<compile_context>
chip_gen: v6e
topology: v6e:2x2x1
jax: 0.10.0
libtpu: 0.0.40
codegen_flags: <defaults>
</compile_context>

<pallas_src>
import functools

import jax
import jax.numpy as jnp
from jax.experimental import pallas as pl
from jax.experimental.pallas import tpu as pltpu

HIDDEN = 1024                 # fixed by nn.LayerNorm(1024) / nn.Linear(1024, 9)
NUM_CLASSES = 9
OUT_PAD = 128                 # lane-dense padded logit width (sliced back to 9)
LORA_RANK = 8
LORA_ALPHA = 2 * LORA_RANK    # as in LoraConfig(lora_alpha=2*lora_rank)
LORA_SCALING = LORA_ALPHA / LORA_RANK
LN_EPS = 1e-5
VOCAB = 128

# TODO(synk): lora_dropout is a no-op at inference time, so it is omitted.
# TODO(synk): the embedding gather (backbone input path) stays a plain JAX
#   gather; fusing it in-kernel via scalar-prefetched input_ids only pays off
#   on v5e-class HBM bandwidth.
# TODO(synk): with B == 1 the single "parallel" axis leaves v7x's second
#   TensorCore idle; splitting W's output columns across cores needs a partial
#   pooled-sum exchange and is left out here.


# ---------------------------------------------------------------------------
# Fused kernel: dense projection + seq-sum, per-batch epilogue does the
# deferred LoRA, mean, LayerNorm(1024) and Linear(1024, 9->128 padded).
# grid = (B, S_pad // ts); batch "parallel", seq "arbitrary" (reduction).
#   x_ref : [1, ts, H] bf16      w_ref : [H, H] bf16
#   a_ref : [H, r] bf16          b_ref : [r, H] bf16 (LoRA scaling pre-folded)
#   g_ref / beta_ref : [1, H] f32   fcw_ref : [H, 128] f32   fcb_ref : [1,128] f32
#   o_ref : [1, 1, 128] f32
#   hacc_ref / xacc_ref : [1, H] f32 VMEM scratch (sum_s h_base, sum_s x)
# ---------------------------------------------------------------------------
def fused_lora_head_kernel(x_ref, w_ref, a_ref, b_ref, g_ref, beta_ref,
                           fcw_ref, fcb_ref, o_ref, hacc_ref, xacc_ref,
                           *, seq_len):
    s = pl.program_id(1)

    @pl.when(s == 0)
    def _init():
        hacc_ref[...] = jnp.zeros_like(hacc_ref)
        xacc_ref[...] = jnp.zeros_like(xacc_ref)

    # Inner loop: only the dense projection hits the MXU; the rank-8 LoRA path
    # is deferred to the per-batch epilogue (it is linear in x).
    x = x_ref[0]                                                       # (ts, H) bf16
    base = jnp.dot(x, w_ref[...], preferred_element_type=jnp.float32)  # (ts, H) f32
    hacc_ref[...] += jnp.sum(base, axis=0, keepdims=True)              # (1, H)
    xacc_ref[...] += jnp.sum(x.astype(jnp.float32), axis=0, keepdims=True)

    @pl.when(s == pl.num_programs(1) - 1)
    def _epilogue():
        # Deferred LoRA on the pooled input: (sum_s x) @ A @ B == sum_s (x@A@B).
        xsum = xacc_ref[...].astype(jnp.bfloat16)                      # (1, H)
        low = jnp.dot(xsum, a_ref[...], preferred_element_type=jnp.float32)
        lora = jnp.dot(low.astype(jnp.bfloat16), b_ref[...],
                       preferred_element_type=jnp.float32)             # (1, H)
        pooled = (hacc_ref[...] + lora) * (1.0 / seq_len)              # mean over dim=1
        # LayerNorm(1024), PyTorch semantics (biased variance).
        mu = jnp.mean(pooled, axis=-1, keepdims=True)
        diff = pooled - mu
        var = jnp.mean(diff * diff, axis=-1, keepdims=True)
        inv = jax.lax.rsqrt(var + LN_EPS)
        normed = diff * inv * g_ref[...] + beta_ref[...]               # (1, H) f32
        # Linear(1024, 9) padded to 128 output lanes -> unmasked, lane-dense store.
        out = jnp.dot(normed, fcw_ref[...],
                      preferred_element_type=jnp.float32) + fcb_ref[...]
        o_ref[0] = out.astype(o_ref.dtype)


def _vmem_capacity_bytes():
    try:
        return int(pltpu.get_tpu_info().vmem_capacity_bytes)
    except Exception:
        return 64 * 1024 * 1024          # conservative: v7x per-TC VMEM


def _choose_seq_tile(seq_len, vmem_bytes):
    # Bigger tiles amortize the ~0.35us per-grid-step overhead; cap by VMEM
    # generation (v7x: 64 MiB -> ts <= 1024; v5e/v6e: 128 MiB -> ts <= 2048).
    max_ts = 2048 if vmem_bytes >= 96 * 1024 * 1024 else 1024
    for ts in (2048, 1024, 512, 256, 128, 64, 32, 16, 8):
        if ts <= max_ts and seq_len >= ts:
            return ts
    return 8


def fused_lora_head(x, w, a, b_scaled, gamma, beta, fc_w, fc_b):
    B, S, H = x.shape
    ts = _choose_seq_tile(S, _vmem_capacity_bytes())
    s_pad = ((S + ts - 1) // ts) * ts
    if s_pad != S:
        # Zero rows contribute 0 to both accumulators (projection is linear);
        # the true S stays the mean divisor inside the kernel.
        x = jnp.pad(x, ((0, 0), (0, s_pad - S), (0, 0)))
    num_s = s_pad // ts

    # Lane-dense head: pad Linear(1024, 9) to 128 output columns.
    fcw_p = jnp.zeros((H, OUT_PAD), jnp.float32).at[:, :NUM_CLASSES].set(
        fc_w.astype(jnp.float32))
    fcb_p = jnp.zeros((1, OUT_PAD), jnp.float32).at[:, :NUM_CLASSES].set(
        fc_b.astype(jnp.float32).reshape(1, NUM_CLASSES))

    # VMEM budget from actual tiles: double-buffered x, (worst-case) double-
    # buffered residents, f32 (ts, H) matmul temp, scratch, headroom.
    x_tile = ts * H * 2
    residents = (H * H + H * LORA_RANK + LORA_RANK * H) * 2 \
        + (2 * H + H * OUT_PAD + OUT_PAD) * 4
    needed = 2 * x_tile + 2 * residents + ts * H * 4 + 2 * H * 4 + (2 << 20)
    vmem_limit = int(min(100 * 2**20, max(24 * 2**20, 2 * needed)))

    m_tokens = B * s_pad
    cost = pl.CostEstimate(
        flops=(2 * m_tokens * H * H            # x @ W (streamed)
               + 2 * B * H * LORA_RANK         # pooled x @ A (per batch)
               + 2 * B * LORA_RANK * H         # (.) @ B (per batch)
               + 2 * B * H * OUT_PAD),         # padded head FC
        transcendentals=B,
        bytes_accessed=int(x.size * x.dtype.itemsize
                           + (H * H + H * LORA_RANK + LORA_RANK * H) * 2
                           + (2 * H + H * OUT_PAD + OUT_PAD) * 4
                           + B * OUT_PAD * 4),
    )

    def build(single_buffer_residents):
        def const_spec(shape):
            index_map = lambda b, s: (0,) * len(shape)
            if single_buffer_residents:
                # Constant index_map => operand never re-fetched; one buffer
                # is enough and frees VMEM (most valuable on v7x's 64 MiB).
                return pl.BlockSpec(shape, index_map, pipeline_mode=pl.Buffered(1))
            return pl.BlockSpec(shape, index_map)

        return pl.pallas_call(
            functools.partial(fused_lora_head_kernel, seq_len=float(S)),
            out_shape=jax.ShapeDtypeStruct((B, 1, OUT_PAD), jnp.float32),
            grid_spec=pltpu.PrefetchScalarGridSpec(
                num_scalar_prefetch=0,
                grid=(B, num_s),
                in_specs=[
                    pl.BlockSpec((1, ts, H), lambda b, s: (b, s, 0)),   # x tile
                    const_spec((H, H)),                                 # W
                    const_spec((H, LORA_RANK)),                         # A
                    const_spec((LORA_RANK, H)),                         # B (scaled)
                    const_spec((1, H)),                                 # ln gamma
                    const_spec((1, H)),                                 # ln beta
                    const_spec((H, OUT_PAD)),                           # fc weight
                    const_spec((1, OUT_PAD)),                           # fc bias
                ],
                # Keep the (b, 0, 0) map constant along s (written only at last step).
                out_specs=pl.BlockSpec((1, 1, OUT_PAD), lambda b, s: (b, 0, 0)),
                scratch_shapes=[pltpu.VMEM((1, H), jnp.float32),        # sum_s h_base
                                pltpu.VMEM((1, H), jnp.float32)],       # sum_s x
            ),
            compiler_params=pltpu.CompilerParams(
                dimension_semantics=("parallel", "arbitrary"),
                vmem_limit_bytes=vmem_limit),
            cost_estimate=cost,
        )

    args = (x, w, a, b_scaled, gamma, beta, fcw_p, fcb_p)
    try:
        out = jax.block_until_ready(build(True)(*args))
    except Exception:
        # Installed jax does not accept pl.Buffered(1) single-buffering; fall
        # back to default double-buffered resident operands.
        out = build(False)(*args)
    return out[:, 0, :NUM_CLASSES]


# ---------------------------------------------------------------------------
# Full forward (synthetic backbone input path + exact fused head)
# ---------------------------------------------------------------------------
def qwen_lora_forward(input_ids, params):
    # Glue: embedding lookup (stand-in for the Qwen backbone input path).
    x = params["embed"][input_ids].astype(jnp.bfloat16)          # [B, S, H] bf16
    w = params["w_proj"].astype(jnp.bfloat16)
    a = params["lora_a"].astype(jnp.bfloat16)
    # Fold the LoRA scalar into B in f32, then cast once (free win; merging
    # W' = W + s*A@B offline would remove the rank-8 dots entirely).
    b_scaled = (LORA_SCALING * params["lora_b"]).astype(jnp.bfloat16)
    return fused_lora_head(x, w, a, b_scaled,
                           params["ln_gamma"], params["ln_beta"],
                           params["fc1_w"], params["fc1_b"])


def init_params(key):
    k = jax.random.split(key, 5)
    return {
        "embed": jax.random.normal(k[0], (VOCAB, HIDDEN), jnp.float32) * 0.02,
        "w_proj": jax.random.normal(k[1], (HIDDEN, HIDDEN), jnp.float32) * 0.02,
        "lora_a": jax.random.normal(k[2], (HIDDEN, LORA_RANK), jnp.float32) * 0.02,
        # PEFT initializes LoRA B to zero; use small nonzero values here so the
        # deferred low-rank path is actually exercised by the check below.
        "lora_b": jax.random.normal(k[3], (LORA_RANK, HIDDEN), jnp.float32) * 0.02,
        "ln_gamma": jnp.ones((1, HIDDEN), jnp.float32),
        "ln_beta": jnp.zeros((1, HIDDEN), jnp.float32),
        "fc1_w": jax.random.normal(k[4], (HIDDEN, NUM_CLASSES), jnp.float32) * 0.02,
        "fc1_b": jax.random.normal(jax.random.fold_in(key, 7),
                                   (1, NUM_CLASSES), jnp.float32) * 0.02,
    }


if __name__ == "__main__":
    key = jax.random.PRNGKey(0)
    params = init_params(key)

    B, S = 2, 8
    input_ids = jax.random.randint(jax.random.PRNGKey(1), (B, S), 0, VOCAB, jnp.int32)

    out = qwen_lora_forward(input_ids, params)
    out = jax.block_until_ready(out)

    # Reference in plain JAX, mirroring the module's ordering (per-token LoRA)
    # with the kernel's bf16 matmul inputs / f32 accumulation.
    x_bf = params["embed"][input_ids].astype(jnp.bfloat16).reshape(B * S, HIDDEN)
    w_bf = params["w_proj"].astype(jnp.bfloat16)
    a_bf = params["lora_a"].astype(jnp.bfloat16)
    b_bf = (LORA_SCALING * params["lora_b"]).astype(jnp.bfloat16)
    base = jnp.dot(x_bf, w_bf, preferred_element_type=jnp.float32)
    low = jnp.dot(x_bf, a_bf, preferred_element_type=jnp.float32)
    lora = jnp.dot(low.astype(jnp.bfloat16), b_bf, preferred_element_type=jnp.float32)
    h_ref = (base + lora).reshape(B, S, HIDDEN)
    pooled = jnp.mean(h_ref, axis=1)
    mu = jnp.mean(pooled, axis=-1, keepdims=True)
    var = jnp.mean((pooled - mu) ** 2, axis=-1, keepdims=True)
    normed = (pooled - mu) / jnp.sqrt(var + LN_EPS) * params["ln_gamma"] + params["ln_beta"]
    ref = normed @ params["fc1_w"] + params["fc1_b"]

    assert out.shape == (B, NUM_CLASSES), out.shape
    assert jnp.allclose(out, ref, atol=5e-3, rtol=5e-3), "mismatch vs reference"
    print("KERNEL_OK")
</pallas_src>

<mosaic_0001>
module attributes {stable_mosaic.version = 11 : i64} {
  func.func @fused_lora_head_kernel(%arg0: i32, %arg1: i32, %arg2: memref<1x8x1024xbf16, #tpu.memory_space<vmem>>, %arg3: memref<1024x1024xbf16, #tpu.memory_space<vmem>>, %arg4: memref<1024x8xbf16, #tpu.memory_space<vmem>>, %arg5: memref<8x1024xbf16, #tpu.memory_space<vmem>>, %arg6: memref<1x1024xf32, #tpu.memory_space<vmem>>, %arg7: memref<1x1024xf32, #tpu.memory_space<vmem>>, %arg8: memref<1024x128xf32, #tpu.memory_space<vmem>>, %arg9: memref<1x128xf32, #tpu.memory_space<vmem>>, %arg10: memref<1x1x128xf32, #tpu.memory_space<vmem>>, %arg11: memref<1x1024xf32, #tpu.memory_space<vmem>>, %arg12: memref<1x1024xf32, #tpu.memory_space<vmem>>) attributes {dimension_semantics = [#tpu.dimension_semantics<parallel>, #tpu.dimension_semantics<arbitrary>], iteration_bounds = array<i64: 2, 1>, scalar_prefetch = 0 : i64, scratch_operands = 2 : i64, tpu.core_type = #tpu.core_type<tc>, window_params = [{transform_indices = @transform_0, window_bounds = array<i64: 1, 8, 1024>}, {pipeline_mode = #tpu.pipeline_mode<synchronous>, transform_indices = @transform_1, window_bounds = array<i64: 1024, 1024>}, {pipeline_mode = #tpu.pipeline_mode<synchronous>, transform_indices = @transform_2, window_bounds = array<i64: 1024, 8>}, {pipeline_mode = #tpu.pipeline_mode<synchronous>, transform_indices = @transform_3, window_bounds = array<i64: 8, 1024>}, {pipeline_mode = #tpu.pipeline_mode<synchronous>, transform_indices = @transform_4, window_bounds = array<i64: 1, 1024>}, {pipeline_mode = #tpu.pipeline_mode<synchronous>, transform_indices = @transform_5, window_bounds = array<i64: 1, 1024>}, {pipeline_mode = #tpu.pipeline_mode<synchronous>, transform_indices = @transform_6, window_bounds = array<i64: 1024, 128>}, {pipeline_mode = #tpu.pipeline_mode<synchronous>, transform_indices = @transform_7, window_bounds = array<i64: 1, 128>}, {transform_indices = @transform_8, window_bounds = array<i64: 1, 1, 128>}]} {
    %c0_i32 = arith.constant 0 : i32
    %0 = arith.cmpi eq, %arg1, %c0_i32 : i32
    %1 = arith.extui %0 : i1 to i32
    %c0_i32_0 = arith.constant 0 : i32
    %2 = arith.cmpi ne, %1, %c0_i32_0 : i32
    scf.if %2 {
      %cst_17 = arith.constant 0.000000e+00 : f32
      %21 = vector.broadcast %cst_17 : f32 to vector<1x1024xf32>
      %c0_18 = arith.constant 0 : index
      %c0_19 = arith.constant 0 : index
      %22 = vector.load %arg11[%c0_18, %c0_19] : memref<1x1024xf32, #tpu.memory_space<vmem>>, vector<1x1024xf32>
      tpu.vector_store %arg11[%c0_18, %c0_19], %21 {strides = array<i32>} : memref<1x1024xf32, #tpu.memory_space<vmem>>, vector<1x1024xf32>,
      %cst_20 = arith.constant 0.000000e+00 : f32
      %23 = vector.broadcast %cst_20 : f32 to vector<1x1024xf32>
      %c0_21 = arith.constant 0 : index
      %c0_22 = arith.constant 0 : index
      %24 = vector.load %arg12[%c0_21, %c0_22] : memref<1x1024xf32, #tpu.memory_space<vmem>>, vector<1x1024xf32>
      tpu.vector_store %arg12[%c0_21, %c0_22], %23 {strides = array<i32>} : memref<1x1024xf32, #tpu.memory_space<vmem>>, vector<1x1024xf32>,
    } else {
    }
    %c0 = arith.constant 0 : index
    %c0_1 = arith.constant 0 : index
    %c0_2 = arith.constant 0 : index
    %3 = vector.load %arg2[%c0, %c0_1, %c0_2] : memref<1x8x1024xbf16, #tpu.memory_space<vmem>>, vector<1x8x1024xbf16>
    %4 = vector.shape_cast %3 : vector<1x8x1024xbf16> to vector<8x1024xbf16>
    %c0_3 = arith.constant 0 : index
    %c0_4 = arith.constant 0 : index
    %5 = vector.load %arg3[%c0_3, %c0_4] : memref<1024x1024xbf16, #tpu.memory_space<vmem>>, vector<1024x1024xbf16>
    %cst = arith.constant dense<0.000000e+00> : vector<8x1024xf32>
    %6 = tpu.matmul %4, %5, %cst {dimension_numbers = #tpu.dot_dimension_numbers<[1], [0], [0], [1], [0, 0, 1, 1], [], []>} : vector<8x1024xbf16>, vector<1024x1024xbf16>, vector<8x1024xf32> -> vector<8x1024xf32>
    %c0_5 = arith.constant 0 : index
    %c0_6 = arith.constant 0 : index
    %7 = vector.load %arg11[%c0_5, %c0_6] : memref<1x1024xf32, #tpu.memory_space<vmem>>, vector<1x1024xf32>
    %cst_7 = arith.constant dense<0.000000e+00> : vector<1024xf32>
    %8 = vector.multi_reduction <add>, %6, %cst_7 [0] : vector<8x1024xf32> to vector<1024xf32>
    %9 = vector.shape_cast %8 : vector<1024xf32> to vector<1x1024xf32>
    %10 = arith.addf %7, %9 : vector<1x1024xf32>
    %c0_8 = arith.constant 0 : index
    %c0_9 = arith.constant 0 : index
    %11 = vector.load %arg11[%c0_8, %c0_9] : memref<1x1024xf32, #tpu.memory_space<vmem>>, vector<1x1024xf32>
    tpu.vector_store %arg11[%c0_8, %c0_9], %10 {strides = array<i32>} : memref<1x1024xf32, #tpu.memory_space<vmem>>, vector<1x1024xf32>,
    %c0_10 = arith.constant 0 : index
    %c0_11 = arith.constant 0 : index
    %12 = vector.load %arg12[%c0_10, %c0_11] : memref<1x1024xf32, #tpu.memory_space<vmem>>, vector<1x1024xf32>
    %13 = arith.extf %4 : vector<8x1024xbf16> to vector<8x1024xf32>
    %cst_12 = arith.constant dense<0.000000e+00> : vector<1024xf32>
    %14 = vector.multi_reduction <add>, %13, %cst_12 [0] : vector<8x1024xf32> to vector<1024xf32>
    %15 = vector.shape_cast %14 : vector<1024xf32> to vector<1x1024xf32>
    %16 = arith.addf %12, %15 : vector<1x1024xf32>
    %c0_13 = arith.constant 0 : index
    %c0_14 = arith.constant 0 : index
    %17 = vector.load %arg12[%c0_13, %c0_14] : memref<1x1024xf32, #tpu.memory_space<vmem>>, vector<1x1024xf32>
    tpu.vector_store %arg12[%c0_13, %c0_14], %16 {strides = array<i32>} : memref<1x1024xf32, #tpu.memory_space<vmem>>, vector<1x1024xf32>,
    %c0_i32_15 = arith.constant 0 : i32
    %18 = arith.cmpi eq, %arg1, %c0_i32_15 : i32
    %19 = arith.extui %18 : i1 to i32
    %c0_i32_16 = arith.constant 0 : i32
    %20 = arith.cmpi ne, %19, %c0_i32_16 : i32
    scf.if %20 {
      %c0_17 = arith.constant 0 : index
      %c0_18 = arith.constant 0 : index
      %21 = vector.load %arg12[%c0_17, %c0_18] : memref<1x1024xf32, #tpu.memory_space<vmem>>, vector<1x1024xf32>
      %22 = arith.truncf %21 : vector<1x1024xf32> to vector<1x1024xbf16>
      %c0_19 = arith.constant 0 : index
      %c0_20 = arith.constant 0 : index
      %23 = vector.load %arg4[%c0_19, %c0_20] : memref<1024x8xbf16, #tpu.memory_space<vmem>>, vector<1024x8xbf16>
      %cst_21 = arith.constant dense<0.000000e+00> : vector<1x8xf32>
      %24 = tpu.matmul %22, %23, %cst_21 {dimension_numbers = #tpu.dot_dimension_numbers<[1], [0], [0], [1], [0, 0, 1, 1], [], []>} : vector<1x1024xbf16>, vector<1024x8xbf16>, vector<1x8xf32> -> vector<1x8xf32>
      %25 = arith.truncf %24 : vector<1x8xf32> to vector<1x8xbf16>
      %c0_22 = arith.constant 0 : index
      %c0_23 = arith.constant 0 : index
      %26 = vector.load %arg5[%c0_22, %c0_23] : memref<8x1024xbf16, #tpu.memory_space<vmem>>, vector<8x1024xbf16>
      %cst_24 = arith.constant dense<0.000000e+00> : vector<1x1024xf32>
      %27 = tpu.matmul %25, %26, %cst_24 {dimension_numbers = #tpu.dot_dimension_numbers<[1], [0], [0], [1], [0, 0, 1, 1], [], []>} : vector<1x8xbf16>, vector<8x1024xbf16>, vector<1x1024xf32> -> vector<1x1024xf32>
      %c0_25 = arith.constant 0 : index
      %c0_26 = arith.constant 0 : index
      %28 = vector.load %arg11[%c0_25, %c0_26] : memref<1x1024xf32, #tpu.memory_space<vmem>>, vector<1x1024xf32>
      %29 = arith.addf %28, %27 : vector<1x1024xf32>
      %cst_27 = arith.constant 1.250000e-01 : f32
      %30 = vector.broadcast %cst_27 : f32 to vector<1x1024xf32>
      %31 = arith.mulf %29, %30 : vector<1x1024xf32>
      %cst_28 = arith.constant dense<0.000000e+00> : vector<1xf32>
      %32 = vector.multi_reduction <add>, %31, %cst_28 [1] : vector<1x1024xf32> to vector<1xf32>
      %33 = vector.shape_cast %32 : vector<1xf32> to vector<1x1xf32>
      %cst_29 = arith.constant 1.024000e+03 : f32
      %34 = vector.broadcast %cst_29 : f32 to vector<1x1xf32>
      %35 = arith.divf %33, %34 : vector<1x1xf32>
      %36 = vector.broadcast %35 : vector<1x1xf32> to vector<1x1024xf32>
      %37 = arith.subf %31, %36 : vector<1x1024xf32>
      %38 = arith.mulf %37, %37 : vector<1x1024xf32>
      %cst_30 = arith.constant dense<0.000000e+00> : vector<1xf32>
      %39 = vector.multi_reduction <add>, %38, %cst_30 [1] : vector<1x1024xf32> to vector<1xf32>
      %40 = vector.shape_cast %39 : vector<1xf32> to vector<1x1xf32>
      %cst_31 = arith.constant 1.024000e+03 : f32
      %41 = vector.broadcast %cst_31 : f32 to vector<1x1xf32>
      %42 = arith.divf %40, %41 : vector<1x1xf32>
      %cst_32 = arith.constant 9.99999974E-6 : f32
      %43 = vector.broadcast %cst_32 : f32 to vector<1x1xf32>
      %44 = arith.addf %42, %43 : vector<1x1xf32>
      %45 = math.rsqrt %44 : vector<1x1xf32>
      %46 = vector.broadcast %45 : vector<1x1xf32> to vector<1x1024xf32>
      %47 = arith.mulf %37, %46 : vector<1x1024xf32>
      %c0_33 = arith.constant 0 : index
      %c0_34 = arith.constant 0 : index
      %48 = vector.load %arg6[%c0_33, %c0_34] : memref<1x1024xf32, #tpu.memory_space<vmem>>, vector<1x1024xf32>
      %49 = arith.mulf %47, %48 : vector<1x1024xf32>
      %c0_35 = arith.constant 0 : index
      %c0_36 = arith.constant 0 : index
      %50 = vector.load %arg7[%c0_35, %c0_36] : memref<1x1024xf32, #tpu.memory_space<vmem>>, vector<1x1024xf32>
      %51 = arith.addf %49, %50 : vector<1x1024xf32>
      %c0_37 = arith.constant 0 : index
      %c0_38 = arith.constant 0 : index
      %52 = vector.load %arg8[%c0_37, %c0_38] : memref<1024x128xf32, #tpu.memory_space<vmem>>, vector<1024x128xf32>
      %cst_39 = arith.constant dense<0.000000e+00> : vector<1x128xf32>
      %53 = tpu.matmul %51, %52, %cst_39 {dimension_numbers = #tpu.dot_dimension_numbers<[1], [0], [0], [1], [0, 0, 1, 1], [], []>} : vector<1x1024xf32>, vector<1024x128xf32>, vector<1x128xf32> -> vector<1x128xf32>
      %c0_40 = arith.constant 0 : index
      %c0_41 = arith.constant 0 : index
      %54 = vector.load %arg9[%c0_40, %c0_41] : memref<1x128xf32, #tpu.memory_space<vmem>>, vector<1x128xf32>
      %55 = arith.addf %53, %54 : vector<1x128xf32>
      %c0_42 = arith.constant 0 : index
      %c0_43 = arith.constant 0 : index
      %c0_44 = arith.constant 0 : index
      %56 = vector.load %arg10[%c0_42, %c0_43, %c0_44] : memref<1x1x128xf32, #tpu.memory_space<vmem>>, vector<1x1x128xf32>
      %57 = vector.shape_cast %56 : vector<1x1x128xf32> to vector<1x128xf32>
      %58 = vector.shape_cast %55 : vector<1x128xf32> to vector<1x1x128xf32>
      tpu.vector_store %arg10[%c0_42, %c0_43, %c0_44], %58 {strides = array<i32>} : memref<1x1x128xf32, #tpu.memory_space<vmem>>, vector<1x1x128xf32>,
    } else {
    }
    return
  }
  func.func @transform_0(%arg0: i32, %arg1: i32) -> (i32, i32, i32) {
    %c0_i32 = arith.constant 0 : i32
    %c0_i32_0 = arith.constant 0 : i32
    return %arg0, %arg1, %c0_i32 : i32, i32, i32
  }
  func.func @transform_1(%arg0: i32, %arg1: i32) -> (i32, i32) {
    %c0_i32 = arith.constant 0 : i32
    %c0_i32_0 = arith.constant 0 : i32
    %c0_i32_1 = arith.constant 0 : i32
    return %c0_i32, %c0_i32_0 : i32, i32
  }
  func.func @transform_2(%arg0: i32, %arg1: i32) -> (i32, i32) {
    %c0_i32 = arith.constant 0 : i32
    %c0_i32_0 = arith.constant 0 : i32
    %c0_i32_1 = arith.constant 0 : i32
    return %c0_i32, %c0_i32_0 : i32, i32
  }
  func.func @transform_3(%arg0: i32, %arg1: i32) -> (i32, i32) {
    %c0_i32 = arith.constant 0 : i32
    %c0_i32_0 = arith.constant 0 : i32
    %c0_i32_1 = arith.constant 0 : i32
    return %c0_i32, %c0_i32_0 : i32, i32
  }
  func.func @transform_4(%arg0: i32, %arg1: i32) -> (i32, i32) {
    %c0_i32 = arith.constant 0 : i32
    %c0_i32_0 = arith.constant 0 : i32
    %c0_i32_1 = arith.constant 0 : i32
    return %c0_i32, %c0_i32_0 : i32, i32
  }
  func.func @transform_5(%arg0: i32, %arg1: i32) -> (i32, i32) {
    %c0_i32 = arith.constant 0 : i32
    %c0_i32_0 = arith.constant 0 : i32
    %c0_i32_1 = arith.constant 0 : i32
    return %c0_i32, %c0_i32_0 : i32, i32
  }
  func.func @transform_6(%arg0: i32, %arg1: i32) -> (i32, i32) {
    %c0_i32 = arith.constant 0 : i32
    %c0_i32_0 = arith.constant 0 : i32
    %c0_i32_1 = arith.constant 0 : i32
    return %c0_i32, %c0_i32_0 : i32, i32
  }
  func.func @transform_7(%arg0: i32, %arg1: i32) -> (i32, i32) {
    %c0_i32 = arith.constant 0 : i32
    %c0_i32_0 = arith.constant 0 : i32
    %c0_i32_1 = arith.constant 0 : i32
    return %c0_i32, %c0_i32_0 : i32, i32
  }
  func.func @transform_8(%arg0: i32, %arg1: i32) -> (i32, i32, i32) {
    %c0_i32 = arith.constant 0 : i32
    %c0_i32_0 = arith.constant 0 : i32
    %c0_i32_1 = arith.constant 0 : i32
    return %arg0, %c0_i32, %c0_i32_0 : i32, i32, i32
  }
}

module attributes {stable_mosaic.version = 11 : i64} {
  func.func @fused_lora_head_kernel(%arg0: i32, %arg1: i32, %arg2: memref<1x8x1024xbf16, #tpu.memory_space<vmem>>, %arg3: memref<1024x1024xbf16, #tpu.memory_space<vmem>>, %arg4: memref<1024x8xbf16, #tpu.memory_space<vmem>>, %arg5: memref<8x1024xbf16, #tpu.memory_space<vmem>>, %arg6: memref<1x1024xf32, #tpu.memory_space<vmem>>, %arg7: memref<1x1024xf32, #tpu.memory_space<vmem>>, %arg8: memref<1024x128xf32, #tpu.memory_space<vmem>>, %arg9: memref<1x128xf32, #tpu.memory_space<vmem>>, %arg10: memref<1x1x128xf32, #tpu.memory_space<vmem>>, %arg11: memref<1x1024xf32, #tpu.memory_space<vmem>>, %arg12: memref<1x1024xf32, #tpu.memory_space<vmem>>) attributes {dimension_semantics = [#tpu.dimension_semantics<parallel>, #tpu.dimension_semantics<arbitrary>], iteration_bounds = array<i64: 2, 1>, scalar_prefetch = 0 : i64, scratch_operands = 2 : i64, tpu.core_type = #tpu.core_type<tc>, window_params = [{transform_indices = @transform_0, window_bounds = array<i64: 1, 8, 1024>}, {pipeline_mode = #tpu.pipeline_mode<synchronous>, transform_indices = @transform_1, window_bounds = array<i64: 1024, 1024>}, {pipeline_mode = #tpu.pipeline_mode<synchronous>, transform_indices = @transform_2, window_bounds = array<i64: 1024, 8>}, {pipeline_mode = #tpu.pipeline_mode<synchronous>, transform_indices = @transform_3, window_bounds = array<i64: 8, 1024>}, {pipeline_mode = #tpu.pipeline_mode<synchronous>, transform_indices = @transform_4, window_bounds = array<i64: 1, 1024>}, {pipeline_mode = #tpu.pipeline_mode<synchronous>, transform_indices = @transform_5, window_bounds = array<i64: 1, 1024>}, {pipeline_mode = #tpu.pipeline_mode<synchronous>, transform_indices = @transform_6, window_bounds = array<i64: 1024, 128>}, {pipeline_mode = #tpu.pipeline_mode<synchronous>, transform_indices = @transform_7, window_bounds = array<i64: 1, 128>}, {transform_indices = @transform_8, window_bounds = array<i64: 1, 1, 128>}]} {
    %c0_i32 = arith.constant 0 : i32
    %0 = arith.cmpi eq, %arg1, %c0_i32 : i32
    %1 = arith.extui %0 : i1 to i32
    %c0_i32_0 = arith.constant 0 : i32
    %2 = arith.cmpi ne, %1, %c0_i32_0 : i32
    scf.if %2 {
      %cst_17 = arith.constant 0.000000e+00 : f32
      %21 = vector.broadcast %cst_17 : f32 to vector<1x1024xf32>
      %c0_18 = arith.constant 0 : index
      %c0_19 = arith.constant 0 : index
      %22 = vector.load %arg11[%c0_18, %c0_19] : memref<1x1024xf32, #tpu.memory_space<vmem>>, vector<1x1024xf32>
      tpu.vector_store %arg11[%c0_18, %c0_19], %21 {strides = array<i32>} : memref<1x1024xf32, #tpu.memory_space<vmem>>, vector<1x1024xf32>,
      %cst_20 = arith.constant 0.000000e+00 : f32
      %23 = vector.broadcast %cst_20 : f32 to vector<1x1024xf32>
      %c0_21 = arith.constant 0 : index
      %c0_22 = arith.constant 0 : index
      %24 = vector.load %arg12[%c0_21, %c0_22] : memref<1x1024xf32, #tpu.memory_space<vmem>>, vector<1x1024xf32>
      tpu.vector_store %arg12[%c0_21, %c0_22], %23 {strides = array<i32>} : memref<1x1024xf32, #tpu.memory_space<vmem>>, vector<1x1024xf32>,
    } else {
    }
    %c0 = arith.constant 0 : index
    %c0_1 = arith.constant 0 : index
    %c0_2 = arith.constant 0 : index
    %3 = vector.load %arg2[%c0, %c0_1, %c0_2] : memref<1x8x1024xbf16, #tpu.memory_space<vmem>>, vector<1x8x1024xbf16>
    %4 = vector.shape_cast %3 : vector<1x8x1024xbf16> to vector<8x1024xbf16>
    %c0_3 = arith.constant 0 : index
    %c0_4 = arith.constant 0 : index
    %5 = vector.load %arg3[%c0_3, %c0_4] : memref<1024x1024xbf16, #tpu.memory_space<vmem>>, vector<1024x1024xbf16>
    %cst = arith.constant dense<0.000000e+00> : vector<8x1024xf32>
    %6 = tpu.matmul %4, %5, %cst {dimension_numbers = #tpu.dot_dimension_numbers<[1], [0], [0], [1], [0, 0, 1, 1], [], []>} : vector<8x1024xbf16>, vector<1024x1024xbf16>, vector<8x1024xf32> -> vector<8x1024xf32>
    %c0_5 = arith.constant 0 : index
    %c0_6 = arith.constant 0 : index
    %7 = vector.load %arg11[%c0_5, %c0_6] : memref<1x1024xf32, #tpu.memory_space<vmem>>, vector<1x1024xf32>
    %cst_7 = arith.constant dense<0.000000e+00> : vector<1024xf32>
    %8 = vector.multi_reduction <add>, %6, %cst_7 [0] : vector<8x1024xf32> to vector<1024xf32>
    %9 = vector.shape_cast %8 : vector<1024xf32> to vector<1x1024xf32>
    %10 = arith.addf %7, %9 : vector<1x1024xf32>
    %c0_8 = arith.constant 0 : index
    %c0_9 = arith.constant 0 : index
    %11 = vector.load %arg11[%c0_8, %c0_9] : memref<1x1024xf32, #tpu.memory_space<vmem>>, vector<1x1024xf32>
    tpu.vector_store %arg11[%c0_8, %c0_9], %10 {strides = array<i32>} : memref<1x1024xf32, #tpu.memory_space<vmem>>, vector<1x1024xf32>,
    %c0_10 = arith.constant 0 : index
    %c0_11 = arith.constant 0 : index
    %12 = vector.load %arg12[%c0_10, %c0_11] : memref<1x1024xf32, #tpu.memory_space<vmem>>, vector<1x1024xf32>
    %13 = arith.extf %4 : vector<8x1024xbf16> to vector<8x1024xf32>
    %cst_12 = arith.constant dense<0.000000e+00> : vector<1024xf32>
    %14 = vector.multi_reduction <add>, %13, %cst_12 [0] : vector<8x1024xf32> to vector<1024xf32>
    %15 = vector.shape_cast %14 : vector<1024xf32> to vector<1x1024xf32>
    %16 = arith.addf %12, %15 : vector<1x1024xf32>
    %c0_13 = arith.constant 0 : index
    %c0_14 = arith.constant 0 : index
    %17 = vector.load %arg12[%c0_13, %c0_14] : memref<1x1024xf32, #tpu.memory_space<vmem>>, vector<1x1024xf32>
    tpu.vector_store %arg12[%c0_13, %c0_14], %16 {strides = array<i32>} : memref<1x1024xf32, #tpu.memory_space<vmem>>, vector<1x1024xf32>,
    %c0_i32_15 = arith.constant 0 : i32
    %18 = arith.cmpi eq, %arg1, %c0_i32_15 : i32
    %19 = arith.extui %18 : i1 to i32
    %c0_i32_16 = arith.constant 0 : i32
    %20 = arith.cmpi ne, %19, %c0_i32_16 : i32
    scf.if %20 {
      %c0_17 = arith.constant 0 : index
      %c0_18 = arith.constant 0 : index
      %21 = vector.load %arg12[%c0_17, %c0_18] : memref<1x1024xf32, #tpu.memory_space<vmem>>, vector<1x1024xf32>
      %22 = arith.truncf %21 : vector<1x1024xf32> to vector<1x1024xbf16>
      %c0_19 = arith.constant 0 : index
      %c0_20 = arith.constant 0 : index
      %23 = vector.load %arg4[%c0_19, %c0_20] : memref<1024x8xbf16, #tpu.memory_space<vmem>>, vector<1024x8xbf16>
      %cst_21 = arith.constant dense<0.000000e+00> : vector<1x8xf32>
      %24 = tpu.matmul %22, %23, %cst_21 {dimension_numbers = #tpu.dot_dimension_numbers<[1], [0], [0], [1], [0, 0, 1, 1], [], []>} : vector<1x1024xbf16>, vector<1024x8xbf16>, vector<1x8xf32> -> vector<1x8xf32>
      %25 = arith.truncf %24 : vector<1x8xf32> to vector<1x8xbf16>
      %c0_22 = arith.constant 0 : index
      %c0_23 = arith.constant 0 : index
      %26 = vector.load %arg5[%c0_22, %c0_23] : memref<8x1024xbf16, #tpu.memory_space<vmem>>, vector<8x1024xbf16>
      %cst_24 = arith.constant dense<0.000000e+00> : vector<1x1024xf32>
      %27 = tpu.matmul %25, %26, %cst_24 {dimension_numbers = #tpu.dot_dimension_numbers<[1], [0], [0], [1], [0, 0, 1, 1], [], []>} : vector<1x8xbf16>, vector<8x1024xbf16>, vector<1x1024xf32> -> vector<1x1024xf32>
      %c0_25 = arith.constant 0 : index
      %c0_26 = arith.constant 0 : index
      %28 = vector.load %arg11[%c0_25, %c0_26] : memref<1x1024xf32, #tpu.memory_space<vmem>>, vector<1x1024xf32>
      %29 = arith.addf %28, %27 : vector<1x1024xf32>
      %cst_27 = arith.constant 1.250000e-01 : f32
      %30 = vector.broadcast %cst_27 : f32 to vector<1x1024xf32>
      %31 = arith.mulf %29, %30 : vector<1x1024xf32>
      %cst_28 = arith.constant dense<0.000000e+00> : vector<1xf32>
      %32 = vector.multi_reduction <add>, %31, %cst_28 [1] : vector<1x1024xf32> to vector<1xf32>
      %33 = vector.shape_cast %32 : vector<1xf32> to vector<1x1xf32>
      %cst_29 = arith.constant 1.024000e+03 : f32
      %34 = vector.broadcast %cst_29 : f32 to vector<1x1xf32>
      %35 = arith.divf %33, %34 : vector<1x1xf32>
      %36 = vector.broadcast %35 : vector<1x1xf32> to vector<1x1024xf32>
      %37 = arith.subf %31, %36 : vector<1x1024xf32>
      %38 = arith.mulf %37, %37 : vector<1x1024xf32>
      %cst_30 = arith.constant dense<0.000000e+00> : vector<1xf32>
      %39 = vector.multi_reduction <add>, %38, %cst_30 [1] : vector<1x1024xf32> to vector<1xf32>
      %40 = vector.shape_cast %39 : vector<1xf32> to vector<1x1xf32>
      %cst_31 = arith.constant 1.024000e+03 : f32
      %41 = vector.broadcast %cst_31 : f32 to vector<1x1xf32>
      %42 = arith.divf %40, %41 : vector<1x1xf32>
      %cst_32 = arith.constant 9.99999974E-6 : f32
      %43 = vector.broadcast %cst_32 : f32 to vector<1x1xf32>
      %44 = arith.addf %42, %43 : vector<1x1xf32>
      %45 = math.rsqrt %44 : vector<1x1xf32>
      %46 = vector.broadcast %45 : vector<1x1xf32> to vector<1x1024xf32>
      %47 = arith.mulf %37, %46 : vector<1x1024xf32>
      %c0_33 = arith.constant 0 : index
      %c0_34 = arith.constant 0 : index
      %48 = vector.load %arg6[%c0_33, %c0_34] : memref<1x1024xf32, #tpu.memory_space<vmem>>, vector<1x1024xf32>
      %49 = arith.mulf %47, %48 : vector<1x1024xf32>
      %c0_35 = arith.constant 0 : index
      %c0_36 = arith.constant 0 : index
      %50 = vector.load %arg7[%c0_35, %c0_36] : memref<1x1024xf32, #tpu.memory_space<vmem>>, vector<1x1024xf32>
      %51 = arith.addf %49, %50 : vector<1x1024xf32>
      %c0_37 = arith.constant 0 : index
      %c0_38 = arith.constant 0 : index
      %52 = vector.load %arg8[%c0_37, %c0_38] : memref<1024x128xf32, #tpu.memory_space<vmem>>, vector<1024x128xf32>
      %cst_39 = arith.constant dense<0.000000e+00> : vector<1x128xf32>
      %53 = tpu.matmul %51, %52, %cst_39 {dimension_numbers = #tpu.dot_dimension_numbers<[1], [0], [0], [1], [0, 0, 1, 1], [], []>} : vector<1x1024xf32>, vector<1024x128xf32>, vector<1x128xf32> -> vector<1x128xf32>
      %c0_40 = arith.constant 0 : index
      %c0_41 = arith.constant 0 : index
      %54 = vector.load %arg9[%c0_40, %c0_41] : memref<1x128xf32, #tpu.memory_space<vmem>>, vector<1x128xf32>
      %55 = arith.addf %53, %54 : vector<1x128xf32>
      %c0_42 = arith.constant 0 : index
      %c0_43 = arith.constant 0 : index
      %c0_44 = arith.constant 0 : index
      %56 = vector.load %arg10[%c0_42, %c0_43, %c0_44] : memref<1x1x128xf32, #tpu.memory_space<vmem>>, vector<1x1x128xf32>
      %57 = vector.shape_cast %56 : vector<1x1x128xf32> to vector<1x128xf32>
      %58 = vector.shape_cast %55 : vector<1x128xf32> to vector<1x1x128xf32>
      tpu.vector_store %arg10[%c0_42, %c0_43, %c0_44], %58 {strides = array<i32>} : memref<1x1x128xf32, #tpu.memory_space<vmem>>, vector<1x1x128xf32>,
    } else {
    }
    return
  }
  func.func @transform_0(%arg0: i32, %arg1: i32) -> (i32, i32, i32) {
    %c0_i32 = arith.constant 0 : i32
    %c0_i32_0 = arith.constant 0 : i32
    return %arg0, %arg1, %c0_i32 : i32, i32, i32
  }
  func.func @transform_1(%arg0: i32, %arg1: i32) -> (i32, i32) {
    %c0_i32 = arith.constant 0 : i32
    %c0_i32_0 = arith.constant 0 : i32
    %c0_i32_1 = arith.constant 0 : i32
    return %c0_i32, %c0_i32_0 : i32, i32
  }
  func.func @transform_2(%arg0: i32, %arg1: i32) -> (i32, i32) {
    %c0_i32 = arith.constant 0 : i32
    %c0_i32_0 = arith.constant 0 : i32
    %c0_i32_1 = arith.constant 0 : i32
    return %c0_i32, %c0_i32_0 : i32, i32
  }
  func.func @transform_3(%arg0: i32, %arg1: i32) -> (i32, i32) {
    %c0_i32 = arith.constant 0 : i32
    %c0_i32_0 = arith.constant 0 : i32
    %c0_i32_1 = arith.constant 0 : i32
    return %c0_i32, %c0_i32_0 : i32, i32
  }
  func.func @transform_4(%arg0: i32, %arg1: i32) -> (i32, i32) {
    %c0_i32 = arith.constant 0 : i32
    %c0_i32_0 = arith.constant 0 : i32
    %c0_i32_1 = arith.constant 0 : i32
    return %c0_i32, %c0_i32_0 : i32, i32
  }
  func.func @transform_5(%arg0: i32, %arg1: i32) -> (i32, i32) {
    %c0_i32 = arith.constant 0 : i32
    %c0_i32_0 = arith.constant 0 : i32
    %c0_i32_1 = arith.constant 0 : i32
    return %c0_i32, %c0_i32_0 : i32, i32
  }
  func.func @transform_6(%arg0: i32, %arg1: i32) -> (i32, i32) {
    %c0_i32 = arith.constant 0 : i32
    %c0_i32_0 = arith.constant 0 : i32
    %c0_i32_1 = arith.constant 0 : i32
    return %c0_i32, %c0_i32_0 : i32, i32
  }
  func.func @transform_7(%arg0: i32, %arg1: i32) -> (i32, i32) {
    %c0_i32 = arith.constant 0 : i32
    %c0_i32_0 = arith.constant 0 : i32
    %c0_i32_1 = arith.constant 0 : i32
    return %c0_i32, %c0_i32_0 : i32, i32
  }
  func.func @transform_8(%arg0: i32, %arg1: i32) -> (i32, i32, i32) {
    %c0_i32 = arith.constant 0 : i32
    %c0_i32_0 = arith.constant 0 : i32
    %c0_i32_1 = arith.constant 0 : i32
    return %arg0, %c0_i32, %c0_i32_0 : i32, i32, i32
  }
}

</mosaic_0001>

<llo_original>
// kernel: tpu_custom_call.1
$region0: #{tpu_custom_call.1}
  #allocation0 [shape = 'u32[]', space=smem, size = 0x4, offset = 0x4, fixed_abs, tag = 'smem constant byte address 0x4 - core index']
  #allocation1 [shape = 'u32[144,128]{1,0:T(1,128)}', space=vmem, size = 0x12000, scoped, tag = 'internal scratch']
  #allocation2 [shape = 'f32[1,1024]{1,0:T(1,128)}', space=vmem, size = 0x1000, scoped, tag = 'scratch operand']
  #allocation3 [shape = 'f32[1,1024]{1,0:T(1,128)}', space=vmem, size = 0x1000, scoped, tag = 'scratch operand']
  %s0 = inlined_call_operand.hbm [shape: bf16[2,8,1024], index: 0, kind: input, shape index: {}]
  %s1 = inlined_call_operand.hbm [shape: bf16[1024,1024], index: 1, kind: input, shape index: {}]
  %s2 = inlined_call_operand.vmem [shape: bf16[1024,8], index: 2, kind: input, shape index: {}]
  %s3 = inlined_call_operand.hbm [shape: bf16[8,1024], index: 3, kind: input, shape index: {}]
  %s4 = inlined_call_operand.hbm [shape: f32[1,1024], index: 4, kind: input, shape index: {}]
  %s5 = inlined_call_operand.hbm [shape: f32[1,1024], index: 5, kind: input, shape index: {}]
  %s6 = inlined_call_operand.hbm [shape: f32[1024,128], index: 6, kind: input, shape index: {}]
  %s7 = inlined_call_operand.hbm [shape: f32[1,128], index: 7, kind: input, shape index: {}]
  %s8 = inlined_call_operand.hbm [shape: f32[2,1,128], index: 8, kind: output, shape index: {}]
  %s9 = sld [smem:[#allocation0]]
  $region101: #{tpu_custom_call.1} parent=0
    _
  %s11 = ssub.s32 1, %s9
  %s12 = scalar_select 0, %s11, %s9
  $region1: #{tpu_custom_call.1} parent=0
    #allocation4 [shape = 'u8[32768]{0}', space=vmem, size = 0x8000, scoped, tag = 'input window, operand 0']
    #allocation5 [shape = 's32[2]{0}', space=sflag, size = 0x8, scoped, tag = 'scoped memory for tpu_custom_call.1']
    #allocation6 [shape = 's32[2]{0}', space=sflag, size = 0x8, scoped, tag = 'scoped memory for tpu_custom_call.1']
    #allocation7 [shape = 'u8[2097152]{0}', space=vmem, size = 0x200000, scoped, tag = 'input window, operand 1, single buffered']
    #allocation8 [shape = 's32[1]{0}', space=sflag, size = 0x4, scoped, tag = 'scoped memory for tpu_custom_call.1']
    #allocation9 [shape = 'u8[16384]{0}', space=vmem, size = 0x4000, scoped, tag = 'input window, operand 3, single buffered']
    #allocation10 [shape = 'u8[4096]{0}', space=vmem, size = 0x1000, scoped, tag = 'input window, operand 4, single buffered']
    #allocation11 [shape = 's32[1]{0}', space=sflag, size = 0x4, scoped, tag = 'scoped memory for tpu_custom_call.1']
    #allocation12 [shape = 'u8[4096]{0}', space=vmem, size = 0x1000, scoped, tag = 'input window, operand 5, single buffered']
    #allocation13 [shape = 'u8[524288]{0}', space=vmem, size = 0x80000, scoped, tag = 'input window, operand 6, single buffered']
    #allocation14 [shape = 's32[1]{0}', space=sflag, size = 0x4, scoped, tag = 'scoped memory for tpu_custom_call.1']
    #allocation15 [shape = 'u8[512]{0}', space=vmem, size = 0x400, scoped, tag = 'input window, operand 7, single buffered']
    #allocation16 [shape = 'u8[1024]{0}', space=vmem, size = 0x400, scoped, tag = 'output window, operand 0']
    %13 = vsyncpa [#allocation5], 0
    %s14 = scalar_lea.sflag [#allocation5], 1
    %15 = vsyncpa %s14, 0
    %16 = vsyncpa [#allocation8], 0
    %17 = vsyncpa [#allocation11], 0
    %18 = vsyncpa [#allocation14], 0
    %19 = vsyncpa [#allocation6], 0
    %s20 = scalar_lea.sflag [#allocation6], 1
    %21 = vsyncpa %s20, 0
    loop: start=0, step=1, limit=4
    $region2: #{tpu_custom_call.1} parent=1 // loop_pre_header
      _
    $region3: #{tpu_custom_call.1} parent=1 // loop_header
      %s23 = sphi 0, %s27
      %p24 = scmp.ge.s32.totalorder %s23, 4
      %s30 = sphi 0, %s42
      %s31 = sphi 0, %s38
      %s32 = sphi 0, %s30
      %s33 = sphi 0, %s31
      %s34 = sphi 0, %s32
      %s35 = sphi 0, %s33
      %s47 = sphi 0, %s49
      %s50 = sphi 0, %s47
      %s51 = sphi 0, %s50
      %s67 = sphi 0, %s51
      %s71 = sphi 0, %s71
      %s73 = sphi 0, %s71
      %s74 = sphi 0, %s73
      %s88 = sphi 0, %s74
      %s92 = sphi 0, %s92
      %s94 = sphi 0, %s92
      %s95 = sphi 0, %s94
      %s109 = sphi 0, %s95
      %s113 = sphi 0, %s113
      %s115 = sphi 0, %s113
      %s116 = sphi 0, %s115
      %s130 = sphi 0, %s116
      %s134 = sphi 0, %s134
      %s136 = sphi 0, %s134
      %s137 = sphi 0, %s136
      %s151 = sphi 0, %s137
      %s155 = sphi 0, %s155
      %s157 = sphi 0, %s155
      %s158 = sphi 0, %s157
      %s172 = sphi 0, %s158
      %s176 = sphi 0, %s176
      %s178 = sphi 0, %s176
      %s179 = sphi 0, %s178
      %s193 = sphi 0, %s179
      %s197 = sphi 0, %s197
      %s199 = sphi 0, %s197
      %s200 = sphi 0, %s199
      %s214 = sphi 0, %s200
      %s220 = sphi 0, %s222
      %s223 = sphi 0, %s220
      %s224 = sphi 0, %s223
      %s240 = sphi 0, %s224
    $region4: #{tpu_custom_call.1} parent=1 // loop_header_branch
      %26 = sbr.rel (%p24) target = $region8
    $region5: #{tpu_custom_call.1} parent=1 // loop_body
      %s28 = ssub.s32 %s23, 1
      %s29 = ssub.s32 %s23, 2
      %s36 = sadd.s32 1, %s31
      %p37 = scmp.ge.s32.totalorder %s36, 1
      %s38 = scalar_select %p37, 0, %s36
      %s39 = sadd.s32 1, %s30
      %s40 = scalar_select %p37, %s39, %s30
      %p41 = scmp.ge.s32.totalorder %s40, 2
      %s42 = scalar_select %p41, 0, %s40
      %s43 = ssub.s32 %s30, %s42
      %s44 = ssub.s32 %s31, %s38
      %s45 = sor.u32 %s43, %s44
      %p46 = scmp.eq.s32.totalorder %s45, 0
      %s48 = sadd.s32 %s47, 1
      %s49 = scalar_select %p46, %s47, %s48
      %p52 = pneg %p46
      %p53 = scmp.eq.s32.totalorder %s23, 1
      %p54 = por %p52, %p53
      %p55 = scmp.ne.s32.totalorder %s47, %s50
      %p56 = scmp.eq.s32.totalorder %s23, 0
      %p57 = por %p55, %p56
      %p58 = scmp.ne.s32.totalorder %s47, %s50
      %p59 = scmp.eq.s32.totalorder %s28, 1
      %p60 = por %p58, %p59
      %p61 = scmp.ne.s32.totalorder %s50, %s51
      %p62 = scmp.eq.s32.totalorder %s28, 0
      %p63 = por %p61, %p62
      %p64 = scmp.ne.s32.totalorder %s50, %s51
      %p65 = scmp.eq.s32.totalorder %s29, 1
      %p66 = por %p64, %p65
      %p68 = scmp.ne.s32.totalorder %s51, %s67
      %p69 = scmp.eq.s32.totalorder %s29, 0
      %p70 = por %p68, %p69
      %s72 = sadd.s32 %s71, 1
      %p75 = scmp.eq.s32.totalorder %s23, 1
      %p76 = scmp.ne.s32.totalorder %s71, %s73
      %p77 = scmp.eq.s32.totalorder %s23, 0
      %p78 = por %p76, %p77
      %p79 = scmp.ne.s32.totalorder %s71, %s73
      %p80 = scmp.eq.s32.totalorder %s28, 1
      %p81 = por %p79, %p80
      %p82 = scmp.ne.s32.totalorder %s73, %s74
      %p83 = scmp.eq.s32.totalorder %s28, 0
      %p84 = por %p82, %p83
      %p85 = scmp.ne.s32.totalorder %s73, %s74
      %p86 = scmp.eq.s32.totalorder %s29, 1
      %p87 = por %p85, %p86
      %p89 = scmp.ne.s32.totalorder %s74, %s88
      %p90 = scmp.eq.s32.totalorder %s29, 0
      %p91 = por %p89, %p90
      %s93 = sadd.s32 %s92, 1
      %p96 = scmp.eq.s32.totalorder %s23, 1
      %p97 = scmp.ne.s32.totalorder %s92, %s94
      %p98 = scmp.eq.s32.totalorder %s23, 0
      %p99 = por %p97, %p98
      %p100 = scmp.ne.s32.totalorder %s92, %s94
      %p101 = scmp.eq.s32.totalorder %s28, 1
      %p102 = por %p100, %p101
      %p103 = scmp.ne.s32.totalorder %s94, %s95
      %p104 = scmp.eq.s32.totalorder %s28, 0
      %p105 = por %p103, %p104
      %p106 = scmp.ne.s32.totalorder %s94, %s95
      %p107 = scmp.eq.s32.totalorder %s29, 1
      %p108 = por %p106, %p107
      %p110 = scmp.ne.s32.totalorder %s95, %s109
      %p111 = scmp.eq.s32.totalorder %s29, 0
      %p112 = por %p110, %p111
      %s114 = sadd.s32 %s113, 1
      %p117 = scmp.eq.s32.totalorder %s23, 1
      %p118 = scmp.ne.s32.totalorder %s113, %s115
      %p119 = scmp.eq.s32.totalorder %s23, 0
      %p120 = por %p118, %p119
      %p121 = scmp.ne.s32.totalorder %s113, %s115
      %p122 = scmp.eq.s32.totalorder %s28, 1
      %p123 = por %p121, %p122
      %p124 = scmp.ne.s32.totalorder %s115, %s116
      %p125 = scmp.eq.s32.totalorder %s28, 0
      %p126 = por %p124, %p125
      %p127 = scmp.ne.s32.totalorder %s115, %s116
      %p128 = scmp.eq.s32.totalorder %s29, 1
      %p129 = por %p127, %p128
      %p131 = scmp.ne.s32.totalorder %s116, %s130
      %p132 = scmp.eq.s32.totalorder %s29, 0
      %p133 = por %p131, %p132
      %s135 = sadd.s32 %s134, 1
      %p138 = scmp.eq.s32.totalorder %s23, 1
      %p139 = scmp.ne.s32.totalorder %s134, %s136
      %p140 = scmp.eq.s32.totalorder %s23, 0
      %p141 = por %p139, %p140
      %p142 = scmp.ne.s32.totalorder %s134, %s136
      %p143 = scmp.eq.s32.totalorder %s28, 1
      %p144 = por %p142, %p143
      %p145 = scmp.ne.s32.totalorder %s136, %s137
      %p146 = scmp.eq.s32.totalorder %s28, 0
      %p147 = por %p145, %p146
      %p148 = scmp.ne.s32.totalorder %s136, %s137
      %p149 = scmp.eq.s32.totalorder %s29, 1
      %p150 = por %p148, %p149
      %p152 = scmp.ne.s32.totalorder %s137, %s151
      %p153 = scmp.eq.s32.totalorder %s29, 0
      %p154 = por %p152, %p153
      %s156 = sadd.s32 %s155, 1
      %p159 = scmp.eq.s32.totalorder %s23, 1
      %p160 = scmp.ne.s32.totalorder %s155, %s157
      %p161 = scmp.eq.s32.totalorder %s23, 0
      %p162 = por %p160, %p161
      %p163 = scmp.ne.s32.totalorder %s155, %s157
      %p164 = scmp.eq.s32.totalorder %s28, 1
      %p165 = por %p163, %p164
      %p166 = scmp.ne.s32.totalorder %s157, %s158
      %p167 = scmp.eq.s32.totalorder %s28, 0
      %p168 = por %p166, %p167
      %p169 = scmp.ne.s32.totalorder %s157, %s158
      %p170 = scmp.eq.s32.totalorder %s29, 1
      %p171 = por %p169, %p170
      %p173 = scmp.ne.s32.totalorder %s158, %s172
      %p174 = scmp.eq.s32.totalorder %s29, 0
      %p175 = por %p173, %p174
      %s177 = sadd.s32 %s176, 1
      %p180 = scmp.eq.s32.totalorder %s23, 1
      %p181 = scmp.ne.s32.totalorder %s176, %s178
      %p182 = scmp.eq.s32.totalorder %s23, 0
      %p183 = por %p181, %p182
      %p184 = scmp.ne.s32.totalorder %s176, %s178
      %p185 = scmp.eq.s32.totalorder %s28, 1
      %p186 = por %p184, %p185
      %p187 = scmp.ne.s32.totalorder %s178, %s179
      %p188 = scmp.eq.s32.totalorder %s28, 0
      %p189 = por %p187, %p188
      %p190 = scmp.ne.s32.totalorder %s178, %s179
      %p191 = scmp.eq.s32.totalorder %s29, 1
      %p192 = por %p190, %p191
      %p194 = scmp.ne.s32.totalorder %s179, %s193
      %p195 = scmp.eq.s32.totalorder %s29, 0
      %p196 = por %p194, %p195
      %s198 = sadd.s32 %s197, 1
      %p201 = scmp.eq.s32.totalorder %s23, 1
      %p202 = scmp.ne.s32.totalorder %s197, %s199
      %p203 = scmp.eq.s32.totalorder %s23, 0
      %p204 = por %p202, %p203
      %p205 = scmp.ne.s32.totalorder %s197, %s199
      %p206 = scmp.eq.s32.totalorder %s28, 1
      %p207 = por %p205, %p206
      %p208 = scmp.ne.s32.totalorder %s199, %s200
      %p209 = scmp.eq.s32.totalorder %s28, 0
      %p210 = por %p208, %p209
      %p211 = scmp.ne.s32.totalorder %s199, %s200
      %p212 = scmp.eq.s32.totalorder %s29, 1
      %p213 = por %p211, %p212
      %p215 = scmp.ne.s32.totalorder %s200, %s214
      %p216 = scmp.eq.s32.totalorder %s29, 0
      %p217 = por %p215, %p216
      %s218 = ssub.s32 %s30, %s42
      %p219 = scmp.eq.s32.totalorder %s218, 0
      %s221 = sadd.s32 %s220, 1
      %s222 = scalar_select %p219, %s220, %s221
      %p225 = pneg %p219
      %p226 = scmp.eq.s32.totalorder %s23, 1
      %p227 = por %p225, %p226
      %p228 = scmp.ne.s32.totalorder %s220, %s223
      %p229 = scmp.eq.s32.totalorder %s23, 0
      %p230 = por %p228, %p229
      %p231 = scmp.ne.s32.totalorder %s220, %s223
      %p232 = scmp.eq.s32.totalorder %s28, 1
      %p233 = por %p231, %p232
      %p234 = scmp.ne.s32.totalorder %s223, %s224
      %p235 = scmp.eq.s32.totalorder %s28, 0
      %p236 = por %p234, %p235
      %p237 = scmp.ne.s32.totalorder %s223, %s224
      %p238 = scmp.eq.s32.totalorder %s29, 1
      %p239 = por %p237, %p238
      %p241 = scmp.ne.s32.totalorder %s224, %s240
      %p242 = scmp.eq.s32.totalorder %s29, 0
      %p243 = por %p241, %p242
      %p244 = scmp.le.s32.totalorder 1, %s23
      %p245 = scmp.lt.s32.totalorder %s23, 3
      %p246 = pnand %p244, %p245
      %p247 = pneg %p246
      // Predicated region
      $region9: #{tpu_custom_call.1} parent=5 // pred_check
        _
      $region10: #{tpu_custom_call.1} parent=5 // pred_check_branch
        %249 = sbr.rel (%p246) target = $region12
      $region11: #{tpu_custom_call.1} parent=5 // pred_region
        %s250 = ssub.s32 %s23, 1
        // Predicated region
        $region13: #{tpu_custom_call.1} parent=11 // pred_check
          %p251 = pneg %p84
        $region14: #{tpu_custom_call.1} parent=11 // pred_check_branch
          %253 = sbr.rel (%p251) target = $region16
        $region15: #{tpu_custom_call.1} parent=11 // pred_region
          %s255 = ssub.s32 65536, 65536
          %256 = vsyncadd [#allocation8], %s255
          %s257 = sshll.u32 [#allocation7], 4
          %s258 = int_to_ptr.vmem [resolvable:$true] %s257
          %263 = dma.hbm_to_vmem [thread:$0]  %s1, 65536, %s258, [#allocation8], 512, 512, 32
        $region16: #{tpu_custom_call.1} parent=11 // pred_fallthru
          _
        // Predicated region
        $region17: #{tpu_custom_call.1} parent=11 // pred_check
          %p264 = pneg %p105
        $region18: #{tpu_custom_call.1} parent=11 // pred_check_branch
          %266 = sbr.rel (%p264) target = $region20
        $region19: #{tpu_custom_call.1} parent=11 // pred_region
          _
        $region20: #{tpu_custom_call.1} parent=11 // pred_fallthru
          _
        // Predicated region
        $region21: #{tpu_custom_call.1} parent=11 // pred_check
          %p267 = pneg %p126
        $region22: #{tpu_custom_call.1} parent=11 // pred_check_branch
          %269 = sbr.rel (%p267) target = $region24
        $region23: #{tpu_custom_call.1} parent=11 // pred_region
          %s271 = ssub.s32 512, 512
          %272 = vsyncadd [#allocation8], %s271
          %s274 = sshll.u32 [#allocation9], 4
          %s275 = int_to_ptr.vmem [resolvable:$true] %s274
          %277 = dma.hbm_to_vmem [thread:$0]  %s3, 512, %s275, [#allocation8]
        $region24: #{tpu_custom_call.1} parent=11 // pred_fallthru
          _
        // Predicated region
        $region25: #{tpu_custom_call.1} parent=11 // pred_check
          %p278 = pneg %p147
        $region26: #{tpu_custom_call.1} parent=11 // pred_check_branch
          %280 = sbr.rel (%p278) target = $region28
        $region27: #{tpu_custom_call.1} parent=11 // pred_region
          %s282 = ssub.s32 128, 128
          %283 = vsyncadd [#allocation11], %s282
          %s285 = sshll.u32 [#allocation10], 4
          %s286 = int_to_ptr.vmem [resolvable:$true] %s285
          %288 = dma.hbm_to_vmem [thread:$0]  %s4, 128, %s286, [#allocation11]
        $region28: #{tpu_custom_call.1} parent=11 // pred_fallthru
          _
        // Predicated region
        $region29: #{tpu_custom_call.1} parent=11 // pred_check
          %p289 = pneg %p168
        $region30: #{tpu_custom_call.1} parent=11 // pred_check_branch
          %291 = sbr.rel (%p289) target = $region32
        $region31: #{tpu_custom_call.1} parent=11 // pred_region
          %s293 = ssub.s32 128, 128
          %294 = vsyncadd [#allocation11], %s293
          %s296 = sshll.u32 [#allocation12], 4
          %s297 = int_to_ptr.vmem [resolvable:$true] %s296
          %299 = dma.hbm_to_vmem [thread:$0]  %s5, 128, %s297, [#allocation11]
        $region32: #{tpu_custom_call.1} parent=11 // pred_fallthru
          _
        // Predicated region
        $region33: #{tpu_custom_call.1} parent=11 // pred_check
          %p300 = pneg %p189
        $region34: #{tpu_custom_call.1} parent=11 // pred_check_branch
          %302 = sbr.rel (%p300) target = $region36
        $region35: #{tpu_custom_call.1} parent=11 // pred_region
          %s304 = ssub.s32 16384, 16384
          %305 = vsyncadd [#allocation14], %s304
          %s306 = sshll.u32 [#allocation13], 4
          %s307 = int_to_ptr.vmem [resolvable:$true] %s306
          %312 = dma.hbm_to_vmem [thread:$0]  %s6, 16384, %s307, [#allocation14], 128, 128, 8
        $region36: #{tpu_custom_call.1} parent=11 // pred_fallthru
          _
        // Predicated region
        $region37: #{tpu_custom_call.1} parent=11 // pred_check
          %p313 = pneg %p210
        $region38: #{tpu_custom_call.1} parent=11 // pred_check_branch
          %315 = sbr.rel (%p313) target = $region40
        $region39: #{tpu_custom_call.1} parent=11 // pred_region
          %s317 = ssub.s32 16, 16
          %318 = vsyncadd [#allocation14], %s317
          %s320 = sshll.u32 [#allocation15], 4
          %s321 = int_to_ptr.vmem [resolvable:$true] %s320
          %323 = dma.hbm_to_vmem [thread:$0]  %s7, 16, %s321, [#allocation14]
        $region40: #{tpu_custom_call.1} parent=11 // pred_fallthru
          _
      $region12: #{tpu_custom_call.1} parent=5 // pred_fallthru
        _
      %p324 = scmp.lt.s32.totalorder %s23, 2
      // Predicated region
      $region41: #{tpu_custom_call.1} parent=5 // pred_check
        %p325 = pneg %p324
      $region42: #{tpu_custom_call.1} parent=5 // pred_check_branch
        %327 = sbr.rel (%p325) target = $region44
      $region43: #{tpu_custom_call.1} parent=5 // pred_region
        // Predicated region
        $region45: #{tpu_custom_call.1} parent=43 // pred_check
          %p328 = pneg %p57
        $region46: #{tpu_custom_call.1} parent=43 // pred_check_branch
          %330 = sbr.rel (%p328) target = $region48
        $region47: #{tpu_custom_call.1} parent=43 // pred_region
          %s331 = sand.u32 %s47, 1
          %s332 = scalar_lea.sflag [#allocation5], %s331
          %s333 = sand.u32 %s47, 1
          %s334 = smul.addr %s333, 32
          %s335 = scalar_lea.vmem [#allocation4], %s334
          %s337 = ssub.s32 512, 512
          %338 = vsyncadd %s332, %s337
          %s339 = smul.addr %s31, 8
          %s340 = smul.addr %s30, 8
          %s341 = sadd.s32 %s339, %s340
          %s342 = smul.addr %s341, 64
          %s343 = scalar_lea.hbm %s0, %s342
          %s345 = sshll.u32 %s335, 4
          %s346 = int_to_ptr.vmem [resolvable:$true] %s345
          %348 = dma.hbm_to_vmem [thread:$0]  %s343, 512, %s346, %s332
        $region48: #{tpu_custom_call.1} parent=43 // pred_fallthru
          _
      $region44: #{tpu_custom_call.1} parent=5 // pred_fallthru
        _
      %p349 = scmp.le.s32.totalorder 1, %s23
      %p350 = scmp.lt.s32.totalorder %s23, 3
      %p351 = pnand %p349, %p350
      %p352 = pneg %p351
      // Predicated region
      $region49: #{tpu_custom_call.1} parent=5 // pred_check
        _
      $region50: #{tpu_custom_call.1} parent=5 // pred_check_branch
        %354 = sbr.rel (%p351) target = $region52
      $region51: #{tpu_custom_call.1} parent=5 // pred_region
        %s355 = ssub.s32 %s23, 1
        %s356 = sand.u32 %s50, 1
        %s357 = scalar_lea.sflag [#allocation5], %s356
        %s358 = sand.u32 %s50, 1
        %s359 = smul.addr %s358, 32
        %s360 = scalar_lea.vmem [#allocation4], %s359
        // Predicated region
        $region53: #{tpu_custom_call.1} parent=51 // pred_check
          %p361 = pneg %p63
        $region54: #{tpu_custom_call.1} parent=51 // pred_check_branch
          %363 = sbr.rel (%p361) target = $region56
        $region55: #{tpu_custom_call.1} parent=51 // pred_region
          %364 = dma.done %s357, 512
        $region56: #{tpu_custom_call.1} parent=51 // pred_fallthru
          _
        // Predicated region
        $region57: #{tpu_custom_call.1} parent=51 // pred_check
          %p365 = pneg %p84
        $region58: #{tpu_custom_call.1} parent=51 // pred_check_branch
          %367 = sbr.rel (%p365) target = $region60
        $region59: #{tpu_custom_call.1} parent=51 // pred_region
          %368 = dma.done [#allocation8], 65536
        $region60: #{tpu_custom_call.1} parent=51 // pred_fallthru
          _
        // Predicated region
        $region61: #{tpu_custom_call.1} parent=51 // pred_check
          %p369 = pneg %p126
        $region62: #{tpu_custom_call.1} parent=51 // pred_check_branch
          %371 = sbr.rel (%p369) target = $region64
        $region63: #{tpu_custom_call.1} parent=51 // pred_region
          %372 = dma.done [#allocation8], 512
        $region64: #{tpu_custom_call.1} parent=51 // pred_fallthru
          _
        // Predicated region
        $region65: #{tpu_custom_call.1} parent=51 // pred_check
          %p373 = pneg %p147
        $region66: #{tpu_custom_call.1} parent=51 // pred_check_branch
          %375 = sbr.rel (%p373) target = $region68
        $region67: #{tpu_custom_call.1} parent=51 // pred_region
          %376 = dma.done [#allocation11], 128
        $region68: #{tpu_custom_call.1} parent=51 // pred_fallthru
          _
        // Predicated region
        $region69: #{tpu_custom_call.1} parent=51 // pred_check
          %p377 = pneg %p168
        $region70: #{tpu_custom_call.1} parent=51 // pred_check_branch
          %379 = sbr.rel (%p377) target = $region72
        $region71: #{tpu_custom_call.1} parent=51 // pred_region
          %380 = dma.done [#allocation11], 128
        $region72: #{tpu_custom_call.1} parent=51 // pred_fallthru
          _
        // Predicated region
        $region73: #{tpu_custom_call.1} parent=51 // pred_check
          %p381 = pneg %p189
        $region74: #{tpu_custom_call.1} parent=51 // pred_check_branch
          %383 = sbr.rel (%p381) target = $region76
        $region75: #{tpu_custom_call.1} parent=51 // pred_region
          %384 = dma.done [#allocation14], 16384
        $region76: #{tpu_custom_call.1} parent=51 // pred_fallthru
          _
        // Predicated region
        $region77: #{tpu_custom_call.1} parent=51 // pred_check
          %p385 = pneg %p210
        $region78: #{tpu_custom_call.1} parent=51 // pred_check_branch
          %387 = sbr.rel (%p385) target = $region80
        $region79: #{tpu_custom_call.1} parent=51 // pred_region
          %388 = dma.done [#allocation14], 16
        $region80: #{tpu_custom_call.1} parent=51 // pred_fallthru
          _
        %s389 = sand.u32 %s50, 1
        %s390 = scalar_lea.sflag [#allocation5], %s389
        %s391 = sand.u32 %s50, 1
        %s392 = smul.addr %s391, 32
        %s393 = scalar_lea.vmem [#allocation4], %s392
        %p394 = pneg %p63
        %p395 = pneg %p60
        %p396 = pneg %p84
        %p397 = pneg %p81
        %p398 = pneg %p105
        %p399 = pneg %p102
        %p400 = pneg %p126
        %p401 = pneg %p123
        %p402 = pneg %p147
        %p403 = pneg %p144
        %p404 = pneg %p168
        %p405 = pneg %p165
        %p406 = pneg %p189
        %p407 = pneg %p186
        %p408 = pneg %p210
        %p409 = pneg %p207
        %p410 = pneg %p236
        %p411 = pneg %p233
        %s412 = sand.u32 %s223, 1
        %s413 = scalar_lea.sflag [#allocation6], %s412
        %s414 = sand.u32 %s223, 1
        %s415 = scalar_lea.vmem [#allocation16], %s414
        %p417 = scmp.eq.s32.totalorder %s33, 0
        // Predicated region
        $region81: #{tpu_custom_call.1} parent=51 // pred_check
          %p418 = pneg %p417
        $region82: #{tpu_custom_call.1} parent=51 // pred_check_branch
          %420 = sbr.rel (%p418) target = $region84
        $region83: #{tpu_custom_call.1} parent=51 // pred_region
          %421 = vst [vmem:[#allocation2] sm:$0xff] 0.0
          %422 = vst [vmem:[#allocation3] sm:$0xff] 0.0
        $region84: #{tpu_custom_call.1} parent=51 // pred_fallthru
          _
        %v423 = vld [vmem:[%s360] sm:$0xff]
        %v424 = vld [vmem:[%s360 + $0x8] sm:$0xff]
        %v425 = vld [vmem:[%s360 + $0x10] sm:$0xff]
        %v426 = vld [vmem:[%s360 + $0x18] sm:$0xff]
        %v427 = vld [vmem:[#allocation7] sm:$0xff]
        %v428 = vld [vmem:[#allocation7 + $0x8] sm:$0xff]
        %v429 = vld [vmem:[#allocation7 + $0x10] sm:$0xff]
        %v430 = vld [vmem:[#allocation7 + $0x18] sm:$0xff]
        %v431 = vld [vmem:[#allocation7 + $0x20] sm:$0xff]
        %v432 = vld [vmem:[#allocation7 + $0x28] sm:$0xff]
        %v433 = vld [vmem:[#allocation7 + $0x30] sm:$0xff]
        %v434 = vld [vmem:[#allocation7 + $0x38] sm:$0xff]
        %v435 = vld [vmem:[#allocation7 + $0x40] sm:$0xff]
        %v436 = vld [vmem:[#allocation7 + $0x48] sm:$0xff]
        %v437 = vld [vmem:[#allocation7 + $0x50] sm:$0xff]
        %v438 = vld [vmem:[#allocation7 + $0x58] sm:$0xff]
        %v439 = vld [vmem:[#allocation7 + $0x60] sm:$0xff]
        %v440 = vld [vmem:[#allocation7 + $0x68] sm:$0xff]
        %v441 = vld [vmem:[#allocation7 + $0x70] sm:$0xff]
        %v442 = vld [vmem:[#allocation7 + $0x78] sm:$0xff]
        %v443 = vld [vmem:[#allocation7 + $0x80] sm:$0xff]
        %v444 = vld [vmem:[#allocation7 + $0x88] sm:$0xff]
        %v445 = vld [vmem:[#allocation7 + $0x90] sm:$0xff]
        %v446 = vld [vmem:[#allocation7 + $0x98] sm:$0xff]
        %v447 = vld [vmem:[#allocation7 + $0xa0] sm:$0xff]
        %v448 = vld [vmem:[#allocation7 + $0xa8] sm:$0xff]
        %v449 = vld [vmem:[#allocation7 + $0xb0] sm:$0xff]
        %v450 = vld [vmem:[#allocation7 + $0xb8] sm:$0xff]
        %v451 = vld [vmem:[#allocation7 + $0xc0] sm:$0xff]
        %v452 = vld [vmem:[#allocation7 + $0xc8] sm:$0xff]
        %v453 = vld [vmem:[#allocation7 + $0xd0] sm:$0xff]
        %v454 = vld [vmem:[#allocation7 + $0xd8] sm:$0xff]
        %v455 = vld [vmem:[#allocation7 + $0xe0] sm:$0xff]
        %v456 = vld [vmem:[#allocation7 + $0xe8] sm:$0xff]
        %v457 = vld [vmem:[#allocation7 + $0xf0] sm:$0xff]
        %v458 = vld [vmem:[#allocation7 + $0xf8] sm:$0xff]
        %v459 = vld [vmem:[#allocation7 + $0x100] sm:$0xff]
        %v460 = vld [vmem:[#allocation7 + $0x108] sm:$0xff]
        %v461 = vld [vmem:[#allocation7 + $0x110] sm:$0xff]
        %v462 = vld [vmem:[#allocation7 + $0x118] sm:$0xff]
        %v463 = vld [vmem:[#allocation7 + $0x120] sm:$0xff]
        %v464 = vld [vmem:[#allocation7 + $0x128] sm:$0xff]
        %v465 = vld [vmem:[#allocation7 + $0x130] sm:$0xff]
        %v466 = vld [vmem:[#allocation7 + $0x138] sm:$0xff]
        %v467 = vld [vmem:[#allocation7 + $0x140] sm:$0xff]
        %v468 = vld [vmem:[#allocation7 + $0x148] sm:$0xff]
        %v469 = vld [vmem:[#allocation7 + $0x150] sm:$0xff]
        %v470 = vld [vmem:[#allocation7 + $0x158] sm:$0xff]
        %v471 = vld [vmem:[#allocation7 + $0x160] sm:$0xff]
        %v472 = vld [vmem:[#allocation7 + $0x168] sm:$0xff]
        %v473 = vld [vmem:[#allocation7 + $0x170] sm:$0xff]
        %v474 = vld [vmem:[#allocation7 + $0x178] sm:$0xff]
        %v475 = vld [vmem:[#allocation7 + $0x180] sm:$0xff]
        %v476 = vld [vmem:[#allocation7 + $0x188] sm:$0xff]
        %v477 = vld [vmem:[#allocation7 + $0x190] sm:$0xff]
        %v478 = vld [vmem:[#allocation7 + $0x198] sm:$0xff]
        %v479 = vld [vmem:[#allocation7 + $0x1a0] sm:$0xff]
        %v480 = vld [vmem:[#allocation7 + $0x1a8] sm:$0xff]
        %v481 = vld [vmem:[#allocation7 + $0x1b0] sm:$0xff]
        %v482 = vld [vmem:[#allocation7 + $0x1b8] sm:$0xff]
        %v483 = vld [vmem:[#allocation7 + $0x1c0] sm:$0xff]
        %v484 = vld [vmem:[#allocation7 + $0x1c8] sm:$0xff]
        %v485 = vld [vmem:[#allocation7 + $0x1d0] sm:$0xff]
        %v486 = vld [vmem:[#allocation7 + $0x1d8] sm:$0xff]
        %v487 = vld [vmem:[#allocation7 + $0x1e0] sm:$0xff]
        %v488 = vld [vmem:[#allocation7 + $0x1e8] sm:$0xff]
        %v489 = vld [vmem:[#allocation7 + $0x1f0] sm:$0xff]
        %v490 = vld [vmem:[#allocation7 + $0x1f8] sm:$0xff]
        %v491 = vld [vmem:[#allocation7 + $0x200] sm:$0xff]
        %v492 = vld [vmem:[#allocation7 + $0x208] sm:$0xff]
        %v493 = vld [vmem:[#allocation7 + $0x210] sm:$0xff]
        %v494 = vld [vmem:[#allocation7 + $0x218] sm:$0xff]
        %v495 = vld [vmem:[#allocation7 + $0x220] sm:$0xff]
        %v496 = vld [vmem:[#allocation7 + $0x228] sm:$0xff]
        %v497 = vld [vmem:[#allocation7 + $0x230] sm:$0xff]
        %v498 = vld [vmem:[#allocation7 + $0x238] sm:$0xff]
        %v499 = vld [vmem:[#allocation7 + $0x240] sm:$0xff]
        %v500 = vld [vmem:[#allocation7 + $0x248] sm:$0xff]
        %v501 = vld [vmem:[#allocation7 + $0x250] sm:$0xff]
        %v502 = vld [vmem:[#allocation7 + $0x258] sm:$0xff]
        %v503 = vld [vmem:[#allocation7 + $0x260] sm:$0xff]
        %v504 = vld [vmem:[#allocation7 + $0x268] sm:$0xff]
        %v505 = vld [vmem:[#allocation7 + $0x270] sm:$0xff]
        %v506 = vld [vmem:[#allocation7 + $0x278] sm:$0xff]
        %v507 = vld [vmem:[#allocation7 + $0x280] sm:$0xff]
        %v508 = vld [vmem:[#allocation7 + $0x288] sm:$0xff]
        %v509 = vld [vmem:[#allocation7 + $0x290] sm:$0xff]
        %v510 = vld [vmem:[#allocation7 + $0x298] sm:$0xff]
        %v511 = vld [vmem:[#allocation7 + $0x2a0] sm:$0xff]
        %v512 = vld [vmem:[#allocation7 + $0x2a8] sm:$0xff]
        %v513 = vld [vmem:[#allocation7 + $0x2b0] sm:$0xff]
        %v514 = vld [vmem:[#allocation7 + $0x2b8] sm:$0xff]
        %v515 = vld [vmem:[#allocation7 + $0x2c0] sm:$0xff]
        %v516 = vld [vmem:[#allocation7 + $0x2c8] sm:$0xff]
        %v517 = vld [vmem:[#allocation7 + $0x2d0] sm:$0xff]
        %v518 = vld [vmem:[#allocation7 + $0x2d8] sm:$0xff]
        %v519 = vld [vmem:[#allocation7 + $0x2e0] sm:$0xff]
        %v520 = vld [vmem:[#allocation7 + $0x2e8] sm:$0xff]
        %v521 = vld [vmem:[#allocation7 + $0x2f0] sm:$0xff]
        %v522 = vld [vmem:[#allocation7 + $0x2f8] sm:$0xff]
        %v523 = vld [vmem:[#allocation7 + $0x300] sm:$0xff]
        %v524 = vld [vmem:[#allocation7 + $0x308] sm:$0xff]
        %v525 = vld [vmem:[#allocation7 + $0x310] sm:$0xff]
        %v526 = vld [vmem:[#allocation7 + $0x318] sm:$0xff]
        %v527 = vld [vmem:[#allocation7 + $0x320] sm:$0xff]
        %v528 = vld [vmem:[#allocation7 + $0x328] sm:$0xff]
        %v529 = vld [vmem:[#allocation7 + $0x330] sm:$0xff]
        %v530 = vld [vmem:[#allocation7 + $0x338] sm:$0xff]
        %v531 = vld [vmem:[#allocation7 + $0x340] sm:$0xff]
        %v532 = vld [vmem:[#allocation7 + $0x348] sm:$0xff]
        %v533 = vld [vmem:[#allocation7 + $0x350] sm:$0xff]
        %v534 = vld [vmem:[#allocation7 + $0x358] sm:$0xff]
        %v535 = vld [vmem:[#allocation7 + $0x360] sm:$0xff]
        %v536 = vld [vmem:[#allocation7 + $0x368] sm:$0xff]
        %v537 = vld [vmem:[#allocation7 + $0x370] sm:$0xff]
        %v538 = vld [vmem:[#allocation7 + $0x378] sm:$0xff]
        %v539 = vld [vmem:[#allocation7 + $0x380] sm:$0xff]
        %v540 = vld [vmem:[#allocation7 + $0x388] sm:$0xff]
        %v541 = vld [vmem:[#allocation7 + $0x390] sm:$0xff]
        %v542 = vld [vmem:[#allocation7 + $0x398] sm:$0xff]
        %v543 = vld [vmem:[#allocation7 + $0x3a0] sm:$0xff]
        %v544 = vld [vmem:[#allocation7 + $0x3a8] sm:$0xff]
        %v545 = vld [vmem:[#allocation7 + $0x3b0] sm:$0xff]
        %v546 = vld [vmem:[#allocation7 + $0x3b8] sm:$0xff]
        %v547 = vld [vmem:[#allocation7 + $0x3c0] sm:$0xff]
        %v548 = vld [vmem:[#allocation7 + $0x3c8] sm:$0xff]
        %v549 = vld [vmem:[#allocation7 + $0x3d0] sm:$0xff]
        %v550 = vld [vmem:[#allocation7 + $0x3d8] sm:$0xff]
        %v551 = vld [vmem:[#allocation7 + $0x3e0] sm:$0xff]
        %v552 = vld [vmem:[#allocation7 + $0x3e8] sm:$0xff]
        %v553 = vld [vmem:[#allocation7 + $0x3f0] sm:$0xff]
        %v554 = vld [vmem:[#allocation7 + $0x3f8] sm:$0xff]
        %v555 = vld [vmem:[#allocation7 + $0x400] sm:$0xff]
        %v556 = vld [vmem:[#allocation7 + $0x408] sm:$0xff]
        %v557 = vld [vmem:[#allocation7 + $0x410] sm:$0xff]
        %v558 = vld [vmem:[#allocation7 + $0x418] sm:$0xff]
        %v559 = vld [vmem:[#allocation7 + $0x420] sm:$0xff]
        %v560 = vld [vmem:[#allocation7 + $0x428] sm:$0xff]
        %v561 = vld [vmem:[#allocation7 + $0x430] sm:$0xff]
        %v562 = vld [vmem:[#allocation7 + $0x438] sm:$0xff]
        %v563 = vld [vmem:[#allocation7 + $0x440] sm:$0xff]
        %v564 = vld [vmem:[#allocation7 + $0x448] sm:$0xff]
        %v565 = vld [vmem:[#allocation7 + $0x450] sm:$0xff]
        %v566 = vld [vmem:[#allocation7 + $0x458] sm:$0xff]
        %v567 = vld [vmem:[#allocation7 + $0x460] sm:$0xff]
        %v568 = vld [vmem:[#allocation7 + $0x468] sm:$0xff]
        %v569 = vld [vmem:[#allocation7 + $0x470] sm:$0xff]
        %v570 = vld [vmem:[#allocation7 + $0x478] sm:$0xff]
        %v571 = vld [vmem:[#allocation7 + $0x480] sm:$0xff]
        %v572 = vld [vmem:[#allocation7 + $0x488] sm:$0xff]
        %v573 = vld [vmem:[#allocation7 + $0x490] sm:$0xff]
        %v574 = vld [vmem:[#allocation7 + $0x498] sm:$0xff]
        %v575 = vld [vmem:[#allocation7 + $0x4a0] sm:$0xff]
        %v576 = vld [vmem:[#allocation7 + $0x4a8] sm:$0xff]
        %v577 = vld [vmem:[#allocation7 + $0x4b0] sm:$0xff]
        %v578 = vld [vmem:[#allocation7 + $0x4b8] sm:$0xff]
        %v579 = vld [vmem:[#allocation7 + $0x4c0] sm:$0xff]
        %v580 = vld [vmem:[#allocation7 + $0x4c8] sm:$0xff]
        %v581 = vld [vmem:[#allocation7 + $0x4d0] sm:$0xff]
        %v582 = vld [vmem:[#allocation7 + $0x4d8] sm:$0xff]
        %v583 = vld [vmem:[#allocation7 + $0x4e0] sm:$0xff]
        %v584 = vld [vmem:[#allocation7 + $0x4e8] sm:$0xff]
        %v585 = vld [vmem:[#allocation7 + $0x4f0] sm:$0xff]
        %v586 = vld [vmem:[#allocation7 + $0x4f8] sm:$0xff]
        %v587 = vld [vmem:[#allocation7 + $0x500] sm:$0xff]
        %v588 = vld [vmem:[#allocation7 + $0x508] sm:$0xff]
        %v589 = vld [vmem:[#allocation7 + $0x510] sm:$0xff]
        %v590 = vld [vmem:[#allocation7 + $0x518] sm:$0xff]
        %v591 = vld [vmem:[#allocation7 + $0x520] sm:$0xff]
        %v592 = vld [vmem:[#allocation7 + $0x528] sm:$0xff]
        %v593 = vld [vmem:[#allocation7 + $0x530] sm:$0xff]
        %v594 = vld [vmem:[#allocation7 + $0x538] sm:$0xff]
        %v595 = vld [vmem:[#allocation7 + $0x540] sm:$0xff]
        %v596 = vld [vmem:[#allocation7 + $0x548] sm:$0xff]
        %v597 = vld [vmem:[#allocation7 + $0x550] sm:$0xff]
        %v598 = vld [vmem:[#allocation7 + $0x558] sm:$0xff]
        %v599 = vld [vmem:[#allocation7 + $0x560] sm:$0xff]
        %v600 = vld [vmem:[#allocation7 + $0x568] sm:$0xff]
        %v601 = vld [vmem:[#allocation7 + $0x570] sm:$0xff]
        %v602 = vld [vmem:[#allocation7 + $0x578] sm:$0xff]
        %v603 = vld [vmem:[#allocation7 + $0x580] sm:$0xff]
        %v604 = vld [vmem:[#allocation7 + $0x588] sm:$0xff]
        %v605 = vld [vmem:[#allocation7 + $0x590] sm:$0xff]
        %v606 = vld [vmem:[#allocation7 + $0x598] sm:$0xff]
        %v607 = vld [vmem:[#allocation7 + $0x5a0] sm:$0xff]
        %v608 = vld [vmem:[#allocation7 + $0x5a8] sm:$0xff]
        %v609 = vld [vmem:[#allocation7 + $0x5b0] sm:$0xff]
        %v610 = vld [vmem:[#allocation7 + $0x5b8] sm:$0xff]
        %v611 = vld [vmem:[#allocation7 + $0x5c0] sm:$0xff]
        %v612 = vld [vmem:[#allocation7 + $0x5c8] sm:$0xff]
        %v613 = vld [vmem:[#allocation7 + $0x5d0] sm:$0xff]
        %v614 = vld [vmem:[#allocation7 + $0x5d8] sm:$0xff]
        %v615 = vld [vmem:[#allocation7 + $0x5e0] sm:$0xff]
        %v616 = vld [vmem:[#allocation7 + $0x5e8] sm:$0xff]
        %v617 = vld [vmem:[#allocation7 + $0x5f0] sm:$0xff]
        %v618 = vld [vmem:[#allocation7 + $0x5f8] sm:$0xff]
        %v619 = vld [vmem:[#allocation7 + $0x600] sm:$0xff]
        %v620 = vld [vmem:[#allocation7 + $0x608] sm:$0xff]
        %v621 = vld [vmem:[#allocation7 + $0x610] sm:$0xff]
        %v622 = vld [vmem:[#allocation7 + $0x618] sm:$0xff]
        %v623 = vld [vmem:[#allocation7 + $0x620] sm:$0xff]
        %v624 = vld [vmem:[#allocation7 + $0x628] sm:$0xff]
        %v625 = vld [vmem:[#allocation7 + $0x630] sm:$0xff]
        %v626 = vld [vmem:[#allocation7 + $0x638] sm:$0xff]
        %v627 = vld [vmem:[#allocation7 + $0x640] sm:$0xff]
        %v628 = vld [vmem:[#allocation7 + $0x648] sm:$0xff]
        %v629 = vld [vmem:[#allocation7 + $0x650] sm:$0xff]
        %v630 = vld [vmem:[#allocation7 + $0x658] sm:$0xff]
        %v631 = vld [vmem:[#allocation7 + $0x660] sm:$0xff]
        %v632 = vld [vmem:[#allocation7 + $0x668] sm:$0xff]
        %v633 = vld [vmem:[#allocation7 + $0x670] sm:$0xff]
        %v634 = vld [vmem:[#allocation7 + $0x678] sm:$0xff]
        %v635 = vld [vmem:[#allocation7 + $0x680] sm:$0xff]
        %v636 = vld [vmem:[#allocation7 + $0x688] sm:$0xff]
        %v637 = vld [vmem:[#allocation7 + $0x690] sm:$0xff]
        %v638 = vld [vmem:[#allocation7 + $0x698] sm:$0xff]
        %v639 = vld [vmem:[#allocation7 + $0x6a0] sm:$0xff]
        %v640 = vld [vmem:[#allocation7 + $0x6a8] sm:$0xff]
        %v641 = vld [vmem:[#allocation7 + $0x6b0] sm:$0xff]
        %v642 = vld [vmem:[#allocation7 + $0x6b8] sm:$0xff]
        %v643 = vld [vmem:[#allocation7 + $0x6c0] sm:$0xff]
        %v644 = vld [vmem:[#allocation7 + $0x6c8] sm:$0xff]
        %v645 = vld [vmem:[#allocation7 + $0x6d0] sm:$0xff]
        %v646 = vld [vmem:[#allocation7 + $0x6d8] sm:$0xff]
        %v647 = vld [vmem:[#allocation7 + $0x6e0] sm:$0xff]
        %v648 = vld [vmem:[#allocation7 + $0x6e8] sm:$0xff]
        %v649 = vld [vmem:[#allocation7 + $0x6f0] sm:$0xff]
        %v650 = vld [vmem:[#allocation7 + $0x6f8] sm:$0xff]
        %v651 = vld [vmem:[#allocation7 + $0x700] sm:$0xff]
        %v652 = vld [vmem:[#allocation7 + $0x708] sm:$0xff]
        %v653 = vld [vmem:[#allocation7 + $0x710] sm:$0xff]
        %v654 = vld [vmem:[#allocation7 + $0x718] sm:$0xff]
        %v655 = vld [vmem:[#allocation7 + $0x720] sm:$0xff]
        %v656 = vld [vmem:[#allocation7 + $0x728] sm:$0xff]
        %v657 = vld [vmem:[#allocation7 + $0x730] sm:$0xff]
        %v658 = vld [vmem:[#allocation7 + $0x738] sm:$0xff]
        %v659 = vld [vmem:[#allocation7 + $0x740] sm:$0xff]
        %v660 = vld [vmem:[#allocation7 + $0x748] sm:$0xff]
        %v661 = vld [vmem:[#allocation7 + $0x750] sm:$0xff]
        %v662 = vld [vmem:[#allocation7 + $0x758] sm:$0xff]
        %v663 = vld [vmem:[#allocation7 + $0x760] sm:$0xff]
        %v664 = vld [vmem:[#allocation7 + $0x768] sm:$0xff]
        %v665 = vld [vmem:[#allocation7 + $0x770] sm:$0xff]
        %v666 = vld [vmem:[#allocation7 + $0x778] sm:$0xff]
        %v667 = vld [vmem:[#allocation7 + $0x780] sm:$0xff]
        %v668 = vld [vmem:[#allocation7 + $0x788] sm:$0xff]
        %v669 = vld [vmem:[#allocation7 + $0x790] sm:$0xff]
        %v670 = vld [vmem:[#allocation7 + $0x798] sm:$0xff]
        %v671 = vld [vmem:[#allocation7 + $0x7a0] sm:$0xff]
        %v672 = vld [vmem:[#allocation7 + $0x7a8] sm:$0xff]
        %v673 = vld [vmem:[#allocation7 + $0x7b0] sm:$0xff]
        %v674 = vld [vmem:[#allocation7 + $0x7b8] sm:$0xff]
        %v675 = vld [vmem:[#allocation7 + $0x7c0] sm:$0xff]
        %v676 = vld [vmem:[#allocation7 + $0x7c8] sm:$0xff]
        %v677 = vld [vmem:[#allocation7 + $0x7d0] sm:$0xff]
        %v678 = vld [vmem:[#allocation7 + $0x7d8] sm:$0xff]
        %v679 = vld [vmem:[#allocation7 + $0x7e0] sm:$0xff]
        %v680 = vld [vmem:[#allocation7 + $0x7e8] sm:$0xff]
        %v681 = vld [vmem:[#allocation7 + $0x7f0] sm:$0xff]
        %v682 = vld [vmem:[#allocation7 + $0x7f8] sm:$0xff]
        %v683 = vld [vmem:[#allocation7 + $0x800] sm:$0xff]
        %v684 = vld [vmem:[#allocation7 + $0x808] sm:$0xff]
        %v685 = vld [vmem:[#allocation7 + $0x810] sm:$0xff]
        %v686 = vld [vmem:[#allocation7 + $0x818] sm:$0xff]
        %v687 = vld [vmem:[#allocation7 + $0x820] sm:$0xff]
        %v688 = vld [vmem:[#allocation7 + $0x828] sm:$0xff]
        %v689 = vld [vmem:[#allocation7 + $0x830] sm:$0xff]
        %v690 = vld [vmem:[#allocation7 + $0x838] sm:$0xff]
        %v691 = vld [vmem:[#allocation7 + $0x840] sm:$0xff]
        %v692 = vld [vmem:[#allocation7 + $0x848] sm:$0xff]
        %v693 = vld [vmem:[#allocation7 + $0x850] sm:$0xff]
        %v694 = vld [vmem:[#allocation7 + $0x858] sm:$0xff]
        %v695 = vld [vmem:[#allocation7 + $0x860] sm:$0xff]
        %v696 = vld [vmem:[#allocation7 + $0x868] sm:$0xff]
        %v697 = vld [vmem:[#allocation7 + $0x870] sm:$0xff]
        %v698 = vld [vmem:[#allocation7 + $0x878] sm:$0xff]
        %v699 = vld [vmem:[#allocation7 + $0x880] sm:$0xff]
        %v700 = vld [vmem:[#allocation7 + $0x888] sm:$0xff]
        %v701 = vld [vmem:[#allocation7 + $0x890] sm:$0xff]
        %v702 = vld [vmem:[#allocation7 + $0x898] sm:$0xff]
        %v703 = vld [vmem:[#allocation7 + $0x8a0] sm:$0xff]
        %v704 = vld [vmem:[#allocation7 + $0x8a8] sm:$0xff]
        %v705 = vld [vmem:[#allocation7 + $0x8b0] sm:$0xff]
        %v706 = vld [vmem:[#allocation7 + $0x8b8] sm:$0xff]
        %v707 = vld [vmem:[#allocation7 + $0x8c0] sm:$0xff]
        %v708 = vld [vmem:[#allocation7 + $0x8c8] sm:$0xff]
        %v709 = vld [vmem:[#allocation7 + $0x8d0] sm:$0xff]
        %v710 = vld [vmem:[#allocation7 + $0x8d8] sm:$0xff]
        %v711 = vld [vmem:[#allocation7 + $0x8e0] sm:$0xff]
        %v712 = vld [vmem:[#allocation7 + $0x8e8] sm:$0xff]
        %v713 = vld [vmem:[#allocation7 + $0x8f0] sm:$0xff]
        %v714 = vld [vmem:[#allocation7 + $0x8f8] sm:$0xff]
        %v715 = vld [vmem:[#allocation7 + $0x900] sm:$0xff]
        %v716 = vld [vmem:[#allocation7 + $0x908] sm:$0xff]
        %v717 = vld [vmem:[#allocation7 + $0x910] sm:$0xff]
        %v718 = vld [vmem:[#allocation7 + $0x918] sm:$0xff]
        %v719 = vld [vmem:[#allocation7 + $0x920] sm:$0xff]
        %v720 = vld [vmem:[#allocation7 + $0x928] sm:$0xff]
        %v721 = vld [vmem:[#allocation7 + $0x930] sm:$0xff]
        %v722 = vld [vmem:[#allocation7 + $0x938] sm:$0xff]
        %v723 = vld [vmem:[#allocation7 + $0x940] sm:$0xff]
        %v724 = vld [vmem:[#allocation7 + $0x948] sm:$0xff]
        %v725 = vld [vmem:[#allocation7 + $0x950] sm:$0xff]
        %v726 = vld [vmem:[#allocation7 + $0x958] sm:$0xff]
        %v727 = vld [vmem:[#allocation7 + $0x960] sm:$0xff]
        %v728 = vld [vmem:[#allocation7 + $0x968] sm:$0xff]
        %v729 = vld [vmem:[#allocation7 + $0x970] sm:$0xff]
        %v730 = vld [vmem:[#allocation7 + $0x978] sm:$0xff]
        %v731 = vld [vmem:[#allocation7 + $0x980] sm:$0xff]
        %v732 = vld [vmem:[#allocation7 + $0x988] sm:$0xff]
        %v733 = vld [vmem:[#allocation7 + $0x990] sm:$0xff]
        %v734 = vld [vmem:[#allocation7 + $0x998] sm:$0xff]
        %v735 = vld [vmem:[#allocation7 + $0x9a0] sm:$0xff]
        %v736 = vld [vmem:[#allocation7 + $0x9a8] sm:$0xff]
        %v737 = vld [vmem:[#allocation7 + $0x9b0] sm:$0xff]
        %v738 = vld [vmem:[#allocation7 + $0x9b8] sm:$0xff]
        %v739 = vld [vmem:[#allocation7 + $0x9c0] sm:$0xff]
        %v740 = vld [vmem:[#allocation7 + $0x9c8] sm:$0xff]
        %v741 = vld [vmem:[#allocation7 + $0x9d0] sm:$0xff]
        %v742 = vld [vmem:[#allocation7 + $0x9d8] sm:$0xff]
        %v743 = vld [vmem:[#allocation7 + $0x9e0] sm:$0xff]
        %v744 = vld [vmem:[#allocation7 + $0x9e8] sm:$0xff]
        %v745 = vld [vmem:[#allocation7 + $0x9f0] sm:$0xff]
        %v746 = vld [vmem:[#allocation7 + $0x9f8] sm:$0xff]
        %v747 = vld [vmem:[#allocation7 + $0xa00] sm:$0xff]
        %v748 = vld [vmem:[#allocation7 + $0xa08] sm:$0xff]
        %v749 = vld [vmem:[#allocation7 + $0xa10] sm:$0xff]
        %v750 = vld [vmem:[#allocation7 + $0xa18] sm:$0xff]
        %v751 = vld [vmem:[#allocation7 + $0xa20] sm:$0xff]
        %v752 = vld [vmem:[#allocation7 + $0xa28] sm:$0xff]
        %v753 = vld [vmem:[#allocation7 + $0xa30] sm:$0xff]
        %v754 = vld [vmem:[#allocation7 + $0xa38] sm:$0xff]
        %v755 = vld [vmem:[#allocation7 + $0xa40] sm:$0xff]
        %v756 = vld [vmem:[#allocation7 + $0xa48] sm:$0xff]
        %v757 = vld [vmem:[#allocation7 + $0xa50] sm:$0xff]
        %v758 = vld [vmem:[#allocation7 + $0xa58] sm:$0xff]
        %v759 = vld [vmem:[#allocation7 + $0xa60] sm:$0xff]
        %v760 = vld [vmem:[#allocation7 + $0xa68] sm:$0xff]
        %v761 = vld [vmem:[#allocation7 + $0xa70] sm:$0xff]
        %v762 = vld [vmem:[#allocation7 + $0xa78] sm:$0xff]
        %v763 = vld [vmem:[#allocation7 + $0xa80] sm:$0xff]
        %v764 = vld [vmem:[#allocation7 + $0xa88] sm:$0xff]
        %v765 = vld [vmem:[#allocation7 + $0xa90] sm:$0xff]
        %v766 = vld [vmem:[#allocation7 + $0xa98] sm:$0xff]
        %v767 = vld [vmem:[#allocation7 + $0xaa0] sm:$0xff]
        %v768 = vld [vmem:[#allocation7 + $0xaa8] sm:$0xff]
        %v769 = vld [vmem:[#allocation7 + $0xab0] sm:$0xff]
        %v770 = vld [vmem:[#allocation7 + $0xab8] sm:$0xff]
        %v771 = vld [vmem:[#allocation7 + $0xac0] sm:$0xff]
        %v772 = vld [vmem:[#allocation7 + $0xac8] sm:$0xff]
        %v773 = vld [vmem:[#allocation7 + $0xad0] sm:$0xff]
        %v774 = vld [vmem:[#allocation7 + $0xad8] sm:$0xff]
        %v775 = vld [vmem:[#allocation7 + $0xae0] sm:$0xff]
        %v776 = vld [vmem:[#allocation7 + $0xae8] sm:$0xff]
        %v777 = vld [vmem:[#allocation7 + $0xaf0] sm:$0xff]
        %v778 = vld [vmem:[#allocation7 + $0xaf8] sm:$0xff]
        %v779 = vld [vmem:[#allocation7 + $0xb00] sm:$0xff]
        %v780 = vld [vmem:[#allocation7 + $0xb08] sm:$0xff]
        %v781 = vld [vmem:[#allocation7 + $0xb10] sm:$0xff]
        %v782 = vld [vmem:[#allocation7 + $0xb18] sm:$0xff]
        %v783 = vld [vmem:[#allocation7 + $0xb20] sm:$0xff]
        %v784 = vld [vmem:[#allocation7 + $0xb28] sm:$0xff]
        %v785 = vld [vmem:[#allocation7 + $0xb30] sm:$0xff]
        %v786 = vld [vmem:[#allocation7 + $0xb38] sm:$0xff]
        %v787 = vld [vmem:[#allocation7 + $0xb40] sm:$0xff]
        %v788 = vld [vmem:[#allocation7 + $0xb48] sm:$0xff]
        %v789 = vld [vmem:[#allocation7 + $0xb50] sm:$0xff]
        %v790 = vld [vmem:[#allocation7 + $0xb58] sm:$0xff]
        %v791 = vld [vmem:[#allocation7 + $0xb60] sm:$0xff]
        %v792 = vld [vmem:[#allocation7 + $0xb68] sm:$0xff]
        %v793 = vld [vmem:[#allocation7 + $0xb70] sm:$0xff]
        %v794 = vld [vmem:[#allocation7 + $0xb78] sm:$0xff]
        %v795 = vld [vmem:[#allocation7 + $0xb80] sm:$0xff]
        %v796 = vld [vmem:[#allocation7 + $0xb88] sm:$0xff]
        %v797 = vld [vmem:[#allocation7 + $0xb90] sm:$0xff]
        %v798 = vld [vmem:[#allocation7 + $0xb98] sm:$0xff]
        %v799 = vld [vmem:[#allocation7 + $0xba0] sm:$0xff]
        %v800 = vld [vmem:[#allocation7 + $0xba8] sm:$0xff]
        %v801 = vld [vmem:[#allocation7 + $0xbb0] sm:$0xff]
        %v802 = vld [vmem:[#allocation7 + $0xbb8] sm:$0xff]
        %v803 = vld [vmem:[#allocation7 + $0xbc0] sm:$0xff]
        %v804 = vld [vmem:[#allocation7 + $0xbc8] sm:$0xff]
        %v805 = vld [vmem:[#allocation7 + $0xbd0] sm:$0xff]
        %v806 = vld [vmem:[#allocation7 + $0xbd8] sm:$0xff]
        %v807 = vld [vmem:[#allocation7 + $0xbe0] sm:$0xff]
        %v808 = vld [vmem:[#allocation7 + $0xbe8] sm:$0xff]
        %v809 = vld [vmem:[#allocation7 + $0xbf0] sm:$0xff]
        %v810 = vld [vmem:[#allocation7 + $0xbf8] sm:$0xff]
        %v811 = vld [vmem:[#allocation7 + $0xc00] sm:$0xff]
        %v812 = vld [vmem:[#allocation7 + $0xc08] sm:$0xff]
        %v813 = vld [vmem:[#allocation7 + $0xc10] sm:$0xff]
        %v814 = vld [vmem:[#allocation7 + $0xc18] sm:$0xff]
        %v815 = vld [vmem:[#allocation7 + $0xc20] sm:$0xff]
        %v816 = vld [vmem:[#allocation7 + $0xc28] sm:$0xff]
        %v817 = vld [vmem:[#allocation7 + $0xc30] sm:$0xff]
        %v818 = vld [vmem:[#allocation7 + $0xc38] sm:$0xff]
        %v819 = vld [vmem:[#allocation7 + $0xc40] sm:$0xff]
        %v820 = vld [vmem:[#allocation7 + $0xc48] sm:$0xff]
        %v821 = vld [vmem:[#allocation7 + $0xc50] sm:$0xff]
        %v822 = vld [vmem:[#allocation7 + $0xc58] sm:$0xff]
        %v823 = vld [vmem:[#allocation7 + $0xc60] sm:$0xff]
        %v824 = vld [vmem:[#allocation7 + $0xc68] sm:$0xff]
        %v825 = vld [vmem:[#allocation7 + $0xc70] sm:$0xff]
        %v826 = vld [vmem:[#allocation7 + $0xc78] sm:$0xff]
        %v827 = vld [vmem:[#allocation7 + $0xc80] sm:$0xff]
        %v828 = vld [vmem:[#allocation7 + $0xc88] sm:$0xff]
        %v829 = vld [vmem:[#allocation7 + $0xc90] sm:$0xff]
        %v830 = vld [vmem:[#allocation7 + $0xc98] sm:$0xff]
        %v831 = vld [vmem:[#allocation7 + $0xca0] sm:$0xff]
        %v832 = vld [vmem:[#allocation7 + $0xca8] sm:$0xff]
        %v833 = vld [vmem:[#allocation7 + $0xcb0] sm:$0xff]
        %v834 = vld [vmem:[#allocation7 + $0xcb8] sm:$0xff]
        %v835 = vld [vmem:[#allocation7 + $0xcc0] sm:$0xff]
        %v836 = vld [vmem:[#allocation7 + $0xcc8] sm:$0xff]
        %v837 = vld [vmem:[#allocation7 + $0xcd0] sm:$0xff]
        %v838 = vld [vmem:[#allocation7 + $0xcd8] sm:$0xff]
        %v839 = vld [vmem:[#allocation7 + $0xce0] sm:$0xff]
        %v840 = vld [vmem:[#allocation7 + $0xce8] sm:$0xff]
        %v841 = vld [vmem:[#allocation7 + $0xcf0] sm:$0xff]
        %v842 = vld [vmem:[#allocation7 + $0xcf8] sm:$0xff]
        %v843 = vld [vmem:[#allocation7 + $0xd00] sm:$0xff]
        %v844 = vld [vmem:[#allocation7 + $0xd08] sm:$0xff]
        %v845 = vld [vmem:[#allocation7 + $0xd10] sm:$0xff]
        %v846 = vld [vmem:[#allocation7 + $0xd18] sm:$0xff]
        %v847 = vld [vmem:[#allocation7 + $0xd20] sm:$0xff]
        %v848 = vld [vmem:[#allocation7 + $0xd28] sm:$0xff]
        %v849 = vld [vmem:[#allocation7 + $0xd30] sm:$0xff]
        %v850 = vld [vmem:[#allocation7 + $0xd38] sm:$0xff]
        %v851 = vld [vmem:[#allocation7 + $0xd40] sm:$0xff]
        %v852 = vld [vmem:[#allocation7 + $0xd48] sm:$0xff]
        %v853 = vld [vmem:[#allocation7 + $0xd50] sm:$0xff]
        %v854 = vld [vmem:[#allocation7 + $0xd58] sm:$0xff]
        %v855 = vld [vmem:[#allocation7 + $0xd60] sm:$0xff]
        %v856 = vld [vmem:[#allocation7 + $0xd68] sm:$0xff]
        %v857 = vld [vmem:[#allocation7 + $0xd70] sm:$0xff]
        %v858 = vld [vmem:[#allocation7 + $0xd78] sm:$0xff]
        %v859 = vld [vmem:[#allocation7 + $0xd80] sm:$0xff]
        %v860 = vld [vmem:[#allocation7 + $0xd88] sm:$0xff]
        %v861 = vld [vmem:[#allocation7 + $0xd90] sm:$0xff]
        %v862 = vld [vmem:[#allocation7 + $0xd98] sm:$0xff]
        %v863 = vld [vmem:[#allocation7 + $0xda0] sm:$0xff]
        %v864 = vld [vmem:[#allocation7 + $0xda8] sm:$0xff]
        %v865 = vld [vmem:[#allocation7 + $0xdb0] sm:$0xff]
        %v866 = vld [vmem:[#allocation7 + $0xdb8] sm:$0xff]
        %v867 = vld [vmem:[#allocation7 + $0xdc0] sm:$0xff]
        %v868 = vld [vmem:[#allocation7 + $0xdc8] sm:$0xff]
        %v869 = vld [vmem:[#allocation7 + $0xdd0] sm:$0xff]
        %v870 = vld [vmem:[#allocation7 + $0xdd8] sm:$0xff]
        %v871 = vld [vmem:[#allocation7 + $0xde0] sm:$0xff]
        %v872 = vld [vmem:[#allocation7 + $0xde8] sm:$0xff]
        %v873 = vld [vmem:[#allocation7 + $0xdf0] sm:$0xff]
        %v874 = vld [vmem:[#allocation7 + $0xdf8] sm:$0xff]
        %v875 = vld [vmem:[#allocation7 + $0xe00] sm:$0xff]
        %v876 = vld [vmem:[#allocation7 + $0xe08] sm:$0xff]
        %v877 = vld [vmem:[#allocation7 + $0xe10] sm:$0xff]
        %v878 = vld [vmem:[#allocation7 + $0xe18] sm:$0xff]
        %v879 = vld [vmem:[#allocation7 + $0xe20] sm:$0xff]
        %v880 = vld [vmem:[#allocation7 + $0xe28] sm:$0xff]
        %v881 = vld [vmem:[#allocation7 + $0xe30] sm:$0xff]
        %v882 = vld [vmem:[#allocation7 + $0xe38] sm:$0xff]
        %v883 = vld [vmem:[#allocation7 + $0xe40] sm:$0xff]
        %v884 = vld [vmem:[#allocation7 + $0xe48] sm:$0xff]
        %v885 = vld [vmem:[#allocation7 + $0xe50] sm:$0xff]
        %v886 = vld [vmem:[#allocation7 + $0xe58] sm:$0xff]
        %v887 = vld [vmem:[#allocation7 + $0xe60] sm:$0xff]
        %v888 = vld [vmem:[#allocation7 + $0xe68] sm:$0xff]
        %v889 = vld [vmem:[#allocation7 + $0xe70] sm:$0xff]
        %v890 = vld [vmem:[#allocation7 + $0xe78] sm:$0xff]
        %v891 = vld [vmem:[#allocation7 + $0xe80] sm:$0xff]
        %v892 = vld [vmem:[#allocation7 + $0xe88] sm:$0xff]
        %v893 = vld [vmem:[#allocation7 + $0xe90] sm:$0xff]
        %v894 = vld [vmem:[#allocation7 + $0xe98] sm:$0xff]
        %v895 = vld [vmem:[#allocation7 + $0xea0] sm:$0xff]
        %v896 = vld [vmem:[#allocation7 + $0xea8] sm:$0xff]
        %v897 = vld [vmem:[#allocation7 + $0xeb0] sm:$0xff]
        %v898 = vld [vmem:[#allocation7 + $0xeb8] sm:$0xff]
        %v899 = vld [vmem:[#allocation7 + $0xec0] sm:$0xff]
        %v900 = vld [vmem:[#allocation7 + $0xec8] sm:$0xff]
        %v901 = vld [vmem:[#allocation7 + $0xed0] sm:$0xff]
        %v902 = vld [vmem:[#allocation7 + $0xed8] sm:$0xff]
        %v903 = vld [vmem:[#allocation7 + $0xee0] sm:$0xff]
        %v904 = vld [vmem:[#allocation7 + $0xee8] sm:$0xff]
        %v905 = vld [vmem:[#allocation7 + $0xef0] sm:$0xff]
        %v906 = vld [vmem:[#allocation7 + $0xef8] sm:$0xff]
        %v907 = vld [vmem:[#allocation7 + $0xf00] sm:$0xff]
        %v908 = vld [vmem:[#allocation7 + $0xf08] sm:$0xff]
        %v909 = vld [vmem:[#allocation7 + $0xf10] sm:$0xff]
        %v910 = vld [vmem:[#allocation7 + $0xf18] sm:$0xff]
        %v911 = vld [vmem:[#allocation7 + $0xf20] sm:$0xff]
        %v912 = vld [vmem:[#allocation7 + $0xf28] sm:$0xff]
        %v913 = vld [vmem:[#allocation7 + $0xf30] sm:$0xff]
        %v914 = vld [vmem:[#allocation7 + $0xf38] sm:$0xff]
        %v915 = vld [vmem:[#allocation7 + $0xf40] sm:$0xff]
        %v916 = vld [vmem:[#allocation7 + $0xf48] sm:$0xff]
        %v917 = vld [vmem:[#allocation7 + $0xf50] sm:$0xff]
        %v918 = vld [vmem:[#allocation7 + $0xf58] sm:$0xff]
        %v919 = vld [vmem:[#allocation7 + $0xf60] sm:$0xff]
        %v920 = vld [vmem:[#allocation7 + $0xf68] sm:$0xff]
        %v921 = vld [vmem:[#allocation7 + $0xf70] sm:$0xff]
        %v922 = vld [vmem:[#allocation7 + $0xf78] sm:$0xff]
        %v923 = vld [vmem:[#allocation7 + $0xf80] sm:$0xff]
        %v924 = vld [vmem:[#allocation7 + $0xf88] sm:$0xff]
        %v925 = vld [vmem:[#allocation7 + $0xf90] sm:$0xff]
        %v926 = vld [vmem:[#allocation7 + $0xf98] sm:$0xff]
        %v927 = vld [vmem:[#allocation7 + $0xfa0] sm:$0xff]
        %v928 = vld [vmem:[#allocation7 + $0xfa8] sm:$0xff]
        %v929 = vld [vmem:[#allocation7 + $0xfb0] sm:$0xff]
        %v930 = vld [vmem:[#allocation7 + $0xfb8] sm:$0xff]
        %v931 = vld [vmem:[#allocation7 + $0xfc0] sm:$0xff]
        %v932 = vld [vmem:[#allocation7 + $0xfc8] sm:$0xff]
        %v933 = vld [vmem:[#allocation7 + $0xfd0] sm:$0xff]
        %v934 = vld [vmem:[#allocation7 + $0xfd8] sm:$0xff]
        %v935 = vld [vmem:[#allocation7 + $0xfe0] sm:$0xff]
        %v936 = vld [vmem:[#allocation7 + $0xfe8] sm:$0xff]
        %v937 = vld [vmem:[#allocation7 + $0xff0] sm:$0xff]
        %v938 = vld [vmem:[#allocation7 + $0xff8] sm:$0xff]
        %v943 = vunpack.c.l.b16 %v423
        %v944 = vunpack.c.h.b16 %v423
        %v945 = vunpack.c.l.b16 %v424
        %v946 = vunpack.c.h.b16 %v424
        %v947 = vunpack.c.l.b16 %v425
        %v948 = vunpack.c.h.b16 %v425
        %v949 = vunpack.c.l.b16 %v426
        %v950 = vunpack.c.h.b16 %v426
        %v951 = vpack.c.b16 %v943, %v943
        %v952 = vpack.c.b16 %v944, %v944
        %v953 = vpack.c.b16 %v945, %v945
        %v954 = vpack.c.b16 %v946, %v946
        %v955 = vpack.c.b16 %v947, %v947
        %v956 = vpack.c.b16 %v948, %v948
        %v957 = vpack.c.b16 %v949, %v949
        %v958 = vpack.c.b16 %v950, %v950
        %v1479 = vunpack.c.l.b16 %v427
        %v1480 = vunpack.c.h.b16 %v427
        %v1481 = vunpack.c.l.b16 %v428
        %v1482 = vunpack.c.h.b16 %v428
        %v1483 = vunpack.c.l.b16 %v429
        %v1484 = vunpack.c.h.b16 %v429
        %v1485 = vunpack.c.l.b16 %v430
        %v1486 = vunpack.c.h.b16 %v430
        %v1487 = vunpack.c.l.b16 %v431
        %v1488 = vunpack.c.h.b16 %v431
        %v1489 = vunpack.c.l.b16 %v432
        %v1490 = vunpack.c.h.b16 %v432
        %v1491 = vunpack.c.l.b16 %v433
        %v1492 = vunpack.c.h.b16 %v433
        %v1493 = vunpack.c.l.b16 %v434
        %v1494 = vunpack.c.h.b16 %v434
        %v1495 = vunpack.c.l.b16 %v435
        %v1496 = vunpack.c.h.b16 %v435
        %v1497 = vunpack.c.l.b16 %v436
        %v1498 = vunpack.c.h.b16 %v436
        %v1499 = vunpack.c.l.b16 %v437
        %v1500 = vunpack.c.h.b16 %v437
        %v1501 = vunpack.c.l.b16 %v438
        %v1502 = vunpack.c.h.b16 %v438
        %v1503 = vunpack.c.l.b16 %v439
        %v1504 = vunpack.c.h.b16 %v439
        %v1505 = vunpack.c.l.b16 %v440
        %v1506 = vunpack.c.h.b16 %v440
        %v1507 = vunpack.c.l.b16 %v441
        %v1508 = vunpack.c.h.b16 %v441
        %v1509 = vunpack.c.l.b16 %v442
        %v1510 = vunpack.c.h.b16 %v442
        %v1511 = vunpack.c.l.b16 %v443
        %v1512 = vunpack.c.h.b16 %v443
        %v1513 = vunpack.c.l.b16 %v444
        %v1514 = vunpack.c.h.b16 %v444
        %v1515 = vunpack.c.l.b16 %v445
        %v1516 = vunpack.c.h.b16 %v445
        %v1517 = vunpack.c.l.b16 %v446
        %v1518 = vunpack.c.h.b16 %v446
        %v1519 = vunpack.c.l.b16 %v447
        %v1520 = vunpack.c.h.b16 %v447
        %v1521 = vunpack.c.l.b16 %v448
        %v1522 = vunpack.c.h.b16 %v448
        %v1523 = vunpack.c.l.b16 %v449
        %v1524 = vunpack.c.h.b16 %v449
        %v1525 = vunpack.c.l.b16 %v450
        %v1526 = vunpack.c.h.b16 %v450
        %v1527 = vunpack.c.l.b16 %v451
        %v1528 = vunpack.c.h.b16 %v451
        %v1529 = vunpack.c.l.b16 %v452
        %v1530 = vunpack.c.h.b16 %v452
        %v1531 = vunpack.c.l.b16 %v453
        %v1532 = vunpack.c.h.b16 %v453
        %v1533 = vunpack.c.l.b16 %v454
        %v1534 = vunpack.c.h.b16 %v454
        %v1535 = vunpack.c.l.b16 %v455
        %v1536 = vunpack.c.h.b16 %v455
        %v1537 = vunpack.c.l.b16 %v456
        %v1538 = vunpack.c.h.b16 %v456
        %v1539 = vunpack.c.l.b16 %v457
        %v1540 = vunpack.c.h.b16 %v457
        %v1541 = vunpack.c.l.b16 %v458
        %v1542 = vunpack.c.h.b16 %v458
        %v1543 = vunpack.c.l.b16 %v459
        %v1544 = vunpack.c.h.b16 %v459
        %v1545 = vunpack.c.l.b16 %v460
        %v1546 = vunpack.c.h.b16 %v460
        %v1547 = vunpack.c.l.b16 %v461
        %v1548 = vunpack.c.h.b16 %v461
        %v1549 = vunpack.c.l.b16 %v462
        %v1550 = vunpack.c.h.b16 %v462
        %v1551 = vunpack.c.l.b16 %v463
        %v1552 = vunpack.c.h.b16 %v463
        %v1553 = vunpack.c.l.b16 %v464
        %v1554 = vunpack.c.h.b16 %v464
        %v1555 = vunpack.c.l.b16 %v465
        %v1556 = vunpack.c.h.b16 %v465
        %v1557 = vunpack.c.l.b16 %v466
        %v1558 = vunpack.c.h.b16 %v466
        %v1559 = vunpack.c.l.b16 %v467
        %v1560 = vunpack.c.h.b16 %v467
        %v1561 = vunpack.c.l.b16 %v468
        %v1562 = vunpack.c.h.b16 %v468
        %v1563 = vunpack.c.l.b16 %v469
        %v1564 = vunpack.c.h.b16 %v469
        %v1565 = vunpack.c.l.b16 %v470
        %v1566 = vunpack.c.h.b16 %v470
        %v1567 = vunpack.c.l.b16 %v471
        %v1568 = vunpack.c.h.b16 %v471
        %v1569 = vunpack.c.l.b16 %v472
        %v1570 = vunpack.c.h.b16 %v472
        %v1571 = vunpack.c.l.b16 %v473
        %v1572 = vunpack.c.h.b16 %v473
        %v1573 = vunpack.c.l.b16 %v474
        %v1574 = vunpack.c.h.b16 %v474
        %v1575 = vunpack.c.l.b16 %v475
        %v1576 = vunpack.c.h.b16 %v475
        %v1577 = vunpack.c.l.b16 %v476
        %v1578 = vunpack.c.h.b16 %v476
        %v1579 = vunpack.c.l.b16 %v477
        %v1580 = vunpack.c.h.b16 %v477
        %v1581 = vunpack.c.l.b16 %v478
        %v1582 = vunpack.c.h.b16 %v478
        %v1583 = vunpack.c.l.b16 %v479
        %v1584 = vunpack.c.h.b16 %v479
        %v1585 = vunpack.c.l.b16 %v480
        %v1586 = vunpack.c.h.b16 %v480
        %v1587 = vunpack.c.l.b16 %v481
        %v1588 = vunpack.c.h.b16 %v481
        %v1589 = vunpack.c.l.b16 %v482
        %v1590 = vunpack.c.h.b16 %v482
        %v1591 = vunpack.c.l.b16 %v483
        %v1592 = vunpack.c.h.b16 %v483
        %v1593 = vunpack.c.l.b16 %v484
        %v1594 = vunpack.c.h.b16 %v484
        %v1595 = vunpack.c.l.b16 %v485
        %v1596 = vunpack.c.h.b16 %v485
        %v1597 = vunpack.c.l.b16 %v486
        %v1598 = vunpack.c.h.b16 %v486
        %v1599 = vunpack.c.l.b16 %v487
        %v1600 = vunpack.c.h.b16 %v487
        %v1601 = vunpack.c.l.b16 %v488
        %v1602 = vunpack.c.h.b16 %v488
        %v1603 = vunpack.c.l.b16 %v489
        %v1604 = vunpack.c.h.b16 %v489
        %v1605 = vunpack.c.l.b16 %v490
        %v1606 = vunpack.c.h.b16 %v490
        %v1607 = vunpack.c.l.b16 %v491
        %v1608 = vunpack.c.h.b16 %v491
        %v1609 = vunpack.c.l.b16 %v492
        %v1610 = vunpack.c.h.b16 %v492
        %v1611 = vunpack.c.l.b16 %v493
        %v1612 = vunpack.c.h.b16 %v493
        %v1613 = vunpack.c.l.b16 %v494
        %v1614 = vunpack.c.h.b16 %v494
        %v1615 = vunpack.c.l.b16 %v495
        %v1616 = vunpack.c.h.b16 %v495
        %v1617 = vunpack.c.l.b16 %v496
        %v1618 = vunpack.c.h.b16 %v496
        %v1619 = vunpack.c.l.b16 %v497
        %v1620 = vunpack.c.h.b16 %v497
        %v1621 = vunpack.c.l.b16 %v498
        %v1622 = vunpack.c.h.b16 %v498
        %v1623 = vunpack.c.l.b16 %v499
        %v1624 = vunpack.c.h.b16 %v499
        %v1625 = vunpack.c.l.b16 %v500
        %v1626 = vunpack.c.h.b16 %v500
        %v1627 = vunpack.c.l.b16 %v501
        %v1628 = vunpack.c.h.b16 %v501
        %v1629 = vunpack.c.l.b16 %v502
        %v1630 = vunpack.c.h.b16 %v502
        %v1631 = vunpack.c.l.b16 %v503
        %v1632 = vunpack.c.h.b16 %v503
        %v1633 = vunpack.c.l.b16 %v504
        %v1634 = vunpack.c.h.b16 %v504
        %v1635 = vunpack.c.l.b16 %v505
        %v1636 = vunpack.c.h.b16 %v505
        %v1637 = vunpack.c.l.b16 %v506
        %v1638 = vunpack.c.h.b16 %v506
        %v1639 = vunpack.c.l.b16 %v507
        %v1640 = vunpack.c.h.b16 %v507
        %v1641 = vunpack.c.l.b16 %v508
        %v1642 = vunpack.c.h.b16 %v508
        %v1643 = vunpack.c.l.b16 %v509
        %v1644 = vunpack.c.h.b16 %v509
        %v1645 = vunpack.c.l.b16 %v510
        %v1646 = vunpack.c.h.b16 %v510
        %v1647 = vunpack.c.l.b16 %v511
        %v1648 = vunpack.c.h.b16 %v511
        %v1649 = vunpack.c.l.b16 %v512
        %v1650 = vunpack.c.h.b16 %v512
        %v1651 = vunpack.c.l.b16 %v513
        %v1652 = vunpack.c.h.b16 %v513
        %v1653 = vunpack.c.l.b16 %v514
        %v1654 = vunpack.c.h.b16 %v514
        %v1655 = vunpack.c.l.b16 %v515
        %v1656 = vunpack.c.h.b16 %v515
        %v1657 = vunpack.c.l.b16 %v516
        %v1658 = vunpack.c.h.b16 %v516
        %v1659 = vunpack.c.l.b16 %v517
        %v1660 = vunpack.c.h.b16 %v517
        %v1661 = vunpack.c.l.b16 %v518
        %v1662 = vunpack.c.h.b16 %v518
        %v1663 = vunpack.c.l.b16 %v519
        %v1664 = vunpack.c.h.b16 %v519
        %v1665 = vunpack.c.l.b16 %v520
        %v1666 = vunpack.c.h.b16 %v520
        %v1667 = vunpack.c.l.b16 %v521
        %v1668 = vunpack.c.h.b16 %v521
        %v1669 = vunpack.c.l.b16 %v522
        %v1670 = vunpack.c.h.b16 %v522
        %v1671 = vunpack.c.l.b16 %v523
        %v1672 = vunpack.c.h.b16 %v523
        %v1673 = vunpack.c.l.b16 %v524
        %v1674 = vunpack.c.h.b16 %v524
        %v1675 = vunpack.c.l.b16 %v525
        %v1676 = vunpack.c.h.b16 %v525
        %v1677 = vunpack.c.l.b16 %v526
        %v1678 = vunpack.c.h.b16 %v526
        %v1679 = vunpack.c.l.b16 %v527
        %v1680 = vunpack.c.h.b16 %v527
        %v1681 = vunpack.c.l.b16 %v528
        %v1682 = vunpack.c.h.b16 %v528
        %v1683 = vunpack.c.l.b16 %v529
        %v1684 = vunpack.c.h.b16 %v529
        %v1685 = vunpack.c.l.b16 %v530
        %v1686 = vunpack.c.h.b16 %v530
        %v1687 = vunpack.c.l.b16 %v531
        %v1688 = vunpack.c.h.b16 %v531
        %v1689 = vunpack.c.l.b16 %v532
        %v1690 = vunpack.c.h.b16 %v532
        %v1691 = vunpack.c.l.b16 %v533
        %v1692 = vunpack.c.h.b16 %v533
        %v1693 = vunpack.c.l.b16 %v534
        %v1694 = vunpack.c.h.b16 %v534
        %v1695 = vunpack.c.l.b16 %v535
        %v1696 = vunpack.c.h.b16 %v535
        %v1697 = vunpack.c.l.b16 %v536
        %v1698 = vunpack.c.h.b16 %v536
        %v1699 = vunpack.c.l.b16 %v537
        %v1700 = vunpack.c.h.b16 %v537
        %v1701 = vunpack.c.l.b16 %v538
        %v1702 = vunpack.c.h.b16 %v538
        %v1703 = vunpack.c.l.b16 %v539
        %v1704 = vunpack.c.h.b16 %v539
        %v1705 = vunpack.c.l.b16 %v540
        %v1706 = vunpack.c.h.b16 %v540
        %v1707 = vunpack.c.l.b16 %v541
        %v1708 = vunpack.c.h.b16 %v541
        %v1709 = vunpack.c.l.b16 %v542
        %v1710 = vunpack.c.h.b16 %v542
        %v1711 = vunpack.c.l.b16 %v543
        %v1712 = vunpack.c.h.b16 %v543
        %v1713 = vunpack.c.l.b16 %v544
        %v1714 = vunpack.c.h.b16 %v544
        %v1715 = vunpack.c.l.b16 %v545
        %v1716 = vunpack.c.h.b16 %v545
        %v1717 = vunpack.c.l.b16 %v546
        %v1718 = vunpack.c.h.b16 %v546
        %v1719 = vunpack.c.l.b16 %v547
        %v1720 = vunpack.c.h.b16 %v547
        %v1721 = vunpack.c.l.b16 %v548
        %v1722 = vunpack.c.h.b16 %v548
        %v1723 = vunpack.c.l.b16 %v549
        %v1724 = vunpack.c.h.b16 %v549
        %v1725 = vunpack.c.l.b16 %v550
        %v1726 = vunpack.c.h.b16 %v550
        %v1727 = vunpack.c.l.b16 %v551
        %v1728 = vunpack.c.h.b16 %v551
        %v1729 = vunpack.c.l.b16 %v552
        %v1730 = vunpack.c.h.b16 %v552
        %v1731 = vunpack.c.l.b16 %v553
        %v1732 = vunpack.c.h.b16 %v553
        %v1733 = vunpack.c.l.b16 %v554
        %v1734 = vunpack.c.h.b16 %v554
        %v1735 = vunpack.c.l.b16 %v555
        %v1736 = vunpack.c.h.b16 %v555
        %v1737 = vunpack.c.l.b16 %v556
        %v1738 = vunpack.c.h.b16 %v556
        %v1739 = vunpack.c.l.b16 %v557
        %v1740 = vunpack.c.h.b16 %v557
        %v1741 = vunpack.c.l.b16 %v558
        %v1742 = vunpack.c.h.b16 %v558
        %v1743 = vunpack.c.l.b16 %v559
        %v1744 = vunpack.c.h.b16 %v559
        %v1745 = vunpack.c.l.b16 %v560
        %v1746 = vunpack.c.h.b16 %v560
        %v1747 = vunpack.c.l.b16 %v561
        %v1748 = vunpack.c.h.b16 %v561
        %v1749 = vunpack.c.l.b16 %v562
        %v1750 = vunpack.c.h.b16 %v562
        %v1751 = vunpack.c.l.b16 %v563
        %v1752 = vunpack.c.h.b16 %v563
        %v1753 = vunpack.c.l.b16 %v564
        %v1754 = vunpack.c.h.b16 %v564
        %v1755 = vunpack.c.l.b16 %v565
        %v1756 = vunpack.c.h.b16 %v565
        %v1757 = vunpack.c.l.b16 %v566
        %v1758 = vunpack.c.h.b16 %v566
        %v1759 = vunpack.c.l.b16 %v567
        %v1760 = vunpack.c.h.b16 %v567
        %v1761 = vunpack.c.l.b16 %v568
        %v1762 = vunpack.c.h.b16 %v568
        %v1763 = vunpack.c.l.b16 %v569
        %v1764 = vunpack.c.h.b16 %v569
        %v1765 = vunpack.c.l.b16 %v570
        %v1766 = vunpack.c.h.b16 %v570
        %v1767 = vunpack.c.l.b16 %v571
        %v1768 = vunpack.c.h.b16 %v571
        %v1769 = vunpack.c.l.b16 %v572
        %v1770 = vunpack.c.h.b16 %v572
        %v1771 = vunpack.c.l.b16 %v573
        %v1772 = vunpack.c.h.b16 %v573
        %v1773 = vunpack.c.l.b16 %v574
        %v1774 = vunpack.c.h.b16 %v574
        %v1775 = vunpack.c.l.b16 %v575
        %v1776 = vunpack.c.h.b16 %v575
        %v1777 = vunpack.c.l.b16 %v576
        %v1778 = vunpack.c.h.b16 %v576
        %v1779 = vunpack.c.l.b16 %v577
        %v1780 = vunpack.c.h.b16 %v577
        %v1781 = vunpack.c.l.b16 %v578
        %v1782 = vunpack.c.h.b16 %v578
        %v1783 = vunpack.c.l.b16 %v579
        %v1784 = vunpack.c.h.b16 %v579
        %v1785 = vunpack.c.l.b16 %v580
        %v1786 = vunpack.c.h.b16 %v580
        %v1787 = vunpack.c.l.b16 %v581
        %v1788 = vunpack.c.h.b16 %v581
        %v1789 = vunpack.c.l.b16 %v582
        %v1790 = vunpack.c.h.b16 %v582
        %v1791 = vunpack.c.l.b16 %v583
        %v1792 = vunpack.c.h.b16 %v583
        %v1793 = vunpack.c.l.b16 %v584
        %v1794 = vunpack.c.h.b16 %v584
        %v1795 = vunpack.c.l.b16 %v585
        %v1796 = vunpack.c.h.b16 %v585
        %v1797 = vunpack.c.l.b16 %v586
        %v1798 = vunpack.c.h.b16 %v586
        %v1799 = vunpack.c.l.b16 %v587
        %v1800 = vunpack.c.h.b16 %v587
        %v1801 = vunpack.c.l.b16 %v588
        %v1802 = vunpack.c.h.b16 %v588
        %v1803 = vunpack.c.l.b16 %v589
        %v1804 = vunpack.c.h.b16 %v589
        %v1805 = vunpack.c.l.b16 %v590
        %v1806 = vunpack.c.h.b16 %v590
        %v1807 = vunpack.c.l.b16 %v591
        %v1808 = vunpack.c.h.b16 %v591
        %v1809 = vunpack.c.l.b16 %v592
        %v1810 = vunpack.c.h.b16 %v592
        %v1811 = vunpack.c.l.b16 %v593
        %v1812 = vunpack.c.h.b16 %v593
        %v1813 = vunpack.c.l.b16 %v594
        %v1814 = vunpack.c.h.b16 %v594
        %v1815 = vunpack.c.l.b16 %v595
        %v1816 = vunpack.c.h.b16 %v595
        %v1817 = vunpack.c.l.b16 %v596
        %v1818 = vunpack.c.h.b16 %v596
        %v1819 = vunpack.c.l.b16 %v597
        %v1820 = vunpack.c.h.b16 %v597
        %v1821 = vunpack.c.l.b16 %v598
        %v1822 = vunpack.c.h.b16 %v598
        %v1823 = vunpack.c.l.b16 %v599
        %v1824 = vunpack.c.h.b16 %v599
        %v1825 = vunpack.c.l.b16 %v600
        %v1826 = vunpack.c.h.b16 %v600
        %v1827 = vunpack.c.l.b16 %v601
        %v1828 = vunpack.c.h.b16 %v601
        %v1829 = vunpack.c.l.b16 %v602
        %v1830 = vunpack.c.h.b16 %v602
        %v1831 = vunpack.c.l.b16 %v603
        %v1832 = vunpack.c.h.b16 %v603
        %v1833 = vunpack.c.l.b16 %v604
        %v1834 = vunpack.c.h.b16 %v604
        %v1835 = vunpack.c.l.b16 %v605
        %v1836 = vunpack.c.h.b16 %v605
        %v1837 = vunpack.c.l.b16 %v606
        %v1838 = vunpack.c.h.b16 %v606
        %v1839 = vunpack.c.l.b16 %v607
        %v1840 = vunpack.c.h.b16 %v607
        %v1841 = vunpack.c.l.b16 %v608
        %v1842 = vunpack.c.h.b16 %v608
        %v1843 = vunpack.c.l.b16 %v609
        %v1844 = vunpack.c.h.b16 %v609
        %v1845 = vunpack.c.l.b16 %v610
        %v1846 = vunpack.c.h.b16 %v610
        %v1847 = vunpack.c.l.b16 %v611
        %v1848 = vunpack.c.h.b16 %v611
        %v1849 = vunpack.c.l.b16 %v612
        %v1850 = vunpack.c.h.b16 %v612
        %v1851 = vunpack.c.l.b16 %v613
        %v1852 = vunpack.c.h.b16 %v613
        %v1853 = vunpack.c.l.b16 %v614
        %v1854 = vunpack.c.h.b16 %v614
        %v1855 = vunpack.c.l.b16 %v615
        %v1856 = vunpack.c.h.b16 %v615
        %v1857 = vunpack.c.l.b16 %v616
        %v1858 = vunpack.c.h.b16 %v616
        %v1859 = vunpack.c.l.b16 %v617
        %v1860 = vunpack.c.h.b16 %v617
        %v1861 = vunpack.c.l.b16 %v618
        %v1862 = vunpack.c.h.b16 %v618
        %v1863 = vunpack.c.l.b16 %v619
        %v1864 = vunpack.c.h.b16 %v619
        %v1865 = vunpack.c.l.b16 %v620
        %v1866 = vunpack.c.h.b16 %v620
        %v1867 = vunpack.c.l.b16 %v621
        %v1868 = vunpack.c.h.b16 %v621
        %v1869 = vunpack.c.l.b16 %v622
        %v1870 = vunpack.c.h.b16 %v622
        %v1871 = vunpack.c.l.b16 %v623
        %v1872 = vunpack.c.h.b16 %v623
        %v1873 = vunpack.c.l.b16 %v624
        %v1874 = vunpack.c.h.b16 %v624
        %v1875 = vunpack.c.l.b16 %v625
        %v1876 = vunpack.c.h.b16 %v625
        %v1877 = vunpack.c.l.b16 %v626
        %v1878 = vunpack.c.h.b16 %v626
        %v1879 = vunpack.c.l.b16 %v627
        %v1880 = vunpack.c.h.b16 %v627
        %v1881 = vunpack.c.l.b16 %v628
        %v1882 = vunpack.c.h.b16 %v628
        %v1883 = vunpack.c.l.b16 %v629
        %v1884 = vunpack.c.h.b16 %v629
        %v1885 = vunpack.c.l.b16 %v630
        %v1886 = vunpack.c.h.b16 %v630
        %v1887 = vunpack.c.l.b16 %v631
        %v1888 = vunpack.c.h.b16 %v631
        %v1889 = vunpack.c.l.b16 %v632
        %v1890 = vunpack.c.h.b16 %v632
        %v1891 = vunpack.c.l.b16 %v633
        %v1892 = vunpack.c.h.b16 %v633
        %v1893 = vunpack.c.l.b16 %v634
        %v1894 = vunpack.c.h.b16 %v634
        %v1895 = vunpack.c.l.b16 %v635
        %v1896 = vunpack.c.h.b16 %v635
        %v1897 = vunpack.c.l.b16 %v636
        %v1898 = vunpack.c.h.b16 %v636
        %v1899 = vunpack.c.l.b16 %v637
        %v1900 = vunpack.c.h.b16 %v637
        %v1901 = vunpack.c.l.b16 %v638
        %v1902 = vunpack.c.h.b16 %v638
        %v1903 = vunpack.c.l.b16 %v639
        %v1904 = vunpack.c.h.b16 %v639
        %v1905 = vunpack.c.l.b16 %v640
        %v1906 = vunpack.c.h.b16 %v640
        %v1907 = vunpack.c.l.b16 %v641
        %v1908 = vunpack.c.h.b16 %v641
        %v1909 = vunpack.c.l.b16 %v642
        %v1910 = vunpack.c.h.b16 %v642
        %v1911 = vunpack.c.l.b16 %v643
        %v1912 = vunpack.c.h.b16 %v643
        %v1913 = vunpack.c.l.b16 %v644
        %v1914 = vunpack.c.h.b16 %v644
        %v1915 = vunpack.c.l.b16 %v645
        %v1916 = vunpack.c.h.b16 %v645
        %v1917 = vunpack.c.l.b16 %v646
        %v1918 = vunpack.c.h.b16 %v646
        %v1919 = vunpack.c.l.b16 %v647
        %v1920 = vunpack.c.h.b16 %v647
        %v1921 = vunpack.c.l.b16 %v648
        %v1922 = vunpack.c.h.b16 %v648
        %v1923 = vunpack.c.l.b16 %v649
        %v1924 = vunpack.c.h.b16 %v649
        %v1925 = vunpack.c.l.b16 %v650
        %v1926 = vunpack.c.h.b16 %v650
        %v1927 = vunpack.c.l.b16 %v651
        %v1928 = vunpack.c.h.b16 %v651
        %v1929 = vunpack.c.l.b16 %v652
        %v1930 = vunpack.c.h.b16 %v652
        %v1931 = vunpack.c.l.b16 %v653
        %v1932 = vunpack.c.h.b16 %v653
        %v1933 = vunpack.c.l.b16 %v654
        %v1934 = vunpack.c.h.b16 %v654
        %v1935 = vunpack.c.l.b16 %v655
        %v1936 = vunpack.c.h.b16 %v655
        %v1937 = vunpack.c.l.b16 %v656
        %v1938 = vunpack.c.h.b16 %v656
        %v1939 = vunpack.c.l.b16 %v657
        %v1940 = vunpack.c.h.b16 %v657
        %v1941 = vunpack.c.l.b16 %v658
        %v1942 = vunpack.c.h.b16 %v658
        %v1943 = vunpack.c.l.b16 %v659
        %v1944 = vunpack.c.h.b16 %v659
        %v1945 = vunpack.c.l.b16 %v660
        %v1946 = vunpack.c.h.b16 %v660
        %v1947 = vunpack.c.l.b16 %v661
        %v1948 = vunpack.c.h.b16 %v661
        %v1949 = vunpack.c.l.b16 %v662
        %v1950 = vunpack.c.h.b16 %v662
        %v1951 = vunpack.c.l.b16 %v663
        %v1952 = vunpack.c.h.b16 %v663
        %v1953 = vunpack.c.l.b16 %v664
        %v1954 = vunpack.c.h.b16 %v664
        %v1955 = vunpack.c.l.b16 %v665
        %v1956 = vunpack.c.h.b16 %v665
        %v1957 = vunpack.c.l.b16 %v666
        %v1958 = vunpack.c.h.b16 %v666
        %v1959 = vunpack.c.l.b16 %v667
        %v1960 = vunpack.c.h.b16 %v667
        %v1961 = vunpack.c.l.b16 %v668
        %v1962 = vunpack.c.h.b16 %v668
        %v1963 = vunpack.c.l.b16 %v669
        %v1964 = vunpack.c.h.b16 %v669
        %v1965 = vunpack.c.l.b16 %v670
        %v1966 = vunpack.c.h.b16 %v670
        %v1967 = vunpack.c.l.b16 %v671
        %v1968 = vunpack.c.h.b16 %v671
        %v1969 = vunpack.c.l.b16 %v672
        %v1970 = vunpack.c.h.b16 %v672
        %v1971 = vunpack.c.l.b16 %v673
        %v1972 = vunpack.c.h.b16 %v673
        %v1973 = vunpack.c.l.b16 %v674
        %v1974 = vunpack.c.h.b16 %v674
        %v1975 = vunpack.c.l.b16 %v675
        %v1976 = vunpack.c.h.b16 %v675
        %v1977 = vunpack.c.l.b16 %v676
        %v1978 = vunpack.c.h.b16 %v676
        %v1979 = vunpack.c.l.b16 %v677
        %v1980 = vunpack.c.h.b16 %v677
        %v1981 = vunpack.c.l.b16 %v678
        %v1982 = vunpack.c.h.b16 %v678
        %v1983 = vunpack.c.l.b16 %v679
        %v1984 = vunpack.c.h.b16 %v679
        %v1985 = vunpack.c.l.b16 %v680
        %v1986 = vunpack.c.h.b16 %v680
        %v1987 = vunpack.c.l.b16 %v681
        %v1988 = vunpack.c.h.b16 %v681
        %v1989 = vunpack.c.l.b16 %v682
        %v1990 = vunpack.c.h.b16 %v682
        %v1991 = vunpack.c.l.b16 %v683
        %v1992 = vunpack.c.h.b16 %v683
        %v1993 = vunpack.c.l.b16 %v684
        %v1994 = vunpack.c.h.b16 %v684
        %v1995 = vunpack.c.l.b16 %v685
        %v1996 = vunpack.c.h.b16 %v685
        %v1997 = vunpack.c.l.b16 %v686
        %v1998 = vunpack.c.h.b16 %v686
        %v1999 = vunpack.c.l.b16 %v687
        %v2000 = vunpack.c.h.b16 %v687
        %v2001 = vunpack.c.l.b16 %v688
        %v2002 = vunpack.c.h.b16 %v688
        %v2003 = vunpack.c.l.b16 %v689
        %v2004 = vunpack.c.h.b16 %v689
        %v2005 = vunpack.c.l.b16 %v690
        %v2006 = vunpack.c.h.b16 %v690
        %v2007 = vunpack.c.l.b16 %v691
        %v2008 = vunpack.c.h.b16 %v691
        %v2009 = vunpack.c.l.b16 %v692
        %v2010 = vunpack.c.h.b16 %v692
        %v2011 = vunpack.c.l.b16 %v693
        %v2012 = vunpack.c.h.b16 %v693
        %v2013 = vunpack.c.l.b16 %v694
        %v2014 = vunpack.c.h.b16 %v694
        %v2015 = vunpack.c.l.b16 %v695
        %v2016 = vunpack.c.h.b16 %v695
        %v2017 = vunpack.c.l.b16 %v696
        %v2018 = vunpack.c.h.b16 %v696
        %v2019 = vunpack.c.l.b16 %v697
        %v2020 = vunpack.c.h.b16 %v697
        %v2021 = vunpack.c.l.b16 %v698
        %v2022 = vunpack.c.h.b16 %v698
        %v2023 = vunpack.c.l.b16 %v699
        %v2024 = vunpack.c.h.b16 %v699
        %v2025 = vunpack.c.l.b16 %v700
        %v2026 = vunpack.c.h.b16 %v700
        %v2027 = vunpack.c.l.b16 %v701
        %v2028 = vunpack.c.h.b16 %v701
        %v2029 = vunpack.c.l.b16 %v702
        %v2030 = vunpack.c.h.b16 %v702
        %v2031 = vunpack.c.l.b16 %v703
        %v2032 = vunpack.c.h.b16 %v703
        %v2033 = vunpack.c.l.b16 %v704
        %v2034 = vunpack.c.h.b16 %v704
        %v2035 = vunpack.c.l.b16 %v705
        %v2036 = vunpack.c.h.b16 %v705
        %v2037 = vunpack.c.l.b16 %v706
        %v2038 = vunpack.c.h.b16 %v706
        %v2039 = vunpack.c.l.b16 %v707
        %v2040 = vunpack.c.h.b16 %v707
        %v2041 = vunpack.c.l.b16 %v708
        %v2042 = vunpack.c.h.b16 %v708
        %v2043 = vunpack.c.l.b16 %v709
        %v2044 = vunpack.c.h.b16 %v709
        %v2045 = vunpack.c.l.b16 %v710
        %v2046 = vunpack.c.h.b16 %v710
        %v2047 = vunpack.c.l.b16 %v711
        %v2048 = vunpack.c.h.b16 %v711
        %v2049 = vunpack.c.l.b16 %v712
        %v2050 = vunpack.c.h.b16 %v712
        %v2051 = vunpack.c.l.b16 %v713
        %v2052 = vunpack.c.h.b16 %v713
        %v2053 = vunpack.c.l.b16 %v714
        %v2054 = vunpack.c.h.b16 %v714
        %v2055 = vunpack.c.l.b16 %v715
        %v2056 = vunpack.c.h.b16 %v715
        %v2057 = vunpack.c.l.b16 %v716
        %v2058 = vunpack.c.h.b16 %v716
        %v2059 = vunpack.c.l.b16 %v717
        %v2060 = vunpack.c.h.b16 %v717
        %v2061 = vunpack.c.l.b16 %v718
        %v2062 = vunpack.c.h.b16 %v718
        %v2063 = vunpack.c.l.b16 %v719
        %v2064 = vunpack.c.h.b16 %v719
        %v2065 = vunpack.c.l.b16 %v720
        %v2066 = vunpack.c.h.b16 %v720
        %v2067 = vunpack.c.l.b16 %v721
        %v2068 = vunpack.c.h.b16 %v721
        %v2069 = vunpack.c.l.b16 %v722
        %v2070 = vunpack.c.h.b16 %v722
        %v2071 = vunpack.c.l.b16 %v723
        %v2072 = vunpack.c.h.b16 %v723
        %v2073 = vunpack.c.l.b16 %v724
        %v2074 = vunpack.c.h.b16 %v724
        %v2075 = vunpack.c.l.b16 %v725
        %v2076 = vunpack.c.h.b16 %v725
        %v2077 = vunpack.c.l.b16 %v726
        %v2078 = vunpack.c.h.b16 %v726
        %v2079 = vunpack.c.l.b16 %v727
        %v2080 = vunpack.c.h.b16 %v727
        %v2081 = vunpack.c.l.b16 %v728
        %v2082 = vunpack.c.h.b16 %v728
        %v2083 = vunpack.c.l.b16 %v729
        %v2084 = vunpack.c.h.b16 %v729
        %v2085 = vunpack.c.l.b16 %v730
        %v2086 = vunpack.c.h.b16 %v730
        %v2087 = vunpack.c.l.b16 %v731
        %v2088 = vunpack.c.h.b16 %v731
        %v2089 = vunpack.c.l.b16 %v732
        %v2090 = vunpack.c.h.b16 %v732
        %v2091 = vunpack.c.l.b16 %v733
        %v2092 = vunpack.c.h.b16 %v733
        %v2093 = vunpack.c.l.b16 %v734
        %v2094 = vunpack.c.h.b16 %v734
        %v2095 = vunpack.c.l.b16 %v735
        %v2096 = vunpack.c.h.b16 %v735
        %v2097 = vunpack.c.l.b16 %v736
        %v2098 = vunpack.c.h.b16 %v736
        %v2099 = vunpack.c.l.b16 %v737
        %v2100 = vunpack.c.h.b16 %v737
        %v2101 = vunpack.c.l.b16 %v738
        %v2102 = vunpack.c.h.b16 %v738
        %v2103 = vunpack.c.l.b16 %v739
        %v2104 = vunpack.c.h.b16 %v739
        %v2105 = vunpack.c.l.b16 %v740
        %v2106 = vunpack.c.h.b16 %v740
        %v2107 = vunpack.c.l.b16 %v741
        %v2108 = vunpack.c.h.b16 %v741
        %v2109 = vunpack.c.l.b16 %v742
        %v2110 = vunpack.c.h.b16 %v742
        %v2111 = vunpack.c.l.b16 %v743
        %v2112 = vunpack.c.h.b16 %v743
        %v2113 = vunpack.c.l.b16 %v744
        %v2114 = vunpack.c.h.b16 %v744
        %v2115 = vunpack.c.l.b16 %v745
        %v2116 = vunpack.c.h.b16 %v745
        %v2117 = vunpack.c.l.b16 %v746
        %v2118 = vunpack.c.h.b16 %v746
        %v2119 = vunpack.c.l.b16 %v747
        %v2120 = vunpack.c.h.b16 %v747
        %v2121 = vunpack.c.l.b16 %v748
        %v2122 = vunpack.c.h.b16 %v748
        %v2123 = vunpack.c.l.b16 %v749
        %v2124 = vunpack.c.h.b16 %v749
        %v2125 = vunpack.c.l.b16 %v750
        %v2126 = vunpack.c.h.b16 %v750
        %v2127 = vunpack.c.l.b16 %v751
        %v2128 = vunpack.c.h.b16 %v751
        %v2129 = vunpack.c.l.b16 %v752
        %v2130 = vunpack.c.h.b16 %v752
        %v2131 = vunpack.c.l.b16 %v753
        %v2132 = vunpack.c.h.b16 %v753
        %v2133 = vunpack.c.l.b16 %v754
        %v2134 = vunpack.c.h.b16 %v754
        %v2135 = vunpack.c.l.b16 %v755
        %v2136 = vunpack.c.h.b16 %v755
        %v2137 = vunpack.c.l.b16 %v756
        %v2138 = vunpack.c.h.b16 %v756
        %v2139 = vunpack.c.l.b16 %v757
        %v2140 = vunpack.c.h.b16 %v757
        %v2141 = vunpack.c.l.b16 %v758
        %v2142 = vunpack.c.h.b16 %v758
        %v2143 = vunpack.c.l.b16 %v759
        %v2144 = vunpack.c.h.b16 %v759
        %v2145 = vunpack.c.l.b16 %v760
        %v2146 = vunpack.c.h.b16 %v760
        %v2147 = vunpack.c.l.b16 %v761
        %v2148 = vunpack.c.h.b16 %v761
        %v2149 = vunpack.c.l.b16 %v762
        %v2150 = vunpack.c.h.b16 %v762
        %v2151 = vunpack.c.l.b16 %v763
        %v2152 = vunpack.c.h.b16 %v763
        %v2153 = vunpack.c.l.b16 %v764
        %v2154 = vunpack.c.h.b16 %v764
        %v2155 = vunpack.c.l.b16 %v765
        %v2156 = vunpack.c.h.b16 %v765
        %v2157 = vunpack.c.l.b16 %v766
        %v2158 = vunpack.c.h.b16 %v766
        %v2159 = vunpack.c.l.b16 %v767
        %v2160 = vunpack.c.h.b16 %v767
        %v2161 = vunpack.c.l.b16 %v768
        %v2162 = vunpack.c.h.b16 %v768
        %v2163 = vunpack.c.l.b16 %v769
        %v2164 = vunpack.c.h.b16 %v769
        %v2165 = vunpack.c.l.b16 %v770
        %v2166 = vunpack.c.h.b16 %v770
        %v2167 = vunpack.c.l.b16 %v771
        %v2168 = vunpack.c.h.b16 %v771
        %v2169 = vunpack.c.l.b16 %v772
        %v2170 = vunpack.c.h.b16 %v772
        %v2171 = vunpack.c.l.b16 %v773
        %v2172 = vunpack.c.h.b16 %v773
        %v2173 = vunpack.c.l.b16 %v774
        %v2174 = vunpack.c.h.b16 %v774
        %v2175 = vunpack.c.l.b16 %v775
        %v2176 = vunpack.c.h.b16 %v775
        %v2177 = vunpack.c.l.b16 %v776
        %v2178 = vunpack.c.h.b16 %v776
        %v2179 = vunpack.c.l.b16 %v777
        %v2180 = vunpack.c.h.b16 %v777
        %v2181 = vunpack.c.l.b16 %v778
        %v2182 = vunpack.c.h.b16 %v778
        %v2183 = vunpack.c.l.b16 %v779
        %v2184 = vunpack.c.h.b16 %v779
        %v2185 = vunpack.c.l.b16 %v780
        %v2186 = vunpack.c.h.b16 %v780
        %v2187 = vunpack.c.l.b16 %v781
        %v2188 = vunpack.c.h.b16 %v781
        %v2189 = vunpack.c.l.b16 %v782
        %v2190 = vunpack.c.h.b16 %v782
        %v2191 = vunpack.c.l.b16 %v783
        %v2192 = vunpack.c.h.b16 %v783
        %v2193 = vunpack.c.l.b16 %v784
        %v2194 = vunpack.c.h.b16 %v784
        %v2195 = vunpack.c.l.b16 %v785
        %v2196 = vunpack.c.h.b16 %v785
        %v2197 = vunpack.c.l.b16 %v786
        %v2198 = vunpack.c.h.b16 %v786
        %v2199 = vunpack.c.l.b16 %v787
        %v2200 = vunpack.c.h.b16 %v787
        %v2201 = vunpack.c.l.b16 %v788
        %v2202 = vunpack.c.h.b16 %v788
        %v2203 = vunpack.c.l.b16 %v789
        %v2204 = vunpack.c.h.b16 %v789
        %v2205 = vunpack.c.l.b16 %v790
        %v2206 = vunpack.c.h.b16 %v790
        %v2207 = vunpack.c.l.b16 %v791
        %v2208 = vunpack.c.h.b16 %v791
        %v2209 = vunpack.c.l.b16 %v792
        %v2210 = vunpack.c.h.b16 %v792
        %v2211 = vunpack.c.l.b16 %v793
        %v2212 = vunpack.c.h.b16 %v793
        %v2213 = vunpack.c.l.b16 %v794
        %v2214 = vunpack.c.h.b16 %v794
        %v2215 = vunpack.c.l.b16 %v795
        %v2216 = vunpack.c.h.b16 %v795
        %v2217 = vunpack.c.l.b16 %v796
        %v2218 = vunpack.c.h.b16 %v796
        %v2219 = vunpack.c.l.b16 %v797
        %v2220 = vunpack.c.h.b16 %v797
        %v2221 = vunpack.c.l.b16 %v798
        %v2222 = vunpack.c.h.b16 %v798
        %v2223 = vunpack.c.l.b16 %v799
        %v2224 = vunpack.c.h.b16 %v799
        %v2225 = vunpack.c.l.b16 %v800
        %v2226 = vunpack.c.h.b16 %v800
        %v2227 = vunpack.c.l.b16 %v801
        %v2228 = vunpack.c.h.b16 %v801
        %v2229 = vunpack.c.l.b16 %v802
        %v2230 = vunpack.c.h.b16 %v802
        %v2231 = vunpack.c.l.b16 %v803
        %v2232 = vunpack.c.h.b16 %v803
        %v2233 = vunpack.c.l.b16 %v804
        %v2234 = vunpack.c.h.b16 %v804
        %v2235 = vunpack.c.l.b16 %v805
        %v2236 = vunpack.c.h.b16 %v805
        %v2237 = vunpack.c.l.b16 %v806
        %v2238 = vunpack.c.h.b16 %v806
        %v2239 = vunpack.c.l.b16 %v807
        %v2240 = vunpack.c.h.b16 %v807
        %v2241 = vunpack.c.l.b16 %v808
        %v2242 = vunpack.c.h.b16 %v808
        %v2243 = vunpack.c.l.b16 %v809
        %v2244 = vunpack.c.h.b16 %v809
        %v2245 = vunpack.c.l.b16 %v810
        %v2246 = vunpack.c.h.b16 %v810
        %v2247 = vunpack.c.l.b16 %v811
        %v2248 = vunpack.c.h.b16 %v811
        %v2249 = vunpack.c.l.b16 %v812
        %v2250 = vunpack.c.h.b16 %v812
        %v2251 = vunpack.c.l.b16 %v813
        %v2252 = vunpack.c.h.b16 %v813
        %v2253 = vunpack.c.l.b16 %v814
        %v2254 = vunpack.c.h.b16 %v814
        %v2255 = vunpack.c.l.b16 %v815
        %v2256 = vunpack.c.h.b16 %v815
        %v2257 = vunpack.c.l.b16 %v816
        %v2258 = vunpack.c.h.b16 %v816
        %v2259 = vunpack.c.l.b16 %v817
        %v2260 = vunpack.c.h.b16 %v817
        %v2261 = vunpack.c.l.b16 %v818
        %v2262 = vunpack.c.h.b16 %v818
        %v2263 = vunpack.c.l.b16 %v819
        %v2264 = vunpack.c.h.b16 %v819
        %v2265 = vunpack.c.l.b16 %v820
        %v2266 = vunpack.c.h.b16 %v820
        %v2267 = vunpack.c.l.b16 %v821
        %v2268 = vunpack.c.h.b16 %v821
        %v2269 = vunpack.c.l.b16 %v822
        %v2270 = vunpack.c.h.b16 %v822
        %v2271 = vunpack.c.l.b16 %v823
        %v2272 = vunpack.c.h.b16 %v823
        %v2273 = vunpack.c.l.b16 %v824
        %v2274 = vunpack.c.h.b16 %v824
        %v2275 = vunpack.c.l.b16 %v825
        %v2276 = vunpack.c.h.b16 %v825
        %v2277 = vunpack.c.l.b16 %v826
        %v2278 = vunpack.c.h.b16 %v826
        %v2279 = vunpack.c.l.b16 %v827
        %v2280 = vunpack.c.h.b16 %v827
        %v2281 = vunpack.c.l.b16 %v828
        %v2282 = vunpack.c.h.b16 %v828
        %v2283 = vunpack.c.l.b16 %v829
        %v2284 = vunpack.c.h.b16 %v829
        %v2285 = vunpack.c.l.b16 %v830
        %v2286 = vunpack.c.h.b16 %v830
        %v2287 = vunpack.c.l.b16 %v831
        %v2288 = vunpack.c.h.b16 %v831
        %v2289 = vunpack.c.l.b16 %v832
        %v2290 = vunpack.c.h.b16 %v832
        %v2291 = vunpack.c.l.b16 %v833
        %v2292 = vunpack.c.h.b16 %v833
        %v2293 = vunpack.c.l.b16 %v834
        %v2294 = vunpack.c.h.b16 %v834
        %v2295 = vunpack.c.l.b16 %v835
        %v2296 = vunpack.c.h.b16 %v835
        %v2297 = vunpack.c.l.b16 %v836
        %v2298 = vunpack.c.h.b16 %v836
        %v2299 = vunpack.c.l.b16 %v837
        %v2300 = vunpack.c.h.b16 %v837
        %v2301 = vunpack.c.l.b16 %v838
        %v2302 = vunpack.c.h.b16 %v838
        %v2303 = vunpack.c.l.b16 %v839
        %v2304 = vunpack.c.h.b16 %v839
        %v2305 = vunpack.c.l.b16 %v840
        %v2306 = vunpack.c.h.b16 %v840
        %v2307 = vunpack.c.l.b16 %v841
        %v2308 = vunpack.c.h.b16 %v841
        %v2309 = vunpack.c.l.b16 %v842
        %v2310 = vunpack.c.h.b16 %v842
        %v2311 = vunpack.c.l.b16 %v843
        %v2312 = vunpack.c.h.b16 %v843
        %v2313 = vunpack.c.l.b16 %v844
        %v2314 = vunpack.c.h.b16 %v844
        %v2315 = vunpack.c.l.b16 %v845
        %v2316 = vunpack.c.h.b16 %v845
        %v2317 = vunpack.c.l.b16 %v846
        %v2318 = vunpack.c.h.b16 %v846
        %v2319 = vunpack.c.l.b16 %v847
        %v2320 = vunpack.c.h.b16 %v847
        %v2321 = vunpack.c.l.b16 %v848
        %v2322 = vunpack.c.h.b16 %v848
        %v2323 = vunpack.c.l.b16 %v849
        %v2324 = vunpack.c.h.b16 %v849
        %v2325 = vunpack.c.l.b16 %v850
        %v2326 = vunpack.c.h.b16 %v850
        %v2327 = vunpack.c.l.b16 %v851
        %v2328 = vunpack.c.h.b16 %v851
        %v2329 = vunpack.c.l.b16 %v852
        %v2330 = vunpack.c.h.b16 %v852
        %v2331 = vunpack.c.l.b16 %v853
        %v2332 = vunpack.c.h.b16 %v853
        %v2333 = vunpack.c.l.b16 %v854
        %v2334 = vunpack.c.h.b16 %v854
        %v2335 = vunpack.c.l.b16 %v855
        %v2336 = vunpack.c.h.b16 %v855
        %v2337 = vunpack.c.l.b16 %v856
        %v2338 = vunpack.c.h.b16 %v856
        %v2339 = vunpack.c.l.b16 %v857
        %v2340 = vunpack.c.h.b16 %v857
        %v2341 = vunpack.c.l.b16 %v858
        %v2342 = vunpack.c.h.b16 %v858
        %v2343 = vunpack.c.l.b16 %v859
        %v2344 = vunpack.c.h.b16 %v859
        %v2345 = vunpack.c.l.b16 %v860
        %v2346 = vunpack.c.h.b16 %v860
        %v2347 = vunpack.c.l.b16 %v861
        %v2348 = vunpack.c.h.b16 %v861
        %v2349 = vunpack.c.l.b16 %v862
        %v2350 = vunpack.c.h.b16 %v862
        %v2351 = vunpack.c.l.b16 %v863
        %v2352 = vunpack.c.h.b16 %v863
        %v2353 = vunpack.c.l.b16 %v864
        %v2354 = vunpack.c.h.b16 %v864
        %v2355 = vunpack.c.l.b16 %v865
        %v2356 = vunpack.c.h.b16 %v865
        %v2357 = vunpack.c.l.b16 %v866
        %v2358 = vunpack.c.h.b16 %v866
        %v2359 = vunpack.c.l.b16 %v867
        %v2360 = vunpack.c.h.b16 %v867
        %v2361 = vunpack.c.l.b16 %v868
        %v2362 = vunpack.c.h.b16 %v868
        %v2363 = vunpack.c.l.b16 %v869
        %v2364 = vunpack.c.h.b16 %v869
        %v2365 = vunpack.c.l.b16 %v870
        %v2366 = vunpack.c.h.b16 %v870
        %v2367 = vunpack.c.l.b16 %v871
        %v2368 = vunpack.c.h.b16 %v871
        %v2369 = vunpack.c.l.b16 %v872
        %v2370 = vunpack.c.h.b16 %v872
        %v2371 = vunpack.c.l.b16 %v873
        %v2372 = vunpack.c.h.b16 %v873
        %v2373 = vunpack.c.l.b16 %v874
        %v2374 = vunpack.c.h.b16 %v874
        %v2375 = vunpack.c.l.b16 %v875
        %v2376 = vunpack.c.h.b16 %v875
        %v2377 = vunpack.c.l.b16 %v876
        %v2378 = vunpack.c.h.b16 %v876
        %v2379 = vunpack.c.l.b16 %v877
        %v2380 = vunpack.c.h.b16 %v877
        %v2381 = vunpack.c.l.b16 %v878
        %v2382 = vunpack.c.h.b16 %v878
        %v2383 = vunpack.c.l.b16 %v879
        %v2384 = vunpack.c.h.b16 %v879
        %v2385 = vunpack.c.l.b16 %v880
        %v2386 = vunpack.c.h.b16 %v880
        %v2387 = vunpack.c.l.b16 %v881
        %v2388 = vunpack.c.h.b16 %v881
        %v2389 = vunpack.c.l.b16 %v882
        %v2390 = vunpack.c.h.b16 %v882
        %v2391 = vunpack.c.l.b16 %v883
        %v2392 = vunpack.c.h.b16 %v883
        %v2393 = vunpack.c.l.b16 %v884
        %v2394 = vunpack.c.h.b16 %v884
        %v2395 = vunpack.c.l.b16 %v885
        %v2396 = vunpack.c.h.b16 %v885
        %v2397 = vunpack.c.l.b16 %v886
        %v2398 = vunpack.c.h.b16 %v886
        %v2399 = vunpack.c.l.b16 %v887
        %v2400 = vunpack.c.h.b16 %v887
        %v2401 = vunpack.c.l.b16 %v888
        %v2402 = vunpack.c.h.b16 %v888
        %v2403 = vunpack.c.l.b16 %v889
        %v2404 = vunpack.c.h.b16 %v889
        %v2405 = vunpack.c.l.b16 %v890
        %v2406 = vunpack.c.h.b16 %v890
        %v2407 = vunpack.c.l.b16 %v891
        %v2408 = vunpack.c.h.b16 %v891
        %v2409 = vunpack.c.l.b16 %v892
        %v2410 = vunpack.c.h.b16 %v892
        %v2411 = vunpack.c.l.b16 %v893
        %v2412 = vunpack.c.h.b16 %v893
        %v2413 = vunpack.c.l.b16 %v894
        %v2414 = vunpack.c.h.b16 %v894
        %v2415 = vunpack.c.l.b16 %v895
        %v2416 = vunpack.c.h.b16 %v895
        %v2417 = vunpack.c.l.b16 %v896
        %v2418 = vunpack.c.h.b16 %v896
        %v2419 = vunpack.c.l.b16 %v897
        %v2420 = vunpack.c.h.b16 %v897
        %v2421 = vunpack.c.l.b16 %v898
        %v2422 = vunpack.c.h.b16 %v898
        %v2423 = vunpack.c.l.b16 %v899
        %v2424 = vunpack.c.h.b16 %v899
        %v2425 = vunpack.c.l.b16 %v900
        %v2426 = vunpack.c.h.b16 %v900
        %v2427 = vunpack.c.l.b16 %v901
        %v2428 = vunpack.c.h.b16 %v901
        %v2429 = vunpack.c.l.b16 %v902
        %v2430 = vunpack.c.h.b16 %v902
        %v2431 = vunpack.c.l.b16 %v903
        %v2432 = vunpack.c.h.b16 %v903
        %v2433 = vunpack.c.l.b16 %v904
        %v2434 = vunpack.c.h.b16 %v904
        %v2435 = vunpack.c.l.b16 %v905
        %v2436 = vunpack.c.h.b16 %v905
        %v2437 = vunpack.c.l.b16 %v906
        %v2438 = vunpack.c.h.b16 %v906
        %v2439 = vunpack.c.l.b16 %v907
        %v2440 = vunpack.c.h.b16 %v907
        %v2441 = vunpack.c.l.b16 %v908
        %v2442 = vunpack.c.h.b16 %v908
        %v2443 = vunpack.c.l.b16 %v909
        %v2444 = vunpack.c.h.b16 %v909
        %v2445 = vunpack.c.l.b16 %v910
        %v2446 = vunpack.c.h.b16 %v910
        %v2447 = vunpack.c.l.b16 %v911
        %v2448 = vunpack.c.h.b16 %v911
        %v2449 = vunpack.c.l.b16 %v912
        %v2450 = vunpack.c.h.b16 %v912
        %v2451 = vunpack.c.l.b16 %v913
        %v2452 = vunpack.c.h.b16 %v913
        %v2453 = vunpack.c.l.b16 %v914
        %v2454 = vunpack.c.h.b16 %v914
        %v2455 = vunpack.c.l.b16 %v915
        %v2456 = vunpack.c.h.b16 %v915
        %v2457 = vunpack.c.l.b16 %v916
        %v2458 = vunpack.c.h.b16 %v916
        %v2459 = vunpack.c.l.b16 %v917
        %v2460 = vunpack.c.h.b16 %v917
        %v2461 = vunpack.c.l.b16 %v918
        %v2462 = vunpack.c.h.b16 %v918
        %v2463 = vunpack.c.l.b16 %v919
        %v2464 = vunpack.c.h.b16 %v919
        %v2465 = vunpack.c.l.b16 %v920
        %v2466 = vunpack.c.h.b16 %v920
        %v2467 = vunpack.c.l.b16 %v921
        %v2468 = vunpack.c.h.b16 %v921
        %v2469 = vunpack.c.l.b16 %v922
        %v2470 = vunpack.c.h.b16 %v922
        %v2471 = vunpack.c.l.b16 %v923
        %v2472 = vunpack.c.h.b16 %v923
        %v2473 = vunpack.c.l.b16 %v924
        %v2474 = vunpack.c.h.b16 %v924
        %v2475 = vunpack.c.l.b16 %v925
        %v2476 = vunpack.c.h.b16 %v925
        %v2477 = vunpack.c.l.b16 %v926
        %v2478 = vunpack.c.h.b16 %v926
        %v2479 = vunpack.c.l.b16 %v927
        %v2480 = vunpack.c.h.b16 %v927
        %v2481 = vunpack.c.l.b16 %v928
        %v2482 = vunpack.c.h.b16 %v928
        %v2483 = vunpack.c.l.b16 %v929
        %v2484 = vunpack.c.h.b16 %v929
        %v2485 = vunpack.c.l.b16 %v930
        %v2486 = vunpack.c.h.b16 %v930
        %v2487 = vunpack.c.l.b16 %v931
        %v2488 = vunpack.c.h.b16 %v931
        %v2489 = vunpack.c.l.b16 %v932
        %v2490 = vunpack.c.h.b16 %v932
        %v2491 = vunpack.c.l.b16 %v933
        %v2492 = vunpack.c.h.b16 %v933
        %v2493 = vunpack.c.l.b16 %v934
        %v2494 = vunpack.c.h.b16 %v934
        %v2495 = vunpack.c.l.b16 %v935
        %v2496 = vunpack.c.h.b16 %v935
        %v2497 = vunpack.c.l.b16 %v936
        %v2498 = vunpack.c.h.b16 %v936
        %v2499 = vunpack.c.l.b16 %v937
        %v2500 = vunpack.c.h.b16 %v937
        %v2501 = vunpack.c.l.b16 %v938
        %v2502 = vunpack.c.h.b16 %v938
        %v2503 = vpack.c.b16 %v1487, %v1479
        %v2504 = vpack.c.b16 %v1488, %v1480
        %v2505 = vpack.c.b16 %v1489, %v1481
        %v2506 = vpack.c.b16 %v1490, %v1482
        %v2507 = vpack.c.b16 %v1491, %v1483
        %v2508 = vpack.c.b16 %v1492, %v1484
        %v2509 = vpack.c.b16 %v1493, %v1485
        %v2510 = vpack.c.b16 %v1494, %v1486
        %v2511 = vpack.c.b16 %v1503, %v1495
        %v2512 = vpack.c.b16 %v1504, %v1496
        %v2513 = vpack.c.b16 %v1505, %v1497
        %v2514 = vpack.c.b16 %v1506, %v1498
        %v2515 = vpack.c.b16 %v1507, %v1499
        %v2516 = vpack.c.b16 %v1508, %v1500
        %v2517 = vpack.c.b16 %v1509, %v1501
        %v2518 = vpack.c.b16 %v1510, %v1502
        %v2519 = vpack.c.b16 %v1519, %v1511
        %v2520 = vpack.c.b16 %v1520, %v1512
        %v2521 = vpack.c.b16 %v1521, %v1513
        %v2522 = vpack.c.b16 %v1522, %v1514
        %v2523 = vpack.c.b16 %v1523, %v1515
        %v2524 = vpack.c.b16 %v1524, %v1516
        %v2525 = vpack.c.b16 %v1525, %v1517
        %v2526 = vpack.c.b16 %v1526, %v1518
        %v2527 = vpack.c.b16 %v1535, %v1527
        %v2528 = vpack.c.b16 %v1536, %v1528
        %v2529 = vpack.c.b16 %v1537, %v1529
        %v2530 = vpack.c.b16 %v1538, %v1530
        %v2531 = vpack.c.b16 %v1539, %v1531
        %v2532 = vpack.c.b16 %v1540, %v1532
        %v2533 = vpack.c.b16 %v1541, %v1533
        %v2534 = vpack.c.b16 %v1542, %v1534
        %v2535 = vpack.c.b16 %v1551, %v1543
        %v2536 = vpack.c.b16 %v1552, %v1544
        %v2537 = vpack.c.b16 %v1553, %v1545
        %v2538 = vpack.c.b16 %v1554, %v1546
        %v2539 = vpack.c.b16 %v1555, %v1547
        %v2540 = vpack.c.b16 %v1556, %v1548
        %v2541 = vpack.c.b16 %v1557, %v1549
        %v2542 = vpack.c.b16 %v1558, %v1550
        %v2543 = vpack.c.b16 %v1567, %v1559
        %v2544 = vpack.c.b16 %v1568, %v1560
        %v2545 = vpack.c.b16 %v1569, %v1561
        %v2546 = vpack.c.b16 %v1570, %v1562
        %v2547 = vpack.c.b16 %v1571, %v1563
        %v2548 = vpack.c.b16 %v1572, %v1564
        %v2549 = vpack.c.b16 %v1573, %v1565
        %v2550 = vpack.c.b16 %v1574, %v1566
        %v2551 = vpack.c.b16 %v1583, %v1575
        %v2552 = vpack.c.b16 %v1584, %v1576
        %v2553 = vpack.c.b16 %v1585, %v1577
        %v2554 = vpack.c.b16 %v1586, %v1578
        %v2555 = vpack.c.b16 %v1587, %v1579
        %v2556 = vpack.c.b16 %v1588, %v1580
        %v2557 = vpack.c.b16 %v1589, %v1581
        %v2558 = vpack.c.b16 %v1590, %v1582
        %v2559 = vpack.c.b16 %v1599, %v1591
        %v2560 = vpack.c.b16 %v1600, %v1592
        %v2561 = vpack.c.b16 %v1601, %v1593
        %v2562 = vpack.c.b16 %v1602, %v1594
        %v2563 = vpack.c.b16 %v1603, %v1595
        %v2564 = vpack.c.b16 %v1604, %v1596
        %v2565 = vpack.c.b16 %v1605, %v1597
        %v2566 = vpack.c.b16 %v1606, %v1598
        %v2567 = vpack.c.b16 %v1615, %v1607
        %v2568 = vpack.c.b16 %v1616, %v1608
        %v2569 = vpack.c.b16 %v1617, %v1609
        %v2570 = vpack.c.b16 %v1618, %v1610
        %v2571 = vpack.c.b16 %v1619, %v1611
        %v2572 = vpack.c.b16 %v1620, %v1612
        %v2573 = vpack.c.b16 %v1621, %v1613
        %v2574 = vpack.c.b16 %v1622, %v1614
        %v2575 = vpack.c.b16 %v1631, %v1623
        %v2576 = vpack.c.b16 %v1632, %v1624
        %v2577 = vpack.c.b16 %v1633, %v1625
        %v2578 = vpack.c.b16 %v1634, %v1626
        %v2579 = vpack.c.b16 %v1635, %v1627
        %v2580 = vpack.c.b16 %v1636, %v1628
        %v2581 = vpack.c.b16 %v1637, %v1629
        %v2582 = vpack.c.b16 %v1638, %v1630
        %v2583 = vpack.c.b16 %v1647, %v1639
        %v2584 = vpack.c.b16 %v1648, %v1640
        %v2585 = vpack.c.b16 %v1649, %v1641
        %v2586 = vpack.c.b16 %v1650, %v1642
        %v2587 = vpack.c.b16 %v1651, %v1643
        %v2588 = vpack.c.b16 %v1652, %v1644
        %v2589 = vpack.c.b16 %v1653, %v1645
        %v2590 = vpack.c.b16 %v1654, %v1646
        %v2591 = vpack.c.b16 %v1663, %v1655
        %v2592 = vpack.c.b16 %v1664, %v1656
        %v2593 = vpack.c.b16 %v1665, %v1657
        %v2594 = vpack.c.b16 %v1666, %v1658
        %v2595 = vpack.c.b16 %v1667, %v1659
        %v2596 = vpack.c.b16 %v1668, %v1660
        %v2597 = vpack.c.b16 %v1669, %v1661
        %v2598 = vpack.c.b16 %v1670, %v1662
        %v2599 = vpack.c.b16 %v1679, %v1671
        %v2600 = vpack.c.b16 %v1680, %v1672
        %v2601 = vpack.c.b16 %v1681, %v1673
        %v2602 = vpack.c.b16 %v1682, %v1674
        %v2603 = vpack.c.b16 %v1683, %v1675
        %v2604 = vpack.c.b16 %v1684, %v1676
        %v2605 = vpack.c.b16 %v1685, %v1677
        %v2606 = vpack.c.b16 %v1686, %v1678
        %v2607 = vpack.c.b16 %v1695, %v1687
        %v2608 = vpack.c.b16 %v1696, %v1688
        %v2609 = vpack.c.b16 %v1697, %v1689
        %v2610 = vpack.c.b16 %v1698, %v1690
        %v2611 = vpack.c.b16 %v1699, %v1691
        %v2612 = vpack.c.b16 %v1700, %v1692
        %v2613 = vpack.c.b16 %v1701, %v1693
        %v2614 = vpack.c.b16 %v1702, %v1694
        %v2615 = vpack.c.b16 %v1711, %v1703
        %v2616 = vpack.c.b16 %v1712, %v1704
        %v2617 = vpack.c.b16 %v1713, %v1705
        %v2618 = vpack.c.b16 %v1714, %v1706
        %v2619 = vpack.c.b16 %v1715, %v1707
        %v2620 = vpack.c.b16 %v1716, %v1708
        %v2621 = vpack.c.b16 %v1717, %v1709
        %v2622 = vpack.c.b16 %v1718, %v1710
        %v2623 = vpack.c.b16 %v1727, %v1719
        %v2624 = vpack.c.b16 %v1728, %v1720
        %v2625 = vpack.c.b16 %v1729, %v1721
        %v2626 = vpack.c.b16 %v1730, %v1722
        %v2627 = vpack.c.b16 %v1731, %v1723
        %v2628 = vpack.c.b16 %v1732, %v1724
        %v2629 = vpack.c.b16 %v1733, %v1725
        %v2630 = vpack.c.b16 %v1734, %v1726
        %v2631 = vpack.c.b16 %v1743, %v1735
        %v2632 = vpack.c.b16 %v1744, %v1736
        %v2633 = vpack.c.b16 %v1745, %v1737
        %v2634 = vpack.c.b16 %v1746, %v1738
        %v2635 = vpack.c.b16 %v1747, %v1739
        %v2636 = vpack.c.b16 %v1748, %v1740
        %v2637 = vpack.c.b16 %v1749, %v1741
        %v2638 = vpack.c.b16 %v1750, %v1742
        %v2639 = vpack.c.b16 %v1759, %v1751
        %v2640 = vpack.c.b16 %v1760, %v1752
        %v2641 = vpack.c.b16 %v1761, %v1753
        %v2642 = vpack.c.b16 %v1762, %v1754
        %v2643 = vpack.c.b16 %v1763, %v1755
        %v2644 = vpack.c.b16 %v1764, %v1756
        %v2645 = vpack.c.b16 %v1765, %v1757
        %v2646 = vpack.c.b16 %v1766, %v1758
        %v2647 = vpack.c.b16 %v1775, %v1767
        %v2648 = vpack.c.b16 %v1776, %v1768
        %v2649 = vpack.c.b16 %v1777, %v1769
        %v2650 = vpack.c.b16 %v1778, %v1770
        %v2651 = vpack.c.b16 %v1779, %v1771
        %v2652 = vpack.c.b16 %v1780, %v1772
        %v2653 = vpack.c.b16 %v1781, %v1773
        %v2654 = vpack.c.b16 %v1782, %v1774
        %v2655 = vpack.c.b16 %v1791, %v1783
        %v2656 = vpack.c.b16 %v1792, %v1784
        %v2657 = vpack.c.b16 %v1793, %v1785
        %v2658 = vpack.c.b16 %v1794, %v1786
        %v2659 = vpack.c.b16 %v1795, %v1787
        %v2660 = vpack.c.b16 %v1796, %v1788
        %v2661 = vpack.c.b16 %v1797, %v1789
        %v2662 = vpack.c.b16 %v1798, %v1790
        %v2663 = vpack.c.b16 %v1807, %v1799
        %v2664 = vpack.c.b16 %v1808, %v1800
        %v2665 = vpack.c.b16 %v1809, %v1801
        %v2666 = vpack.c.b16 %v1810, %v1802
        %v2667 = vpack.c.b16 %v1811, %v1803
        %v2668 = vpack.c.b16 %v1812, %v1804
        %v2669 = vpack.c.b16 %v1813, %v1805
        %v2670 = vpack.c.b16 %v1814, %v1806
        %v2671 = vpack.c.b16 %v1823, %v1815
        %v2672 = vpack.c.b16 %v1824, %v1816
        %v2673 = vpack.c.b16 %v1825, %v1817
        %v2674 = vpack.c.b16 %v1826, %v1818
        %v2675 = vpack.c.b16 %v1827, %v1819
        %v2676 = vpack.c.b16 %v1828, %v1820
        %v2677 = vpack.c.b16 %v1829, %v1821
        %v2678 = vpack.c.b16 %v1830, %v1822
        %v2679 = vpack.c.b16 %v1839, %v1831
        %v2680 = vpack.c.b16 %v1840, %v1832
        %v2681 = vpack.c.b16 %v1841, %v1833
        %v2682 = vpack.c.b16 %v1842, %v1834
        %v2683 = vpack.c.b16 %v1843, %v1835
        %v2684 = vpack.c.b16 %v1844, %v1836
        %v2685 = vpack.c.b16 %v1845, %v1837
        %v2686 = vpack.c.b16 %v1846, %v1838
        %v2687 = vpack.c.b16 %v1855, %v1847
        %v2688 = vpack.c.b16 %v1856, %v1848
        %v2689 = vpack.c.b16 %v1857, %v1849
        %v2690 = vpack.c.b16 %v1858, %v1850
        %v2691 = vpack.c.b16 %v1859, %v1851
        %v2692 = vpack.c.b16 %v1860, %v1852
        %v2693 = vpack.c.b16 %v1861, %v1853
        %v2694 = vpack.c.b16 %v1862, %v1854
        %v2695 = vpack.c.b16 %v1871, %v1863
        %v2696 = vpack.c.b16 %v1872, %v1864
        %v2697 = vpack.c.b16 %v1873, %v1865
        %v2698 = vpack.c.b16 %v1874, %v1866
        %v2699 = vpack.c.b16 %v1875, %v1867
        %v2700 = vpack.c.b16 %v1876, %v1868
        %v2701 = vpack.c.b16 %v1877, %v1869
        %v2702 = vpack.c.b16 %v1878, %v1870
        %v2703 = vpack.c.b16 %v1887, %v1879
        %v2704 = vpack.c.b16 %v1888, %v1880
        %v2705 = vpack.c.b16 %v1889, %v1881
        %v2706 = vpack.c.b16 %v1890, %v1882
        %v2707 = vpack.c.b16 %v1891, %v1883
        %v2708 = vpack.c.b16 %v1892, %v1884
        %v2709 = vpack.c.b16 %v1893, %v1885
        %v2710 = vpack.c.b16 %v1894, %v1886
        %v2711 = vpack.c.b16 %v1903, %v1895
        %v2712 = vpack.c.b16 %v1904, %v1896
        %v2713 = vpack.c.b16 %v1905, %v1897
        %v2714 = vpack.c.b16 %v1906, %v1898
        %v2715 = vpack.c.b16 %v1907, %v1899
        %v2716 = vpack.c.b16 %v1908, %v1900
        %v2717 = vpack.c.b16 %v1909, %v1901
        %v2718 = vpack.c.b16 %v1910, %v1902
        %v2719 = vpack.c.b16 %v1919, %v1911
        %v2720 = vpack.c.b16 %v1920, %v1912
        %v2721 = vpack.c.b16 %v1921, %v1913
        %v2722 = vpack.c.b16 %v1922, %v1914
        %v2723 = vpack.c.b16 %v1923, %v1915
        %v2724 = vpack.c.b16 %v1924, %v1916
        %v2725 = vpack.c.b16 %v1925, %v1917
        %v2726 = vpack.c.b16 %v1926, %v1918
        %v2727 = vpack.c.b16 %v1935, %v1927
        %v2728 = vpack.c.b16 %v1936, %v1928
        %v2729 = vpack.c.b16 %v1937, %v1929
        %v2730 = vpack.c.b16 %v1938, %v1930
        %v2731 = vpack.c.b16 %v1939, %v1931
        %v2732 = vpack.c.b16 %v1940, %v1932
        %v2733 = vpack.c.b16 %v1941, %v1933
        %v2734 = vpack.c.b16 %v1942, %v1934
        %v2735 = vpack.c.b16 %v1951, %v1943
        %v2736 = vpack.c.b16 %v1952, %v1944
        %v2737 = vpack.c.b16 %v1953, %v1945
        %v2738 = vpack.c.b16 %v1954, %v1946
        %v2739 = vpack.c.b16 %v1955, %v1947
        %v2740 = vpack.c.b16 %v1956, %v1948
        %v2741 = vpack.c.b16 %v1957, %v1949
        %v2742 = vpack.c.b16 %v1958, %v1950
        %v2743 = vpack.c.b16 %v1967, %v1959
        %v2744 = vpack.c.b16 %v1968, %v1960
        %v2745 = vpack.c.b16 %v1969, %v1961
        %v2746 = vpack.c.b16 %v1970, %v1962
        %v2747 = vpack.c.b16 %v1971, %v1963
        %v2748 = vpack.c.b16 %v1972, %v1964
        %v2749 = vpack.c.b16 %v1973, %v1965
        %v2750 = vpack.c.b16 %v1974, %v1966
        %v2751 = vpack.c.b16 %v1983, %v1975
        %v2752 = vpack.c.b16 %v1984, %v1976
        %v2753 = vpack.c.b16 %v1985, %v1977
        %v2754 = vpack.c.b16 %v1986, %v1978
        %v2755 = vpack.c.b16 %v1987, %v1979
        %v2756 = vpack.c.b16 %v1988, %v1980
        %v2757 = vpack.c.b16 %v1989, %v1981
        %v2758 = vpack.c.b16 %v1990, %v1982
        %v2759 = vpack.c.b16 %v1999, %v1991
        %v2760 = vpack.c.b16 %v2000, %v1992
        %v2761 = vpack.c.b16 %v2001, %v1993
        %v2762 = vpack.c.b16 %v2002, %v1994
        %v2763 = vpack.c.b16 %v2003, %v1995
        %v2764 = vpack.c.b16 %v2004, %v1996
        %v2765 = vpack.c.b16 %v2005, %v1997
        %v2766 = vpack.c.b16 %v2006, %v1998
        %v2767 = vpack.c.b16 %v2015, %v2007
        %v2768 = vpack.c.b16 %v2016, %v2008
        %v2769 = vpack.c.b16 %v2017, %v2009
        %v2770 = vpack.c.b16 %v2018, %v2010
        %v2771 = vpack.c.b16 %v2019, %v2011
        %v2772 = vpack.c.b16 %v2020, %v2012
        %v2773 = vpack.c.b16 %v2021, %v2013
        %v2774 = vpack.c.b16 %v2022, %v2014
        %v2775 = vpack.c.b16 %v2031, %v2023
        %v2776 = vpack.c.b16 %v2032, %v2024
        %v2777 = vpack.c.b16 %v2033, %v2025
        %v2778 = vpack.c.b16 %v2034, %v2026
        %v2779 = vpack.c.b16 %v2035, %v2027
        %v2780 = vpack.c.b16 %v2036, %v2028
        %v2781 = vpack.c.b16 %v2037, %v2029
        %v2782 = vpack.c.b16 %v2038, %v2030
        %v2783 = vpack.c.b16 %v2047, %v2039
        %v2784 = vpack.c.b16 %v2048, %v2040
        %v2785 = vpack.c.b16 %v2049, %v2041
        %v2786 = vpack.c.b16 %v2050, %v2042
        %v2787 = vpack.c.b16 %v2051, %v2043
        %v2788 = vpack.c.b16 %v2052, %v2044
        %v2789 = vpack.c.b16 %v2053, %v2045
        %v2790 = vpack.c.b16 %v2054, %v2046
        %v2791 = vpack.c.b16 %v2063, %v2055
        %v2792 = vpack.c.b16 %v2064, %v2056
        %v2793 = vpack.c.b16 %v2065, %v2057
        %v2794 = vpack.c.b16 %v2066, %v2058
        %v2795 = vpack.c.b16 %v2067, %v2059
        %v2796 = vpack.c.b16 %v2068, %v2060
        %v2797 = vpack.c.b16 %v2069, %v2061
        %v2798 = vpack.c.b16 %v2070, %v2062
        %v2799 = vpack.c.b16 %v2079, %v2071
        %v2800 = vpack.c.b16 %v2080, %v2072
        %v2801 = vpack.c.b16 %v2081, %v2073
        %v2802 = vpack.c.b16 %v2082, %v2074
        %v2803 = vpack.c.b16 %v2083, %v2075
        %v2804 = vpack.c.b16 %v2084, %v2076
        %v2805 = vpack.c.b16 %v2085, %v2077
        %v2806 = vpack.c.b16 %v2086, %v2078
        %v2807 = vpack.c.b16 %v2095, %v2087
        %v2808 = vpack.c.b16 %v2096, %v2088
        %v2809 = vpack.c.b16 %v2097, %v2089
        %v2810 = vpack.c.b16 %v2098, %v2090
        %v2811 = vpack.c.b16 %v2099, %v2091
        %v2812 = vpack.c.b16 %v2100, %v2092
        %v2813 = vpack.c.b16 %v2101, %v2093
        %v2814 = vpack.c.b16 %v2102, %v2094
        %v2815 = vpack.c.b16 %v2111, %v2103
        %v2816 = vpack.c.b16 %v2112, %v2104
        %v2817 = vpack.c.b16 %v2113, %v2105
        %v2818 = vpack.c.b16 %v2114, %v2106
        %v2819 = vpack.c.b16 %v2115, %v2107
        %v2820 = vpack.c.b16 %v2116, %v2108
        %v2821 = vpack.c.b16 %v2117, %v2109
        %v2822 = vpack.c.b16 %v2118, %v2110
        %v2823 = vpack.c.b16 %v2127, %v2119
        %v2824 = vpack.c.b16 %v2128, %v2120
        %v2825 = vpack.c.b16 %v2129, %v2121
        %v2826 = vpack.c.b16 %v2130, %v2122
        %v2827 = vpack.c.b16 %v2131, %v2123
        %v2828 = vpack.c.b16 %v2132, %v2124
        %v2829 = vpack.c.b16 %v2133, %v2125
        %v2830 = vpack.c.b16 %v2134, %v2126
        %v2831 = vpack.c.b16 %v2143, %v2135
        %v2832 = vpack.c.b16 %v2144, %v2136
        %v2833 = vpack.c.b16 %v2145, %v2137
        %v2834 = vpack.c.b16 %v2146, %v2138
        %v2835 = vpack.c.b16 %v2147, %v2139
        %v2836 = vpack.c.b16 %v2148, %v2140
        %v2837 = vpack.c.b16 %v2149, %v2141
        %v2838 = vpack.c.b16 %v2150, %v2142
        %v2839 = vpack.c.b16 %v2159, %v2151
        %v2840 = vpack.c.b16 %v2160, %v2152
        %v2841 = vpack.c.b16 %v2161, %v2153
        %v2842 = vpack.c.b16 %v2162, %v2154
        %v2843 = vpack.c.b16 %v2163, %v2155
        %v2844 = vpack.c.b16 %v2164, %v2156
        %v2845 = vpack.c.b16 %v2165, %v2157
        %v2846 = vpack.c.b16 %v2166, %v2158
        %v2847 = vpack.c.b16 %v2175, %v2167
        %v2848 = vpack.c.b16 %v2176, %v2168
        %v2849 = vpack.c.b16 %v2177, %v2169
        %v2850 = vpack.c.b16 %v2178, %v2170
        %v2851 = vpack.c.b16 %v2179, %v2171
        %v2852 = vpack.c.b16 %v2180, %v2172
        %v2853 = vpack.c.b16 %v2181, %v2173
        %v2854 = vpack.c.b16 %v2182, %v2174
        %v2855 = vpack.c.b16 %v2191, %v2183
        %v2856 = vpack.c.b16 %v2192, %v2184
        %v2857 = vpack.c.b16 %v2193, %v2185
        %v2858 = vpack.c.b16 %v2194, %v2186
        %v2859 = vpack.c.b16 %v2195, %v2187
        %v2860 = vpack.c.b16 %v2196, %v2188
        %v2861 = vpack.c.b16 %v2197, %v2189
        %v2862 = vpack.c.b16 %v2198, %v2190
        %v2863 = vpack.c.b16 %v2207, %v2199
        %v2864 = vpack.c.b16 %v2208, %v2200
        %v2865 = vpack.c.b16 %v2209, %v2201
        %v2866 = vpack.c.b16 %v2210, %v2202
        %v2867 = vpack.c.b16 %v2211, %v2203
        %v2868 = vpack.c.b16 %v2212, %v2204
        %v2869 = vpack.c.b16 %v2213, %v2205
        %v2870 = vpack.c.b16 %v2214, %v2206
        %v2871 = vpack.c.b16 %v2223, %v2215
        %v2872 = vpack.c.b16 %v2224, %v2216
        %v2873 = vpack.c.b16 %v2225, %v2217
        %v2874 = vpack.c.b16 %v2226, %v2218
        %v2875 = vpack.c.b16 %v2227, %v2219
        %v2876 = vpack.c.b16 %v2228, %v2220
        %v2877 = vpack.c.b16 %v2229, %v2221
        %v2878 = vpack.c.b16 %v2230, %v2222
        %v2879 = vpack.c.b16 %v2239, %v2231
        %v2880 = vpack.c.b16 %v2240, %v2232
        %v2881 = vpack.c.b16 %v2241, %v2233
        %v2882 = vpack.c.b16 %v2242, %v2234
        %v2883 = vpack.c.b16 %v2243, %v2235
        %v2884 = vpack.c.b16 %v2244, %v2236
        %v2885 = vpack.c.b16 %v2245, %v2237
        %v2886 = vpack.c.b16 %v2246, %v2238
        %v2887 = vpack.c.b16 %v2255, %v2247
        %v2888 = vpack.c.b16 %v2256, %v2248
        %v2889 = vpack.c.b16 %v2257, %v2249
        %v2890 = vpack.c.b16 %v2258, %v2250
        %v2891 = vpack.c.b16 %v2259, %v2251
        %v2892 = vpack.c.b16 %v2260, %v2252
        %v2893 = vpack.c.b16 %v2261, %v2253
        %v2894 = vpack.c.b16 %v2262, %v2254
        %v2895 = vpack.c.b16 %v2271, %v2263
        %v2896 = vpack.c.b16 %v2272, %v2264
        %v2897 = vpack.c.b16 %v2273, %v2265
        %v2898 = vpack.c.b16 %v2274, %v2266
        %v2899 = vpack.c.b16 %v2275, %v2267
        %v2900 = vpack.c.b16 %v2276, %v2268
        %v2901 = vpack.c.b16 %v2277, %v2269
        %v2902 = vpack.c.b16 %v2278, %v2270
        %v2903 = vpack.c.b16 %v2287, %v2279
        %v2904 = vpack.c.b16 %v2288, %v2280
        %v2905 = vpack.c.b16 %v2289, %v2281
        %v2906 = vpack.c.b16 %v2290, %v2282
        %v2907 = vpack.c.b16 %v2291, %v2283
        %v2908 = vpack.c.b16 %v2292, %v2284
        %v2909 = vpack.c.b16 %v2293, %v2285
        %v2910 = vpack.c.b16 %v2294, %v2286
        %v2911 = vpack.c.b16 %v2303, %v2295
        %v2912 = vpack.c.b16 %v2304, %v2296
        %v2913 = vpack.c.b16 %v2305, %v2297
        %v2914 = vpack.c.b16 %v2306, %v2298
        %v2915 = vpack.c.b16 %v2307, %v2299
        %v2916 = vpack.c.b16 %v2308, %v2300
        %v2917 = vpack.c.b16 %v2309, %v2301
        %v2918 = vpack.c.b16 %v2310, %v2302
        %v2919 = vpack.c.b16 %v2319, %v2311
        %v2920 = vpack.c.b16 %v2320, %v2312
        %v2921 = vpack.c.b16 %v2321, %v2313
        %v2922 = vpack.c.b16 %v2322, %v2314
        %v2923 = vpack.c.b16 %v2323, %v2315
        %v2924 = vpack.c.b16 %v2324, %v2316
        %v2925 = vpack.c.b16 %v2325, %v2317
        %v2926 = vpack.c.b16 %v2326, %v2318
        %v2927 = vpack.c.b16 %v2335, %v2327
        %v2928 = vpack.c.b16 %v2336, %v2328
        %v2929 = vpack.c.b16 %v2337, %v2329
        %v2930 = vpack.c.b16 %v2338, %v2330
        %v2931 = vpack.c.b16 %v2339, %v2331
        %v2932 = vpack.c.b16 %v2340, %v2332
        %v2933 = vpack.c.b16 %v2341, %v2333
        %v2934 = vpack.c.b16 %v2342, %v2334
        %v2935 = vpack.c.b16 %v2351, %v2343
        %v2936 = vpack.c.b16 %v2352, %v2344
        %v2937 = vpack.c.b16 %v2353, %v2345
        %v2938 = vpack.c.b16 %v2354, %v2346
        %v2939 = vpack.c.b16 %v2355, %v2347
        %v2940 = vpack.c.b16 %v2356, %v2348
        %v2941 = vpack.c.b16 %v2357, %v2349
        %v2942 = vpack.c.b16 %v2358, %v2350
        %v2943 = vpack.c.b16 %v2367, %v2359
        %v2944 = vpack.c.b16 %v2368, %v2360
        %v2945 = vpack.c.b16 %v2369, %v2361
        %v2946 = vpack.c.b16 %v2370, %v2362
        %v2947 = vpack.c.b16 %v2371, %v2363
        %v2948 = vpack.c.b16 %v2372, %v2364
        %v2949 = vpack.c.b16 %v2373, %v2365
        %v2950 = vpack.c.b16 %v2374, %v2366
        %v2951 = vpack.c.b16 %v2383, %v2375
        %v2952 = vpack.c.b16 %v2384, %v2376
        %v2953 = vpack.c.b16 %v2385, %v2377
        %v2954 = vpack.c.b16 %v2386, %v2378
        %v2955 = vpack.c.b16 %v2387, %v2379
        %v2956 = vpack.c.b16 %v2388, %v2380
        %v2957 = vpack.c.b16 %v2389, %v2381
        %v2958 = vpack.c.b16 %v2390, %v2382
        %v2959 = vpack.c.b16 %v2399, %v2391
        %v2960 = vpack.c.b16 %v2400, %v2392
        %v2961 = vpack.c.b16 %v2401, %v2393
        %v2962 = vpack.c.b16 %v2402, %v2394
        %v2963 = vpack.c.b16 %v2403, %v2395
        %v2964 = vpack.c.b16 %v2404, %v2396
        %v2965 = vpack.c.b16 %v2405, %v2397
        %v2966 = vpack.c.b16 %v2406, %v2398
        %v2967 = vpack.c.b16 %v2415, %v2407
        %v2968 = vpack.c.b16 %v2416, %v2408
        %v2969 = vpack.c.b16 %v2417, %v2409
        %v2970 = vpack.c.b16 %v2418, %v2410
        %v2971 = vpack.c.b16 %v2419, %v2411
        %v2972 = vpack.c.b16 %v2420, %v2412
        %v2973 = vpack.c.b16 %v2421, %v2413
        %v2974 = vpack.c.b16 %v2422, %v2414
        %v2975 = vpack.c.b16 %v2431, %v2423
        %v2976 = vpack.c.b16 %v2432, %v2424
        %v2977 = vpack.c.b16 %v2433, %v2425
        %v2978 = vpack.c.b16 %v2434, %v2426
        %v2979 = vpack.c.b16 %v2435, %v2427
        %v2980 = vpack.c.b16 %v2436, %v2428
        %v2981 = vpack.c.b16 %v2437, %v2429
        %v2982 = vpack.c.b16 %v2438, %v2430
        %v2983 = vpack.c.b16 %v2447, %v2439
        %v2984 = vpack.c.b16 %v2448, %v2440
        %v2985 = vpack.c.b16 %v2449, %v2441
        %v2986 = vpack.c.b16 %v2450, %v2442
        %v2987 = vpack.c.b16 %v2451, %v2443
        %v2988 = vpack.c.b16 %v2452, %v2444
        %v2989 = vpack.c.b16 %v2453, %v2445
        %v2990 = vpack.c.b16 %v2454, %v2446
        %v2991 = vpack.c.b16 %v2463, %v2455
        %v2992 = vpack.c.b16 %v2464, %v2456
        %v2993 = vpack.c.b16 %v2465, %v2457
        %v2994 = vpack.c.b16 %v2466, %v2458
        %v2995 = vpack.c.b16 %v2467, %v2459
        %v2996 = vpack.c.b16 %v2468, %v2460
        %v2997 = vpack.c.b16 %v2469, %v2461
        %v2998 = vpack.c.b16 %v2470, %v2462
        %v2999 = vpack.c.b16 %v2479, %v2471
        %v3000 = vpack.c.b16 %v2480, %v2472
        %v3001 = vpack.c.b16 %v2481, %v2473
        %v3002 = vpack.c.b16 %v2482, %v2474
        %v3003 = vpack.c.b16 %v2483, %v2475
        %v3004 = vpack.c.b16 %v2484, %v2476
        %v3005 = vpack.c.b16 %v2485, %v2477
        %v3006 = vpack.c.b16 %v2486, %v2478
        %v3007 = vpack.c.b16 %v2495, %v2487
        %v3008 = vpack.c.b16 %v2496, %v2488
        %v3009 = vpack.c.b16 %v2497, %v2489
        %v3010 = vpack.c.b16 %v2498, %v2490
        %v3011 = vpack.c.b16 %v2499, %v2491
        %v3012 = vpack.c.b16 %v2500, %v2492
        %v3013 = vpack.c.b16 %v2501, %v2493
        %v3014 = vpack.c.b16 %v2502, %v2494
        %3527 = vmatprep.subr.bf16.mxu0 %v2560
        %3528 = vmatpush1.bf16.msra.mxu0 %v2559
        %3529 = vmatprep.subr.bf16.mxu0 %v2552
        %3530 = vmatpush1.bf16.msra.mxu0 %v2551
        %3531 = vmatprep.subr.bf16.mxu0 %v2544
        %3532 = vmatpush1.bf16.msra.mxu0 %v2543
        %3533 = vmatprep.subr.bf16.mxu0 %v2536
        %3534 = vmatpush1.bf16.msra.mxu0 %v2535
        %3535 = vmatprep.subr.bf16.mxu0 %v2528
        %3536 = vmatpush1.bf16.msra.mxu0 %v2527
        %3537 = vmatprep.subr.bf16.mxu0 %v2520
        %3538 = vmatpush1.bf16.msra.mxu0 %v2519
        %3539 = vmatprep.subr.bf16.mxu0 %v2512
        %3540 = vmatpush1.bf16.msra.mxu0 %v2511
        %3541 = vmatprep.subr.bf16.mxu0 %v2504
        %3542 = vmatpush1.bf16.msra.mxu0 %v2503
        %3543 = vmatprep.subr.bf16.mxu0 %v2624
        %3544 = vmatpush2.bf16.msra.mxu0 %v2623
        %3545 = vmatprep.subr.bf16.mxu0 %v2616
        %3546 = vmatpush2.bf16.msra.mxu0 %v2615
        %3547 = vmatprep.subr.bf16.mxu0 %v2608
        %3548 = vmatpush2.bf16.msra.mxu0 %v2607
        %3549 = vmatprep.subr.bf16.mxu0 %v2600
        %3550 = vmatpush2.bf16.msra.mxu0 %v2599
        %3551 = vmatprep.subr.bf16.mxu0 %v2592
        %3552 = vmatpush2.bf16.msra.mxu0 %v2591
        %3553 = vmatprep.subr.bf16.mxu0 %v2584
        %3554 = vmatpush2.bf16.msra.mxu0 %v2583
        %3555 = vmatprep.subr.bf16.mxu0 %v2576
        %3556 = vmatpush2.bf16.msra.mxu0 %v2575
        %3557 = vmatprep.subr.bf16.mxu0 %v2568
        %3558 = vmatpush2.bf16.msra.mxu0 %v2567
        %3559 = vmatprep.mubr.bf16.mxu0 %v952
        %3560 = vmatmul.mubr.bf16.gmra.mxu0 %v951
        %v3561 = vpop.f32.mrf.mxu0
        %v3562 = vadd.f32 0.0, %v3561
        %v3563 = vpop.f32.mrf.mxu0
        %v3564 = vadd.f32 0.0, %v3563
        %v3565 = vpop.f32.mrf.mxu0
        %v3566 = vpop.f32.mrf.mxu0
        %3567 = vdwg.mxu0
        %3568 = vmatprep.subr.bf16.mxu0 %v2688
        %3569 = vmatpush1.bf16.msra.mxu0 %v2687
        %3570 = vmatprep.subr.bf16.mxu0 %v2680
        %3571 = vmatpush1.bf16.msra.mxu0 %v2679
        %3572 = vmatprep.subr.bf16.mxu0 %v2672
        %3573 = vmatpush1.bf16.msra.mxu0 %v2671
        %3574 = vmatprep.subr.bf16.mxu0 %v2664
        %3575 = vmatpush1.bf16.msra.mxu0 %v2663
        %3576 = vmatprep.subr.bf16.mxu0 %v2656
        %3577 = vmatpush1.bf16.msra.mxu0 %v2655
        %3578 = vmatprep.subr.bf16.mxu0 %v2648
        %3579 = vmatpush1.bf16.msra.mxu0 %v2647
        %3580 = vmatprep.subr.bf16.mxu0 %v2640
        %3581 = vmatpush1.bf16.msra.mxu0 %v2639
        %3582 = vmatprep.subr.bf16.mxu0 %v2632
        %3583 = vmatpush1.bf16.msra.mxu0 %v2631
        %3584 = vmatprep.subr.bf16.mxu0 %v2752
        %3585 = vmatpush2.bf16.msra.mxu0 %v2751
        %3586 = vmatprep.subr.bf16.mxu0 %v2744
        %3587 = vmatpush2.bf16.msra.mxu0 %v2743
        %3588 = vmatprep.subr.bf16.mxu0 %v2736
        %3589 = vmatpush2.bf16.msra.mxu0 %v2735
        %3590 = vmatprep.subr.bf16.mxu0 %v2728
        %3591 = vmatpush2.bf16.msra.mxu0 %v2727
        %3592 = vmatprep.subr.bf16.mxu0 %v2720
        %3593 = vmatpush2.bf16.msra.mxu0 %v2719
        %3594 = vmatprep.subr.bf16.mxu0 %v2712
        %3595 = vmatpush2.bf16.msra.mxu0 %v2711
        %3596 = vmatprep.subr.bf16.mxu0 %v2704
        %3597 = vmatpush2.bf16.msra.mxu0 %v2703
        %3598 = vmatprep.subr.bf16.mxu0 %v2696
        %3599 = vmatpush2.bf16.msra.mxu0 %v2695
        %3600 = vmatprep.mubr.bf16.mxu0 %v954
        %3601 = vmatmul.mubr.bf16.gmra.mxu0 %v953
        %v3602 = vpop.f32.mrf.mxu0
        %v3603 = vadd.f32 %v3562, %v3602
        %v3604 = vpop.f32.mrf.mxu0
        %v3605 = vadd.f32 %v3564, %v3604
        %v3606 = vpop.f32.mrf.mxu0
        %v3607 = vpop.f32.mrf.mxu0
        %3608 = vdwg.mxu0
        %3609 = vmatprep.subr.bf16.mxu0 %v2816
        %3610 = vmatpush1.bf16.msra.mxu0 %v2815
        %3611 = vmatprep.subr.bf16.mxu0 %v2808
        %3612 = vmatpush1.bf16.msra.mxu0 %v2807
        %3613 = vmatprep.subr.bf16.mxu0 %v2800
        %3614 = vmatpush1.bf16.msra.mxu0 %v2799
        %3615 = vmatprep.subr.bf16.mxu0 %v2792
        %3616 = vmatpush1.bf16.msra.mxu0 %v2791
        %3617 = vmatprep.subr.bf16.mxu0 %v2784
        %3618 = vmatpush1.bf16.msra.mxu0 %v2783
        %3619 = vmatprep.subr.bf16.mxu0 %v2776
        %3620 = vmatpush1.bf16.msra.mxu0 %v2775
        %3621 = vmatprep.subr.bf16.mxu0 %v2768
        %3622 = vmatpush1.bf16.msra.mxu0 %v2767
        %3623 = vmatprep.subr.bf16.mxu0 %v2760
        %3624 = vmatpush1.bf16.msra.mxu0 %v2759
        %3625 = vmatprep.subr.bf16.mxu0 %v2880
        %3626 = vmatpush2.bf16.msra.mxu0 %v2879
        %3627 = vmatprep.subr.bf16.mxu0 %v2872
        %3628 = vmatpush2.bf16.msra.mxu0 %v2871
        %3629 = vmatprep.subr.bf16.mxu0 %v2864
        %3630 = vmatpush2.bf16.msra.mxu0 %v2863
        %3631 = vmatprep.subr.bf16.mxu0 %v2856
        %3632 = vmatpush2.bf16.msra.mxu0 %v2855
        %3633 = vmatprep.subr.bf16.mxu0 %v2848
        %3634 = vmatpush2.bf16.msra.mxu0 %v2847
        %3635 = vmatprep.subr.bf16.mxu0 %v2840
        %3636 = vmatpush2.bf16.msra.mxu0 %v2839
        %3637 = vmatprep.subr.bf16.mxu0 %v2832
        %3638 = vmatpush2.bf16.msra.mxu0 %v2831
        %3639 = vmatprep.subr.bf16.mxu0 %v2824
        %3640 = vmatpush2.bf16.msra.mxu0 %v2823
        %3641 = vmatprep.mubr.bf16.mxu0 %v956
        %3642 = vmatmul.mubr.bf16.gmra.mxu0 %v955
        %v3643 = vpop.f32.mrf.mxu0
        %v3644 = vadd.f32 %v3603, %v3643
        %v3645 = vpop.f32.mrf.mxu0
        %v3646 = vadd.f32 %v3605, %v3645
        %v3647 = vpop.f32.mrf.mxu0
        %v3648 = vpop.f32.mrf.mxu0
        %3649 = vdwg.mxu0
        %3650 = vmatprep.subr.bf16.mxu0 %v2944
        %3651 = vmatpush1.bf16.msra.mxu0 %v2943
        %3652 = vmatprep.subr.bf16.mxu0 %v2936
        %3653 = vmatpush1.bf16.msra.mxu0 %v2935
        %3654 = vmatprep.subr.bf16.mxu0 %v2928
        %3655 = vmatpush1.bf16.msra.mxu0 %v2927
        %3656 = vmatprep.subr.bf16.mxu0 %v2920
        %3657 = vmatpush1.bf16.msra.mxu0 %v2919
        %3658 = vmatprep.subr.bf16.mxu0 %v2912
        %3659 = vmatpush1.bf16.msra.mxu0 %v2911
        %3660 = vmatprep.subr.bf16.mxu0 %v2904
        %3661 = vmatpush1.bf16.msra.mxu0 %v2903
        %3662 = vmatprep.subr.bf16.mxu0 %v2896
        %3663 = vmatpush1.bf16.msra.mxu0 %v2895
        %3664 = vmatprep.subr.bf16.mxu0 %v2888
        %3665 = vmatpush1.bf16.msra.mxu0 %v2887
        %3666 = vmatprep.subr.bf16.mxu0 %v3008
        %3667 = vmatpush2.bf16.msra.mxu0 %v3007
        %3668 = vmatprep.subr.bf16.mxu0 %v3000
        %3669 = vmatpush2.bf16.msra.mxu0 %v2999
        %3670 = vmatprep.subr.bf16.mxu0 %v2992
        %3671 = vmatpush2.bf16.msra.mxu0 %v2991
        %3672 = vmatprep.subr.bf16.mxu0 %v2984
        %3673 = vmatpush2.bf16.msra.mxu0 %v2983
        %3674 = vmatprep.subr.bf16.mxu0 %v2976
        %3675 = vmatpush2.bf16.msra.mxu0 %v2975
        %3676 = vmatprep.subr.bf16.mxu0 %v2968
        %3677 = vmatpush2.bf16.msra.mxu0 %v2967
        %3678 = vmatprep.subr.bf16.mxu0 %v2960
        %3679 = vmatpush2.bf16.msra.mxu0 %v2959
        %3680 = vmatprep.subr.bf16.mxu0 %v2952
        %3681 = vmatpush2.bf16.msra.mxu0 %v2951
        %3682 = vmatprep.mubr.bf16.mxu0 %v958
        %3683 = vmatmul.mubr.bf16.gmra.mxu0 %v957
        %v3684 = vpop.f32.mrf.mxu0
        %v3685 = vadd.f32 %v3644, %v3684
        %v3686 = vpop.f32.mrf.mxu0
        %v3687 = vadd.f32 %v3646, %v3686
        %v3688 = vpop.f32.mrf.mxu0
        %v3689 = vpop.f32.mrf.mxu0
        %3690 = vdwg.mxu0
        %3691 = vmatprep.subr.bf16.mxu0 %v2562
        %3692 = vmatpush1.bf16.msra.mxu0 %v2561
        %3693 = vmatprep.subr.bf16.mxu0 %v2554
        %3694 = vmatpush1.bf16.msra.mxu0 %v2553
        %3695 = vmatprep.subr.bf16.mxu0 %v2546
        %3696 = vmatpush1.bf16.msra.mxu0 %v2545
        %3697 = vmatprep.subr.bf16.mxu0 %v2538
        %3698 = vmatpush1.bf16.msra.mxu0 %v2537
        %3699 = vmatprep.subr.bf16.mxu0 %v2530
        %3700 = vmatpush1.bf16.msra.mxu0 %v2529
        %3701 = vmatprep.subr.bf16.mxu0 %v2522
        %3702 = vmatpush1.bf16.msra.mxu0 %v2521
        %3703 = vmatprep.subr.bf16.mxu0 %v2514
        %3704 = vmatpush1.bf16.msra.mxu0 %v2513
        %3705 = vmatprep.subr.bf16.mxu0 %v2506
        %3706 = vmatpush1.bf16.msra.mxu0 %v2505
        %3707 = vmatprep.subr.bf16.mxu0 %v2626
        %3708 = vmatpush2.bf16.msra.mxu0 %v2625
        %3709 = vmatprep.subr.bf16.mxu0 %v2618
        %3710 = vmatpush2.bf16.msra.mxu0 %v2617
        %3711 = vmatprep.subr.bf16.mxu0 %v2610
        %3712 = vmatpush2.bf16.msra.mxu0 %v2609
        %3713 = vmatprep.subr.bf16.mxu0 %v2602
        %3714 = vmatpush2.bf16.msra.mxu0 %v2601
        %3715 = vmatprep.subr.bf16.mxu0 %v2594
        %3716 = vmatpush2.bf16.msra.mxu0 %v2593
        %3717 = vmatprep.subr.bf16.mxu0 %v2586
        %3718 = vmatpush2.bf16.msra.mxu0 %v2585
        %3719 = vmatprep.subr.bf16.mxu0 %v2578
        %3720 = vmatpush2.bf16.msra.mxu0 %v2577
        %3721 = vmatprep.subr.bf16.mxu0 %v2570
        %3722 = vmatpush2.bf16.msra.mxu0 %v2569
        %3723 = vmatprep.mubr.bf16.mxu0 %v952
        %3724 = vmatmul.mubr.bf16.gmra.mxu0 %v951
        %v3725 = vpop.f32.mrf.mxu0
        %v3726 = vadd.f32 0.0, %v3725
        %v3727 = vpop.f32.mrf.mxu0
        %v3728 = vadd.f32 0.0, %v3727
        %v3729 = vpop.f32.mrf.mxu0
        %v3730 = vpop.f32.mrf.mxu0
        %3731 = vdwg.mxu0
        %3732 = vmatprep.subr.bf16.mxu0 %v2690
        %3733 = vmatpush1.bf16.msra.mxu0 %v2689
        %3734 = vmatprep.subr.bf16.mxu0 %v2682
        %3735 = vmatpush1.bf16.msra.mxu0 %v2681
        %3736 = vmatprep.subr.bf16.mxu0 %v2674
        %3737 = vmatpush1.bf16.msra.mxu0 %v2673
        %3738 = vmatprep.subr.bf16.mxu0 %v2666
        %3739 = vmatpush1.bf16.msra.mxu0 %v2665
        %3740 = vmatprep.subr.bf16.mxu0 %v2658
        %3741 = vmatpush1.bf16.msra.mxu0 %v2657
        %3742 = vmatprep.subr.bf16.mxu0 %v2650
        %3743 = vmatpush1.bf16.msra.mxu0 %v2649
        %3744 = vmatprep.subr.bf16.mxu0 %v2642
        %3745 = vmatpush1.bf16.msra.mxu0 %v2641
        %3746 = vmatprep.subr.bf16.mxu0 %v2634
        %3747 = vmatpush1.bf16.msra.mxu0 %v2633
        %3748 = vmatprep.subr.bf16.mxu0 %v2754
        %3749 = vmatpush2.bf16.msra.mxu0 %v2753
        %3750 = vmatprep.subr.bf16.mxu0 %v2746
        %3751 = vmatpush2.bf16.msra.mxu0 %v2745
        %3752 = vmatprep.subr.bf16.mxu0 %v2738
        %3753 = vmatpush2.bf16.msra.mxu0 %v2737
        %3754 = vmatprep.subr.bf16.mxu0 %v2730
        %3755 = vmatpush2.bf16.msra.mxu0 %v2729
        %3756 = vmatprep.subr.bf16.mxu0 %v2722
        %3757 = vmatpush2.bf16.msra.mxu0 %v2721
        %3758 = vmatprep.subr.bf16.mxu0 %v2714
        %3759 = vmatpush2.bf16.msra.mxu0 %v2713
        %3760 = vmatprep.subr.bf16.mxu0 %v2706
        %3761 = vmatpush2.bf16.msra.mxu0 %v2705
        %3762 = vmatprep.subr.bf16.mxu0 %v2698
        %3763 = vmatpush2.bf16.msra.mxu0 %v2697
        %3764 = vmatprep.mubr.bf16.mxu0 %v954
        %3765 = vmatmul.mubr.bf16.gmra.mxu0 %v953
        %v3766 = vpop.f32.mrf.mxu0
        %v3767 = vadd.f32 %v3726, %v3766
        %v3768 = vpop.f32.mrf.mxu0
        %v3769 = vadd.f32 %v3728, %v3768
        %v3770 = vpop.f32.mrf.mxu0
        %v3771 = vpop.f32.mrf.mxu0
        %3772 = vdwg.mxu0
        %3773 = vmatprep.subr.bf16.mxu0 %v2818
        %3774 = vmatpush1.bf16.msra.mxu0 %v2817
        %3775 = vmatprep.subr.bf16.mxu0 %v2810
        %3776 = vmatpush1.bf16.msra.mxu0 %v2809
        %3777 = vmatprep.subr.bf16.mxu0 %v2802
        %3778 = vmatpush1.bf16.msra.mxu0 %v2801
        %3779 = vmatprep.subr.bf16.mxu0 %v2794
        %3780 = vmatpush1.bf16.msra.mxu0 %v2793
        %3781 = vmatprep.subr.bf16.mxu0 %v2786
        %3782 = vmatpush1.bf16.msra.mxu0 %v2785
        %3783 = vmatprep.subr.bf16.mxu0 %v2778
        %3784 = vmatpush1.bf16.msra.mxu0 %v2777
        %3785 = vmatprep.subr.bf16.mxu0 %v2770
        %3786 = vmatpush1.bf16.msra.mxu0 %v2769
        %3787 = vmatprep.subr.bf16.mxu0 %v2762
        %3788 = vmatpush1.bf16.msra.mxu0 %v2761
        %3789 = vmatprep.subr.bf16.mxu0 %v2882
        %3790 = vmatpush2.bf16.msra.mxu0 %v2881
        %3791 = vmatprep.subr.bf16.mxu0 %v2874
        %3792 = vmatpush2.bf16.msra.mxu0 %v2873
        %3793 = vmatprep.subr.bf16.mxu0 %v2866
        %3794 = vmatpush2.bf16.msra.mxu0 %v2865
        %3795 = vmatprep.subr.bf16.mxu0 %v2858
        %3796 = vmatpush2.bf16.msra.mxu0 %v2857
        %3797 = vmatprep.subr.bf16.mxu0 %v2850
        %3798 = vmatpush2.bf16.msra.mxu0 %v2849
        %3799 = vmatprep.subr.bf16.mxu0 %v2842
        %3800 = vmatpush2.bf16.msra.mxu0 %v2841
        %3801 = vmatprep.subr.bf16.mxu0 %v2834
        %3802 = vmatpush2.bf16.msra.mxu0 %v2833
        %3803 = vmatprep.subr.bf16.mxu0 %v2826
        %3804 = vmatpush2.bf16.msra.mxu0 %v2825
        %3805 = vmatprep.mubr.bf16.mxu0 %v956
        %3806 = vmatmul.mubr.bf16.gmra.mxu0 %v955
        %v3807 = vpop.f32.mrf.mxu0
        %v3808 = vadd.f32 %v3767, %v3807
        %v3809 = vpop.f32.mrf.mxu0
        %v3810 = vadd.f32 %v3769, %v3809
        %v3811 = vpop.f32.mrf.mxu0
        %v3812 = vpop.f32.mrf.mxu0
        %3813 = vdwg.mxu0
        %3814 = vmatprep.subr.bf16.mxu0 %v2946
        %3815 = vmatpush1.bf16.msra.mxu0 %v2945
        %3816 = vmatprep.subr.bf16.mxu0 %v2938
        %3817 = vmatpush1.bf16.msra.mxu0 %v2937
        %3818 = vmatprep.subr.bf16.mxu0 %v2930
        %3819 = vmatpush1.bf16.msra.mxu0 %v2929
        %3820 = vmatprep.subr.bf16.mxu0 %v2922
        %3821 = vmatpush1.bf16.msra.mxu0 %v2921
        %3822 = vmatprep.subr.bf16.mxu0 %v2914
        %3823 = vmatpush1.bf16.msra.mxu0 %v2913
        %3824 = vmatprep.subr.bf16.mxu0 %v2906
        %3825 = vmatpush1.bf16.msra.mxu0 %v2905
        %3826 = vmatprep.subr.bf16.mxu0 %v2898
        %3827 = vmatpush1.bf16.msra.mxu0 %v2897
        %3828 = vmatprep.subr.bf16.mxu0 %v2890
        %3829 = vmatpush1.bf16.msra.mxu0 %v2889
        %3830 = vmatprep.subr.bf16.mxu0 %v3010
        %3831 = vmatpush2.bf16.msra.mxu0 %v3009
        %3832 = vmatprep.subr.bf16.mxu0 %v3002
        %3833 = vmatpush2.bf16.msra.mxu0 %v3001
        %3834 = vmatprep.subr.bf16.mxu0 %v2994
        %3835 = vmatpush2.bf16.msra.mxu0 %v2993
        %3836 = vmatprep.subr.bf16.mxu0 %v2986
        %3837 = vmatpush2.bf16.msra.mxu0 %v2985
        %3838 = vmatprep.subr.bf16.mxu0 %v2978
        %3839 = vmatpush2.bf16.msra.mxu0 %v2977
        %3840 = vmatprep.subr.bf16.mxu0 %v2970
        %3841 = vmatpush2.bf16.msra.mxu0 %v2969
        %3842 = vmatprep.subr.bf16.mxu0 %v2962
        %3843 = vmatpush2.bf16.msra.mxu0 %v2961
        %3844 = vmatprep.subr.bf16.mxu0 %v2954
        %3845 = vmatpush2.bf16.msra.mxu0 %v2953
        %3846 = vmatprep.mubr.bf16.mxu0 %v958
        %3847 = vmatmul.mubr.bf16.gmra.mxu0 %v957
        %v3848 = vpop.f32.mrf.mxu0
        %v3849 = vadd.f32 %v3808, %v3848
        %v3850 = vpop.f32.mrf.mxu0
        %v3851 = vadd.f32 %v3810, %v3850
        %v3852 = vpop.f32.mrf.mxu0
        %v3853 = vpop.f32.mrf.mxu0
        %3854 = vdwg.mxu0
        %3855 = vmatprep.subr.bf16.mxu0 %v2564
        %3856 = vmatpush1.bf16.msra.mxu0 %v2563
        %3857 = vmatprep.subr.bf16.mxu0 %v2556
        %3858 = vmatpush1.bf16.msra.mxu0 %v2555
        %3859 = vmatprep.subr.bf16.mxu0 %v2548
        %3860 = vmatpush1.bf16.msra.mxu0 %v2547
        %3861 = vmatprep.subr.bf16.mxu0 %v2540
        %3862 = vmatpush1.bf16.msra.mxu0 %v2539
        %3863 = vmatprep.subr.bf16.mxu0 %v2532
        %3864 = vmatpush1.bf16.msra.mxu0 %v2531
        %3865 = vmatprep.subr.bf16.mxu0 %v2524
        %3866 = vmatpush1.bf16.msra.mxu0 %v2523
        %3867 = vmatprep.subr.bf16.mxu0 %v2516
        %3868 = vmatpush1.bf16.msra.mxu0 %v2515
        %3869 = vmatprep.subr.bf16.mxu0 %v2508
        %3870 = vmatpush1.bf16.msra.mxu0 %v2507
        %3871 = vmatprep.subr.bf16.mxu0 %v2628
        %3872 = vmatpush2.bf16.msra.mxu0 %v2627
        %3873 = vmatprep.subr.bf16.mxu0 %v2620
        %3874 = vmatpush2.bf16.msra.mxu0 %v2619
        %3875 = vmatprep.subr.bf16.mxu0 %v2612
        %3876 = vmatpush2.bf16.msra.mxu0 %v2611
        %3877 = vmatprep.subr.bf16.mxu0 %v2604
        %3878 = vmatpush2.bf16.msra.mxu0 %v2603
        %3879 = vmatprep.subr.bf16.mxu0 %v2596
        %3880 = vmatpush2.bf16.msra.mxu0 %v2595
        %3881 = vmatprep.subr.bf16.mxu0 %v2588
        %3882 = vmatpush2.bf16.msra.mxu0 %v2587
        %3883 = vmatprep.subr.bf16.mxu0 %v2580
        %3884 = vmatpush2.bf16.msra.mxu0 %v2579
        %3885 = vmatprep.subr.bf16.mxu0 %v2572
        %3886 = vmatpush2.bf16.msra.mxu0 %v2571
        %3887 = vmatprep.mubr.bf16.mxu0 %v952
        %3888 = vmatmul.mubr.bf16.gmra.mxu0 %v951
        %v3889 = vpop.f32.mrf.mxu0
        %v3890 = vadd.f32 0.0, %v3889
        %v3891 = vpop.f32.mrf.mxu0
        %v3892 = vadd.f32 0.0, %v3891
        %v3893 = vpop.f32.mrf.mxu0
        %v3894 = vpop.f32.mrf.mxu0
        %3895 = vdwg.mxu0
        %3896 = vmatprep.subr.bf16.mxu0 %v2692
        %3897 = vmatpush1.bf16.msra.mxu0 %v2691
        %3898 = vmatprep.subr.bf16.mxu0 %v2684
        %3899 = vmatpush1.bf16.msra.mxu0 %v2683
        %3900 = vmatprep.subr.bf16.mxu0 %v2676
        %3901 = vmatpush1.bf16.msra.mxu0 %v2675
        %3902 = vmatprep.subr.bf16.mxu0 %v2668
        %3903 = vmatpush1.bf16.msra.mxu0 %v2667
        %3904 = vmatprep.subr.bf16.mxu0 %v2660
        %3905 = vmatpush1.bf16.msra.mxu0 %v2659
        %3906 = vmatprep.subr.bf16.mxu0 %v2652
        %3907 = vmatpush1.bf16.msra.mxu0 %v2651
        %3908 = vmatprep.subr.bf16.mxu0 %v2644
        %3909 = vmatpush1.bf16.msra.mxu0 %v2643
        %3910 = vmatprep.subr.bf16.mxu0 %v2636
        %3911 = vmatpush1.bf16.msra.mxu0 %v2635
        %3912 = vmatprep.subr.bf16.mxu0 %v2756
        %3913 = vmatpush2.bf16.msra.mxu0 %v2755
        %3914 = vmatprep.subr.bf16.mxu0 %v2748
        %3915 = vmatpush2.bf16.msra.mxu0 %v2747
        %3916 = vmatprep.subr.bf16.mxu0 %v2740
        %3917 = vmatpush2.bf16.msra.mxu0 %v2739
        %3918 = vmatprep.subr.bf16.mxu0 %v2732
        %3919 = vmatpush2.bf16.msra.mxu0 %v2731
        %3920 = vmatprep.subr.bf16.mxu0 %v2724
        %3921 = vmatpush2.bf16.msra.mxu0 %v2723
        %3922 = vmatprep.subr.bf16.mxu0 %v2716
        %3923 = vmatpush2.bf16.msra.mxu0 %v2715
        %3924 = vmatprep.subr.bf16.mxu0 %v2708
        %3925 = vmatpush2.bf16.msra.mxu0 %v2707
        %3926 = vmatprep.subr.bf16.mxu0 %v2700
        %3927 = vmatpush2.bf16.msra.mxu0 %v2699
        %3928 = vmatprep.mubr.bf16.mxu0 %v954
        %3929 = vmatmul.mubr.bf16.gmra.mxu0 %v953
        %v3930 = vpop.f32.mrf.mxu0
        %v3931 = vadd.f32 %v3890, %v3930
        %v3932 = vpop.f32.mrf.mxu0
        %v3933 = vadd.f32 %v3892, %v3932
        %v3934 = vpop.f32.mrf.mxu0
        %v3935 = vpop.f32.mrf.mxu0
        %3936 = vdwg.mxu0
        %3937 = vmatprep.subr.bf16.mxu0 %v2820
        %3938 = vmatpush1.bf16.msra.mxu0 %v2819
        %3939 = vmatprep.subr.bf16.mxu0 %v2812
        %3940 = vmatpush1.bf16.msra.mxu0 %v2811
        %3941 = vmatprep.subr.bf16.mxu0 %v2804
        %3942 = vmatpush1.bf16.msra.mxu0 %v2803
        %3943 = vmatprep.subr.bf16.mxu0 %v2796
        %3944 = vmatpush1.bf16.msra.mxu0 %v2795
        %3945 = vmatprep.subr.bf16.mxu0 %v2788
        %3946 = vmatpush1.bf16.msra.mxu0 %v2787
        %3947 = vmatprep.subr.bf16.mxu0 %v2780
        %3948 = vmatpush1.bf16.msra.mxu0 %v2779
        %3949 = vmatprep.subr.bf16.mxu0 %v2772
        %3950 = vmatpush1.bf16.msra.mxu0 %v2771
        %3951 = vmatprep.subr.bf16.mxu0 %v2764
        %3952 = vmatpush1.bf16.msra.mxu0 %v2763
        %3953 = vmatprep.subr.bf16.mxu0 %v2884
        %3954 = vmatpush2.bf16.msra.mxu0 %v2883
        %3955 = vmatprep.subr.bf16.mxu0 %v2876
        %3956 = vmatpush2.bf16.msra.mxu0 %v2875
        %3957 = vmatprep.subr.bf16.mxu0 %v2868
        %3958 = vmatpush2.bf16.msra.mxu0 %v2867
        %3959 = vmatprep.subr.bf16.mxu0 %v2860
        %3960 = vmatpush2.bf16.msra.mxu0 %v2859
        %3961 = vmatprep.subr.bf16.mxu0 %v2852
        %3962 = vmatpush2.bf16.msra.mxu0 %v2851
        %3963 = vmatprep.subr.bf16.mxu0 %v2844
        %3964 = vmatpush2.bf16.msra.mxu0 %v2843
        %3965 = vmatprep.subr.bf16.mxu0 %v2836
        %3966 = vmatpush2.bf16.msra.mxu0 %v2835
        %3967 = vmatprep.subr.bf16.mxu0 %v2828
        %3968 = vmatpush2.bf16.msra.mxu0 %v2827
        %3969 = vmatprep.mubr.bf16.mxu0 %v956
        %3970 = vmatmul.mubr.bf16.gmra.mxu0 %v955
        %v3971 = vpop.f32.mrf.mxu0
        %v3972 = vadd.f32 %v3931, %v3971
        %v3973 = vpop.f32.mrf.mxu0
        %v3974 = vadd.f32 %v3933, %v3973
        %v3975 = vpop.f32.mrf.mxu0
        %v3976 = vpop.f32.mrf.mxu0
        %3977 = vdwg.mxu0
        %3978 = vmatprep.subr.bf16.mxu0 %v2948
        %3979 = vmatpush1.bf16.msra.mxu0 %v2947
        %3980 = vmatprep.subr.bf16.mxu0 %v2940
        %3981 = vmatpush1.bf16.msra.mxu0 %v2939
        %3982 = vmatprep.subr.bf16.mxu0 %v2932
        %3983 = vmatpush1.bf16.msra.mxu0 %v2931
        %3984 = vmatprep.subr.bf16.mxu0 %v2924
        %3985 = vmatpush1.bf16.msra.mxu0 %v2923
        %3986 = vmatprep.subr.bf16.mxu0 %v2916
        %3987 = vmatpush1.bf16.msra.mxu0 %v2915
        %3988 = vmatprep.subr.bf16.mxu0 %v2908
        %3989 = vmatpush1.bf16.msra.mxu0 %v2907
        %3990 = vmatprep.subr.bf16.mxu0 %v2900
        %3991 = vmatpush1.bf16.msra.mxu0 %v2899
        %3992 = vmatprep.subr.bf16.mxu0 %v2892
        %3993 = vmatpush1.bf16.msra.mxu0 %v2891
        %3994 = vmatprep.subr.bf16.mxu0 %v3012
        %3995 = vmatpush2.bf16.msra.mxu0 %v3011
        %3996 = vmatprep.subr.bf16.mxu0 %v3004
        %3997 = vmatpush2.bf16.msra.mxu0 %v3003
        %3998 = vmatprep.subr.bf16.mxu0 %v2996
        %3999 = vmatpush2.bf16.msra.mxu0 %v2995
        %4000 = vmatprep.subr.bf16.mxu0 %v2988
        %4001 = vmatpush2.bf16.msra.mxu0 %v2987
        %4002 = vmatprep.subr.bf16.mxu0 %v2980
        %4003 = vmatpush2.bf16.msra.mxu0 %v2979
        %4004 = vmatprep.subr.bf16.mxu0 %v2972
        %4005 = vmatpush2.bf16.msra.mxu0 %v2971
        %4006 = vmatprep.subr.bf16.mxu0 %v2964
        %4007 = vmatpush2.bf16.msra.mxu0 %v2963
        %4008 = vmatprep.subr.bf16.mxu0 %v2956
        %4009 = vmatpush2.bf16.msra.mxu0 %v2955
        %4010 = vmatprep.mubr.bf16.mxu0 %v958
        %4011 = vmatmul.mubr.bf16.gmra.mxu0 %v957
        %v4012 = vpop.f32.mrf.mxu0
        %v4013 = vadd.f32 %v3972, %v4012
        %v4014 = vpop.f32.mrf.mxu0
        %v4015 = vadd.f32 %v3974, %v4014
        %v4016 = vpop.f32.mrf.mxu0
        %v4017 = vpop.f32.mrf.mxu0
        %4018 = vdwg.mxu0
        %4019 = vmatprep.subr.bf16.mxu0 %v2566
        %4020 = vmatpush1.bf16.msra.mxu0 %v2565
        %4021 = vmatprep.subr.bf16.mxu0 %v2558
        %4022 = vmatpush1.bf16.msra.mxu0 %v2557
        %4023 = vmatprep.subr.bf16.mxu0 %v2550
        %4024 = vmatpush1.bf16.msra.mxu0 %v2549
        %4025 = vmatprep.subr.bf16.mxu0 %v2542
        %4026 = vmatpush1.bf16.msra.mxu0 %v2541
        %4027 = vmatprep.subr.bf16.mxu0 %v2534
        %4028 = vmatpush1.bf16.msra.mxu0 %v2533
        %4029 = vmatprep.subr.bf16.mxu0 %v2526
        %4030 = vmatpush1.bf16.msra.mxu0 %v2525
        %4031 = vmatprep.subr.bf16.mxu0 %v2518
        %4032 = vmatpush1.bf16.msra.mxu0 %v2517
        %4033 = vmatprep.subr.bf16.mxu0 %v2510
        %4034 = vmatpush1.bf16.msra.mxu0 %v2509
        %4035 = vmatprep.subr.bf16.mxu0 %v2630
        %4036 = vmatpush2.bf16.msra.mxu0 %v2629
        %4037 = vmatprep.subr.bf16.mxu0 %v2622
        %4038 = vmatpush2.bf16.msra.mxu0 %v2621
        %4039 = vmatprep.subr.bf16.mxu0 %v2614
        %4040 = vmatpush2.bf16.msra.mxu0 %v2613
        %4041 = vmatprep.subr.bf16.mxu0 %v2606
        %4042 = vmatpush2.bf16.msra.mxu0 %v2605
        %4043 = vmatprep.subr.bf16.mxu0 %v2598
        %4044 = vmatpush2.bf16.msra.mxu0 %v2597
        %4045 = vmatprep.subr.bf16.mxu0 %v2590
        %4046 = vmatpush2.bf16.msra.mxu0 %v2589
        %4047 = vmatprep.subr.bf16.mxu0 %v2582
        %4048 = vmatpush2.bf16.msra.mxu0 %v2581
        %4049 = vmatprep.subr.bf16.mxu0 %v2574
        %4050 = vmatpush2.bf16.msra.mxu0 %v2573
        %4051 = vmatprep.mubr.bf16.mxu0 %v952
        %4052 = vmatmul.mubr.bf16.gmra.mxu0 %v951
        %v4053 = vpop.f32.mrf.mxu0
        %v4054 = vadd.f32 0.0, %v4053
        %v4055 = vpop.f32.mrf.mxu0
        %v4056 = vadd.f32 0.0, %v4055
        %v4057 = vpop.f32.mrf.mxu0
        %v4058 = vpop.f32.mrf.mxu0
        %4059 = vdwg.mxu0
        %4060 = vmatprep.subr.bf16.mxu0 %v2694
        %4061 = vmatpush1.bf16.msra.mxu0 %v2693
        %4062 = vmatprep.subr.bf16.mxu0 %v2686
        %4063 = vmatpush1.bf16.msra.mxu0 %v2685
        %4064 = vmatprep.subr.bf16.mxu0 %v2678
        %4065 = vmatpush1.bf16.msra.mxu0 %v2677
        %4066 = vmatprep.subr.bf16.mxu0 %v2670
        %4067 = vmatpush1.bf16.msra.mxu0 %v2669
        %4068 = vmatprep.subr.bf16.mxu0 %v2662
        %4069 = vmatpush1.bf16.msra.mxu0 %v2661
        %4070 = vmatprep.subr.bf16.mxu0 %v2654
        %4071 = vmatpush1.bf16.msra.mxu0 %v2653
        %4072 = vmatprep.subr.bf16.mxu0 %v2646
        %4073 = vmatpush1.bf16.msra.mxu0 %v2645
        %4074 = vmatprep.subr.bf16.mxu0 %v2638
        %4075 = vmatpush1.bf16.msra.mxu0 %v2637
        %4076 = vmatprep.subr.bf16.mxu0 %v2758
        %4077 = vmatpush2.bf16.msra.mxu0 %v2757
        %4078 = vmatprep.subr.bf16.mxu0 %v2750
        %4079 = vmatpush2.bf16.msra.mxu0 %v2749
        %4080 = vmatprep.subr.bf16.mxu0 %v2742
        %4081 = vmatpush2.bf16.msra.mxu0 %v2741
        %4082 = vmatprep.subr.bf16.mxu0 %v2734
        %4083 = vmatpush2.bf16.msra.mxu0 %v2733
        %4084 = vmatprep.subr.bf16.mxu0 %v2726
        %4085 = vmatpush2.bf16.msra.mxu0 %v2725
        %4086 = vmatprep.subr.bf16.mxu0 %v2718
        %4087 = vmatpush2.bf16.msra.mxu0 %v2717
        %4088 = vmatprep.subr.bf16.mxu0 %v2710
        %4089 = vmatpush2.bf16.msra.mxu0 %v2709
        %4090 = vmatprep.subr.bf16.mxu0 %v2702
        %4091 = vmatpush2.bf16.msra.mxu0 %v2701
        %4092 = vmatprep.mubr.bf16.mxu0 %v954
        %4093 = vmatmul.mubr.bf16.gmra.mxu0 %v953
        %v4094 = vpop.f32.mrf.mxu0
        %v4095 = vadd.f32 %v4054, %v4094
        %v4096 = vpop.f32.mrf.mxu0
        %v4097 = vadd.f32 %v4056, %v4096
        %v4098 = vpop.f32.mrf.mxu0
        %v4099 = vpop.f32.mrf.mxu0
        %4100 = vdwg.mxu0
        %4101 = vmatprep.subr.bf16.mxu0 %v2822
        %4102 = vmatpush1.bf16.msra.mxu0 %v2821
        %4103 = vmatprep.subr.bf16.mxu0 %v2814
        %4104 = vmatpush1.bf16.msra.mxu0 %v2813
        %4105 = vmatprep.subr.bf16.mxu0 %v2806
        %4106 = vmatpush1.bf16.msra.mxu0 %v2805
        %4107 = vmatprep.subr.bf16.mxu0 %v2798
        %4108 = vmatpush1.bf16.msra.mxu0 %v2797
        %4109 = vmatprep.subr.bf16.mxu0 %v2790
        %4110 = vmatpush1.bf16.msra.mxu0 %v2789
        %4111 = vmatprep.subr.bf16.mxu0 %v2782
        %4112 = vmatpush1.bf16.msra.mxu0 %v2781
        %4113 = vmatprep.subr.bf16.mxu0 %v2774
        %4114 = vmatpush1.bf16.msra.mxu0 %v2773
        %4115 = vmatprep.subr.bf16.mxu0 %v2766
        %4116 = vmatpush1.bf16.msra.mxu0 %v2765
        %4117 = vmatprep.subr.bf16.mxu0 %v2886
        %4118 = vmatpush2.bf16.msra.mxu0 %v2885
        %4119 = vmatprep.subr.bf16.mxu0 %v2878
        %4120 = vmatpush2.bf16.msra.mxu0 %v2877
        %4121 = vmatprep.subr.bf16.mxu0 %v2870
        %4122 = vmatpush2.bf16.msra.mxu0 %v2869
        %4123 = vmatprep.subr.bf16.mxu0 %v2862
        %4124 = vmatpush2.bf16.msra.mxu0 %v2861
        %4125 = vmatprep.subr.bf16.mxu0 %v2854
        %4126 = vmatpush2.bf16.msra.mxu0 %v2853
        %4127 = vmatprep.subr.bf16.mxu0 %v2846
        %4128 = vmatpush2.bf16.msra.mxu0 %v2845
        %4129 = vmatprep.subr.bf16.mxu0 %v2838
        %4130 = vmatpush2.bf16.msra.mxu0 %v2837
        %4131 = vmatprep.subr.bf16.mxu0 %v2830
        %4132 = vmatpush2.bf16.msra.mxu0 %v2829
        %4133 = vmatprep.mubr.bf16.mxu0 %v956
        %4134 = vmatmul.mubr.bf16.gmra.mxu0 %v955
        %v4135 = vpop.f32.mrf.mxu0
        %v4136 = vadd.f32 %v4095, %v4135
        %v4137 = vpop.f32.mrf.mxu0
        %v4138 = vadd.f32 %v4097, %v4137
        %v4139 = vpop.f32.mrf.mxu0
        %v4140 = vpop.f32.mrf.mxu0
        %4141 = vdwg.mxu0
        %4142 = vmatprep.subr.bf16.mxu0 %v2950
        %4143 = vmatpush1.bf16.msra.mxu0 %v2949
        %4144 = vmatprep.subr.bf16.mxu0 %v2942
        %4145 = vmatpush1.bf16.msra.mxu0 %v2941
        %4146 = vmatprep.subr.bf16.mxu0 %v2934
        %4147 = vmatpush1.bf16.msra.mxu0 %v2933
        %4148 = vmatprep.subr.bf16.mxu0 %v2926
        %4149 = vmatpush1.bf16.msra.mxu0 %v2925
        %4150 = vmatprep.subr.bf16.mxu0 %v2918
        %4151 = vmatpush1.bf16.msra.mxu0 %v2917
        %4152 = vmatprep.subr.bf16.mxu0 %v2910
        %4153 = vmatpush1.bf16.msra.mxu0 %v2909
        %4154 = vmatprep.subr.bf16.mxu0 %v2902
        %4155 = vmatpush1.bf16.msra.mxu0 %v2901
        %4156 = vmatprep.subr.bf16.mxu0 %v2894
        %4157 = vmatpush1.bf16.msra.mxu0 %v2893
        %4158 = vmatprep.subr.bf16.mxu0 %v3014
        %4159 = vmatpush2.bf16.msra.mxu0 %v3013
        %4160 = vmatprep.subr.bf16.mxu0 %v3006
        %4161 = vmatpush2.bf16.msra.mxu0 %v3005
        %4162 = vmatprep.subr.bf16.mxu0 %v2998
        %4163 = vmatpush2.bf16.msra.mxu0 %v2997
        %4164 = vmatprep.subr.bf16.mxu0 %v2990
        %4165 = vmatpush2.bf16.msra.mxu0 %v2989
        %4166 = vmatprep.subr.bf16.mxu0 %v2982
        %4167 = vmatpush2.bf16.msra.mxu0 %v2981
        %4168 = vmatprep.subr.bf16.mxu0 %v2974
        %4169 = vmatpush2.bf16.msra.mxu0 %v2973
        %4170 = vmatprep.subr.bf16.mxu0 %v2966
        %4171 = vmatpush2.bf16.msra.mxu0 %v2965
        %4172 = vmatprep.subr.bf16.mxu0 %v2958
        %4173 = vmatpush2.bf16.msra.mxu0 %v2957
        %4174 = vmatprep.mubr.bf16.mxu0 %v958
        %4175 = vmatmul.mubr.bf16.gmra.mxu0 %v957
        %v4176 = vpop.f32.mrf.mxu0
        %v4177 = vadd.f32 %v4136, %v4176
        %v4178 = vpop.f32.mrf.mxu0
        %v4179 = vadd.f32 %v4138, %v4178
        %v4180 = vpop.f32.mrf.mxu0
        %v4181 = vpop.f32.mrf.mxu0
        %4182 = vdwg.mxu0
        %v4183 = vld [vmem:[#allocation2] sm:$0xff]
        %v4184 = vrot.slane %v3685, 4
        %v4185 = vadd.f32 %v3685, %v4184
        %v4186 = vrot.slane %v4185, 2
        %v4187 = vadd.f32 %v4185, %v4186
        %v4188 = vrot.slane %v4187, 1
        %v4189 = vadd.f32 %v4187, %v4188
        %v4190 = vrot.slane %v3687, 4
        %v4191 = vadd.f32 %v3687, %v4190
        %v4192 = vrot.slane %v4191, 2
        %v4193 = vadd.f32 %v4191, %v4192
        %v4194 = vrot.slane %v4193, 1
        %v4195 = vadd.f32 %v4193, %v4194
        %v4196 = vrot.slane %v3849, 4
        %v4197 = vadd.f32 %v3849, %v4196
        %v4198 = vrot.slane %v4197, 2
        %v4199 = vadd.f32 %v4197, %v4198
        %v4200 = vrot.slane %v4199, 1
        %v4201 = vadd.f32 %v4199, %v4200
        %v4202 = vrot.slane %v3851, 4
        %v4203 = vadd.f32 %v3851, %v4202
        %v4204 = vrot.slane %v4203, 2
        %v4205 = vadd.f32 %v4203, %v4204
        %v4206 = vrot.slane %v4205, 1
        %v4207 = vadd.f32 %v4205, %v4206
        %v4208 = vrot.slane %v4013, 4
        %v4209 = vadd.f32 %v4013, %v4208
        %v4210 = vrot.slane %v4209, 2
        %v4211 = vadd.f32 %v4209, %v4210
        %v4212 = vrot.slane %v4211, 1
        %v4213 = vadd.f32 %v4211, %v4212
        %v4214 = vrot.slane %v4015, 4
        %v4215 = vadd.f32 %v4015, %v4214
        %v4216 = vrot.slane %v4215, 2
        %v4217 = vadd.f32 %v4215, %v4216
        %v4218 = vrot.slane %v4217, 1
        %v4219 = vadd.f32 %v4217, %v4218
        %v4220 = vrot.slane %v4177, 4
        %v4221 = vadd.f32 %v4177, %v4220
        %v4222 = vrot.slane %v4221, 2
        %v4223 = vadd.f32 %v4221, %v4222
        %v4224 = vrot.slane %v4223, 1
        %v4225 = vadd.f32 %v4223, %v4224
        %v4226 = vrot.slane %v4179, 4
        %v4227 = vadd.f32 %v4179, %v4226
        %v4228 = vrot.slane %v4227, 2
        %v4229 = vadd.f32 %v4227, %v4228
        %v4230 = vrot.slane %v4229, 1
        %v4231 = vadd.f32 %v4229, %v4230
        %v4240 = vcombine.low %v4189, %v4195
        %v4241 = vcombine.low %v4201, %v4207
        %v4242 = vcombine.low %v4213, %v4219
        %v4243 = vcombine.low %v4225, %v4231
        %v4245 = vunpack.c.l.s4 1966171168
        %v4246 = vunpack.c.0.s8 %v4245
        %v4247 = vlaneseq
        %v4248 = vshrl.u32 %v4247, 7
        %v4249 = vsub.s32 %v4246, %v4248
        %v4250 = vrot.slane %v4240, %v4249
        %v4252 = vunpack.c.l.s4 1966171168
        %v4253 = vunpack.c.0.s8 %v4252
        %v4254 = vlaneseq
        %v4255 = vshrl.u32 %v4254, 7
        %v4256 = vsub.s32 %v4253, %v4255
        %v4257 = vrot.slane %v4241, %v4256
        %v4259 = vunpack.c.l.s4 1966171168
        %v4260 = vunpack.c.0.s8 %v4259
        %v4261 = vlaneseq
        %v4262 = vshrl.u32 %v4261, 7
        %v4263 = vsub.s32 %v4260, %v4262
        %v4264 = vrot.slane %v4242, %v4263
        %v4266 = vunpack.c.l.s4 1966171168
        %v4267 = vunpack.c.0.s8 %v4266
        %v4268 = vlaneseq
        %v4269 = vshrl.u32 %v4268, 7
        %v4270 = vsub.s32 %v4267, %v4269
        %v4271 = vrot.slane %v4243, %v4270
        %v4272 = vcombine.low %v4250, %v4257
        %v4273 = vcombine.low %v4264, %v4271
        %v4275 = vunpack.c.l.s4 1966171168
        %v4276 = vunpack.c.0.s8 %v4275
        %v4277 = vlaneseq
        %v4278 = vshrl.u32 %v4277, 7
        %v4279 = vsub.s32 %v4276, %v4278
        %v4280 = vrot.slane %v4272, %v4279
        %v4282 = vunpack.c.l.s4 1966171168
        %v4283 = vunpack.c.0.s8 %v4282
        %v4284 = vlaneseq
        %v4285 = vshrl.u32 %v4284, 7
        %v4286 = vsub.s32 %v4283, %v4285
        %v4287 = vrot.slane %v4273, %v4286
        %v4288 = vcombine.low %v4280, %v4287
        %v4290 = vadd.f32 %v4183, %v4288
        %4291 = vst [vmem:[#allocation2] sm:$0xff] %v4290
        %v4292 = vld [vmem:[#allocation3] sm:$0xff]
        %v4293 = vunpack.c.l.bf16 %v423
        %v4294 = vunpack.c.h.bf16 %v423
        %v4295 = vunpack.c.l.bf16 %v424
        %v4296 = vunpack.c.h.bf16 %v424
        %v4297 = vunpack.c.l.bf16 %v425
        %v4298 = vunpack.c.h.bf16 %v425
        %v4299 = vunpack.c.l.bf16 %v426
        %v4300 = vunpack.c.h.bf16 %v426
        %v4301 = vrot.slane %v4293, 4
        %v4302 = vadd.f32 %v4293, %v4301
        %v4303 = vrot.slane %v4302, 2
        %v4304 = vadd.f32 %v4302, %v4303
        %v4305 = vrot.slane %v4304, 1
        %v4306 = vadd.f32 %v4304, %v4305
        %v4307 = vrot.slane %v4294, 4
        %v4308 = vadd.f32 %v4294, %v4307
        %v4309 = vrot.slane %v4308, 2
        %v4310 = vadd.f32 %v4308, %v4309
        %v4311 = vrot.slane %v4310, 1
        %v4312 = vadd.f32 %v4310, %v4311
        %v4313 = vrot.slane %v4295, 4
        %v4314 = vadd.f32 %v4295, %v4313
        %v4315 = vrot.slane %v4314, 2
        %v4316 = vadd.f32 %v4314, %v4315
        %v4317 = vrot.slane %v4316, 1
        %v4318 = vadd.f32 %v4316, %v4317
        %v4319 = vrot.slane %v4296, 4
        %v4320 = vadd.f32 %v4296, %v4319
        %v4321 = vrot.slane %v4320, 2
        %v4322 = vadd.f32 %v4320, %v4321
        %v4323 = vrot.slane %v4322, 1
        %v4324 = vadd.f32 %v4322, %v4323
        %v4325 = vrot.slane %v4297, 4
        %v4326 = vadd.f32 %v4297, %v4325
        %v4327 = vrot.slane %v4326, 2
        %v4328 = vadd.f32 %v4326, %v4327
        %v4329 = vrot.slane %v4328, 1
        %v4330 = vadd.f32 %v4328, %v4329
        %v4331 = vrot.slane %v4298, 4
        %v4332 = vadd.f32 %v4298, %v4331
        %v4333 = vrot.slane %v4332, 2
        %v4334 = vadd.f32 %v4332, %v4333
        %v4335 = vrot.slane %v4334, 1
        %v4336 = vadd.f32 %v4334, %v4335
        %v4337 = vrot.slane %v4299, 4
        %v4338 = vadd.f32 %v4299, %v4337
        %v4339 = vrot.slane %v4338, 2
        %v4340 = vadd.f32 %v4338, %v4339
        %v4341 = vrot.slane %v4340, 1
        %v4342 = vadd.f32 %v4340, %v4341
        %v4343 = vrot.slane %v4300, 4
        %v4344 = vadd.f32 %v4300, %v4343
        %v4345 = vrot.slane %v4344, 2
        %v4346 = vadd.f32 %v4344, %v4345
        %v4347 = vrot.slane %v4346, 1
        %v4348 = vadd.f32 %v4346, %v4347
        %v4357 = vcombine.low %v4306, %v4312
        %v4358 = vcombine.low %v4318, %v4324
        %v4359 = vcombine.low %v4330, %v4336
        %v4360 = vcombine.low %v4342, %v4348
        %v4362 = vunpack.c.l.s4 1966171168
        %v4363 = vunpack.c.0.s8 %v4362
        %v4364 = vlaneseq
        %v4365 = vshrl.u32 %v4364, 7
        %v4366 = vsub.s32 %v4363, %v4365
        %v4367 = vrot.slane %v4357, %v4366
        %v4369 = vunpack.c.l.s4 1966171168
        %v4370 = vunpack.c.0.s8 %v4369
        %v4371 = vlaneseq
        %v4372 = vshrl.u32 %v4371, 7
        %v4373 = vsub.s32 %v4370, %v4372
        %v4374 = vrot.slane %v4358, %v4373
        %v4376 = vunpack.c.l.s4 1966171168
        %v4377 = vunpack.c.0.s8 %v4376
        %v4378 = vlaneseq
        %v4379 = vshrl.u32 %v4378, 7
        %v4380 = vsub.s32 %v4377, %v4379
        %v4381 = vrot.slane %v4359, %v4380
        %v4383 = vunpack.c.l.s4 1966171168
        %v4384 = vunpack.c.0.s8 %v4383
        %v4385 = vlaneseq
        %v4386 = vshrl.u32 %v4385, 7
        %v4387 = vsub.s32 %v4384, %v4386
        %v4388 = vrot.slane %v4360, %v4387
        %v4389 = vcombine.low %v4367, %v4374
        %v4390 = vcombine.low %v4381, %v4388
        %v4392 = vunpack.c.l.s4 1966171168
        %v4393 = vunpack.c.0.s8 %v4392
        %v4394 = vlaneseq
        %v4395 = vshrl.u32 %v4394, 7
        %v4396 = vsub.s32 %v4393, %v4395
        %v4397 = vrot.slane %v4389, %v4396
        %v4399 = vunpack.c.l.s4 1966171168
        %v4400 = vunpack.c.0.s8 %v4399
        %v4401 = vlaneseq
        %v4402 = vshrl.u32 %v4401, 7
        %v4403 = vsub.s32 %v4400, %v4402
        %v4404 = vrot.slane %v4390, %v4403
        %v4405 = vcombine.low %v4397, %v4404
        %v4407 = vadd.f32 %v4292, %v4405
        %4408 = vst [vmem:[#allocation3] sm:$0xff] %v4407
        // Predicated region
        $region85: #{tpu_custom_call.1} parent=51 // pred_check
          %p4409 = pneg %p417
        $region86: #{tpu_custom_call.1} parent=51 // pred_check_branch
          %4411 = sbr.rel (%p4409) target = $region88
        $region87: #{tpu_custom_call.1} parent=51 // pred_region
          %v4412 = vld [vmem:[#allocation3] sm:$0xff]
          %v4414 = vlaneseq
          %v4415 = vshrl.u32 %v4414, 7
          %v4416 = vsub.s32 0, %v4415
          %v4417 = vrot.slane %v4412, %v4416
          %v4418 = vlaneseq
          %v4419 = vshrl.u32 %v4418, 7
          %v4420 = vsub.s32 1, %v4419
          %v4421 = vrot.slane %v4412, %v4420
          %v4422 = vlaneseq
          %v4423 = vshrl.u32 %v4422, 7
          %v4424 = vsub.s32 2, %v4423
          %v4425 = vrot.slane %v4412, %v4424
          %v4426 = vlaneseq
          %v4427 = vshrl.u32 %v4426, 7
          %v4428 = vsub.s32 3, %v4427
          %v4429 = vrot.slane %v4412, %v4428
          %v4430 = vlaneseq
          %v4431 = vshrl.u32 %v4430, 7
          %v4432 = vsub.s32 4, %v4431
          %v4433 = vrot.slane %v4412, %v4432
          %v4434 = vlaneseq
          %v4435 = vshrl.u32 %v4434, 7
          %v4436 = vsub.s32 5, %v4435
          %v4437 = vrot.slane %v4412, %v4436
          %v4438 = vlaneseq
          %v4439 = vshrl.u32 %v4438, 7
          %v4440 = vsub.s32 6, %v4439
          %v4441 = vrot.slane %v4412, %v4440
          %v4442 = vlaneseq
          %v4443 = vshrl.u32 %v4442, 7
          %v4444 = vsub.s32 7, %v4443
          %v4445 = vrot.slane %v4412, %v4444
          %v4454 = vpack.c.bf16 %v4417, %v4417
          %v4455 = vpack.c.bf16 %v4421, %v4421
          %v4456 = vpack.c.bf16 %v4425, %v4425
          %v4457 = vpack.c.bf16 %v4429, %v4429
          %v4458 = vpack.c.bf16 %v4433, %v4433
          %v4459 = vpack.c.bf16 %v4437, %v4437
          %v4460 = vpack.c.bf16 %v4441, %v4441
          %v4461 = vpack.c.bf16 %v4445, %v4445
          %v4462 = vld [vmem:[%s2] sm:$0xf]
          %v4463 = vld [vmem:[%s2 + $0x4] sm:$0xf]
          %v4464 = vld [vmem:[%s2 + $0x8] sm:$0xf]
          %v4465 = vld [vmem:[%s2 + $0xc] sm:$0xf]
          %v4466 = vld [vmem:[%s2 + $0x10] sm:$0xf]
          %v4467 = vld [vmem:[%s2 + $0x14] sm:$0xf]
          %v4468 = vld [vmem:[%s2 + $0x18] sm:$0xf]
          %v4469 = vld [vmem:[%s2 + $0x1c] sm:$0xf]
          %v4470 = vld [vmem:[%s2 + $0x20] sm:$0xf]
          %v4471 = vld [vmem:[%s2 + $0x24] sm:$0xf]
          %v4472 = vld [vmem:[%s2 + $0x28] sm:$0xf]
          %v4473 = vld [vmem:[%s2 + $0x2c] sm:$0xf]
          %v4474 = vld [vmem:[%s2 + $0x30] sm:$0xf]
          %v4475 = vld [vmem:[%s2 + $0x34] sm:$0xf]
          %v4476 = vld [vmem:[%s2 + $0x38] sm:$0xf]
          %v4477 = vld [vmem:[%s2 + $0x3c] sm:$0xf]
          %v4478 = vld [vmem:[%s2 + $0x40] sm:$0xf]
          %v4479 = vld [vmem:[%s2 + $0x44] sm:$0xf]
          %v4480 = vld [vmem:[%s2 + $0x48] sm:$0xf]
          %v4481 = vld [vmem:[%s2 + $0x4c] sm:$0xf]
          %v4482 = vld [vmem:[%s2 + $0x50] sm:$0xf]
          %v4483 = vld [vmem:[%s2 + $0x54] sm:$0xf]
          %v4484 = vld [vmem:[%s2 + $0x58] sm:$0xf]
          %v4485 = vld [vmem:[%s2 + $0x5c] sm:$0xf]
          %v4486 = vld [vmem:[%s2 + $0x60] sm:$0xf]
          %v4487 = vld [vmem:[%s2 + $0x64] sm:$0xf]
          %v4488 = vld [vmem:[%s2 + $0x68] sm:$0xf]
          %v4489 = vld [vmem:[%s2 + $0x6c] sm:$0xf]
          %v4490 = vld [vmem:[%s2 + $0x70] sm:$0xf]
          %v4491 = vld [vmem:[%s2 + $0x74] sm:$0xf]
          %v4492 = vld [vmem:[%s2 + $0x78] sm:$0xf]
          %v4493 = vld [vmem:[%s2 + $0x7c] sm:$0xf]
          %v4494 = vld [vmem:[%s2 + $0x80] sm:$0xf]
          %v4495 = vld [vmem:[%s2 + $0x84] sm:$0xf]
          %v4496 = vld [vmem:[%s2 + $0x88] sm:$0xf]
          %v4497 = vld [vmem:[%s2 + $0x8c] sm:$0xf]
          %v4498 = vld [vmem:[%s2 + $0x90] sm:$0xf]
          %v4499 = vld [vmem:[%s2 + $0x94] sm:$0xf]
          %v4500 = vld [vmem:[%s2 + $0x98] sm:$0xf]
          %v4501 = vld [vmem:[%s2 + $0x9c] sm:$0xf]
          %v4502 = vld [vmem:[%s2 + $0xa0] sm:$0xf]
          %v4503 = vld [vmem:[%s2 + $0xa4] sm:$0xf]
          %v4504 = vld [vmem:[%s2 + $0xa8] sm:$0xf]
          %v4505 = vld [vmem:[%s2 + $0xac] sm:$0xf]
          %v4506 = vld [vmem:[%s2 + $0xb0] sm:$0xf]
          %v4507 = vld [vmem:[%s2 + $0xb4] sm:$0xf]
          %v4508 = vld [vmem:[%s2 + $0xb8] sm:$0xf]
          %v4509 = vld [vmem:[%s2 + $0xbc] sm:$0xf]
          %v4510 = vld [vmem:[%s2 + $0xc0] sm:$0xf]
          %v4511 = vld [vmem:[%s2 + $0xc4] sm:$0xf]
          %v4512 = vld [vmem:[%s2 + $0xc8] sm:$0xf]
          %v4513 = vld [vmem:[%s2 + $0xcc] sm:$0xf]
          %v4514 = vld [vmem:[%s2 + $0xd0] sm:$0xf]
          %v4515 = vld [vmem:[%s2 + $0xd4] sm:$0xf]
          %v4516 = vld [vmem:[%s2 + $0xd8] sm:$0xf]
          %v4517 = vld [vmem:[%s2 + $0xdc] sm:$0xf]
          %v4518 = vld [vmem:[%s2 + $0xe0] sm:$0xf]
          %v4519 = vld [vmem:[%s2 + $0xe4] sm:$0xf]
          %v4520 = vld [vmem:[%s2 + $0xe8] sm:$0xf]
          %v4521 = vld [vmem:[%s2 + $0xec] sm:$0xf]
          %v4522 = vld [vmem:[%s2 + $0xf0] sm:$0xf]
          %v4523 = vld [vmem:[%s2 + $0xf4] sm:$0xf]
          %v4524 = vld [vmem:[%s2 + $0xf8] sm:$0xf]
          %v4525 = vld [vmem:[%s2 + $0xfc] sm:$0xf]
          %v4526 = vld [vmem:[%s2 + $0x100] sm:$0xf]
          %v4527 = vld [vmem:[%s2 + $0x104] sm:$0xf]
          %v4528 = vld [vmem:[%s2 + $0x108] sm:$0xf]
          %v4529 = vld [vmem:[%s2 + $0x10c] sm:$0xf]
          %v4530 = vld [vmem:[%s2 + $0x110] sm:$0xf]
          %v4531 = vld [vmem:[%s2 + $0x114] sm:$0xf]
          %v4532 = vld [vmem:[%s2 + $0x118] sm:$0xf]
          %v4533 = vld [vmem:[%s2 + $0x11c] sm:$0xf]
          %v4534 = vld [vmem:[%s2 + $0x120] sm:$0xf]
          %v4535 = vld [vmem:[%s2 + $0x124] sm:$0xf]
          %v4536 = vld [vmem:[%s2 + $0x128] sm:$0xf]
          %v4537 = vld [vmem:[%s2 + $0x12c] sm:$0xf]
          %v4538 = vld [vmem:[%s2 + $0x130] sm:$0xf]
          %v4539 = vld [vmem:[%s2 + $0x134] sm:$0xf]
          %v4540 = vld [vmem:[%s2 + $0x138] sm:$0xf]
          %v4541 = vld [vmem:[%s2 + $0x13c] sm:$0xf]
          %v4542 = vld [vmem:[%s2 + $0x140] sm:$0xf]
          %v4543 = vld [vmem:[%s2 + $0x144] sm:$0xf]
          %v4544 = vld [vmem:[%s2 + $0x148] sm:$0xf]
          %v4545 = vld [vmem:[%s2 + $0x14c] sm:$0xf]
          %v4546 = vld [vmem:[%s2 + $0x150] sm:$0xf]
          %v4547 = vld [vmem:[%s2 + $0x154] sm:$0xf]
          %v4548 = vld [vmem:[%s2 + $0x158] sm:$0xf]
          %v4549 = vld [vmem:[%s2 + $0x15c] sm:$0xf]
          %v4550 = vld [vmem:[%s2 + $0x160] sm:$0xf]
          %v4551 = vld [vmem:[%s2 + $0x164] sm:$0xf]
          %v4552 = vld [vmem:[%s2 + $0x168] sm:$0xf]
          %v4553 = vld [vmem:[%s2 + $0x16c] sm:$0xf]
          %v4554 = vld [vmem:[%s2 + $0x170] sm:$0xf]
          %v4555 = vld [vmem:[%s2 + $0x174] sm:$0xf]
          %v4556 = vld [vmem:[%s2 + $0x178] sm:$0xf]
          %v4557 = vld [vmem:[%s2 + $0x17c] sm:$0xf]
          %v4558 = vld [vmem:[%s2 + $0x180] sm:$0xf]
          %v4559 = vld [vmem:[%s2 + $0x184] sm:$0xf]
          %v4560 = vld [vmem:[%s2 + $0x188] sm:$0xf]
          %v4561 = vld [vmem:[%s2 + $0x18c] sm:$0xf]
          %v4562 = vld [vmem:[%s2 + $0x190] sm:$0xf]
          %v4563 = vld [vmem:[%s2 + $0x194] sm:$0xf]
          %v4564 = vld [vmem:[%s2 + $0x198] sm:$0xf]
          %v4565 = vld [vmem:[%s2 + $0x19c] sm:$0xf]
          %v4566 = vld [vmem:[%s2 + $0x1a0] sm:$0xf]
          %v4567 = vld [vmem:[%s2 + $0x1a4] sm:$0xf]
          %v4568 = vld [vmem:[%s2 + $0x1a8] sm:$0xf]
          %v4569 = vld [vmem:[%s2 + $0x1ac] sm:$0xf]
          %v4570 = vld [vmem:[%s2 + $0x1b0] sm:$0xf]
          %v4571 = vld [vmem:[%s2 + $0x1b4] sm:$0xf]
          %v4572 = vld [vmem:[%s2 + $0x1b8] sm:$0xf]
          %v4573 = vld [vmem:[%s2 + $0x1bc] sm:$0xf]
          %v4574 = vld [vmem:[%s2 + $0x1c0] sm:$0xf]
          %v4575 = vld [vmem:[%s2 + $0x1c4] sm:$0xf]
          %v4576 = vld [vmem:[%s2 + $0x1c8] sm:$0xf]
          %v4577 = vld [vmem:[%s2 + $0x1cc] sm:$0xf]
          %v4578 = vld [vmem:[%s2 + $0x1d0] sm:$0xf]
          %v4579 = vld [vmem:[%s2 + $0x1d4] sm:$0xf]
          %v4580 = vld [vmem:[%s2 + $0x1d8] sm:$0xf]
          %v4581 = vld [vmem:[%s2 + $0x1dc] sm:$0xf]
          %v4582 = vld [vmem:[%s2 + $0x1e0] sm:$0xf]
          %v4583 = vld [vmem:[%s2 + $0x1e4] sm:$0xf]
          %v4584 = vld [vmem:[%s2 + $0x1e8] sm:$0xf]
          %v4585 = vld [vmem:[%s2 + $0x1ec] sm:$0xf]
          %v4586 = vld [vmem:[%s2 + $0x1f0] sm:$0xf]
          %v4587 = vld [vmem:[%s2 + $0x1f4] sm:$0xf]
          %v4588 = vld [vmem:[%s2 + $0x1f8] sm:$0xf]
          %v4589 = vld [vmem:[%s2 + $0x1fc] sm:$0xf]
          %v4718 = vunpack.c.l.b16 %v4462
          %v4719 = vunpack.c.l.b16 %v4463
          %v4720 = vunpack.c.l.b16 %v4464
          %v4721 = vunpack.c.l.b16 %v4465
          %v4722 = vunpack.c.l.b16 %v4466
          %v4723 = vunpack.c.l.b16 %v4467
          %v4724 = vunpack.c.l.b16 %v4468
          %v4725 = vunpack.c.l.b16 %v4469
          %v4726 = vunpack.c.l.b16 %v4470
          %v4727 = vunpack.c.l.b16 %v4471
          %v4728 = vunpack.c.l.b16 %v4472
          %v4729 = vunpack.c.l.b16 %v4473
          %v4730 = vunpack.c.l.b16 %v4474
          %v4731 = vunpack.c.l.b16 %v4475
          %v4732 = vunpack.c.l.b16 %v4476
          %v4733 = vunpack.c.l.b16 %v4477
          %v4734 = vunpack.c.l.b16 %v4478
          %v4735 = vunpack.c.l.b16 %v4479
          %v4736 = vunpack.c.l.b16 %v4480
          %v4737 = vunpack.c.l.b16 %v4481
          %v4738 = vunpack.c.l.b16 %v4482
          %v4739 = vunpack.c.l.b16 %v4483
          %v4740 = vunpack.c.l.b16 %v4484
          %v4741 = vunpack.c.l.b16 %v4485
          %v4742 = vunpack.c.l.b16 %v4486
          %v4743 = vunpack.c.l.b16 %v4487
          %v4744 = vunpack.c.l.b16 %v4488
          %v4745 = vunpack.c.l.b16 %v4489
          %v4746 = vunpack.c.l.b16 %v4490
          %v4747 = vunpack.c.l.b16 %v4491
          %v4748 = vunpack.c.l.b16 %v4492
          %v4749 = vunpack.c.l.b16 %v4493
          %v4750 = vunpack.c.l.b16 %v4494
          %v4751 = vunpack.c.l.b16 %v4495
          %v4752 = vunpack.c.l.b16 %v4496
          %v4753 = vunpack.c.l.b16 %v4497
          %v4754 = vunpack.c.l.b16 %v4498
          %v4755 = vunpack.c.l.b16 %v4499
          %v4756 = vunpack.c.l.b16 %v4500
          %v4757 = vunpack.c.l.b16 %v4501
          %v4758 = vunpack.c.l.b16 %v4502
          %v4759 = vunpack.c.l.b16 %v4503
          %v4760 = vunpack.c.l.b16 %v4504
          %v4761 = vunpack.c.l.b16 %v4505
          %v4762 = vunpack.c.l.b16 %v4506
          %v4763 = vunpack.c.l.b16 %v4507
          %v4764 = vunpack.c.l.b16 %v4508
          %v4765 = vunpack.c.l.b16 %v4509
          %v4766 = vunpack.c.l.b16 %v4510
          %v4767 = vunpack.c.l.b16 %v4511
          %v4768 = vunpack.c.l.b16 %v4512
          %v4769 = vunpack.c.l.b16 %v4513
          %v4770 = vunpack.c.l.b16 %v4514
          %v4771 = vunpack.c.l.b16 %v4515
          %v4772 = vunpack.c.l.b16 %v4516
          %v4773 = vunpack.c.l.b16 %v4517
          %v4774 = vunpack.c.l.b16 %v4518
          %v4775 = vunpack.c.l.b16 %v4519
          %v4776 = vunpack.c.l.b16 %v4520
          %v4777 = vunpack.c.l.b16 %v4521
          %v4778 = vunpack.c.l.b16 %v4522
          %v4779 = vunpack.c.l.b16 %v4523
          %v4780 = vunpack.c.l.b16 %v4524
          %v4781 = vunpack.c.l.b16 %v4525
          %v4782 = vunpack.c.l.b16 %v4526
          %v4783 = vunpack.c.l.b16 %v4527
          %v4784 = vunpack.c.l.b16 %v4528
          %v4785 = vunpack.c.l.b16 %v4529
          %v4786 = vunpack.c.l.b16 %v4530
          %v4787 = vunpack.c.l.b16 %v4531
          %v4788 = vunpack.c.l.b16 %v4532
          %v4789 = vunpack.c.l.b16 %v4533
          %v4790 = vunpack.c.l.b16 %v4534
          %v4791 = vunpack.c.l.b16 %v4535
          %v4792 = vunpack.c.l.b16 %v4536
          %v4793 = vunpack.c.l.b16 %v4537
          %v4794 = vunpack.c.l.b16 %v4538
          %v4795 = vunpack.c.l.b16 %v4539
          %v4796 = vunpack.c.l.b16 %v4540
          %v4797 = vunpack.c.l.b16 %v4541
          %v4798 = vunpack.c.l.b16 %v4542
          %v4799 = vunpack.c.l.b16 %v4543
          %v4800 = vunpack.c.l.b16 %v4544
          %v4801 = vunpack.c.l.b16 %v4545
          %v4802 = vunpack.c.l.b16 %v4546
          %v4803 = vunpack.c.l.b16 %v4547
          %v4804 = vunpack.c.l.b16 %v4548
          %v4805 = vunpack.c.l.b16 %v4549
          %v4806 = vunpack.c.l.b16 %v4550
          %v4807 = vunpack.c.l.b16 %v4551
          %v4808 = vunpack.c.l.b16 %v4552
          %v4809 = vunpack.c.l.b16 %v4553
          %v4810 = vunpack.c.l.b16 %v4554
          %v4811 = vunpack.c.l.b16 %v4555
          %v4812 = vunpack.c.l.b16 %v4556
          %v4813 = vunpack.c.l.b16 %v4557
          %v4814 = vunpack.c.l.b16 %v4558
          %v4815 = vunpack.c.l.b16 %v4559
          %v4816 = vunpack.c.l.b16 %v4560
          %v4817 = vunpack.c.l.b16 %v4561
          %v4818 = vunpack.c.l.b16 %v4562
          %v4819 = vunpack.c.l.b16 %v4563
          %v4820 = vunpack.c.l.b16 %v4564
          %v4821 = vunpack.c.l.b16 %v4565
          %v4822 = vunpack.c.l.b16 %v4566
          %v4823 = vunpack.c.l.b16 %v4567
          %v4824 = vunpack.c.l.b16 %v4568
          %v4825 = vunpack.c.l.b16 %v4569
          %v4826 = vunpack.c.l.b16 %v4570
          %v4827 = vunpack.c.l.b16 %v4571
          %v4828 = vunpack.c.l.b16 %v4572
          %v4829 = vunpack.c.l.b16 %v4573
          %v4830 = vunpack.c.l.b16 %v4574
          %v4831 = vunpack.c.l.b16 %v4575
          %v4832 = vunpack.c.l.b16 %v4576
          %v4833 = vunpack.c.l.b16 %v4577
          %v4834 = vunpack.c.l.b16 %v4578
          %v4835 = vunpack.c.l.b16 %v4579
          %v4836 = vunpack.c.l.b16 %v4580
          %v4837 = vunpack.c.l.b16 %v4581
          %v4838 = vunpack.c.l.b16 %v4582
          %v4839 = vunpack.c.l.b16 %v4583
          %v4840 = vunpack.c.l.b16 %v4584
          %v4841 = vunpack.c.l.b16 %v4585
          %v4842 = vunpack.c.l.b16 %v4586
          %v4843 = vunpack.c.l.b16 %v4587
          %v4844 = vunpack.c.l.b16 %v4588
          %v4845 = vunpack.c.l.b16 %v4589
          %v4846 = vpack.c.b16 %v4719, %v4718
          %v4847 = vpack.c.b16 %v4721, %v4720
          %v4848 = vpack.c.b16 %v4723, %v4722
          %v4849 = vpack.c.b16 %v4725, %v4724
          %v4850 = vpack.c.b16 %v4727, %v4726
          %v4851 = vpack.c.b16 %v4729, %v4728
          %v4852 = vpack.c.b16 %v4731, %v4730
          %v4853 = vpack.c.b16 %v4733, %v4732
          %v4854 = vpack.c.b16 %v4735, %v4734
          %v4855 = vpack.c.b16 %v4737, %v4736
          %v4856 = vpack.c.b16 %v4739, %v4738
          %v4857 = vpack.c.b16 %v4741, %v4740
          %v4858 = vpack.c.b16 %v4743, %v4742
          %v4859 = vpack.c.b16 %v4745, %v4744
          %v4860 = vpack.c.b16 %v4747, %v4746
          %v4861 = vpack.c.b16 %v4749, %v4748
          %v4862 = vpack.c.b16 %v4751, %v4750
          %v4863 = vpack.c.b16 %v4753, %v4752
          %v4864 = vpack.c.b16 %v4755, %v4754
          %v4865 = vpack.c.b16 %v4757, %v4756
          %v4866 = vpack.c.b16 %v4759, %v4758
          %v4867 = vpack.c.b16 %v4761, %v4760
          %v4868 = vpack.c.b16 %v4763, %v4762
          %v4869 = vpack.c.b16 %v4765, %v4764
          %v4870 = vpack.c.b16 %v4767, %v4766
          %v4871 = vpack.c.b16 %v4769, %v4768
          %v4872 = vpack.c.b16 %v4771, %v4770
          %v4873 = vpack.c.b16 %v4773, %v4772
          %v4874 = vpack.c.b16 %v4775, %v4774
          %v4875 = vpack.c.b16 %v4777, %v4776
          %v4876 = vpack.c.b16 %v4779, %v4778
          %v4877 = vpack.c.b16 %v4781, %v4780
          %v4878 = vpack.c.b16 %v4783, %v4782
          %v4879 = vpack.c.b16 %v4785, %v4784
          %v4880 = vpack.c.b16 %v4787, %v4786
          %v4881 = vpack.c.b16 %v4789, %v4788
          %v4882 = vpack.c.b16 %v4791, %v4790
          %v4883 = vpack.c.b16 %v4793, %v4792
          %v4884 = vpack.c.b16 %v4795, %v4794
          %v4885 = vpack.c.b16 %v4797, %v4796
          %v4886 = vpack.c.b16 %v4799, %v4798
          %v4887 = vpack.c.b16 %v4801, %v4800
          %v4888 = vpack.c.b16 %v4803, %v4802
          %v4889 = vpack.c.b16 %v4805, %v4804
          %v4890 = vpack.c.b16 %v4807, %v4806
          %v4891 = vpack.c.b16 %v4809, %v4808
          %v4892 = vpack.c.b16 %v4811, %v4810
          %v4893 = vpack.c.b16 %v4813, %v4812
          %v4894 = vpack.c.b16 %v4815, %v4814
          %v4895 = vpack.c.b16 %v4817, %v4816
          %v4896 = vpack.c.b16 %v4819, %v4818
          %v4897 = vpack.c.b16 %v4821, %v4820
          %v4898 = vpack.c.b16 %v4823, %v4822
          %v4899 = vpack.c.b16 %v4825, %v4824
          %v4900 = vpack.c.b16 %v4827, %v4826
          %v4901 = vpack.c.b16 %v4829, %v4828
          %v4902 = vpack.c.b16 %v4831, %v4830
          %v4903 = vpack.c.b16 %v4833, %v4832
          %v4904 = vpack.c.b16 %v4835, %v4834
          %v4905 = vpack.c.b16 %v4837, %v4836
          %v4906 = vpack.c.b16 %v4839, %v4838
          %v4907 = vpack.c.b16 %v4841, %v4840
          %v4908 = vpack.c.b16 %v4843, %v4842
          %v4909 = vpack.c.b16 %v4845, %v4844
          %4974 = vmatprep.subr.bf16.mxu0 0
          %4975 = vmatpush1.bf16.msra.mxu0 %v4853
          %4976 = vmatprep.subr.bf16.mxu0 0
          %4977 = vmatpush1.bf16.msra.mxu0 %v4852
          %4978 = vmatprep.subr.bf16.mxu0 0
          %4979 = vmatpush1.bf16.msra.mxu0 %v4851
          %4980 = vmatprep.subr.bf16.mxu0 0
          %4981 = vmatpush1.bf16.msra.mxu0 %v4850
          %4982 = vmatprep.subr.bf16.mxu0 0
          %4983 = vmatpush1.bf16.msra.mxu0 %v4849
          %4984 = vmatprep.subr.bf16.mxu0 0
          %4985 = vmatpush1.bf16.msra.mxu0 %v4848
          %4986 = vmatprep.subr.bf16.mxu0 0
          %4987 = vmatpush1.bf16.msra.mxu0 %v4847
          %4988 = vmatprep.subr.bf16.mxu0 0
          %4989 = vmatpush1.bf16.msra.mxu0 %v4846
          %4990 = vmatprep.subr.bf16.mxu0 0
          %4991 = vmatpush2.bf16.msra.mxu0 %v4861
          %4992 = vmatprep.subr.bf16.mxu0 0
          %4993 = vmatpush2.bf16.msra.mxu0 %v4860
          %4994 = vmatprep.subr.bf16.mxu0 0
          %4995 = vmatpush2.bf16.msra.mxu0 %v4859
          %4996 = vmatprep.subr.bf16.mxu0 0
          %4997 = vmatpush2.bf16.msra.mxu0 %v4858
          %4998 = vmatprep.subr.bf16.mxu0 0
          %4999 = vmatpush2.bf16.msra.mxu0 %v4857
          %5000 = vmatprep.subr.bf16.mxu0 0
          %5001 = vmatpush2.bf16.msra.mxu0 %v4856
          %5002 = vmatprep.subr.bf16.mxu0 0
          %5003 = vmatpush2.bf16.msra.mxu0 %v4855
          %5004 = vmatprep.subr.bf16.mxu0 0
          %5005 = vmatpush2.bf16.msra.mxu0 %v4854
          %5006 = vmatprep.mubr.bf16.mxu0 %v4455
          %5007 = vmatmul.mubr.bf16.gmra.mxu0 %v4454
          %v5008 = vpop.f32.mrf.mxu0
          %v5009 = vadd.f32 0.0, %v5008
          %v5010 = vpop.f32.mrf.mxu0
          %v5011 = vpop.f32.mrf.mxu0
          %v5012 = vpop.f32.mrf.mxu0
          %5013 = vdwg.mxu0
          %5014 = vmatprep.subr.bf16.mxu0 0
          %5015 = vmatpush1.bf16.msra.mxu0 %v4869
          %5016 = vmatprep.subr.bf16.mxu0 0
          %5017 = vmatpush1.bf16.msra.mxu0 %v4868
          %5018 = vmatprep.subr.bf16.mxu0 0
          %5019 = vmatpush1.bf16.msra.mxu0 %v4867
          %5020 = vmatprep.subr.bf16.mxu0 0
          %5021 = vmatpush1.bf16.msra.mxu0 %v4866
          %5022 = vmatprep.subr.bf16.mxu0 0
          %5023 = vmatpush1.bf16.msra.mxu0 %v4865
          %5024 = vmatprep.subr.bf16.mxu0 0
          %5025 = vmatpush1.bf16.msra.mxu0 %v4864
          %5026 = vmatprep.subr.bf16.mxu0 0
          %5027 = vmatpush1.bf16.msra.mxu0 %v4863
          %5028 = vmatprep.subr.bf16.mxu0 0
          %5029 = vmatpush1.bf16.msra.mxu0 %v4862
          %5030 = vmatprep.subr.bf16.mxu0 0
          %5031 = vmatpush2.bf16.msra.mxu0 %v4877
          %5032 = vmatprep.subr.bf16.mxu0 0
          %5033 = vmatpush2.bf16.msra.mxu0 %v4876
          %5034 = vmatprep.subr.bf16.mxu0 0
          %5035 = vmatpush2.bf16.msra.mxu0 %v4875
          %5036 = vmatprep.subr.bf16.mxu0 0
          %5037 = vmatpush2.bf16.msra.mxu0 %v4874
          %5038 = vmatprep.subr.bf16.mxu0 0
          %5039 = vmatpush2.bf16.msra.mxu0 %v4873
          %5040 = vmatprep.subr.bf16.mxu0 0
          %5041 = vmatpush2.bf16.msra.mxu0 %v4872
          %5042 = vmatprep.subr.bf16.mxu0 0
          %5043 = vmatpush2.bf16.msra.mxu0 %v4871
          %5044 = vmatprep.subr.bf16.mxu0 0
          %5045 = vmatpush2.bf16.msra.mxu0 %v4870
          %5046 = vmatprep.mubr.bf16.mxu0 %v4457
          %5047 = vmatmul.mubr.bf16.gmra.mxu0 %v4456
          %v5048 = vpop.f32.mrf.mxu0
          %v5049 = vadd.f32 %v5009, %v5048
          %v5050 = vpop.f32.mrf.mxu0
          %v5051 = vpop.f32.mrf.mxu0
          %v5052 = vpop.f32.mrf.mxu0
          %5053 = vdwg.mxu0
          %5054 = vmatprep.subr.bf16.mxu0 0
          %5055 = vmatpush1.bf16.msra.mxu0 %v4885
          %5056 = vmatprep.subr.bf16.mxu0 0
          %5057 = vmatpush1.bf16.msra.mxu0 %v4884
          %5058 = vmatprep.subr.bf16.mxu0 0
          %5059 = vmatpush1.bf16.msra.mxu0 %v4883
          %5060 = vmatprep.subr.bf16.mxu0 0
          %5061 = vmatpush1.bf16.msra.mxu0 %v4882
          %5062 = vmatprep.subr.bf16.mxu0 0
          %5063 = vmatpush1.bf16.msra.mxu0 %v4881
          %5064 = vmatprep.subr.bf16.mxu0 0
          %5065 = vmatpush1.bf16.msra.mxu0 %v4880
          %5066 = vmatprep.subr.bf16.mxu0 0
          %5067 = vmatpush1.bf16.msra.mxu0 %v4879
          %5068 = vmatprep.subr.bf16.mxu0 0
          %5069 = vmatpush1.bf16.msra.mxu0 %v4878
          %5070 = vmatprep.subr.bf16.mxu0 0
          %5071 = vmatpush2.bf16.msra.mxu0 %v4893
          %5072 = vmatprep.subr.bf16.mxu0 0
          %5073 = vmatpush2.bf16.msra.mxu0 %v4892
          %5074 = vmatprep.subr.bf16.mxu0 0
          %5075 = vmatpush2.bf16.msra.mxu0 %v4891
          %5076 = vmatprep.subr.bf16.mxu0 0
          %5077 = vmatpush2.bf16.msra.mxu0 %v4890
          %5078 = vmatprep.subr.bf16.mxu0 0
          %5079 = vmatpush2.bf16.msra.mxu0 %v4889
          %5080 = vmatprep.subr.bf16.mxu0 0
          %5081 = vmatpush2.bf16.msra.mxu0 %v4888
          %5082 = vmatprep.subr.bf16.mxu0 0
          %5083 = vmatpush2.bf16.msra.mxu0 %v4887
          %5084 = vmatprep.subr.bf16.mxu0 0
          %5085 = vmatpush2.bf16.msra.mxu0 %v4886
          %5086 = vmatprep.mubr.bf16.mxu0 %v4459
          %5087 = vmatmul.mubr.bf16.gmra.mxu0 %v4458
          %v5088 = vpop.f32.mrf.mxu0
          %v5089 = vadd.f32 %v5049, %v5088
          %v5090 = vpop.f32.mrf.mxu0
          %v5091 = vpop.f32.mrf.mxu0
          %v5092 = vpop.f32.mrf.mxu0
          %5093 = vdwg.mxu0
          %5094 = vmatprep.subr.bf16.mxu0 0
          %5095 = vmatpush1.bf16.msra.mxu0 %v4901
          %5096 = vmatprep.subr.bf16.mxu0 0
          %5097 = vmatpush1.bf16.msra.mxu0 %v4900
          %5098 = vmatprep.subr.bf16.mxu0 0
          %5099 = vmatpush1.bf16.msra.mxu0 %v4899
          %5100 = vmatprep.subr.bf16.mxu0 0
          %5101 = vmatpush1.bf16.msra.mxu0 %v4898
          %5102 = vmatprep.subr.bf16.mxu0 0
          %5103 = vmatpush1.bf16.msra.mxu0 %v4897
          %5104 = vmatprep.subr.bf16.mxu0 0
          %5105 = vmatpush1.bf16.msra.mxu0 %v4896
          %5106 = vmatprep.subr.bf16.mxu0 0
          %5107 = vmatpush1.bf16.msra.mxu0 %v4895
          %5108 = vmatprep.subr.bf16.mxu0 0
          %5109 = vmatpush1.bf16.msra.mxu0 %v4894
          %5110 = vmatprep.subr.bf16.mxu0 0
          %5111 = vmatpush2.bf16.msra.mxu0 %v4909
          %5112 = vmatprep.subr.bf16.mxu0 0
          %5113 = vmatpush2.bf16.msra.mxu0 %v4908
          %5114 = vmatprep.subr.bf16.mxu0 0
          %5115 = vmatpush2.bf16.msra.mxu0 %v4907
          %5116 = vmatprep.subr.bf16.mxu0 0
          %5117 = vmatpush2.bf16.msra.mxu0 %v4906
          %5118 = vmatprep.subr.bf16.mxu0 0
          %5119 = vmatpush2.bf16.msra.mxu0 %v4905
          %5120 = vmatprep.subr.bf16.mxu0 0
          %5121 = vmatpush2.bf16.msra.mxu0 %v4904
          %5122 = vmatprep.subr.bf16.mxu0 0
          %5123 = vmatpush2.bf16.msra.mxu0 %v4903
          %5124 = vmatprep.subr.bf16.mxu0 0
          %5125 = vmatpush2.bf16.msra.mxu0 %v4902
          %5126 = vmatprep.mubr.bf16.mxu0 %v4461
          %5127 = vmatmul.mubr.bf16.gmra.mxu0 %v4460
          %v5128 = vpop.f32.mrf.mxu0
          %v5129 = vadd.f32 %v5089, %v5128
          %v5130 = vpop.f32.mrf.mxu0
          %v5131 = vpop.f32.mrf.mxu0
          %v5132 = vpop.f32.mrf.mxu0
          %5133 = vdwg.mxu0
          %v5134 = vpack.c.bf16 %v5129, %v5129
          %v5135 = vld [vmem:[#allocation9] sm:$0xff]
          %v5136 = vld [vmem:[#allocation9 + $0x8] sm:$0xff]
          %v5137 = vld [vmem:[#allocation9 + $0x10] sm:$0xff]
          %v5138 = vld [vmem:[#allocation9 + $0x18] sm:$0xff]
          %v5143 = vunpack.c.l.b16 %v5135
          %v5144 = vunpack.c.h.b16 %v5135
          %v5145 = vunpack.c.l.b16 %v5136
          %v5146 = vunpack.c.h.b16 %v5136
          %v5147 = vunpack.c.l.b16 %v5137
          %v5148 = vunpack.c.h.b16 %v5137
          %v5149 = vunpack.c.l.b16 %v5138
          %v5150 = vunpack.c.h.b16 %v5138
          %v5151 = vpack.c.b16 %v5143, %v5143
          %v5152 = vpack.c.b16 %v5144, %v5144
          %v5153 = vpack.c.b16 %v5145, %v5145
          %v5154 = vpack.c.b16 %v5146, %v5146
          %v5155 = vpack.c.b16 %v5147, %v5147
          %v5156 = vpack.c.b16 %v5148, %v5148
          %v5157 = vpack.c.b16 %v5149, %v5149
          %v5158 = vpack.c.b16 %v5150, %v5150
          %vm5159 = vcmask 64512
          %v5161 = vsel %vm5159, %v5134, 0
          %vm5163 = vcmask 1043456
          %v5165 = vsel %vm5163, %v5151, 0
          %v5168 = vsel %vm5163, %v5152, 0
          %v5171 = vsel %vm5163, %v5153, 0
          %v5174 = vsel %vm5163, %v5154, 0
          %v5177 = vsel %vm5163, %v5155, 0
          %v5180 = vsel %vm5163, %v5156, 0
          %v5183 = vsel %vm5163, %v5157, 0
          %v5186 = vsel %vm5163, %v5158, 0
          %5188 = vmatprep.subr.bf16.mxu0 0
          %5189 = vmatpush1.bf16.msra.mxu0 0
          %5190 = vmatprep.subr.bf16.mxu0 0
          %5191 = vmatpush1.bf16.msra.mxu0 0
          %5192 = vmatprep.subr.bf16.mxu0 0
          %5193 = vmatpush1.bf16.msra.mxu0 0
          %5194 = vmatprep.subr.bf16.mxu0 0
          %5195 = vmatpush1.bf16.msra.mxu0 0
          %5196 = vmatprep.subr.bf16.mxu0 0
          %5197 = vmatpush1.bf16.msra.mxu0 0
          %5198 = vmatprep.subr.bf16.mxu0 0
          %5199 = vmatpush1.bf16.msra.mxu0 0
          %5200 = vmatprep.subr.bf16.mxu0 0
          %5201 = vmatpush1.bf16.msra.mxu0 0
          %5202 = vmatprep.subr.bf16.mxu0 %v5168
          %5203 = vmatpush1.bf16.msra.mxu0 %v5165
          %5204 = vmatprep.subr.bf16.mxu0 0
          %5205 = vmatpush2.bf16.msra.mxu0 0
          %5206 = vmatprep.subr.bf16.mxu0 0
          %5207 = vmatpush2.bf16.msra.mxu0 0
          %5208 = vmatprep.subr.bf16.mxu0 0
          %5209 = vmatpush2.bf16.msra.mxu0 0
          %5210 = vmatprep.subr.bf16.mxu0 0
          %5211 = vmatpush2.bf16.msra.mxu0 0
          %5212 = vmatprep.subr.bf16.mxu0 0
          %5213 = vmatpush2.bf16.msra.mxu0 0
          %5214 = vmatprep.subr.bf16.mxu0 0
          %5215 = vmatpush2.bf16.msra.mxu0 0
          %5216 = vmatprep.subr.bf16.mxu0 0
          %5217 = vmatpush2.bf16.msra.mxu0 0
          %5218 = vmatprep.subr.bf16.mxu0 0
          %5219 = vmatpush2.bf16.msra.mxu0 0
          %5220 = vmatprep.mubr.bf16.mxu0 0
          %5221 = vmatmul.mubr.bf16.gmra.mxu0 %v5161
          %v5222 = vpop.f32.mrf.mxu0
          %v5223 = vadd.f32 0.0, %v5222
          %v5224 = vpop.f32.mrf.mxu0
          %v5225 = vadd.f32 0.0, %v5224
          %v5226 = vpop.f32.mrf.mxu0
          %v5227 = vpop.f32.mrf.mxu0
          %5228 = vdwg.mxu0
          %5229 = vmatprep.subr.bf16.mxu0 0
          %5230 = vmatpush1.bf16.msra.mxu0 0
          %5231 = vmatprep.subr.bf16.mxu0 0
          %5232 = vmatpush1.bf16.msra.mxu0 0
          %5233 = vmatprep.subr.bf16.mxu0 0
          %5234 = vmatpush1.bf16.msra.mxu0 0
          %5235 = vmatprep.subr.bf16.mxu0 0
          %5236 = vmatpush1.bf16.msra.mxu0 0
          %5237 = vmatprep.subr.bf16.mxu0 0
          %5238 = vmatpush1.bf16.msra.mxu0 0
          %5239 = vmatprep.subr.bf16.mxu0 0
          %5240 = vmatpush1.bf16.msra.mxu0 0
          %5241 = vmatprep.subr.bf16.mxu0 0
          %5242 = vmatpush1.bf16.msra.mxu0 0
          %5243 = vmatprep.subr.bf16.mxu0 %v5174
          %5244 = vmatpush1.bf16.msra.mxu0 %v5171
          %5245 = vmatprep.subr.bf16.mxu0 0
          %5246 = vmatpush2.bf16.msra.mxu0 0
          %5247 = vmatprep.subr.bf16.mxu0 0
          %5248 = vmatpush2.bf16.msra.mxu0 0
          %5249 = vmatprep.subr.bf16.mxu0 0
          %5250 = vmatpush2.bf16.msra.mxu0 0
          %5251 = vmatprep.subr.bf16.mxu0 0
          %5252 = vmatpush2.bf16.msra.mxu0 0
          %5253 = vmatprep.subr.bf16.mxu0 0
          %5254 = vmatpush2.bf16.msra.mxu0 0
          %5255 = vmatprep.subr.bf16.mxu0 0
          %5256 = vmatpush2.bf16.msra.mxu0 0
          %5257 = vmatprep.subr.bf16.mxu0 0
          %5258 = vmatpush2.bf16.msra.mxu0 0
          %5259 = vmatprep.subr.bf16.mxu0 0
          %5260 = vmatpush2.bf16.msra.mxu0 0
          %5261 = vmatprep.mubr.bf16.mxu0 0
          %5262 = vmatmul.mubr.bf16.gmra.mxu0 %v5161
          %v5263 = vpop.f32.mrf.mxu0
          %v5264 = vadd.f32 0.0, %v5263
          %v5265 = vpop.f32.mrf.mxu0
          %v5266 = vadd.f32 0.0, %v5265
          %v5267 = vpop.f32.mrf.mxu0
          %v5268 = vpop.f32.mrf.mxu0
          %5269 = vdwg.mxu0
          %5270 = vmatprep.subr.bf16.mxu0 0
          %5271 = vmatpush1.bf16.msra.mxu0 0
          %5272 = vmatprep.subr.bf16.mxu0 0
          %5273 = vmatpush1.bf16.msra.mxu0 0
          %5274 = vmatprep.subr.bf16.mxu0 0
          %5275 = vmatpush1.bf16.msra.mxu0 0
          %5276 = vmatprep.subr.bf16.mxu0 0
          %5277 = vmatpush1.bf16.msra.mxu0 0
          %5278 = vmatprep.subr.bf16.mxu0 0
          %5279 = vmatpush1.bf16.msra.mxu0 0
          %5280 = vmatprep.subr.bf16.mxu0 0
          %5281 = vmatpush1.bf16.msra.mxu0 0
          %5282 = vmatprep.subr.bf16.mxu0 0
          %5283 = vmatpush1.bf16.msra.mxu0 0
          %5284 = vmatprep.subr.bf16.mxu0 %v5180
          %5285 = vmatpush1.bf16.msra.mxu0 %v5177
          %5286 = vmatprep.subr.bf16.mxu0 0
          %5287 = vmatpush2.bf16.msra.mxu0 0
          %5288 = vmatprep.subr.bf16.mxu0 0
          %5289 = vmatpush2.bf16.msra.mxu0 0
          %5290 = vmatprep.subr.bf16.mxu0 0
          %5291 = vmatpush2.bf16.msra.mxu0 0
          %5292 = vmatprep.subr.bf16.mxu0 0
          %5293 = vmatpush2.bf16.msra.mxu0 0
          %5294 = vmatprep.subr.bf16.mxu0 0
          %5295 = vmatpush2.bf16.msra.mxu0 0
          %5296 = vmatprep.subr.bf16.mxu0 0
          %5297 = vmatpush2.bf16.msra.mxu0 0
          %5298 = vmatprep.subr.bf16.mxu0 0
          %5299 = vmatpush2.bf16.msra.mxu0 0
          %5300 = vmatprep.subr.bf16.mxu0 0
          %5301 = vmatpush2.bf16.msra.mxu0 0
          %5302 = vmatprep.mubr.bf16.mxu0 0
          %5303 = vmatmul.mubr.bf16.gmra.mxu0 %v5161
          %v5304 = vpop.f32.mrf.mxu0
          %v5305 = vadd.f32 0.0, %v5304
          %v5306 = vpop.f32.mrf.mxu0
          %v5307 = vadd.f32 0.0, %v5306
          %v5308 = vpop.f32.mrf.mxu0
          %v5309 = vpop.f32.mrf.mxu0
          %5310 = vdwg.mxu0
          %5311 = vmatprep.subr.bf16.mxu0 0
          %5312 = vmatpush1.bf16.msra.mxu0 0
          %5313 = vmatprep.subr.bf16.mxu0 0
          %5314 = vmatpush1.bf16.msra.mxu0 0
          %5315 = vmatprep.subr.bf16.mxu0 0
          %5316 = vmatpush1.bf16.msra.mxu0 0
          %5317 = vmatprep.subr.bf16.mxu0 0
          %5318 = vmatpush1.bf16.msra.mxu0 0
          %5319 = vmatprep.subr.bf16.mxu0 0
          %5320 = vmatpush1.bf16.msra.mxu0 0
          %5321 = vmatprep.subr.bf16.mxu0 0
          %5322 = vmatpush1.bf16.msra.mxu0 0
          %5323 = vmatprep.subr.bf16.mxu0 0
          %5324 = vmatpush1.bf16.msra.mxu0 0
          %5325 = vmatprep.subr.bf16.mxu0 %v5186
          %5326 = vmatpush1.bf16.msra.mxu0 %v5183
          %5327 = vmatprep.subr.bf16.mxu0 0
          %5328 = vmatpush2.bf16.msra.mxu0 0
          %5329 = vmatprep.subr.bf16.mxu0 0
          %5330 = vmatpush2.bf16.msra.mxu0 0
          %5331 = vmatprep.subr.bf16.mxu0 0
          %5332 = vmatpush2.bf16.msra.mxu0 0
          %5333 = vmatprep.subr.bf16.mxu0 0
          %5334 = vmatpush2.bf16.msra.mxu0 0
          %5335 = vmatprep.subr.bf16.mxu0 0
          %5336 = vmatpush2.bf16.msra.mxu0 0
          %5337 = vmatprep.subr.bf16.mxu0 0
          %5338 = vmatpush2.bf16.msra.mxu0 0
          %5339 = vmatprep.subr.bf16.mxu0 0
          %5340 = vmatpush2.bf16.msra.mxu0 0
          %5341 = vmatprep.subr.bf16.mxu0 0
          %5342 = vmatpush2.bf16.msra.mxu0 0
          %5343 = vmatprep.mubr.bf16.mxu0 0
          %5344 = vmatmul.mubr.bf16.gmra.mxu0 %v5161
          %v5345 = vpop.f32.mrf.mxu0
          %v5346 = vadd.f32 0.0, %v5345
          %v5347 = vpop.f32.mrf.mxu0
          %v5348 = vadd.f32 0.0, %v5347
          %v5349 = vpop.f32.mrf.mxu0
          %v5350 = vpop.f32.mrf.mxu0
          %5351 = vdwg.mxu0
          %v5352 = vld [vmem:[#allocation2] sm:$0xff]
          %v5361 = vcombine.low %v5223, %v5225
          %v5362 = vcombine.low %v5264, %v5266
          %v5363 = vcombine.low %v5305, %v5307
          %v5364 = vcombine.low %v5346, %v5348
          %v5366 = vunpack.c.l.s4 1966171168
          %v5367 = vunpack.c.0.s8 %v5366
          %v5368 = vlaneseq
          %v5369 = vshrl.u32 %v5368, 7
          %v5370 = vsub.s32 %v5367, %v5369
          %v5371 = vrot.slane %v5361, %v5370
          %v5373 = vunpack.c.l.s4 1966171168
          %v5374 = vunpack.c.0.s8 %v5373
          %v5375 = vlaneseq
          %v5376 = vshrl.u32 %v5375, 7
          %v5377 = vsub.s32 %v5374, %v5376
          %v5378 = vrot.slane %v5362, %v5377
          %v5380 = vunpack.c.l.s4 1966171168
          %v5381 = vunpack.c.0.s8 %v5380
          %v5382 = vlaneseq
          %v5383 = vshrl.u32 %v5382, 7
          %v5384 = vsub.s32 %v5381, %v5383
          %v5385 = vrot.slane %v5363, %v5384
          %v5387 = vunpack.c.l.s4 1966171168
          %v5388 = vunpack.c.0.s8 %v5387
          %v5389 = vlaneseq
          %v5390 = vshrl.u32 %v5389, 7
          %v5391 = vsub.s32 %v5388, %v5390
          %v5392 = vrot.slane %v5364, %v5391
          %v5393 = vcombine.low %v5371, %v5378
          %v5394 = vcombine.low %v5385, %v5392
          %v5396 = vunpack.c.l.s4 1966171168
          %v5397 = vunpack.c.0.s8 %v5396
          %v5398 = vlaneseq
          %v5399 = vshrl.u32 %v5398, 7
          %v5400 = vsub.s32 %v5397, %v5399
          %v5401 = vrot.slane %v5393, %v5400
          %v5403 = vunpack.c.l.s4 1966171168
          %v5404 = vunpack.c.0.s8 %v5403
          %v5405 = vlaneseq
          %v5406 = vshrl.u32 %v5405, 7
          %v5407 = vsub.s32 %v5404, %v5406
          %v5408 = vrot.slane %v5394, %v5407
          %v5409 = vcombine.low %v5401, %v5408
          %v5411 = vadd.f32 %v5352, %v5409
          %v5412 = vmul.f32 %v5411, 0.125
          %v5414 = vlaneseq
          %v5415 = vshrl.u32 %v5414, 7
          %v5416 = vsub.s32 0, %v5415
          %v5417 = vrot.slane %v5412, %v5416
          %v5418 = vlaneseq
          %v5419 = vshrl.u32 %v5418, 7
          %v5420 = vsub.s32 1, %v5419
          %v5421 = vrot.slane %v5412, %v5420
          %v5422 = vlaneseq
          %v5423 = vshrl.u32 %v5422, 7
          %v5424 = vsub.s32 2, %v5423
          %v5425 = vrot.slane %v5412, %v5424
          %v5426 = vlaneseq
          %v5427 = vshrl.u32 %v5426, 7
          %v5428 = vsub.s32 3, %v5427
          %v5429 = vrot.slane %v5412, %v5428
          %v5430 = vlaneseq
          %v5431 = vshrl.u32 %v5430, 7
          %v5432 = vsub.s32 4, %v5431
          %v5433 = vrot.slane %v5412, %v5432
          %v5434 = vlaneseq
          %v5435 = vshrl.u32 %v5434, 7
          %v5436 = vsub.s32 5, %v5435
          %v5437 = vrot.slane %v5412, %v5436
          %v5438 = vlaneseq
          %v5439 = vshrl.u32 %v5438, 7
          %v5440 = vsub.s32 6, %v5439
          %v5441 = vrot.slane %v5412, %v5440
          %v5442 = vlaneseq
          %v5443 = vshrl.u32 %v5442, 7
          %v5444 = vsub.s32 7, %v5443
          %v5445 = vrot.slane %v5412, %v5444
          %vm5454 = vcmask 1040384
          %v5455 = vsel %vm5454, %v5417, 0.0
          %v5456 = vsel %vm5454, %v5421, 0.0
          %v5457 = vadd.f32 %v5455, %v5456
          %v5458 = vsel %vm5454, %v5425, 0.0
          %v5459 = vadd.f32 %v5457, %v5458
          %v5460 = vsel %vm5454, %v5429, 0.0
          %v5461 = vadd.f32 %v5459, %v5460
          %v5462 = vsel %vm5454, %v5433, 0.0
          %v5463 = vadd.f32 %v5461, %v5462
          %v5464 = vsel %vm5454, %v5437, 0.0
          %v5465 = vadd.f32 %v5463, %v5464
          %v5466 = vsel %vm5454, %v5441, 0.0
          %v5467 = vadd.f32 %v5465, %v5466
          %v5468 = vsel %vm5454, %v5445, 0.0
          %v5469 = vadd.f32 %v5467, %v5468
          %5470 = vadd.xlane.f32.xlu0 %v5469
          %v5471 = vpop.xlane.xlu0 %5470
          %v5472 = vrcp.pop 1024.0
          %v5473 = vmul.f32 %v5471, %v5472
          %v5475 = vlaneseq
          %v5476 = vshrl.u32 %v5475, 7
          %v5477 = vsub.s32 0, %v5476
          %v5478 = vrot.slane %v5473, %v5477
          %v5480 = vsub.f32 %v5412, %v5478
          %v5481 = vmul.f32 %v5480, %v5480
          %v5483 = vlaneseq
          %v5484 = vshrl.u32 %v5483, 7
          %v5485 = vsub.s32 0, %v5484
          %v5486 = vrot.slane %v5481, %v5485
          %v5487 = vlaneseq
          %v5488 = vshrl.u32 %v5487, 7
          %v5489 = vsub.s32 1, %v5488
          %v5490 = vrot.slane %v5481, %v5489
          %v5491 = vlaneseq
          %v5492 = vshrl.u32 %v5491, 7
          %v5493 = vsub.s32 2, %v5492
          %v5494 = vrot.slane %v5481, %v5493
          %v5495 = vlaneseq
          %v5496 = vshrl.u32 %v5495, 7
          %v5497 = vsub.s32 3, %v5496
          %v5498 = vrot.slane %v5481, %v5497
          %v5499 = vlaneseq
          %v5500 = vshrl.u32 %v5499, 7
          %v5501 = vsub.s32 4, %v5500
          %v5502 = vrot.slane %v5481, %v5501
          %v5503 = vlaneseq
          %v5504 = vshrl.u32 %v5503, 7
          %v5505 = vsub.s32 5, %v5504
          %v5506 = vrot.slane %v5481, %v5505
          %v5507 = vlaneseq
          %v5508 = vshrl.u32 %v5507, 7
          %v5509 = vsub.s32 6, %v5508
          %v5510 = vrot.slane %v5481, %v5509
          %v5511 = vlaneseq
          %v5512 = vshrl.u32 %v5511, 7
          %v5513 = vsub.s32 7, %v5512
          %v5514 = vrot.slane %v5481, %v5513
          %v5523 = vsel %vm5454, %v5486, 0.0
          %v5524 = vsel %vm5454, %v5490, 0.0
          %v5525 = vadd.f32 %v5523, %v5524
          %v5526 = vsel %vm5454, %v5494, 0.0
          %v5527 = vadd.f32 %v5525, %v5526
          %v5528 = vsel %vm5454, %v5498, 0.0
          %v5529 = vadd.f32 %v5527, %v5528
          %v5530 = vsel %vm5454, %v5502, 0.0
          %v5531 = vadd.f32 %v5529, %v5530
          %v5532 = vsel %vm5454, %v5506, 0.0
          %v5533 = vadd.f32 %v5531, %v5532
          %v5534 = vsel %vm5454, %v5510, 0.0
          %v5535 = vadd.f32 %v5533, %v5534
          %v5536 = vsel %vm5454, %v5514, 0.0
          %v5537 = vadd.f32 %v5535, %v5536
          %5538 = vadd.xlane.f32.xlu0 %v5537
          %v5539 = vpop.xlane.xlu0 %5538
          %v5540 = vmul.f32 %v5539, %v5472
          %v5541 = vadd.f32 %v5540, 1e-05
          %v5542 = vrsqrt.pop %v5541
          %v5544 = vlaneseq
          %v5545 = vshrl.u32 %v5544, 7
          %v5546 = vsub.s32 0, %v5545
          %v5547 = vrot.slane %v5542, %v5546
          %v5549 = vmul.f32 %v5480, %v5547
          %v5550 = vld [vmem:[#allocation10] sm:$0xff]
          %v5551 = vmul.f32 %v5549, %v5550
          %v5552 = vld [vmem:[#allocation12] sm:$0xff]
          %v5553 = vadd.f32 %v5551, %v5552
          %v5554 = vld [vmem:[#allocation13] sm:$0xff]
          %v5555 = vld [vmem:[#allocation13 + $0x8] sm:$0xff]
          %v5556 = vld [vmem:[#allocation13 + $0x10] sm:$0xff]
          %v5557 = vld [vmem:[#allocation13 + $0x18] sm:$0xff]
          %v5558 = vld [vmem:[#allocation13 + $0x20] sm:$0xff]
          %v5559 = vld [vmem:[#allocation13 + $0x28] sm:$0xff]
          %v5560 = vld [vmem:[#allocation13 + $0x30] sm:$0xff]
          %v5561 = vld [vmem:[#allocation13 + $0x38] sm:$0xff]
          %v5562 = vld [vmem:[#allocation13 + $0x40] sm:$0xff]
          %v5563 = vld [vmem:[#allocation13 + $0x48] sm:$0xff]
          %v5564 = vld [vmem:[#allocation13 + $0x50] sm:$0xff]
          %v5565 = vld [vmem:[#allocation13 + $0x58] sm:$0xff]
          %v5566 = vld [vmem:[#allocation13 + $0x60] sm:$0xff]
          %v5567 = vld [vmem:[#allocation13 + $0x68] sm:$0xff]
          %v5568 = vld [vmem:[#allocation13 + $0x70] sm:$0xff]
          %v5569 = vld [vmem:[#allocation13 + $0x78] sm:$0xff]
          %v5570 = vld [vmem:[#allocation13 + $0x80] sm:$0xff]
          %v5571 = vld [vmem:[#allocation13 + $0x88] sm:$0xff]
          %v5572 = vld [vmem:[#allocation13 + $0x90] sm:$0xff]
          %v5573 = vld [vmem:[#allocation13 + $0x98] sm:$0xff]
          %v5574 = vld [vmem:[#allocation13 + $0xa0] sm:$0xff]
          %v5575 = vld [vmem:[#allocation13 + $0xa8] sm:$0xff]
          %v5576 = vld [vmem:[#allocation13 + $0xb0] sm:$0xff]
          %v5577 = vld [vmem:[#allocation13 + $0xb8] sm:$0xff]
          %v5578 = vld [vmem:[#allocation13 + $0xc0] sm:$0xff]
          %v5579 = vld [vmem:[#allocation13 + $0xc8] sm:$0xff]
          %v5580 = vld [vmem:[#allocation13 + $0xd0] sm:$0xff]
          %v5581 = vld [vmem:[#allocation13 + $0xd8] sm:$0xff]
          %v5582 = vld [vmem:[#allocation13 + $0xe0] sm:$0xff]
          %v5583 = vld [vmem:[#allocation13 + $0xe8] sm:$0xff]
          %v5584 = vld [vmem:[#allocation13 + $0xf0] sm:$0xff]
          %v5585 = vld [vmem:[#allocation13 + $0xf8] sm:$0xff]
          %v5586 = vld [vmem:[#allocation13 + $0x100] sm:$0xff]
          %v5587 = vld [vmem:[#allocation13 + $0x108] sm:$0xff]
          %v5588 = vld [vmem:[#allocation13 + $0x110] sm:$0xff]
          %v5589 = vld [vmem:[#allocation13 + $0x118] sm:$0xff]
          %v5590 = vld [vmem:[#allocation13 + $0x120] sm:$0xff]
          %v5591 = vld [vmem:[#allocation13 + $0x128] sm:$0xff]
          %v5592 = vld [vmem:[#allocation13 + $0x130] sm:$0xff]
          %v5593 = vld [vmem:[#allocation13 + $0x138] sm:$0xff]
          %v5594 = vld [vmem:[#allocation13 + $0x140] sm:$0xff]
          %v5595 = vld [vmem:[#allocation13 + $0x148] sm:$0xff]
          %v5596 = vld [vmem:[#allocation13 + $0x150] sm:$0xff]
          %v5597 = vld [vmem:[#allocation13 + $0x158] sm:$0xff]
          %v5598 = vld [vmem:[#allocation13 + $0x160] sm:$0xff]
          %v5599 = vld [vmem:[#allocation13 + $0x168] sm:$0xff]
          %v5600 = vld [vmem:[#allocation13 + $0x170] sm:$0xff]
          %v5601 = vld [vmem:[#allocation13 + $0x178] sm:$0xff]
          %v5602 = vld [vmem:[#allocation13 + $0x180] sm:$0xff]
          %v5603 = vld [vmem:[#allocation13 + $0x188] sm:$0xff]
          %v5604 = vld [vmem:[#allocation13 + $0x190] sm:$0xff]
          %v5605 = vld [vmem:[#allocation13 + $0x198] sm:$0xff]
          %v5606 = vld [vmem:[#allocation13 + $0x1a0] sm:$0xff]
          %v5607 = vld [vmem:[#allocation13 + $0x1a8] sm:$0xff]
          %v5608 = vld [vmem:[#allocation13 + $0x1b0] sm:$0xff]
          %v5609 = vld [vmem:[#allocation13 + $0x1b8] sm:$0xff]
          %v5610 = vld [vmem:[#allocation13 + $0x1c0] sm:$0xff]
          %v5611 = vld [vmem:[#allocation13 + $0x1c8] sm:$0xff]
          %v5612 = vld [vmem:[#allocation13 + $0x1d0] sm:$0xff]
          %v5613 = vld [vmem:[#allocation13 + $0x1d8] sm:$0xff]
          %v5614 = vld [vmem:[#allocation13 + $0x1e0] sm:$0xff]
          %v5615 = vld [vmem:[#allocation13 + $0x1e8] sm:$0xff]
          %v5616 = vld [vmem:[#allocation13 + $0x1f0] sm:$0xff]
          %v5617 = vld [vmem:[#allocation13 + $0x1f8] sm:$0xff]
          %v5618 = vld [vmem:[#allocation13 + $0x200] sm:$0xff]
          %v5619 = vld [vmem:[#allocation13 + $0x208] sm:$0xff]
          %v5620 = vld [vmem:[#allocation13 + $0x210] sm:$0xff]
          %v5621 = vld [vmem:[#allocation13 + $0x218] sm:$0xff]
          %v5622 = vld [vmem:[#allocation13 + $0x220] sm:$0xff]
          %v5623 = vld [vmem:[#allocation13 + $0x228] sm:$0xff]
          %v5624 = vld [vmem:[#allocation13 + $0x230] sm:$0xff]
          %v5625 = vld [vmem:[#allocation13 + $0x238] sm:$0xff]
          %v5626 = vld [vmem:[#allocation13 + $0x240] sm:$0xff]
          %v5627 = vld [vmem:[#allocation13 + $0x248] sm:$0xff]
          %v5628 = vld [vmem:[#allocation13 + $0x250] sm:$0xff]
          %v5629 = vld [vmem:[#allocation13 + $0x258] sm:$0xff]
          %v5630 = vld [vmem:[#allocation13 + $0x260] sm:$0xff]
          %v5631 = vld [vmem:[#allocation13 + $0x268] sm:$0xff]
          %v5632 = vld [vmem:[#allocation13 + $0x270] sm:$0xff]
          %v5633 = vld [vmem:[#allocation13 + $0x278] sm:$0xff]
          %v5634 = vld [vmem:[#allocation13 + $0x280] sm:$0xff]
          %v5635 = vld [vmem:[#allocation13 + $0x288] sm:$0xff]
          %v5636 = vld [vmem:[#allocation13 + $0x290] sm:$0xff]
          %v5637 = vld [vmem:[#allocation13 + $0x298] sm:$0xff]
          %v5638 = vld [vmem:[#allocation13 + $0x2a0] sm:$0xff]
          %v5639 = vld [vmem:[#allocation13 + $0x2a8] sm:$0xff]
          %v5640 = vld [vmem:[#allocation13 + $0x2b0] sm:$0xff]
          %v5641 = vld [vmem:[#allocation13 + $0x2b8] sm:$0xff]
          %v5642 = vld [vmem:[#allocation13 + $0x2c0] sm:$0xff]
          %v5643 = vld [vmem:[#allocation13 + $0x2c8] sm:$0xff]
          %v5644 = vld [vmem:[#allocation13 + $0x2d0] sm:$0xff]
          %v5645 = vld [vmem:[#allocation13 + $0x2d8] sm:$0xff]
          %v5646 = vld [vmem:[#allocation13 + $0x2e0] sm:$0xff]
          %v5647 = vld [vmem:[#allocation13 + $0x2e8] sm:$0xff]
          %v5648 = vld [vmem:[#allocation13 + $0x2f0] sm:$0xff]
          %v5649 = vld [vmem:[#allocation13 + $0x2f8] sm:$0xff]
          %v5650 = vld [vmem:[#allocation13 + $0x300] sm:$0xff]
          %v5651 = vld [vmem:[#allocation13 + $0x308] sm:$0xff]
          %v5652 = vld [vmem:[#allocation13 + $0x310] sm:$0xff]
          %v5653 = vld [vmem:[#allocation13 + $0x318] sm:$0xff]
          %v5654 = vld [vmem:[#allocation13 + $0x320] sm:$0xff]
          %v5655 = vld [vmem:[#allocation13 + $0x328] sm:$0xff]
          %v5656 = vld [vmem:[#allocation13 + $0x330] sm:$0xff]
          %v5657 = vld [vmem:[#allocation13 + $0x338] sm:$0xff]
          %v5658 = vld [vmem:[#allocation13 + $0x340] sm:$0xff]
          %v5659 = vld [vmem:[#allocation13 + $0x348] sm:$0xff]
          %v5660 = vld [vmem:[#allocation13 + $0x350] sm:$0xff]
          %v5661 = vld [vmem:[#allocation13 + $0x358] sm:$0xff]
          %v5662 = vld [vmem:[#allocation13 + $0x360] sm:$0xff]
          %v5663 = vld [vmem:[#allocation13 + $0x368] sm:$0xff]
          %v5664 = vld [vmem:[#allocation13 + $0x370] sm:$0xff]
          %v5665 = vld [vmem:[#allocation13 + $0x378] sm:$0xff]
          %v5666 = vld [vmem:[#allocation13 + $0x380] sm:$0xff]
          %v5667 = vld [vmem:[#allocation13 + $0x388] sm:$0xff]
          %v5668 = vld [vmem:[#allocation13 + $0x390] sm:$0xff]
          %v5669 = vld [vmem:[#allocation13 + $0x398] sm:$0xff]
          %v5670 = vld [vmem:[#allocation13 + $0x3a0] sm:$0xff]
          %v5671 = vld [vmem:[#allocation13 + $0x3a8] sm:$0xff]
          %v5672 = vld [vmem:[#allocation13 + $0x3b0] sm:$0xff]
          %v5673 = vld [vmem:[#allocation13 + $0x3b8] sm:$0xff]
          %v5674 = vld [vmem:[#allocation13 + $0x3c0] sm:$0xff]
          %v5675 = vld [vmem:[#allocation13 + $0x3c8] sm:$0xff]
          %v5676 = vld [vmem:[#allocation13 + $0x3d0] sm:$0xff]
          %v5677 = vld [vmem:[#allocation13 + $0x3d8] sm:$0xff]
          %v5678 = vld [vmem:[#allocation13 + $0x3e0] sm:$0xff]
          %v5679 = vld [vmem:[#allocation13 + $0x3e8] sm:$0xff]
          %v5680 = vld [vmem:[#allocation13 + $0x3f0] sm:$0xff]
          %v5681 = vld [vmem:[#allocation13 + $0x3f8] sm:$0xff]
          %v5682 = vld [vmem:[#allocation15] sm:$0x1]
          %v5684 = vlaneseq
          %v5685 = vshrl.u32 %v5684, 7
          %v5686 = vsub.s32 0, %v5685
          %v5687 = vrot.slane %v5553, %v5686
          %v5688 = vlaneseq
          %v5689 = vshrl.u32 %v5688, 7
          %v5690 = vsub.s32 1, %v5689
          %v5691 = vrot.slane %v5553, %v5690
          %v5692 = vlaneseq
          %v5693 = vshrl.u32 %v5692, 7
          %v5694 = vsub.s32 2, %v5693
          %v5695 = vrot.slane %v5553, %v5694
          %v5696 = vlaneseq
          %v5697 = vshrl.u32 %v5696, 7
          %v5698 = vsub.s32 3, %v5697
          %v5699 = vrot.slane %v5553, %v5698
          %v5700 = vlaneseq
          %v5701 = vshrl.u32 %v5700, 7
          %v5702 = vsub.s32 4, %v5701
          %v5703 = vrot.slane %v5553, %v5702
          %v5704 = vlaneseq
          %v5705 = vshrl.u32 %v5704, 7
          %v5706 = vsub.s32 5, %v5705
          %v5707 = vrot.slane %v5553, %v5706
          %v5708 = vlaneseq
          %v5709 = vshrl.u32 %v5708, 7
          %v5710 = vsub.s32 6, %v5709
          %v5711 = vrot.slane %v5553, %v5710
          %v5712 = vlaneseq
          %v5713 = vshrl.u32 %v5712, 7
          %v5714 = vsub.s32 7, %v5713
          %v5715 = vrot.slane %v5553, %v5714
          %5724 = vmatprep.subr.mxu0 0.0
          %5725 = vmatpush1.msra.mxu0 %v5569
          %5726 = vmatprep.subr.mxu0 0.0
          %5727 = vmatpush1.msra.mxu0 %v5568
          %5728 = vmatprep.subr.mxu0 0.0
          %5729 = vmatpush1.msra.mxu0 %v5567
          %5730 = vmatprep.subr.mxu0 0.0
          %5731 = vmatpush1.msra.mxu0 %v5566
          %5732 = vmatprep.subr.mxu0 0.0
          %5733 = vmatpush1.msra.mxu0 %v5565
          %5734 = vmatprep.subr.mxu0 0.0
          %5735 = vmatpush1.msra.mxu0 %v5564
          %5736 = vmatprep.subr.mxu0 0.0
          %5737 = vmatpush1.msra.mxu0 %v5563
          %5738 = vmatprep.subr.mxu0 0.0
          %5739 = vmatpush1.msra.mxu0 %v5562
          %5740 = vmatprep.subr.mxu0 0.0
          %5741 = vmatpush1.msra.mxu0 %v5561
          %5742 = vmatprep.subr.mxu0 0.0
          %5743 = vmatpush1.msra.mxu0 %v5560
          %5744 = vmatprep.subr.mxu0 0.0
          %5745 = vmatpush1.msra.mxu0 %v5559
          %5746 = vmatprep.subr.mxu0 0.0
          %5747 = vmatpush1.msra.mxu0 %v5558
          %5748 = vmatprep.subr.mxu0 0.0
          %5749 = vmatpush1.msra.mxu0 %v5557
          %5750 = vmatprep.subr.mxu0 0.0
          %5751 = vmatpush1.msra.mxu0 %v5556
          %5752 = vmatprep.subr.mxu0 0.0
          %5753 = vmatpush1.msra.mxu0 %v5555
          %5754 = vmatprep.subr.mxu0 0.0
          %5755 = vmatpush1.msra.mxu0 %v5554
          %5756 = vmatprep.subr.mxu0 0.0
          %5757 = vmatpush2.msra.mxu0 %v5585
          %5758 = vmatprep.subr.mxu0 0.0
          %5759 = vmatpush2.msra.mxu0 %v5584
          %5760 = vmatprep.subr.mxu0 0.0
          %5761 = vmatpush2.msra.mxu0 %v5583
          %5762 = vmatprep.subr.mxu0 0.0
          %5763 = vmatpush2.msra.mxu0 %v5582
          %5764 = vmatprep.subr.mxu0 0.0
          %5765 = vmatpush2.msra.mxu0 %v5581
          %5766 = vmatprep.subr.mxu0 0.0
          %5767 = vmatpush2.msra.mxu0 %v5580
          %5768 = vmatprep.subr.mxu0 0.0
          %5769 = vmatpush2.msra.mxu0 %v5579
          %5770 = vmatprep.subr.mxu0 0.0
          %5771 = vmatpush2.msra.mxu0 %v5578
          %5772 = vmatprep.subr.mxu0 0.0
          %5773 = vmatpush2.msra.mxu0 %v5577
          %5774 = vmatprep.subr.mxu0 0.0
          %5775 = vmatpush2.msra.mxu0 %v5576
          %5776 = vmatprep.subr.mxu0 0.0
          %5777 = vmatpush2.msra.mxu0 %v5575
          %5778 = vmatprep.subr.mxu0 0.0
          %5779 = vmatpush2.msra.mxu0 %v5574
          %5780 = vmatprep.subr.mxu0 0.0
          %5781 = vmatpush2.msra.mxu0 %v5573
          %5782 = vmatprep.subr.mxu0 0.0
          %5783 = vmatpush2.msra.mxu0 %v5572
          %5784 = vmatprep.subr.mxu0 0.0
          %5785 = vmatpush2.msra.mxu0 %v5571
          %5786 = vmatprep.subr.mxu0 0.0
          %5787 = vmatpush2.msra.mxu0 %v5570
          %5788 = vmatprep.mubr.f32.mxu0 %v5691
          %5789 = vmatmul.mubr.f32.gmra.mxu0 %v5687
          %v5790 = vpop.f32.mrf.mxu0
          %v5791 = vadd.f32 %v5682, %v5790
          %v5792 = vpop.f32.mrf.mxu0
          %5793 = vdwg.mxu0
          %5794 = vmatprep.subr.mxu0 0.0
          %5795 = vmatpush1.msra.mxu0 %v5601
          %5796 = vmatprep.subr.mxu0 0.0
          %5797 = vmatpush1.msra.mxu0 %v5600
          %5798 = vmatprep.subr.mxu0 0.0
          %5799 = vmatpush1.msra.mxu0 %v5599
          %5800 = vmatprep.subr.mxu0 0.0
          %5801 = vmatpush1.msra.mxu0 %v5598
          %5802 = vmatprep.subr.mxu0 0.0
          %5803 = vmatpush1.msra.mxu0 %v5597
          %5804 = vmatprep.subr.mxu0 0.0
          %5805 = vmatpush1.msra.mxu0 %v5596
          %5806 = vmatprep.subr.mxu0 0.0
          %5807 = vmatpush1.msra.mxu0 %v5595
          %5808 = vmatprep.subr.mxu0 0.0
          %5809 = vmatpush1.msra.mxu0 %v5594
          %5810 = vmatprep.subr.mxu0 0.0
          %5811 = vmatpush1.msra.mxu0 %v5593
          %5812 = vmatprep.subr.mxu0 0.0
          %5813 = vmatpush1.msra.mxu0 %v5592
          %5814 = vmatprep.subr.mxu0 0.0
          %5815 = vmatpush1.msra.mxu0 %v5591
          %5816 = vmatprep.subr.mxu0 0.0
          %5817 = vmatpush1.msra.mxu0 %v5590
          %5818 = vmatprep.subr.mxu0 0.0
          %5819 = vmatpush1.msra.mxu0 %v5589
          %5820 = vmatprep.subr.mxu0 0.0
          %5821 = vmatpush1.msra.mxu0 %v5588
          %5822 = vmatprep.subr.mxu0 0.0
          %5823 = vmatpush1.msra.mxu0 %v5587
          %5824 = vmatprep.subr.mxu0 0.0
          %5825 = vmatpush1.msra.mxu0 %v5586
          %5826 = vmatprep.subr.mxu0 0.0
          %5827 = vmatpush2.msra.mxu0 %v5617
          %5828 = vmatprep.subr.mxu0 0.0
          %5829 = vmatpush2.msra.mxu0 %v5616
          %5830 = vmatprep.subr.mxu0 0.0
          %5831 = vmatpush2.msra.mxu0 %v5615
          %5832 = vmatprep.subr.mxu0 0.0
          %5833 = vmatpush2.msra.mxu0 %v5614
          %5834 = vmatprep.subr.mxu0 0.0
          %5835 = vmatpush2.msra.mxu0 %v5613
          %5836 = vmatprep.subr.mxu0 0.0
          %5837 = vmatpush2.msra.mxu0 %v5612
          %5838 = vmatprep.subr.mxu0 0.0
          %5839 = vmatpush2.msra.mxu0 %v5611
          %5840 = vmatprep.subr.mxu0 0.0
          %5841 = vmatpush2.msra.mxu0 %v5610
          %5842 = vmatprep.subr.mxu0 0.0
          %5843 = vmatpush2.msra.mxu0 %v5609
          %5844 = vmatprep.subr.mxu0 0.0
          %5845 = vmatpush2.msra.mxu0 %v5608
          %5846 = vmatprep.subr.mxu0 0.0
          %5847 = vmatpush2.msra.mxu0 %v5607
          %5848 = vmatprep.subr.mxu0 0.0
          %5849 = vmatpush2.msra.mxu0 %v5606
          %5850 = vmatprep.subr.mxu0 0.0
          %5851 = vmatpush2.msra.mxu0 %v5605
          %5852 = vmatprep.subr.mxu0 0.0
          %5853 = vmatpush2.msra.mxu0 %v5604
          %5854 = vmatprep.subr.mxu0 0.0
          %5855 = vmatpush2.msra.mxu0 %v5603
          %5856 = vmatprep.subr.mxu0 0.0
          %5857 = vmatpush2.msra.mxu0 %v5602
          %5858 = vmatprep.mubr.f32.mxu0 %v5699
          %5859 = vmatmul.mubr.f32.gmra.mxu0 %v5695
          %v5860 = vpop.f32.mrf.mxu0
          %v5861 = vadd.f32 %v5791, %v5860
          %v5862 = vpop.f32.mrf.mxu0
          %5863 = vdwg.mxu0
          %5864 = vmatprep.subr.mxu0 0.0
          %5865 = vmatpush1.msra.mxu0 %v5633
          %5866 = vmatprep.subr.mxu0 0.0
          %5867 = vmatpush1.msra.mxu0 %v5632
          %5868 = vmatprep.subr.mxu0 0.0
          %5869 = vmatpush1.msra.mxu0 %v5631
          %5870 = vmatprep.subr.mxu0 0.0
          %5871 = vmatpush1.msra.mxu0 %v5630
          %5872 = vmatprep.subr.mxu0 0.0
          %5873 = vmatpush1.msra.mxu0 %v5629
          %5874 = vmatprep.subr.mxu0 0.0
          %5875 = vmatpush1.msra.mxu0 %v5628
          %5876 = vmatprep.subr.mxu0 0.0
          %5877 = vmatpush1.msra.mxu0 %v5627
          %5878 = vmatprep.subr.mxu0 0.0
          %5879 = vmatpush1.msra.mxu0 %v5626
          %5880 = vmatprep.subr.mxu0 0.0
          %5881 = vmatpush1.msra.mxu0 %v5625
          %5882 = vmatprep.subr.mxu0 0.0
          %5883 = vmatpush1.msra.mxu0 %v5624
          %5884 = vmatprep.subr.mxu0 0.0
          %5885 = vmatpush1.msra.mxu0 %v5623
          %5886 = vmatprep.subr.mxu0 0.0
          %5887 = vmatpush1.msra.mxu0 %v5622
          %5888 = vmatprep.subr.mxu0 0.0
          %5889 = vmatpush1.msra.mxu0 %v5621
          %5890 = vmatprep.subr.mxu0 0.0
          %5891 = vmatpush1.msra.mxu0 %v5620
          %5892 = vmatprep.subr.mxu0 0.0
          %5893 = vmatpush1.msra.mxu0 %v5619
          %5894 = vmatprep.subr.mxu0 0.0
          %5895 = vmatpush1.msra.mxu0 %v5618
          %5896 = vmatprep.subr.mxu0 0.0
          %5897 = vmatpush2.msra.mxu0 %v5649
          %5898 = vmatprep.subr.mxu0 0.0
          %5899 = vmatpush2.msra.mxu0 %v5648
          %5900 = vmatprep.subr.mxu0 0.0
          %5901 = vmatpush2.msra.mxu0 %v5647
          %5902 = vmatprep.subr.mxu0 0.0
          %5903 = vmatpush2.msra.mxu0 %v5646
          %5904 = vmatprep.subr.mxu0 0.0
          %5905 = vmatpush2.msra.mxu0 %v5645
          %5906 = vmatprep.subr.mxu0 0.0
          %5907 = vmatpush2.msra.mxu0 %v5644
          %5908 = vmatprep.subr.mxu0 0.0
          %5909 = vmatpush2.msra.mxu0 %v5643
          %5910 = vmatprep.subr.mxu0 0.0
          %5911 = vmatpush2.msra.mxu0 %v5642
          %5912 = vmatprep.subr.mxu0 0.0
          %5913 = vmatpush2.msra.mxu0 %v5641
          %5914 = vmatprep.subr.mxu0 0.0
          %5915 = vmatpush2.msra.mxu0 %v5640
          %5916 = vmatprep.subr.mxu0 0.0
          %5917 = vmatpush2.msra.mxu0 %v5639
          %5918 = vmatprep.subr.mxu0 0.0
          %5919 = vmatpush2.msra.mxu0 %v5638
          %5920 = vmatprep.subr.mxu0 0.0
          %5921 = vmatpush2.msra.mxu0 %v5637
          %5922 = vmatprep.subr.mxu0 0.0
          %5923 = vmatpush2.msra.mxu0 %v5636
          %5924 = vmatprep.subr.mxu0 0.0
          %5925 = vmatpush2.msra.mxu0 %v5635
          %5926 = vmatprep.subr.mxu0 0.0
          %5927 = vmatpush2.msra.mxu0 %v5634
          %5928 = vmatprep.mubr.f32.mxu0 %v5707
          %5929 = vmatmul.mubr.f32.gmra.mxu0 %v5703
          %v5930 = vpop.f32.mrf.mxu0
          %v5931 = vadd.f32 %v5861, %v5930
          %v5932 = vpop.f32.mrf.mxu0
          %5933 = vdwg.mxu0
          %5934 = vmatprep.subr.mxu0 0.0
          %5935 = vmatpush1.msra.mxu0 %v5665
          %5936 = vmatprep.subr.mxu0 0.0
          %5937 = vmatpush1.msra.mxu0 %v5664
          %5938 = vmatprep.subr.mxu0 0.0
          %5939 = vmatpush1.msra.mxu0 %v5663
          %5940 = vmatprep.subr.mxu0 0.0
          %5941 = vmatpush1.msra.mxu0 %v5662
          %5942 = vmatprep.subr.mxu0 0.0
          %5943 = vmatpush1.msra.mxu0 %v5661
          %5944 = vmatprep.subr.mxu0 0.0
          %5945 = vmatpush1.msra.mxu0 %v5660
          %5946 = vmatprep.subr.mxu0 0.0
          %5947 = vmatpush1.msra.mxu0 %v5659
          %5948 = vmatprep.subr.mxu0 0.0
          %5949 = vmatpush1.msra.mxu0 %v5658
          %5950 = vmatprep.subr.mxu0 0.0
          %5951 = vmatpush1.msra.mxu0 %v5657
          %5952 = vmatprep.subr.mxu0 0.0
          %5953 = vmatpush1.msra.mxu0 %v5656
          %5954 = vmatprep.subr.mxu0 0.0
          %5955 = vmatpush1.msra.mxu0 %v5655
          %5956 = vmatprep.subr.mxu0 0.0
          %5957 = vmatpush1.msra.mxu0 %v5654
          %5958 = vmatprep.subr.mxu0 0.0
          %5959 = vmatpush1.msra.mxu0 %v5653
          %5960 = vmatprep.subr.mxu0 0.0
          %5961 = vmatpush1.msra.mxu0 %v5652
          %5962 = vmatprep.subr.mxu0 0.0
          %5963 = vmatpush1.msra.mxu0 %v5651
          %5964 = vmatprep.subr.mxu0 0.0
          %5965 = vmatpush1.msra.mxu0 %v5650
          %5966 = vmatprep.subr.mxu0 0.0
          %5967 = vmatpush2.msra.mxu0 %v5681
          %5968 = vmatprep.subr.mxu0 0.0
          %5969 = vmatpush2.msra.mxu0 %v5680
          %5970 = vmatprep.subr.mxu0 0.0
          %5971 = vmatpush2.msra.mxu0 %v5679
          %5972 = vmatprep.subr.mxu0 0.0
          %5973 = vmatpush2.msra.mxu0 %v5678
          %5974 = vmatprep.subr.mxu0 0.0
          %5975 = vmatpush2.msra.mxu0 %v5677
          %5976 = vmatprep.subr.mxu0 0.0
          %5977 = vmatpush2.msra.mxu0 %v5676
          %5978 = vmatprep.subr.mxu0 0.0
          %5979 = vmatpush2.msra.mxu0 %v5675
          %5980 = vmatprep.subr.mxu0 0.0
          %5981 = vmatpush2.msra.mxu0 %v5674
          %5982 = vmatprep.subr.mxu0 0.0
          %5983 = vmatpush2.msra.mxu0 %v5673
          %5984 = vmatprep.subr.mxu0 0.0
          %5985 = vmatpush2.msra.mxu0 %v5672
          %5986 = vmatprep.subr.mxu0 0.0
          %5987 = vmatpush2.msra.mxu0 %v5671
          %5988 = vmatprep.subr.mxu0 0.0
          %5989 = vmatpush2.msra.mxu0 %v5670
          %5990 = vmatprep.subr.mxu0 0.0
          %5991 = vmatpush2.msra.mxu0 %v5669
          %5992 = vmatprep.subr.mxu0 0.0
          %5993 = vmatpush2.msra.mxu0 %v5668
          %5994 = vmatprep.subr.mxu0 0.0
          %5995 = vmatpush2.msra.mxu0 %v5667
          %5996 = vmatprep.subr.mxu0 0.0
          %5997 = vmatpush2.msra.mxu0 %v5666
          %5998 = vmatprep.mubr.f32.mxu0 %v5715
          %5999 = vmatmul.mubr.f32.gmra.mxu0 %v5711
          %v6000 = vpop.f32.mrf.mxu0
          %v6001 = vadd.f32 %v5931, %v6000
          %v6002 = vpop.f32.mrf.mxu0
          %6003 = vdwg.mxu0
          %6004 = vst [vmem:[%s415] sm:$0x1] %v6001
        $region88: #{tpu_custom_call.1} parent=51 // pred_fallthru
          _
        %s6005 = sand.u32 %s223, 1
        %s6006 = scalar_lea.sflag [#allocation6], %s6005
        %s6007 = sand.u32 %s223, 1
        %s6008 = scalar_lea.vmem [#allocation16], %s6007
        // Predicated region
        $region89: #{tpu_custom_call.1} parent=51 // pred_check
          %p6009 = pneg %p233
        $region90: #{tpu_custom_call.1} parent=51 // pred_check_branch
          %6011 = sbr.rel (%p6009) target = $region92
        $region91: #{tpu_custom_call.1} parent=51 // pred_region
          %s6013 = ssub.s32 16, 16
          %6014 = vsyncadd %s6006, %s6013
          %s6015 = smul.addr %s32, 16
          %s6016 = scalar_lea.hbm %s8, %s6015
          %s6018 = sshll.u32 %s6008, 4
          %s6019 = int_to_ptr.vmem [resolvable:$true] %s6018
          %6021 = dma.vmem_to_hbm [thread:$0]  %s6019, 16, %s6016, %s6006
        $region92: #{tpu_custom_call.1} parent=51 // pred_fallthru
          _
      $region52: #{tpu_custom_call.1} parent=5 // pred_fallthru
        _
      %p6022 = scmp.le.s32.totalorder 2, %s23
      // Predicated region
      $region93: #{tpu_custom_call.1} parent=5 // pred_check
        %p6023 = pneg %p6022
      $region94: #{tpu_custom_call.1} parent=5 // pred_check_branch
        %6025 = sbr.rel (%p6023) target = $region96
      $region95: #{tpu_custom_call.1} parent=5 // pred_region
        %s6026 = ssub.s32 %s23, 2
        // Predicated region
        $region97: #{tpu_custom_call.1} parent=95 // pred_check
          %p6027 = pneg %p239
        $region98: #{tpu_custom_call.1} parent=95 // pred_check_branch
          %6029 = sbr.rel (%p6027) target = $region100
        $region99: #{tpu_custom_call.1} parent=95 // pred_region
          %s6030 = sand.u32 %s224, 1
          %s6031 = scalar_lea.sflag [#allocation6], %s6030
          %s6032 = sand.u32 %s224, 1
          %s6033 = scalar_lea.vmem [#allocation16], %s6032
          %6034 = dma.done %s6031, 16
        $region100: #{tpu_custom_call.1} parent=95 // pred_fallthru
          _
      $region96: #{tpu_custom_call.1} parent=5 // pred_fallthru
        _
    $region6: #{tpu_custom_call.1} parent=1 // loop_footer
      %s27 = sadd.s32 1, %s23
    $region7: #{tpu_custom_call.1} parent=1 // loop_footer_branch
      %22 = sbr.rel target = $region3
    $region8: #{tpu_custom_call.1} parent=1 // loop_exit
      _
    %6035 = vsyncpa [#allocation5], 1
    %s6036 = scalar_lea.sflag [#allocation5], 1
    %6037 = vsyncpa %s6036, 1
    %6038 = vsyncpa [#allocation8], 1
    %6039 = vsyncpa [#allocation11], 1
    %6040 = vsyncpa [#allocation14], 1
    %6041 = vsyncpa [#allocation6], 1
    %s6042 = scalar_lea.sflag [#allocation6], 1
    %6043 = vsyncpa %s6042, 1

// kernel: tpu_custom_call.1
$region0: #{tpu_custom_call.1}
  #allocation0 [shape = 'u32[]', space=smem, size = 0x4, offset = 0x4, fixed_abs, tag = 'smem constant byte address 0x4 - core index']
  #allocation1 [shape = 'u32[144,128]{1,0:T(1,128)}', space=vmem, size = 0x12000, scoped, tag = 'internal scratch']
  #allocation2 [shape = 'f32[1,1024]{1,0:T(1,128)}', space=vmem, size = 0x1000, scoped, tag = 'scratch operand']
  #allocation3 [shape = 'f32[1,1024]{1,0:T(1,128)}', space=vmem, size = 0x1000, scoped, tag = 'scratch operand']
  %s0 = inlined_call_operand.hbm [shape: bf16[2,8,1024], index: 0, kind: input, shape index: {}]
  %s1 = inlined_call_operand.hbm [shape: bf16[1024,1024], index: 1, kind: input, shape index: {}]
  %s2 = inlined_call_operand.vmem [shape: bf16[1024,8], index: 2, kind: input, shape index: {}]
  %s3 = inlined_call_operand.hbm [shape: bf16[8,1024], index: 3, kind: input, shape index: {}]
  %s4 = inlined_call_operand.hbm [shape: f32[1,1024], index: 4, kind: input, shape index: {}]
  %s5 = inlined_call_operand.hbm [shape: f32[1,1024], index: 5, kind: input, shape index: {}]
  %s6 = inlined_call_operand.hbm [shape: f32[1024,128], index: 6, kind: input, shape index: {}]
  %s7 = inlined_call_operand.hbm [shape: f32[1,128], index: 7, kind: input, shape index: {}]
  %s8 = inlined_call_operand.hbm [shape: f32[2,1,128], index: 8, kind: output, shape index: {}]
  %s9 = sld [smem:[#allocation0]]
  $region101: #{tpu_custom_call.1} parent=0
    _
  %s11 = ssub.s32 1, %s9
  %s12 = scalar_select 0, %s11, %s9
  $region1: #{tpu_custom_call.1} parent=0
    #allocation4 [shape = 'u8[32768]{0}', space=vmem, size = 0x8000, scoped, tag = 'input window, operand 0']
    #allocation5 [shape = 's32[2]{0}', space=sflag, size = 0x8, scoped, tag = 'scoped memory for tpu_custom_call.1']
    #allocation6 [shape = 's32[2]{0}', space=sflag, size = 0x8, scoped, tag = 'scoped memory for tpu_custom_call.1']
    #allocation7 [shape = 'u8[2097152]{0}', space=vmem, size = 0x200000, scoped, tag = 'input window, operand 1, single buffered']
    #allocation8 [shape = 's32[1]{0}', space=sflag, size = 0x4, scoped, tag = 'scoped memory for tpu_custom_call.1']
    #allocation9 [shape = 'u8[16384]{0}', space=vmem, size = 0x4000, scoped, tag = 'input window, operand 3, single buffered']
    #allocation10 [shape = 'u8[4096]{0}', space=vmem, size = 0x1000, scoped, tag = 'input window, operand 4, single buffered']
    #allocation11 [shape = 's32[1]{0}', space=sflag, size = 0x4, scoped, tag = 'scoped memory for tpu_custom_call.1']
    #allocation12 [shape = 'u8[4096]{0}', space=vmem, size = 0x1000, scoped, tag = 'input window, operand 5, single buffered']
    #allocation13 [shape = 'u8[524288]{0}', space=vmem, size = 0x80000, scoped, tag = 'input window, operand 6, single buffered']
    #allocation14 [shape = 's32[1]{0}', space=sflag, size = 0x4, scoped, tag = 'scoped memory for tpu_custom_call.1']
    #allocation15 [shape = 'u8[512]{0}', space=vmem, size = 0x400, scoped, tag = 'input window, operand 7, single buffered']
    #allocation16 [shape = 'u8[1024]{0}', space=vmem, size = 0x400, scoped, tag = 'output window, operand 0']
    %13 = vsyncpa [#allocation5], 0
    %s14 = scalar_lea.sflag [#allocation5], 1
    %15 = vsyncpa %s14, 0
    %16 = vsyncpa [#allocation8], 0
    %17 = vsyncpa [#allocation11], 0
    %18 = vsyncpa [#allocation14], 0
    %19 = vsyncpa [#allocation6], 0
    %s20 = scalar_lea.sflag [#allocation6], 1
    %21 = vsyncpa %s20, 0
    loop: start=0, step=1, limit=4
    $region2: #{tpu_custom_call.1} parent=1 // loop_pre_header
      _
    $region3: #{tpu_custom_call.1} parent=1 // loop_header
      %s23 = sphi 0, %s27
      %p24 = scmp.ge.s32.totalorder %s23, 4
      %s30 = sphi 0, %s42
      %s31 = sphi 0, %s38
      %s32 = sphi 0, %s30
      %s33 = sphi 0, %s31
      %s34 = sphi 0, %s32
      %s35 = sphi 0, %s33
      %s47 = sphi 0, %s49
      %s50 = sphi 0, %s47
      %s51 = sphi 0, %s50
      %s67 = sphi 0, %s51
      %s71 = sphi 0, %s71
      %s73 = sphi 0, %s71
      %s74 = sphi 0, %s73
      %s88 = sphi 0, %s74
      %s92 = sphi 0, %s92
      %s94 = sphi 0, %s92
      %s95 = sphi 0, %s94
      %s109 = sphi 0, %s95
      %s113 = sphi 0, %s113
      %s115 = sphi 0, %s113
      %s116 = sphi 0, %s115
      %s130 = sphi 0, %s116
      %s134 = sphi 0, %s134
      %s136 = sphi 0, %s134
      %s137 = sphi 0, %s136
      %s151 = sphi 0, %s137
      %s155 = sphi 0, %s155
      %s157 = sphi 0, %s155
      %s158 = sphi 0, %s157
      %s172 = sphi 0, %s158
      %s176 = sphi 0, %s176
      %s178 = sphi 0, %s176
      %s179 = sphi 0, %s178
      %s193 = sphi 0, %s179
      %s197 = sphi 0, %s197
      %s199 = sphi 0, %s197
      %s200 = sphi 0, %s199
      %s214 = sphi 0, %s200
      %s220 = sphi 0, %s222
      %s223 = sphi 0, %s220
      %s224 = sphi 0, %s223
      %s240 = sphi 0, %s224
    $region4: #{tpu_custom_call.1} parent=1 // loop_header_branch
      %26 = sbr.rel (%p24) target = $region8
    $region5: #{tpu_custom_call.1} parent=1 // loop_body
      %s28 = ssub.s32 %s23, 1
      %s29 = ssub.s32 %s23, 2
      %s36 = sadd.s32 1, %s31
      %p37 = scmp.ge.s32.totalorder %s36, 1
      %s38 = scalar_select %p37, 0, %s36
      %s39 = sadd.s32 1, %s30
      %s40 = scalar_select %p37, %s39, %s30
      %p41 = scmp.ge.s32.totalorder %s40, 2
      %s42 = scalar_select %p41, 0, %s40
      %s43 = ssub.s32 %s30, %s42
      %s44 = ssub.s32 %s31, %s38
      %s45 = sor.u32 %s43, %s44
      %p46 = scmp.eq.s32.totalorder %s45, 0
      %s48 = sadd.s32 %s47, 1
      %s49 = scalar_select %p46, %s47, %s48
      %p52 = pneg %p46
      %p53 = scmp.eq.s32.totalorder %s23, 1
      %p54 = por %p52, %p53
      %p55 = scmp.ne.s32.totalorder %s47, %s50
      %p56 = scmp.eq.s32.totalorder %s23, 0
      %p57 = por %p55, %p56
      %p58 = scmp.ne.s32.totalorder %s47, %s50
      %p59 = scmp.eq.s32.totalorder %s28, 1
      %p60 = por %p58, %p59
      %p61 = scmp.ne.s32.totalorder %s50, %s51
      %p62 = scmp.eq.s32.totalorder %s28, 0
      %p63 = por %p61, %p62
      %p64 = scmp.ne.s32.totalorder %s50, %s51
      %p65 = scmp.eq.s32.totalorder %s29, 1
      %p66 = por %p64, %p65
      %p68 = scmp.ne.s32.totalorder %s51, %s67
      %p69 = scmp.eq.s32.totalorder %s29, 0
      %p70 = por %p68, %p69
      %s72 = sadd.s32 %s71, 1
      %p75 = scmp.eq.s32.totalorder %s23, 1
      %p76 = scmp.ne.s32.totalorder %s71, %s73
      %p77 = scmp.eq.s32.totalorder %s23, 0
      %p78 = por %p76, %p77
      %p79 = scmp.ne.s32.totalorder %s71, %s73
      %p80 = scmp.eq.s32.totalorder %s28, 1
      %p81 = por %p79, %p80
      %p82 = scmp.ne.s32.totalorder %s73, %s74
      %p83 = scmp.eq.s32.totalorder %s28, 0
      %p84 = por %p82, %p83
      %p85 = scmp.ne.s32.totalorder %s73, %s74
      %p86 = scmp.eq.s32.totalorder %s29, 1
      %p87 = por %p85, %p86
      %p89 = scmp.ne.s32.totalorder %s74, %s88
      %p90 = scmp.eq.s32.totalorder %s29, 0
      %p91 = por %p89, %p90
      %s93 = sadd.s32 %s92, 1
      %p96 = scmp.eq.s32.totalorder %s23, 1
      %p97 = scmp.ne.s32.totalorder %s92, %s94
      %p98 = scmp.eq.s32.totalorder %s23, 0
      %p99 = por %p97, %p98
      %p100 = scmp.ne.s32.totalorder %s92, %s94
      %p101 = scmp.eq.s32.totalorder %s28, 1
      %p102 = por %p100, %p101
      %p103 = scmp.ne.s32.totalorder %s94, %s95
      %p104 = scmp.eq.s32.totalorder %s28, 0
      %p105 = por %p103, %p104
      %p106 = scmp.ne.s32.totalorder %s94, %s95
      %p107 = scmp.eq.s32.totalorder %s29, 1
      %p108 = por %p106, %p107
      %p110 = scmp.ne.s32.totalorder %s95, %s109
      %p111 = scmp.eq.s32.totalorder %s29, 0
      %p112 = por %p110, %p111
      %s114 = sadd.s32 %s113, 1
      %p117 = scmp.eq.s32.totalorder %s23, 1
      %p118 = scmp.ne.s32.totalorder %s113, %s115
      %p119 = scmp.eq.s32.totalorder %s23, 0
      %p120 = por %p118, %p119
      %p121 = scmp.ne.s32.totalorder %s113, %s115
      %p122 = scmp.eq.s32.totalorder %s28, 1
      %p123 = por %p121, %p122
      %p124 = scmp.ne.s32.totalorder %s115, %s116
      %p125 = scmp.eq.s32.totalorder %s28, 0
      %p126 = por %p124, %p125
      %p127 = scmp.ne.s32.totalorder %s115, %s116
      %p128 = scmp.eq.s32.totalorder %s29, 1
      %p129 = por %p127, %p128
      %p131 = scmp.ne.s32.totalorder %s116, %s130
      %p132 = scmp.eq.s32.totalorder %s29, 0
      %p133 = por %p131, %p132
      %s135 = sadd.s32 %s134, 1
      %p138 = scmp.eq.s32.totalorder %s23, 1
      %p139 = scmp.ne.s32.totalorder %s134, %s136
      %p140 = scmp.eq.s32.totalorder %s23, 0
      %p141 = por %p139, %p140
      %p142 = scmp.ne.s32.totalorder %s134, %s136
      %p143 = scmp.eq.s32.totalorder %s28, 1
      %p144 = por %p142, %p143
      %p145 = scmp.ne.s32.totalorder %s136, %s137
      %p146 = scmp.eq.s32.totalorder %s28, 0
      %p147 = por %p145, %p146
      %p148 = scmp.ne.s32.totalorder %s136, %s137
      %p149 = scmp.eq.s32.totalorder %s29, 1
      %p150 = por %p148, %p149
      %p152 = scmp.ne.s32.totalorder %s137, %s151
      %p153 = scmp.eq.s32.totalorder %s29, 0
      %p154 = por %p152, %p153
      %s156 = sadd.s32 %s155, 1
      %p159 = scmp.eq.s32.totalorder %s23, 1
      %p160 = scmp.ne.s32.totalorder %s155, %s157
      %p161 = scmp.eq.s32.totalorder %s23, 0
      %p162 = por %p160, %p161
      %p163 = scmp.ne.s32.totalorder %s155, %s157
      %p164 = scmp.eq.s32.totalorder %s28, 1
      %p165 = por %p163, %p164
      %p166 = scmp.ne.s32.totalorder %s157, %s158
      %p167 = scmp.eq.s32.totalorder %s28, 0
      %p168 = por %p166, %p167
      %p169 = scmp.ne.s32.totalorder %s157, %s158
      %p170 = scmp.eq.s32.totalorder %s29, 1
      %p171 = por %p169, %p170
      %p173 = scmp.ne.s32.totalorder %s158, %s172
      %p174 = scmp.eq.s32.totalorder %s29, 0
      %p175 = por %p173, %p174
      %s177 = sadd.s32 %s176, 1
      %p180 = scmp.eq.s32.totalorder %s23, 1
      %p181 = scmp.ne.s32.totalorder %s176, %s178
      %p182 = scmp.eq.s32.totalorder %s23, 0
      %p183 = por %p181, %p182
      %p184 = scmp.ne.s32.totalorder %s176, %s178
      %p185 = scmp.eq.s32.totalorder %s28, 1
      %p186 = por %p184, %p185
      %p187 = scmp.ne.s32.totalorder %s178, %s179
      %p188 = scmp.eq.s32.totalorder %s28, 0
      %p189 = por %p187, %p188
      %p190 = scmp.ne.s32.totalorder %s178, %s179
      %p191 = scmp.eq.s32.totalorder %s29, 1
      %p192 = por %p190, %p191
      %p194 = scmp.ne.s32.totalorder %s179, %s193
      %p195 = scmp.eq.s32.totalorder %s29, 0
      %p196 = por %p194, %p195
      %s198 = sadd.s32 %s197, 1
      %p201 = scmp.eq.s32.totalorder %s23, 1
      %p202 = scmp.ne.s32.totalorder %s197, %s199
      %p203 = scmp.eq.s32.totalorder %s23, 0
      %p204 = por %p202, %p203
      %p205 = scmp.ne.s32.totalorder %s197, %s199
      %p206 = scmp.eq.s32.totalorder %s28, 1
      %p207 = por %p205, %p206
      %p208 = scmp.ne.s32.totalorder %s199, %s200
      %p209 = scmp.eq.s32.totalorder %s28, 0
      %p210 = por %p208, %p209
      %p211 = scmp.ne.s32.totalorder %s199, %s200
      %p212 = scmp.eq.s32.totalorder %s29, 1
      %p213 = por %p211, %p212
      %p215 = scmp.ne.s32.totalorder %s200, %s214
      %p216 = scmp.eq.s32.totalorder %s29, 0
      %p217 = por %p215, %p216
      %s218 = ssub.s32 %s30, %s42
      %p219 = scmp.eq.s32.totalorder %s218, 0
      %s221 = sadd.s32 %s220, 1
      %s222 = scalar_select %p219, %s220, %s221
      %p225 = pneg %p219
      %p226 = scmp.eq.s32.totalorder %s23, 1
      %p227 = por %p225, %p226
      %p228 = scmp.ne.s32.totalorder %s220, %s223
      %p229 = scmp.eq.s32.totalorder %s23, 0
      %p230 = por %p228, %p229
      %p231 = scmp.ne.s32.totalorder %s220, %s223
      %p232 = scmp.eq.s32.totalorder %s28, 1
      %p233 = por %p231, %p232
      %p234 = scmp.ne.s32.totalorder %s223, %s224
      %p235 = scmp.eq.s32.totalorder %s28, 0
      %p236 = por %p234, %p235
      %p237 = scmp.ne.s32.totalorder %s223, %s224
      %p238 = scmp.eq.s32.totalorder %s29, 1
      %p239 = por %p237, %p238
      %p241 = scmp.ne.s32.totalorder %s224, %s240
      %p242 = scmp.eq.s32.totalorder %s29, 0
      %p243 = por %p241, %p242
      %p244 = scmp.le.s32.totalorder 1, %s23
      %p245 = scmp.lt.s32.totalorder %s23, 3
      %p246 = pnand %p244, %p245
      %p247 = pneg %p246
      // Predicated region
      $region9: #{tpu_custom_call.1} parent=5 // pred_check
        _
      $region10: #{tpu_custom_call.1} parent=5 // pred_check_branch
        %249 = sbr.rel (%p246) target = $region12
      $region11: #{tpu_custom_call.1} parent=5 // pred_region
        %s250 = ssub.s32 %s23, 1
        // Predicated region
        $region13: #{tpu_custom_call.1} parent=11 // pred_check
          %p251 = pneg %p84
        $region14: #{tpu_custom_call.1} parent=11 // pred_check_branch
          %253 = sbr.rel (%p251) target = $region16
        $region15: #{tpu_custom_call.1} parent=11 // pred_region
          %s255 = ssub.s32 65536, 65536
          %256 = vsyncadd [#allocation8], %s255
          %s257 = sshll.u32 [#allocation7], 4
          %s258 = int_to_ptr.vmem [resolvable:$true] %s257
          %263 = dma.hbm_to_vmem [thread:$0]  %s1, 65536, %s258, [#allocation8], 512, 512, 32
        $region16: #{tpu_custom_call.1} parent=11 // pred_fallthru
          _
        // Predicated region
        $region17: #{tpu_custom_call.1} parent=11 // pred_check
          %p264 = pneg %p105
        $region18: #{tpu_custom_call.1} parent=11 // pred_check_branch
          %266 = sbr.rel (%p264) target = $region20
        $region19: #{tpu_custom_call.1} parent=11 // pred_region
          _
        $region20: #{tpu_custom_call.1} parent=11 // pred_fallthru
          _
        // Predicated region
        $region21: #{tpu_custom_call.1} parent=11 // pred_check
          %p267 = pneg %p126
        $region22: #{tpu_custom_call.1} parent=11 // pred_check_branch
          %269 = sbr.rel (%p267) target = $region24
        $region23: #{tpu_custom_call.1} parent=11 // pred_region
          %s271 = ssub.s32 512, 512
          %272 = vsyncadd [#allocation8], %s271
          %s274 = sshll.u32 [#allocation9], 4
          %s275 = int_to_ptr.vmem [resolvable:$true] %s274
          %277 = dma.hbm_to_vmem [thread:$0]  %s3, 512, %s275, [#allocation8]
        $region24: #{tpu_custom_call.1} parent=11 // pred_fallthru
          _
        // Predicated region
        $region25: #{tpu_custom_call.1} parent=11 // pred_check
          %p278 = pneg %p147
        $region26: #{tpu_custom_call.1} parent=11 // pred_check_branch
          %280 = sbr.rel (%p278) target = $region28
        $region27: #{tpu_custom_call.1} parent=11 // pred_region
          %s282 = ssub.s32 128, 128
          %283 = vsyncadd [#allocation11], %s282
          %s285 = sshll.u32 [#allocation10], 4
          %s286 = int_to_ptr.vmem [resolvable:$true] %s285
          %288 = dma.hbm_to_vmem [thread:$0]  %s4, 128, %s286, [#allocation11]
        $region28: #{tpu_custom_call.1} parent=11 // pred_fallthru
          _
        // Predicated region
        $region29: #{tpu_custom_call.1} parent=11 // pred_check
          %p289 = pneg %p168
        $region30: #{tpu_custom_call.1} parent=11 // pred_check_branch
          %291 = sbr.rel (%p289) target = $region32
        $region31: #{tpu_custom_call.1} parent=11 // pred_region
          %s293 = ssub.s32 128, 128
          %294 = vsyncadd [#allocation11], %s293
          %s296 = sshll.u32 [#allocation12], 4
          %s297 = int_to_ptr.vmem [resolvable:$true] %s296
          %299 = dma.hbm_to_vmem [thread:$0]  %s5, 128, %s297, [#allocation11]
        $region32: #{tpu_custom_call.1} parent=11 // pred_fallthru
          _
        // Predicated region
        $region33: #{tpu_custom_call.1} parent=11 // pred_check
          %p300 = pneg %p189
        $region34: #{tpu_custom_call.1} parent=11 // pred_check_branch
          %302 = sbr.rel (%p300) target = $region36
        $region35: #{tpu_custom_call.1} parent=11 // pred_region
          %s304 = ssub.s32 16384, 16384
          %305 = vsyncadd [#allocation14], %s304
          %s306 = sshll.u32 [#allocation13], 4
          %s307 = int_to_ptr.vmem [resolvable:$true] %s306
          %312 = dma.hbm_to_vmem [thread:$0]  %s6, 16384, %s307, [#allocation14], 128, 128, 8
        $region36: #{tpu_custom_call.1} parent=11 // pred_fallthru
          _
        // Predicated region
        $region37: #{tpu_custom_call.1} parent=11 // pred_check
          %p313 = pneg %p210
        $region38: #{tpu_custom_call.1} parent=11 // pred_check_branch
          %315 = sbr.rel (%p313) target = $region40
        $region39: #{tpu_custom_call.1} parent=11 // pred_region
          %s317 = ssub.s32 16, 16
          %318 = vsyncadd [#allocation14], %s317
          %s320 = sshll.u32 [#allocation15], 4
          %s321 = int_to_ptr.vmem [resolvable:$true] %s320
          %323 = dma.hbm_to_vmem [thread:$0]  %s7, 16, %s321, [#allocation14]
        $region40: #{tpu_custom_call.1} parent=11 // pred_fallthru
          _
      $region12: #{tpu_custom_call.1} parent=5 // pred_fallthru
        _
      %p324 = scmp.lt.s32.totalorder %s23, 2
      // Predicated region
      $region41: #{tpu_custom_call.1} parent=5 // pred_check
        %p325 = pneg %p324
      $region42: #{tpu_custom_call.1} parent=5 // pred_check_branch
        %327 = sbr.rel (%p325) target = $region44
      $region43: #{tpu_custom_call.1} parent=5 // pred_region
        // Predicated region
        $region45: #{tpu_custom_call.1} parent=43 // pred_check
          %p328 = pneg %p57
        $region46: #{tpu_custom_call.1} parent=43 // pred_check_branch
          %330 = sbr.rel (%p328) target = $region48
        $region47: #{tpu_custom_call.1} parent=43 // pred_region
          %s331 = sand.u32 %s47, 1
          %s332 = scalar_lea.sflag [#allocation5], %s331
          %s333 = sand.u32 %s47, 1
          %s334 = smul.addr %s333, 32
          %s335 = scalar_lea.vmem [#allocation4], %s334
          %s337 = ssub.s32 512, 512
          %338 = vsyncadd %s332, %s337
          %s339 = smul.addr %s31, 8
          %s340 = smul.addr %s30, 8
          %s341 = sadd.s32 %s339, %s340
          %s342 = smul.addr %s341, 64
          %s343 = scalar_lea.hbm %s0, %s342
          %s345 = sshll.u32 %s335, 4
          %s346 = int_to_ptr.vmem [resolvable:$true] %s345
          %348 = dma.hbm_to_vmem [thread:$0]  %s343, 512, %s346, %s332
        $region48: #{tpu_custom_call.1} parent=43 // pred_fallthru
          _
      $region44: #{tpu_custom_call.1} parent=5 // pred_fallthru
        _
      %p349 = scmp.le.s32.totalorder 1, %s23
      %p350 = scmp.lt.s32.totalorder %s23, 3
      %p351 = pnand %p349, %p350
      %p352 = pneg %p351
      // Predicated region
      $region49: #{tpu_custom_call.1} parent=5 // pred_check
        _
      $region50: #{tpu_custom_call.1} parent=5 // pred_check_branch
        %354 = sbr.rel (%p351) target = $region52
      $region51: #{tpu_custom_call.1} parent=5 // pred_region
        %s355 = ssub.s32 %s23, 1
        %s356 = sand.u32 %s50, 1
        %s357 = scalar_lea.sflag [#allocation5], %s356
        %s358 = sand.u32 %s50, 1
        %s359 = smul.addr %s358, 32
        %s360 = scalar_lea.vmem [#allocation4], %s359
        // Predicated region
        $region53: #{tpu_custom_call.1} parent=51 // pred_check
          %p361 = pneg %p63
        $region54: #{tpu_custom_call.1} parent=51 // pred_check_branch
          %363 = sbr.rel (%p361) target = $region56
        $region55: #{tpu_custom_call.1} parent=51 // pred_region
          %364 = dma.done %s357, 512
        $region56: #{tpu_custom_call.1} parent=51 // pred_fallthru
          _
        // Predicated region
        $region57: #{tpu_custom_call.1} parent=51 // pred_check
          %p365 = pneg %p84
        $region58: #{tpu_custom_call.1} parent=51 // pred_check_branch
          %367 = sbr.rel (%p365) target = $region60
        $region59: #{tpu_custom_call.1} parent=51 // pred_region
          %368 = dma.done [#allocation8], 65536
        $region60: #{tpu_custom_call.1} parent=51 // pred_fallthru
          _
        // Predicated region
        $region61: #{tpu_custom_call.1} parent=51 // pred_check
          %p369 = pneg %p126
        $region62: #{tpu_custom_call.1} parent=51 // pred_check_branch
          %371 = sbr.rel (%p369) target = $region64
        $region63: #{tpu_custom_call.1} parent=51 // pred_region
          %372 = dma.done [#allocation8], 512
        $region64: #{tpu_custom_call.1} parent=51 // pred_fallthru
          _
        // Predicated region
        $region65: #{tpu_custom_call.1} parent=51 // pred_check
          %p373 = pneg %p147
        $region66: #{tpu_custom_call.1} parent=51 // pred_check_branch
          %375 = sbr.rel (%p373) target = $region68
        $region67: #{tpu_custom_call.1} parent=51 // pred_region
          %376 = dma.done [#allocation11], 128
        $region68: #{tpu_custom_call.1} parent=51 // pred_fallthru
          _
        // Predicated region
        $region69: #{tpu_custom_call.1} parent=51 // pred_check
          %p377 = pneg %p168
        $region70: #{tpu_custom_call.1} parent=51 // pred_check_branch
          %379 = sbr.rel (%p377) target = $region72
        $region71: #{tpu_custom_call.1} parent=51 // pred_region
          %380 = dma.done [#allocation11], 128
        $region72: #{tpu_custom_call.1} parent=51 // pred_fallthru
          _
        // Predicated region
        $region73: #{tpu_custom_call.1} parent=51 // pred_check
          %p381 = pneg %p189
        $region74: #{tpu_custom_call.1} parent=51 // pred_check_branch
          %383 = sbr.rel (%p381) target = $region76
        $region75: #{tpu_custom_call.1} parent=51 // pred_region
          %384 = dma.done [#allocation14], 16384
        $region76: #{tpu_custom_call.1} parent=51 // pred_fallthru
          _
        // Predicated region
        $region77: #{tpu_custom_call.1} parent=51 // pred_check
          %p385 = pneg %p210
        $region78: #{tpu_custom_call.1} parent=51 // pred_check_branch
          %387 = sbr.rel (%p385) target = $region80
        $region79: #{tpu_custom_call.1} parent=51 // pred_region
          %388 = dma.done [#allocation14], 16
        $region80: #{tpu_custom_call.1} parent=51 // pred_fallthru
          _
        %s389 = sand.u32 %s50, 1
        %s390 = scalar_lea.sflag [#allocation5], %s389
        %s391 = sand.u32 %s50, 1
        %s392 = smul.addr %s391, 32
        %s393 = scalar_lea.vmem [#allocation4], %s392
        %p394 = pneg %p63
        %p395 = pneg %p60
        %p396 = pneg %p84
        %p397 = pneg %p81
        %p398 = pneg %p105
        %p399 = pneg %p102
        %p400 = pneg %p126
        %p401 = pneg %p123
        %p402 = pneg %p147
        %p403 = pneg %p144
        %p404 = pneg %p168
        %p405 = pneg %p165
        %p406 = pneg %p189
        %p407 = pneg %p186
        %p408 = pneg %p210
        %p409 = pneg %p207
        %p410 = pneg %p236
        %p411 = pneg %p233
        %s412 = sand.u32 %s223, 1
        %s413 = scalar_lea.sflag [#allocation6], %s412
        %s414 = sand.u32 %s223, 1
        %s415 = scalar_lea.vmem [#allocation16], %s414
        %p417 = scmp.eq.s32.totalorder %s33, 0
        // Predicated region
        $region81: #{tpu_custom_call.1} parent=51 // pred_check
          %p418 = pneg %p417
        $region82: #{tpu_custom_call.1} parent=51 // pred_check_branch
          %420 = sbr.rel (%p418) target = $region84
        $region83: #{tpu_custom_call.1} parent=51 // pred_region
          %421 = vst [vmem:[#allocation2] sm:$0xff] 0.0
          %422 = vst [vmem:[#allocation3] sm:$0xff] 0.0
        $region84: #{tpu_custom_call.1} parent=51 // pred_fallthru
          _
        %v423 = vld [vmem:[%s360] sm:$0xff]
        %v424 = vld [vmem:[%s360 + $0x8] sm:$0xff]
        %v425 = vld [vmem:[%s360 + $0x10] sm:$0xff]
        %v426 = vld [vmem:[%s360 + $0x18] sm:$0xff]
        %v427 = vld [vmem:[#allocation7] sm:$0xff]
        %v428 = vld [vmem:[#allocation7 + $0x8] sm:$0xff]
        %v429 = vld [vmem:[#allocation7 + $0x10] sm:$0xff]
        %v430 = vld [vmem:[#allocation7 + $0x18] sm:$0xff]
        %v431 = vld [vmem:[#allocation7 + $0x20] sm:$0xff]
        %v432 = vld [vmem:[#allocation7 + $0x28] sm:$0xff]
        %v433 = vld [vmem:[#allocation7 + $0x30] sm:$0xff]
        %v434 = vld [vmem:[#allocation7 + $0x38] sm:$0xff]
        %v435 = vld [vmem:[#allocation7 + $0x40] sm:$0xff]
        %v436 = vld [vmem:[#allocation7 + $0x48] sm:$0xff]
        %v437 = vld [vmem:[#allocation7 + $0x50] sm:$0xff]
        %v438 = vld [vmem:[#allocation7 + $0x58] sm:$0xff]
        %v439 = vld [vmem:[#allocation7 + $0x60] sm:$0xff]
        %v440 = vld [vmem:[#allocation7 + $0x68] sm:$0xff]
        %v441 = vld [vmem:[#allocation7 + $0x70] sm:$0xff]
        %v442 = vld [vmem:[#allocation7 + $0x78] sm:$0xff]
        %v443 = vld [vmem:[#allocation7 + $0x80] sm:$0xff]
        %v444 = vld [vmem:[#allocation7 + $0x88] sm:$0xff]
        %v445 = vld [vmem:[#allocation7 + $0x90] sm:$0xff]
        %v446 = vld [vmem:[#allocation7 + $0x98] sm:$0xff]
        %v447 = vld [vmem:[#allocation7 + $0xa0] sm:$0xff]
        %v448 = vld [vmem:[#allocation7 + $0xa8] sm:$0xff]
        %v449 = vld [vmem:[#allocation7 + $0xb0] sm:$0xff]
        %v450 = vld [vmem:[#allocation7 + $0xb8] sm:$0xff]
        %v451 = vld [vmem:[#allocation7 + $0xc0] sm:$0xff]
        %v452 = vld [vmem:[#allocation7 + $0xc8] sm:$0xff]
        %v453 = vld [vmem:[#allocation7 + $0xd0] sm:$0xff]
        %v454 = vld [vmem:[#allocation7 + $0xd8] sm:$0xff]
        %v455 = vld [vmem:[#allocation7 + $0xe0] sm:$0xff]
        %v456 = vld [vmem:[#allocation7 + $0xe8] sm:$0xff]
        %v457 = vld [vmem:[#allocation7 + $0xf0] sm:$0xff]
        %v458 = vld [vmem:[#allocation7 + $0xf8] sm:$0xff]
        %v459 = vld [vmem:[#allocation7 + $0x100] sm:$0xff]
        %v460 = vld [vmem:[#allocation7 + $0x108] sm:$0xff]
        %v461 = vld [vmem:[#allocation7 + $0x110] sm:$0xff]
        %v462 = vld [vmem:[#allocation7 + $0x118] sm:$0xff]
        %v463 = vld [vmem:[#allocation7 + $0x120] sm:$0xff]
        %v464 = vld [vmem:[#allocation7 + $0x128] sm:$0xff]
        %v465 = vld [vmem:[#allocation7 + $0x130] sm:$0xff]
        %v466 = vld [vmem:[#allocation7 + $0x138] sm:$0xff]
        %v467 = vld [vmem:[#allocation7 + $0x140] sm:$0xff]
        %v468 = vld [vmem:[#allocation7 + $0x148] sm:$0xff]
        %v469 = vld [vmem:[#allocation7 + $0x150] sm:$0xff]
        %v470 = vld [vmem:[#allocation7 + $0x158] sm:$0xff]
        %v471 = vld [vmem:[#allocation7 + $0x160] sm:$0xff]
        %v472 = vld [vmem:[#allocation7 + $0x168] sm:$0xff]
        %v473 = vld [vmem:[#allocation7 + $0x170] sm:$0xff]
        %v474 = vld [vmem:[#allocation7 + $0x178] sm:$0xff]
        %v475 = vld [vmem:[#allocation7 + $0x180] sm:$0xff]
        %v476 = vld [vmem:[#allocation7 + $0x188] sm:$0xff]
        %v477 = vld [vmem:[#allocation7 + $0x190] sm:$0xff]
        %v478 = vld [vmem:[#allocation7 + $0x198] sm:$0xff]
        %v479 = vld [vmem:[#allocation7 + $0x1a0] sm:$0xff]
        %v480 = vld [vmem:[#allocation7 + $0x1a8] sm:$0xff]
        %v481 = vld [vmem:[#allocation7 + $0x1b0] sm:$0xff]
        %v482 = vld [vmem:[#allocation7 + $0x1b8] sm:$0xff]
        %v483 = vld [vmem:[#allocation7 + $0x1c0] sm:$0xff]
        %v484 = vld [vmem:[#allocation7 + $0x1c8] sm:$0xff]
        %v485 = vld [vmem:[#allocation7 + $0x1d0] sm:$0xff]
        %v486 = vld [vmem:[#allocation7 + $0x1d8] sm:$0xff]
        %v487 = vld [vmem:[#allocation7 + $0x1e0] sm:$0xff]
        %v488 = vld [vmem:[#allocation7 + $0x1e8] sm:$0xff]
        %v489 = vld [vmem:[#allocation7 + $0x1f0] sm:$0xff]
        %v490 = vld [vmem:[#allocation7 + $0x1f8] sm:$0xff]
        %v491 = vld [vmem:[#allocation7 + $0x200] sm:$0xff]
        %v492 = vld [vmem:[#allocation7 + $0x208] sm:$0xff]
        %v493 = vld [vmem:[#allocation7 + $0x210] sm:$0xff]
        %v494 = vld [vmem:[#allocation7 + $0x218] sm:$0xff]
        %v495 = vld [vmem:[#allocation7 + $0x220] sm:$0xff]
        %v496 = vld [vmem:[#allocation7 + $0x228] sm:$0xff]
        %v497 = vld [vmem:[#allocation7 + $0x230] sm:$0xff]
        %v498 = vld [vmem:[#allocation7 + $0x238] sm:$0xff]
        %v499 = vld [vmem:[#allocation7 + $0x240] sm:$0xff]
        %v500 = vld [vmem:[#allocation7 + $0x248] sm:$0xff]
        %v501 = vld [vmem:[#allocation7 + $0x250] sm:$0xff]
        %v502 = vld [vmem:[#allocation7 + $0x258] sm:$0xff]
        %v503 = vld [vmem:[#allocation7 + $0x260] sm:$0xff]
        %v504 = vld [vmem:[#allocation7 + $0x268] sm:$0xff]
        %v505 = vld [vmem:[#allocation7 + $0x270] sm:$0xff]
        %v506 = vld [vmem:[#allocation7 + $0x278] sm:$0xff]
        %v507 = vld [vmem:[#allocation7 + $0x280] sm:$0xff]
        %v508 = vld [vmem:[#allocation7 + $0x288] sm:$0xff]
        %v509 = vld [vmem:[#allocation7 + $0x290] sm:$0xff]
        %v510 = vld [vmem:[#allocation7 + $0x298] sm:$0xff]
        %v511 = vld [vmem:[#allocation7 + $0x2a0] sm:$0xff]
        %v512 = vld [vmem:[#allocation7 + $0x2a8] sm:$0xff]
        %v513 = vld [vmem:[#allocation7 + $0x2b0] sm:$0xff]
        %v514 = vld [vmem:[#allocation7 + $0x2b8] sm:$0xff]
        %v515 = vld [vmem:[#allocation7 + $0x2c0] sm:$0xff]
        %v516 = vld [vmem:[#allocation7 + $0x2c8] sm:$0xff]
        %v517 = vld [vmem:[#allocation7 + $0x2d0] sm:$0xff]
        %v518 = vld [vmem:[#allocation7 + $0x2d8] sm:$0xff]
        %v519 = vld [vmem:[#allocation7 + $0x2e0] sm:$0xff]
        %v520 = vld [vmem:[#allocation7 + $0x2e8] sm:$0xff]
        %v521 = vld [vmem:[#allocation7 + $0x2f0] sm:$0xff]
        %v522 = vld [vmem:[#allocation7 + $0x2f8] sm:$0xff]
        %v523 = vld [vmem:[#allocation7 + $0x300] sm:$0xff]
        %v524 = vld [vmem:[#allocation7 + $0x308] sm:$0xff]
        %v525 = vld [vmem:[#allocation7 + $0x310] sm:$0xff]
        %v526 = vld [vmem:[#allocation7 + $0x318] sm:$0xff]
        %v527 = vld [vmem:[#allocation7 + $0x320] sm:$0xff]
        %v528 = vld [vmem:[#allocation7 + $0x328] sm:$0xff]
        %v529 = vld [vmem:[#allocation7 + $0x330] sm:$0xff]
        %v530 = vld [vmem:[#allocation7 + $0x338] sm:$0xff]
        %v531 = vld [vmem:[#allocation7 + $0x340] sm:$0xff]
        %v532 = vld [vmem:[#allocation7 + $0x348] sm:$0xff]
        %v533 = vld [vmem:[#allocation7 + $0x350] sm:$0xff]
        %v534 = vld [vmem:[#allocation7 + $0x358] sm:$0xff]
        %v535 = vld [vmem:[#allocation7 + $0x360] sm:$0xff]
        %v536 = vld [vmem:[#allocation7 + $0x368] sm:$0xff]
        %v537 = vld [vmem:[#allocation7 + $0x370] sm:$0xff]
        %v538 = vld [vmem:[#allocation7 + $0x378] sm:$0xff]
        %v539 = vld [vmem:[#allocation7 + $0x380] sm:$0xff]
        %v540 = vld [vmem:[#allocation7 + $0x388] sm:$0xff]
        %v541 = vld [vmem:[#allocation7 + $0x390] sm:$0xff]
        %v542 = vld [vmem:[#allocation7 + $0x398] sm:$0xff]
        %v543 = vld [vmem:[#allocation7 + $0x3a0] sm:$0xff]
        %v544 = vld [vmem:[#allocation7 + $0x3a8] sm:$0xff]
        %v545 = vld [vmem:[#allocation7 + $0x3b0] sm:$0xff]
        %v546 = vld [vmem:[#allocation7 + $0x3b8] sm:$0xff]
        %v547 = vld [vmem:[#allocation7 + $0x3c0] sm:$0xff]
        %v548 = vld [vmem:[#allocation7 + $0x3c8] sm:$0xff]
        %v549 = vld [vmem:[#allocation7 + $0x3d0] sm:$0xff]
        %v550 = vld [vmem:[#allocation7 + $0x3d8] sm:$0xff]
        %v551 = vld [vmem:[#allocation7 + $0x3e0] sm:$0xff]
        %v552 = vld [vmem:[#allocation7 + $0x3e8] sm:$0xff]
        %v553 = vld [vmem:[#allocation7 + $0x3f0] sm:$0xff]
        %v554 = vld [vmem:[#allocation7 + $0x3f8] sm:$0xff]
        %v555 = vld [vmem:[#allocation7 + $0x400] sm:$0xff]
        %v556 = vld [vmem:[#allocation7 + $0x408] sm:$0xff]
        %v557 = vld [vmem:[#allocation7 + $0x410] sm:$0xff]
        %v558 = vld [vmem:[#allocation7 + $0x418] sm:$0xff]
        %v559 = vld [vmem:[#allocation7 + $0x420] sm:$0xff]
        %v560 = vld [vmem:[#allocation7 + $0x428] sm:$0xff]
        %v561 = vld [vmem:[#allocation7 + $0x430] sm:$0xff]
        %v562 = vld [vmem:[#allocation7 + $0x438] sm:$0xff]
        %v563 = vld [vmem:[#allocation7 + $0x440] sm:$0xff]
        %v564 = vld [vmem:[#allocation7 + $0x448] sm:$0xff]
        %v565 = vld [vmem:[#allocation7 + $0x450] sm:$0xff]
        %v566 = vld [vmem:[#allocation7 + $0x458] sm:$0xff]
        %v567 = vld [vmem:[#allocation7 + $0x460] sm:$0xff]
        %v568 = vld [vmem:[#allocation7 + $0x468] sm:$0xff]
        %v569 = vld [vmem:[#allocation7 + $0x470] sm:$0xff]
        %v570 = vld [vmem:[#allocation7 + $0x478] sm:$0xff]
        %v571 = vld [vmem:[#allocation7 + $0x480] sm:$0xff]
        %v572 = vld [vmem:[#allocation7 + $0x488] sm:$0xff]
        %v573 = vld [vmem:[#allocation7 + $0x490] sm:$0xff]
        %v574 = vld [vmem:[#allocation7 + $0x498] sm:$0xff]
        %v575 = vld [vmem:[#allocation7 + $0x4a0] sm:$0xff]
        %v576 = vld [vmem:[#allocation7 + $0x4a8] sm:$0xff]
        %v577 = vld [vmem:[#allocation7 + $0x4b0] sm:$0xff]
        %v578 = vld [vmem:[#allocation7 + $0x4b8] sm:$0xff]
        %v579 = vld [vmem:[#allocation7 + $0x4c0] sm:$0xff]
        %v580 = vld [vmem:[#allocation7 + $0x4c8] sm:$0xff]
        %v581 = vld [vmem:[#allocation7 + $0x4d0] sm:$0xff]
        %v582 = vld [vmem:[#allocation7 + $0x4d8] sm:$0xff]
        %v583 = vld [vmem:[#allocation7 + $0x4e0] sm:$0xff]
        %v584 = vld [vmem:[#allocation7 + $0x4e8] sm:$0xff]
        %v585 = vld [vmem:[#allocation7 + $0x4f0] sm:$0xff]
        %v586 = vld [vmem:[#allocation7 + $0x4f8] sm:$0xff]
        %v587 = vld [vmem:[#allocation7 + $0x500] sm:$0xff]
        %v588 = vld [vmem:[#allocation7 + $0x508] sm:$0xff]
        %v589 = vld [vmem:[#allocation7 + $0x510] sm:$0xff]
        %v590 = vld [vmem:[#allocation7 + $0x518] sm:$0xff]
        %v591 = vld [vmem:[#allocation7 + $0x520] sm:$0xff]
        %v592 = vld [vmem:[#allocation7 + $0x528] sm:$0xff]
        %v593 = vld [vmem:[#allocation7 + $0x530] sm:$0xff]
        %v594 = vld [vmem:[#allocation7 + $0x538] sm:$0xff]
        %v595 = vld [vmem:[#allocation7 + $0x540] sm:$0xff]
        %v596 = vld [vmem:[#allocation7 + $0x548] sm:$0xff]
        %v597 = vld [vmem:[#allocation7 + $0x550] sm:$0xff]
        %v598 = vld [vmem:[#allocation7 + $0x558] sm:$0xff]
        %v599 = vld [vmem:[#allocation7 + $0x560] sm:$0xff]
        %v600 = vld [vmem:[#allocation7 + $0x568] sm:$0xff]
        %v601 = vld [vmem:[#allocation7 + $0x570] sm:$0xff]
        %v602 = vld [vmem:[#allocation7 + $0x578] sm:$0xff]
        %v603 = vld [vmem:[#allocation7 + $0x580] sm:$0xff]
        %v604 = vld [vmem:[#allocation7 + $0x588] sm:$0xff]
        %v605 = vld [vmem:[#allocation7 + $0x590] sm:$0xff]
        %v606 = vld [vmem:[#allocation7 + $0x598] sm:$0xff]
        %v607 = vld [vmem:[#allocation7 + $0x5a0] sm:$0xff]
        %v608 = vld [vmem:[#allocation7 + $0x5a8] sm:$0xff]
        %v609 = vld [vmem:[#allocation7 + $0x5b0] sm:$0xff]
        %v610 = vld [vmem:[#allocation7 + $0x5b8] sm:$0xff]
        %v611 = vld [vmem:[#allocation7 + $0x5c0] sm:$0xff]
        %v612 = vld [vmem:[#allocation7 + $0x5c8] sm:$0xff]
        %v613 = vld [vmem:[#allocation7 + $0x5d0] sm:$0xff]
        %v614 = vld [vmem:[#allocation7 + $0x5d8] sm:$0xff]
        %v615 = vld [vmem:[#allocation7 + $0x5e0] sm:$0xff]
        %v616 = vld [vmem:[#allocation7 + $0x5e8] sm:$0xff]
        %v617 = vld [vmem:[#allocation7 + $0x5f0] sm:$0xff]
        %v618 = vld [vmem:[#allocation7 + $0x5f8] sm:$0xff]
        %v619 = vld [vmem:[#allocation7 + $0x600] sm:$0xff]
        %v620 = vld [vmem:[#allocation7 + $0x608] sm:$0xff]
        %v621 = vld [vmem:[#allocation7 + $0x610] sm:$0xff]
        %v622 = vld [vmem:[#allocation7 + $0x618] sm:$0xff]
        %v623 = vld [vmem:[#allocation7 + $0x620] sm:$0xff]
        %v624 = vld [vmem:[#allocation7 + $0x628] sm:$0xff]
        %v625 = vld [vmem:[#allocation7 + $0x630] sm:$0xff]
        %v626 = vld [vmem:[#allocation7 + $0x638] sm:$0xff]
        %v627 = vld [vmem:[#allocation7 + $0x640] sm:$0xff]
        %v628 = vld [vmem:[#allocation7 + $0x648] sm:$0xff]
        %v629 = vld [vmem:[#allocation7 + $0x650] sm:$0xff]
        %v630 = vld [vmem:[#allocation7 + $0x658] sm:$0xff]
        %v631 = vld [vmem:[#allocation7 + $0x660] sm:$0xff]
        %v632 = vld [vmem:[#allocation7 + $0x668] sm:$0xff]
        %v633 = vld [vmem:[#allocation7 + $0x670] sm:$0xff]
        %v634 = vld [vmem:[#allocation7 + $0x678] sm:$0xff]
        %v635 = vld [vmem:[#allocation7 + $0x680] sm:$0xff]
        %v636 = vld [vmem:[#allocation7 + $0x688] sm:$0xff]
        %v637 = vld [vmem:[#allocation7 + $0x690] sm:$0xff]
        %v638 = vld [vmem:[#allocation7 + $0x698] sm:$0xff]
        %v639 = vld [vmem:[#allocation7 + $0x6a0] sm:$0xff]
        %v640 = vld [vmem:[#allocation7 + $0x6a8] sm:$0xff]
        %v641 = vld [vmem:[#allocation7 + $0x6b0] sm:$0xff]
        %v642 = vld [vmem:[#allocation7 + $0x6b8] sm:$0xff]
        %v643 = vld [vmem:[#allocation7 + $0x6c0] sm:$0xff]
        %v644 = vld [vmem:[#allocation7 + $0x6c8] sm:$0xff]
        %v645 = vld [vmem:[#allocation7 + $0x6d0] sm:$0xff]
        %v646 = vld [vmem:[#allocation7 + $0x6d8] sm:$0xff]
        %v647 = vld [vmem:[#allocation7 + $0x6e0] sm:$0xff]
        %v648 = vld [vmem:[#allocation7 + $0x6e8] sm:$0xff]
        %v649 = vld [vmem:[#allocation7 + $0x6f0] sm:$0xff]
        %v650 = vld [vmem:[#allocation7 + $0x6f8] sm:$0xff]
        %v651 = vld [vmem:[#allocation7 + $0x700] sm:$0xff]
        %v652 = vld [vmem:[#allocation7 + $0x708] sm:$0xff]
        %v653 = vld [vmem:[#allocation7 + $0x710] sm:$0xff]
        %v654 = vld [vmem:[#allocation7 + $0x718] sm:$0xff]
        %v655 = vld [vmem:[#allocation7 + $0x720] sm:$0xff]
        %v656 = vld [vmem:[#allocation7 + $0x728] sm:$0xff]
        %v657 = vld [vmem:[#allocation7 + $0x730] sm:$0xff]
        %v658 = vld [vmem:[#allocation7 + $0x738] sm:$0xff]
        %v659 = vld [vmem:[#allocation7 + $0x740] sm:$0xff]
        %v660 = vld [vmem:[#allocation7 + $0x748] sm:$0xff]
        %v661 = vld [vmem:[#allocation7 + $0x750] sm:$0xff]
        %v662 = vld [vmem:[#allocation7 + $0x758] sm:$0xff]
        %v663 = vld [vmem:[#allocation7 + $0x760] sm:$0xff]
        %v664 = vld [vmem:[#allocation7 + $0x768] sm:$0xff]
        %v665 = vld [vmem:[#allocation7 + $0x770] sm:$0xff]
        %v666 = vld [vmem:[#allocation7 + $0x778] sm:$0xff]
        %v667 = vld [vmem:[#allocation7 + $0x780] sm:$0xff]
        %v668 = vld [vmem:[#allocation7 + $0x788] sm:$0xff]
        %v669 = vld [vmem:[#allocation7 + $0x790] sm:$0xff]
        %v670 = vld [vmem:[#allocation7 + $0x798] sm:$0xff]
        %v671 = vld [vmem:[#allocation7 + $0x7a0] sm:$0xff]
        %v672 = vld [vmem:[#allocation7 + $0x7a8] sm:$0xff]
        %v673 = vld [vmem:[#allocation7 + $0x7b0] sm:$0xff]
        %v674 = vld [vmem:[#allocation7 + $0x7b8] sm:$0xff]
        %v675 = vld [vmem:[#allocation7 + $0x7c0] sm:$0xff]
        %v676 = vld [vmem:[#allocation7 + $0x7c8] sm:$0xff]
        %v677 = vld [vmem:[#allocation7 + $0x7d0] sm:$0xff]
        %v678 = vld [vmem:[#allocation7 + $0x7d8] sm:$0xff]
        %v679 = vld [vmem:[#allocation7 + $0x7e0] sm:$0xff]
        %v680 = vld [vmem:[#allocation7 + $0x7e8] sm:$0xff]
        %v681 = vld [vmem:[#allocation7 + $0x7f0] sm:$0xff]
        %v682 = vld [vmem:[#allocation7 + $0x7f8] sm:$0xff]
        %v683 = vld [vmem:[#allocation7 + $0x800] sm:$0xff]
        %v684 = vld [vmem:[#allocation7 + $0x808] sm:$0xff]
        %v685 = vld [vmem:[#allocation7 + $0x810] sm:$0xff]
        %v686 = vld [vmem:[#allocation7 + $0x818] sm:$0xff]
        %v687 = vld [vmem:[#allocation7 + $0x820] sm:$0xff]
        %v688 = vld [vmem:[#allocation7 + $0x828] sm:$0xff]
        %v689 = vld [vmem:[#allocation7 + $0x830] sm:$0xff]
        %v690 = vld [vmem:[#allocation7 + $0x838] sm:$0xff]
        %v691 = vld [vmem:[#allocation7 + $0x840] sm:$0xff]
        %v692 = vld [vmem:[#allocation7 + $0x848] sm:$0xff]
        %v693 = vld [vmem:[#allocation7 + $0x850] sm:$0xff]
        %v694 = vld [vmem:[#allocation7 + $0x858] sm:$0xff]
        %v695 = vld [vmem:[#allocation7 + $0x860] sm:$0xff]
        %v696 = vld [vmem:[#allocation7 + $0x868] sm:$0xff]
        %v697 = vld [vmem:[#allocation7 + $0x870] sm:$0xff]
        %v698 = vld [vmem:[#allocation7 + $0x878] sm:$0xff]
        %v699 = vld [vmem:[#allocation7 + $0x880] sm:$0xff]
        %v700 = vld [vmem:[#allocation7 + $0x888] sm:$0xff]
        %v701 = vld [vmem:[#allocation7 + $0x890] sm:$0xff]
        %v702 = vld [vmem:[#allocation7 + $0x898] sm:$0xff]
        %v703 = vld [vmem:[#allocation7 + $0x8a0] sm:$0xff]
        %v704 = vld [vmem:[#allocation7 + $0x8a8] sm:$0xff]
        %v705 = vld [vmem:[#allocation7 + $0x8b0] sm:$0xff]
        %v706 = vld [vmem:[#allocation7 + $0x8b8] sm:$0xff]
        %v707 = vld [vmem:[#allocation7 + $0x8c0] sm:$0xff]
        %v708 = vld [vmem:[#allocation7 + $0x8c8] sm:$0xff]
        %v709 = vld [vmem:[#allocation7 + $0x8d0] sm:$0xff]
        %v710 = vld [vmem:[#allocation7 + $0x8d8] sm:$0xff]
        %v711 = vld [vmem:[#allocation7 + $0x8e0] sm:$0xff]
        %v712 = vld [vmem:[#allocation7 + $0x8e8] sm:$0xff]
        %v713 = vld [vmem:[#allocation7 + $0x8f0] sm:$0xff]
        %v714 = vld [vmem:[#allocation7 + $0x8f8] sm:$0xff]
        %v715 = vld [vmem:[#allocation7 + $0x900] sm:$0xff]
        %v716 = vld [vmem:[#allocation7 + $0x908] sm:$0xff]
        %v717 = vld [vmem:[#allocation7 + $0x910] sm:$0xff]
        %v718 = vld [vmem:[#allocation7 + $0x918] sm:$0xff]
        %v719 = vld [vmem:[#allocation7 + $0x920] sm:$0xff]
        %v720 = vld [vmem:[#allocation7 + $0x928] sm:$0xff]
        %v721 = vld [vmem:[#allocation7 + $0x930] sm:$0xff]
        %v722 = vld [vmem:[#allocation7 + $0x938] sm:$0xff]
        %v723 = vld [vmem:[#allocation7 + $0x940] sm:$0xff]
        %v724 = vld [vmem:[#allocation7 + $0x948] sm:$0xff]
        %v725 = vld [vmem:[#allocation7 + $0x950] sm:$0xff]
        %v726 = vld [vmem:[#allocation7 + $0x958] sm:$0xff]
        %v727 = vld [vmem:[#allocation7 + $0x960] sm:$0xff]
        %v728 = vld [vmem:[#allocation7 + $0x968] sm:$0xff]
        %v729 = vld [vmem:[#allocation7 + $0x970] sm:$0xff]
        %v730 = vld [vmem:[#allocation7 + $0x978] sm:$0xff]
        %v731 = vld [vmem:[#allocation7 + $0x980] sm:$0xff]
        %v732 = vld [vmem:[#allocation7 + $0x988] sm:$0xff]
        %v733 = vld [vmem:[#allocation7 + $0x990] sm:$0xff]
        %v734 = vld [vmem:[#allocation7 + $0x998] sm:$0xff]
        %v735 = vld [vmem:[#allocation7 + $0x9a0] sm:$0xff]
        %v736 = vld [vmem:[#allocation7 + $0x9a8] sm:$0xff]
        %v737 = vld [vmem:[#allocation7 + $0x9b0] sm:$0xff]
        %v738 = vld [vmem:[#allocation7 + $0x9b8] sm:$0xff]
        %v739 = vld [vmem:[#allocation7 + $0x9c0] sm:$0xff]
        %v740 = vld [vmem:[#allocation7 + $0x9c8] sm:$0xff]
        %v741 = vld [vmem:[#allocation7 + $0x9d0] sm:$0xff]
        %v742 = vld [vmem:[#allocation7 + $0x9d8] sm:$0xff]
        %v743 = vld [vmem:[#allocation7 + $0x9e0] sm:$0xff]
        %v744 = vld [vmem:[#allocation7 + $0x9e8] sm:$0xff]
        %v745 = vld [vmem:[#allocation7 + $0x9f0] sm:$0xff]
        %v746 = vld [vmem:[#allocation7 + $0x9f8] sm:$0xff]
        %v747 = vld [vmem:[#allocation7 + $0xa00] sm:$0xff]
        %v748 = vld [vmem:[#allocation7 + $0xa08] sm:$0xff]
        %v749 = vld [vmem:[#allocation7 + $0xa10] sm:$0xff]
        %v750 = vld [vmem:[#allocation7 + $0xa18] sm:$0xff]
        %v751 = vld [vmem:[#allocation7 + $0xa20] sm:$0xff]
        %v752 = vld [vmem:[#allocation7 + $0xa28] sm:$0xff]
        %v753 = vld [vmem:[#allocation7 + $0xa30] sm:$0xff]
        %v754 = vld [vmem:[#allocation7 + $0xa38] sm:$0xff]
        %v755 = vld [vmem:[#allocation7 + $0xa40] sm:$0xff]
        %v756 = vld [vmem:[#allocation7 + $0xa48] sm:$0xff]
        %v757 = vld [vmem:[#allocation7 + $0xa50] sm:$0xff]
        %v758 = vld [vmem:[#allocation7 + $0xa58] sm:$0xff]
        %v759 = vld [vmem:[#allocation7 + $0xa60] sm:$0xff]
        %v760 = vld [vmem:[#allocation7 + $0xa68] sm:$0xff]
        %v761 = vld [vmem:[#allocation7 + $0xa70] sm:$0xff]
        %v762 = vld [vmem:[#allocation7 + $0xa78] sm:$0xff]
        %v763 = vld [vmem:[#allocation7 + $0xa80] sm:$0xff]
        %v764 = vld [vmem:[#allocation7 + $0xa88] sm:$0xff]
        %v765 = vld [vmem:[#allocation7 + $0xa90] sm:$0xff]
        %v766 = vld [vmem:[#allocation7 + $0xa98] sm:$0xff]
        %v767 = vld [vmem:[#allocation7 + $0xaa0] sm:$0xff]
        %v768 = vld [vmem:[#allocation7 + $0xaa8] sm:$0xff]
        %v769 = vld [vmem:[#allocation7 + $0xab0] sm:$0xff]
        %v770 = vld [vmem:[#allocation7 + $0xab8] sm:$0xff]
        %v771 = vld [vmem:[#allocation7 + $0xac0] sm:$0xff]
        %v772 = vld [vmem:[#allocation7 + $0xac8] sm:$0xff]
        %v773 = vld [vmem:[#allocation7 + $0xad0] sm:$0xff]
        %v774 = vld [vmem:[#allocation7 + $0xad8] sm:$0xff]
        %v775 = vld [vmem:[#allocation7 + $0xae0] sm:$0xff]
        %v776 = vld [vmem:[#allocation7 + $0xae8] sm:$0xff]
        %v777 = vld [vmem:[#allocation7 + $0xaf0] sm:$0xff]
        %v778 = vld [vmem:[#allocation7 + $0xaf8] sm:$0xff]
        %v779 = vld [vmem:[#allocation7 + $0xb00] sm:$0xff]
        %v780 = vld [vmem:[#allocation7 + $0xb08] sm:$0xff]
        %v781 = vld [vmem:[#allocation7 + $0xb10] sm:$0xff]
        %v782 = vld [vmem:[#allocation7 + $0xb18] sm:$0xff]
        %v783 = vld [vmem:[#allocation7 + $0xb20] sm:$0xff]
        %v784 = vld [vmem:[#allocation7 + $0xb28] sm:$0xff]
        %v785 = vld [vmem:[#allocation7 + $0xb30] sm:$0xff]
        %v786 = vld [vmem:[#allocation7 + $0xb38] sm:$0xff]
        %v787 = vld [vmem:[#allocation7 + $0xb40] sm:$0xff]
        %v788 = vld [vmem:[#allocation7 + $0xb48] sm:$0xff]
        %v789 = vld [vmem:[#allocation7 + $0xb50] sm:$0xff]
        %v790 = vld [vmem:[#allocation7 + $0xb58] sm:$0xff]
        %v791 = vld [vmem:[#allocation7 + $0xb60] sm:$0xff]
        %v792 = vld [vmem:[#allocation7 + $0xb68] sm:$0xff]
        %v793 = vld [vmem:[#allocation7 + $0xb70] sm:$0xff]
        %v794 = vld [vmem:[#allocation7 + $0xb78] sm:$0xff]
        %v795 = vld [vmem:[#allocation7 + $0xb80] sm:$0xff]
        %v796 = vld [vmem:[#allocation7 + $0xb88] sm:$0xff]
        %v797 = vld [vmem:[#allocation7 + $0xb90] sm:$0xff]
        %v798 = vld [vmem:[#allocation7 + $0xb98] sm:$0xff]
        %v799 = vld [vmem:[#allocation7 + $0xba0] sm:$0xff]
        %v800 = vld [vmem:[#allocation7 + $0xba8] sm:$0xff]
        %v801 = vld [vmem:[#allocation7 + $0xbb0] sm:$0xff]
        %v802 = vld [vmem:[#allocation7 + $0xbb8] sm:$0xff]
        %v803 = vld [vmem:[#allocation7 + $0xbc0] sm:$0xff]
        %v804 = vld [vmem:[#allocation7 + $0xbc8] sm:$0xff]
        %v805 = vld [vmem:[#allocation7 + $0xbd0] sm:$0xff]
        %v806 = vld [vmem:[#allocation7 + $0xbd8] sm:$0xff]
        %v807 = vld [vmem:[#allocation7 + $0xbe0] sm:$0xff]
        %v808 = vld [vmem:[#allocation7 + $0xbe8] sm:$0xff]
        %v809 = vld [vmem:[#allocation7 + $0xbf0] sm:$0xff]
        %v810 = vld [vmem:[#allocation7 + $0xbf8] sm:$0xff]
        %v811 = vld [vmem:[#allocation7 + $0xc00] sm:$0xff]
        %v812 = vld [vmem:[#allocation7 + $0xc08] sm:$0xff]
        %v813 = vld [vmem:[#allocation7 + $0xc10] sm:$0xff]
        %v814 = vld [vmem:[#allocation7 + $0xc18] sm:$0xff]
        %v815 = vld [vmem:[#allocation7 + $0xc20] sm:$0xff]
        %v816 = vld [vmem:[#allocation7 + $0xc28] sm:$0xff]
        %v817 = vld [vmem:[#allocation7 + $0xc30] sm:$0xff]
        %v818 = vld [vmem:[#allocation7 + $0xc38] sm:$0xff]
        %v819 = vld [vmem:[#allocation7 + $0xc40] sm:$0xff]
        %v820 = vld [vmem:[#allocation7 + $0xc48] sm:$0xff]
        %v821 = vld [vmem:[#allocation7 + $0xc50] sm:$0xff]
        %v822 = vld [vmem:[#allocation7 + $0xc58] sm:$0xff]
        %v823 = vld [vmem:[#allocation7 + $0xc60] sm:$0xff]
        %v824 = vld [vmem:[#allocation7 + $0xc68] sm:$0xff]
        %v825 = vld [vmem:[#allocation7 + $0xc70] sm:$0xff]
        %v826 = vld [vmem:[#allocation7 + $0xc78] sm:$0xff]
        %v827 = vld [vmem:[#allocation7 + $0xc80] sm:$0xff]
        %v828 = vld [vmem:[#allocation7 + $0xc88] sm:$0xff]
        %v829 = vld [vmem:[#allocation7 + $0xc90] sm:$0xff]
        %v830 = vld [vmem:[#allocation7 + $0xc98] sm:$0xff]
        %v831 = vld [vmem:[#allocation7 + $0xca0] sm:$0xff]
        %v832 = vld [vmem:[#allocation7 + $0xca8] sm:$0xff]
        %v833 = vld [vmem:[#allocation7 + $0xcb0] sm:$0xff]
        %v834 = vld [vmem:[#allocation7 + $0xcb8] sm:$0xff]
        %v835 = vld [vmem:[#allocation7 + $0xcc0] sm:$0xff]
        %v836 = vld [vmem:[#allocation7 + $0xcc8] sm:$0xff]
        %v837 = vld [vmem:[#allocation7 + $0xcd0] sm:$0xff]
        %v838 = vld [vmem:[#allocation7 + $0xcd8] sm:$0xff]
        %v839 = vld [vmem:[#allocation7 + $0xce0] sm:$0xff]
        %v840 = vld [vmem:[#allocation7 + $0xce8] sm:$0xff]
        %v841 = vld [vmem:[#allocation7 + $0xcf0] sm:$0xff]
        %v842 = vld [vmem:[#allocation7 + $0xcf8] sm:$0xff]
        %v843 = vld [vmem:[#allocation7 + $0xd00] sm:$0xff]
        %v844 = vld [vmem:[#allocation7 + $0xd08] sm:$0xff]
        %v845 = vld [vmem:[#allocation7 + $0xd10] sm:$0xff]
        %v846 = vld [vmem:[#allocation7 + $0xd18] sm:$0xff]
        %v847 = vld [vmem:[#allocation7 + $0xd20] sm:$0xff]
        %v848 = vld [vmem:[#allocation7 + $0xd28] sm:$0xff]
        %v849 = vld [vmem:[#allocation7 + $0xd30] sm:$0xff]
        %v850 = vld [vmem:[#allocation7 + $0xd38] sm:$0xff]
        %v851 = vld [vmem:[#allocation7 + $0xd40] sm:$0xff]
        %v852 = vld [vmem:[#allocation7 + $0xd48] sm:$0xff]
        %v853 = vld [vmem:[#allocation7 + $0xd50] sm:$0xff]
        %v854 = vld [vmem:[#allocation7 + $0xd58] sm:$0xff]
        %v855 = vld [vmem:[#allocation7 + $0xd60] sm:$0xff]
        %v856 = vld [vmem:[#allocation7 + $0xd68] sm:$0xff]
        %v857 = vld [vmem:[#allocation7 + $0xd70] sm:$0xff]
        %v858 = vld [vmem:[#allocation7 + $0xd78] sm:$0xff]
        %v859 = vld [vmem:[#allocation7 + $0xd80] sm:$0xff]
        %v860 = vld [vmem:[#allocation7 + $0xd88] sm:$0xff]
        %v861 = vld [vmem:[#allocation7 + $0xd90] sm:$0xff]
        %v862 = vld [vmem:[#allocation7 + $0xd98] sm:$0xff]
        %v863 = vld [vmem:[#allocation7 + $0xda0] sm:$0xff]
        %v864 = vld [vmem:[#allocation7 + $0xda8] sm:$0xff]
        %v865 = vld [vmem:[#allocation7 + $0xdb0] sm:$0xff]
        %v866 = vld [vmem:[#allocation7 + $0xdb8] sm:$0xff]
        %v867 = vld [vmem:[#allocation7 + $0xdc0] sm:$0xff]
        %v868 = vld [vmem:[#allocation7 + $0xdc8] sm:$0xff]
        %v869 = vld [vmem:[#allocation7 + $0xdd0] sm:$0xff]
        %v870 = vld [vmem:[#allocation7 + $0xdd8] sm:$0xff]
        %v871 = vld [vmem:[#allocation7 + $0xde0] sm:$0xff]
        %v872 = vld [vmem:[#allocation7 + $0xde8] sm:$0xff]
        %v873 = vld [vmem:[#allocation7 + $0xdf0] sm:$0xff]
        %v874 = vld [vmem:[#allocation7 + $0xdf8] sm:$0xff]
        %v875 = vld [vmem:[#allocation7 + $0xe00] sm:$0xff]
        %v876 = vld [vmem:[#allocation7 + $0xe08] sm:$0xff]
        %v877 = vld [vmem:[#allocation7 + $0xe10] sm:$0xff]
        %v878 = vld [vmem:[#allocation7 + $0xe18] sm:$0xff]
        %v879 = vld [vmem:[#allocation7 + $0xe20] sm:$0xff]
        %v880 = vld [vmem:[#allocation7 + $0xe28] sm:$0xff]
        %v881 = vld [vmem:[#allocation7 + $0xe30] sm:$0xff]
        %v882 = vld [vmem:[#allocation7 + $0xe38] sm:$0xff]
        %v883 = vld [vmem:[#allocation7 + $0xe40] sm:$0xff]
        %v884 = vld [vmem:[#allocation7 + $0xe48] sm:$0xff]
        %v885 = vld [vmem:[#allocation7 + $0xe50] sm:$0xff]
        %v886 = vld [vmem:[#allocation7 + $0xe58] sm:$0xff]
        %v887 = vld [vmem:[#allocation7 + $0xe60] sm:$0xff]
        %v888 = vld [vmem:[#allocation7 + $0xe68] sm:$0xff]
        %v889 = vld [vmem:[#allocation7 + $0xe70] sm:$0xff]
        %v890 = vld [vmem:[#allocation7 + $0xe78] sm:$0xff]
        %v891 = vld [vmem:[#allocation7 + $0xe80] sm:$0xff]
        %v892 = vld [vmem:[#allocation7 + $0xe88] sm:$0xff]
        %v893 = vld [vmem:[#allocation7 + $0xe90] sm:$0xff]
        %v894 = vld [vmem:[#allocation7 + $0xe98] sm:$0xff]
        %v895 = vld [vmem:[#allocation7 + $0xea0] sm:$0xff]
        %v896 = vld [vmem:[#allocation7 + $0xea8] sm:$0xff]
        %v897 = vld [vmem:[#allocation7 + $0xeb0] sm:$0xff]
        %v898 = vld [vmem:[#allocation7 + $0xeb8] sm:$0xff]
        %v899 = vld [vmem:[#allocation7 + $0xec0] sm:$0xff]
        %v900 = vld [vmem:[#allocation7 + $0xec8] sm:$0xff]
        %v901 = vld [vmem:[#allocation7 + $0xed0] sm:$0xff]
        %v902 = vld [vmem:[#allocation7 + $0xed8] sm:$0xff]
        %v903 = vld [vmem:[#allocation7 + $0xee0] sm:$0xff]
        %v904 = vld [vmem:[#allocation7 + $0xee8] sm:$0xff]
        %v905 = vld [vmem:[#allocation7 + $0xef0] sm:$0xff]
        %v906 = vld [vmem:[#allocation7 + $0xef8] sm:$0xff]
        %v907 = vld [vmem:[#allocation7 + $0xf00] sm:$0xff]
        %v908 = vld [vmem:[#allocation7 + $0xf08] sm:$0xff]
        %v909 = vld [vmem:[#allocation7 + $0xf10] sm:$0xff]
        %v910 = vld [vmem:[#allocation7 + $0xf18] sm:$0xff]
        %v911 = vld [vmem:[#allocation7 + $0xf20] sm:$0xff]
        %v912 = vld [vmem:[#allocation7 + $0xf28] sm:$0xff]
        %v913 = vld [vmem:[#allocation7 + $0xf30] sm:$0xff]
        %v914 = vld [vmem:[#allocation7 + $0xf38] sm:$0xff]
        %v915 = vld [vmem:[#allocation7 + $0xf40] sm:$0xff]
        %v916 = vld [vmem:[#allocation7 + $0xf48] sm:$0xff]
        %v917 = vld [vmem:[#allocation7 + $0xf50] sm:$0xff]
        %v918 = vld [vmem:[#allocation7 + $0xf58] sm:$0xff]
        %v919 = vld [vmem:[#allocation7 + $0xf60] sm:$0xff]
        %v920 = vld [vmem:[#allocation7 + $0xf68] sm:$0xff]
        %v921 = vld [vmem:[#allocation7 + $0xf70] sm:$0xff]
        %v922 = vld [vmem:[#allocation7 + $0xf78] sm:$0xff]
        %v923 = vld [vmem:[#allocation7 + $0xf80] sm:$0xff]
        %v924 = vld [vmem:[#allocation7 + $0xf88] sm:$0xff]
        %v925 = vld [vmem:[#allocation7 + $0xf90] sm:$0xff]
        %v926 = vld [vmem:[#allocation7 + $0xf98] sm:$0xff]
        %v927 = vld [vmem:[#allocation7 + $0xfa0] sm:$0xff]
        %v928 = vld [vmem:[#allocation7 + $0xfa8] sm:$0xff]
        %v929 = vld [vmem:[#allocation7 + $0xfb0] sm:$0xff]
        %v930 = vld [vmem:[#allocation7 + $0xfb8] sm:$0xff]
        %v931 = vld [vmem:[#allocation7 + $0xfc0] sm:$0xff]
        %v932 = vld [vmem:[#allocation7 + $0xfc8] sm:$0xff]
        %v933 = vld [vmem:[#allocation7 + $0xfd0] sm:$0xff]
        %v934 = vld [vmem:[#allocation7 + $0xfd8] sm:$0xff]
        %v935 = vld [vmem:[#allocation7 + $0xfe0] sm:$0xff]
        %v936 = vld [vmem:[#allocation7 + $0xfe8] sm:$0xff]
        %v937 = vld [vmem:[#allocation7 + $0xff0] sm:$0xff]
        %v938 = vld [vmem:[#allocation7 + $0xff8] sm:$0xff]
        %v943 = vunpack.c.l.b16 %v423
        %v944 = vunpack.c.h.b16 %v423
        %v945 = vunpack.c.l.b16 %v424
        %v946 = vunpack.c.h.b16 %v424
        %v947 = vunpack.c.l.b16 %v425
        %v948 = vunpack.c.h.b16 %v425
        %v949 = vunpack.c.l.b16 %v426
        %v950 = vunpack.c.h.b16 %v426
        %v951 = vpack.c.b16 %v943, %v943
        %v952 = vpack.c.b16 %v944, %v944
        %v953 = vpack.c.b16 %v945, %v945
        %v954 = vpack.c.b16 %v946, %v946
        %v955 = vpack.c.b16 %v947, %v947
        %v956 = vpack.c.b16 %v948, %v948
        %v957 = vpack.c.b16 %v949, %v949
        %v958 = vpack.c.b16 %v950, %v950
        %v1479 = vunpack.c.l.b16 %v427
        %v1480 = vunpack.c.h.b16 %v427
        %v1481 = vunpack.c.l.b16 %v428
        %v1482 = vunpack.c.h.b16 %v428
        %v1483 = vunpack.c.l.b16 %v429
        %v1484 = vunpack.c.h.b16 %v429
        %v1485 = vunpack.c.l.b16 %v430
        %v1486 = vunpack.c.h.b16 %v430
        %v1487 = vunpack.c.l.b16 %v431
        %v1488 = vunpack.c.h.b16 %v431
        %v1489 = vunpack.c.l.b16 %v432
        %v1490 = vunpack.c.h.b16 %v432
        %v1491 = vunpack.c.l.b16 %v433
        %v1492 = vunpack.c.h.b16 %v433
        %v1493 = vunpack.c.l.b16 %v434
        %v1494 = vunpack.c.h.b16 %v434
        %v1495 = vunpack.c.l.b16 %v435
        %v1496 = vunpack.c.h.b16 %v435
        %v1497 = vunpack.c.l.b16 %v436
        %v1498 = vunpack.c.h.b16 %v436
        %v1499 = vunpack.c.l.b16 %v437
        %v1500 = vunpack.c.h.b16 %v437
        %v1501 = vunpack.c.l.b16 %v438
        %v1502 = vunpack.c.h.b16 %v438
        %v1503 = vunpack.c.l.b16 %v439
        %v1504 = vunpack.c.h.b16 %v439
        %v1505 = vunpack.c.l.b16 %v440
        %v1506 = vunpack.c.h.b16 %v440
        %v1507 = vunpack.c.l.b16 %v441
        %v1508 = vunpack.c.h.b16 %v441
        %v1509 = vunpack.c.l.b16 %v442
        %v1510 = vunpack.c.h.b16 %v442
        %v1511 = vunpack.c.l.b16 %v443
        %v1512 = vunpack.c.h.b16 %v443
        %v1513 = vunpack.c.l.b16 %v444
        %v1514 = vunpack.c.h.b16 %v444
        %v1515 = vunpack.c.l.b16 %v445
        %v1516 = vunpack.c.h.b16 %v445
        %v1517 = vunpack.c.l.b16 %v446
        %v1518 = vunpack.c.h.b16 %v446
        %v1519 = vunpack.c.l.b16 %v447
        %v1520 = vunpack.c.h.b16 %v447
        %v1521 = vunpack.c.l.b16 %v448
        %v1522 = vunpack.c.h.b16 %v448
        %v1523 = vunpack.c.l.b16 %v449
        %v1524 = vunpack.c.h.b16 %v449
        %v1525 = vunpack.c.l.b16 %v450
        %v1526 = vunpack.c.h.b16 %v450
        %v1527 = vunpack.c.l.b16 %v451
        %v1528 = vunpack.c.h.b16 %v451
        %v1529 = vunpack.c.l.b16 %v452
        %v1530 = vunpack.c.h.b16 %v452
        %v1531 = vunpack.c.l.b16 %v453
        %v1532 = vunpack.c.h.b16 %v453
        %v1533 = vunpack.c.l.b16 %v454
        %v1534 = vunpack.c.h.b16 %v454
        %v1535 = vunpack.c.l.b16 %v455
        %v1536 = vunpack.c.h.b16 %v455
        %v1537 = vunpack.c.l.b16 %v456
        %v1538 = vunpack.c.h.b16 %v456
        %v1539 = vunpack.c.l.b16 %v457
        %v1540 = vunpack.c.h.b16 %v457
        %v1541 = vunpack.c.l.b16 %v458
        %v1542 = vunpack.c.h.b16 %v458
        %v1543 = vunpack.c.l.b16 %v459
        %v1544 = vunpack.c.h.b16 %v459
        %v1545 = vunpack.c.l.b16 %v460
        %v1546 = vunpack.c.h.b16 %v460
        %v1547 = vunpack.c.l.b16 %v461
        %v1548 = vunpack.c.h.b16 %v461
        %v1549 = vunpack.c.l.b16 %v462
        %v1550 = vunpack.c.h.b16 %v462
        %v1551 = vunpack.c.l.b16 %v463
        %v1552 = vunpack.c.h.b16 %v463
        %v1553 = vunpack.c.l.b16 %v464
        %v1554 = vunpack.c.h.b16 %v464
        %v1555 = vunpack.c.l.b16 %v465
        %v1556 = vunpack.c.h.b16 %v465
        %v1557 = vunpack.c.l.b16 %v466
        %v1558 = vunpack.c.h.b16 %v466
        %v1559 = vunpack.c.l.b16 %v467
        %v1560 = vunpack.c.h.b16 %v467
        %v1561 = vunpack.c.l.b16 %v468
        %v1562 = vunpack.c.h.b16 %v468
        %v1563 = vunpack.c.l.b16 %v469
        %v1564 = vunpack.c.h.b16 %v469
        %v1565 = vunpack.c.l.b16 %v470
        %v1566 = vunpack.c.h.b16 %v470
        %v1567 = vunpack.c.l.b16 %v471
        %v1568 = vunpack.c.h.b16 %v471
        %v1569 = vunpack.c.l.b16 %v472
        %v1570 = vunpack.c.h.b16 %v472
        %v1571 = vunpack.c.l.b16 %v473
        %v1572 = vunpack.c.h.b16 %v473
        %v1573 = vunpack.c.l.b16 %v474
        %v1574 = vunpack.c.h.b16 %v474
        %v1575 = vunpack.c.l.b16 %v475
        %v1576 = vunpack.c.h.b16 %v475
        %v1577 = vunpack.c.l.b16 %v476
        %v1578 = vunpack.c.h.b16 %v476
        %v1579 = vunpack.c.l.b16 %v477
        %v1580 = vunpack.c.h.b16 %v477
        %v1581 = vunpack.c.l.b16 %v478
        %v1582 = vunpack.c.h.b16 %v478
        %v1583 = vunpack.c.l.b16 %v479
        %v1584 = vunpack.c.h.b16 %v479
        %v1585 = vunpack.c.l.b16 %v480
        %v1586 = vunpack.c.h.b16 %v480
        %v1587 = vunpack.c.l.b16 %v481
        %v1588 = vunpack.c.h.b16 %v481
        %v1589 = vunpack.c.l.b16 %v482
        %v1590 = vunpack.c.h.b16 %v482
        %v1591 = vunpack.c.l.b16 %v483
        %v1592 = vunpack.c.h.b16 %v483
        %v1593 = vunpack.c.l.b16 %v484
        %v1594 = vunpack.c.h.b16 %v484
        %v1595 = vunpack.c.l.b16 %v485
        %v1596 = vunpack.c.h.b16 %v485
        %v1597 = vunpack.c.l.b16 %v486
        %v1598 = vunpack.c.h.b16 %v486
        %v1599 = vunpack.c.l.b16 %v487
        %v1600 = vunpack.c.h.b16 %v487
        %v1601 = vunpack.c.l.b16 %v488
        %v1602 = vunpack.c.h.b16 %v488
        %v1603 = vunpack.c.l.b16 %v489
        %v1604 = vunpack.c.h.b16 %v489
        %v1605 = vunpack.c.l.b16 %v490
        %v1606 = vunpack.c.h.b16 %v490
        %v1607 = vunpack.c.l.b16 %v491
        %v1608 = vunpack.c.h.b16 %v491
        %v1609 = vunpack.c.l.b16 %v492
        %v1610 = vunpack.c.h.b16 %v492
        %v1611 = vunpack.c.l.b16 %v493
        %v1612 = vunpack.c.h.b16 %v493
        %v1613 = vunpack.c.l.b16 %v494
        %v1614 = vunpack.c.h.b16 %v494
        %v1615 = vunpack.c.l.b16 %v495
        %v1616 = vunpack.c.h.b16 %v495
        %v1617 = vunpack.c.l.b16 %v496
        %v1618 = vunpack.c.h.b16 %v496
        %v1619 = vunpack.c.l.b16 %v497
        %v1620 = vunpack.c.h.b16 %v497
        %v1621 = vunpack.c.l.b16 %v498
        %v1622 = vunpack.c.h.b16 %v498
        %v1623 = vunpack.c.l.b16 %v499
        %v1624 = vunpack.c.h.b16 %v499
        %v1625 = vunpack.c.l.b16 %v500
        %v1626 = vunpack.c.h.b16 %v500
        %v1627 = vunpack.c.l.b16 %v501
        %v1628 = vunpack.c.h.b16 %v501
        %v1629 = vunpack.c.l.b16 %v502
        %v1630 = vunpack.c.h.b16 %v502
        %v1631 = vunpack.c.l.b16 %v503
        %v1632 = vunpack.c.h.b16 %v503
        %v1633 = vunpack.c.l.b16 %v504
        %v1634 = vunpack.c.h.b16 %v504
        %v1635 = vunpack.c.l.b16 %v505
        %v1636 = vunpack.c.h.b16 %v505
        %v1637 = vunpack.c.l.b16 %v506
        %v1638 = vunpack.c.h.b16 %v506
        %v1639 = vunpack.c.l.b16 %v507
        %v1640 = vunpack.c.h.b16 %v507
        %v1641 = vunpack.c.l.b16 %v508
        %v1642 = vunpack.c.h.b16 %v508
        %v1643 = vunpack.c.l.b16 %v509
        %v1644 = vunpack.c.h.b16 %v509
        %v1645 = vunpack.c.l.b16 %v510
        %v1646 = vunpack.c.h.b16 %v510
        %v1647 = vunpack.c.l.b16 %v511
        %v1648 = vunpack.c.h.b16 %v511
        %v1649 = vunpack.c.l.b16 %v512
        %v1650 = vunpack.c.h.b16 %v512
        %v1651 = vunpack.c.l.b16 %v513
        %v1652 = vunpack.c.h.b16 %v513
        %v1653 = vunpack.c.l.b16 %v514
        %v1654 = vunpack.c.h.b16 %v514
        %v1655 = vunpack.c.l.b16 %v515
        %v1656 = vunpack.c.h.b16 %v515
        %v1657 = vunpack.c.l.b16 %v516
        %v1658 = vunpack.c.h.b16 %v516
        %v1659 = vunpack.c.l.b16 %v517
        %v1660 = vunpack.c.h.b16 %v517
        %v1661 = vunpack.c.l.b16 %v518
        %v1662 = vunpack.c.h.b16 %v518
        %v1663 = vunpack.c.l.b16 %v519
        %v1664 = vunpack.c.h.b16 %v519
        %v1665 = vunpack.c.l.b16 %v520
        %v1666 = vunpack.c.h.b16 %v520
        %v1667 = vunpack.c.l.b16 %v521
        %v1668 = vunpack.c.h.b16 %v521
        %v1669 = vunpack.c.l.b16 %v522
        %v1670 = vunpack.c.h.b16 %v522
        %v1671 = vunpack.c.l.b16 %v523
        %v1672 = vunpack.c.h.b16 %v523
        %v1673 = vunpack.c.l.b16 %v524
        %v1674 = vunpack.c.h.b16 %v524
        %v1675 = vunpack.c.l.b16 %v525
        %v1676 = vunpack.c.h.b16 %v525
        %v1677 = vunpack.c.l.b16 %v526
        %v1678 = vunpack.c.h.b16 %v526
        %v1679 = vunpack.c.l.b16 %v527
        %v1680 = vunpack.c.h.b16 %v527
        %v1681 = vunpack.c.l.b16 %v528
        %v1682 = vunpack.c.h.b16 %v528
        %v1683 = vunpack.c.l.b16 %v529
        %v1684 = vunpack.c.h.b16 %v529
        %v1685 = vunpack.c.l.b16 %v530
        %v1686 = vunpack.c.h.b16 %v530
        %v1687 = vunpack.c.l.b16 %v531
        %v1688 = vunpack.c.h.b16 %v531
        %v1689 = vunpack.c.l.b16 %v532
        %v1690 = vunpack.c.h.b16 %v532
        %v1691 = vunpack.c.l.b16 %v533
        %v1692 = vunpack.c.h.b16 %v533
        %v1693 = vunpack.c.l.b16 %v534
        %v1694 = vunpack.c.h.b16 %v534
        %v1695 = vunpack.c.l.b16 %v535
        %v1696 = vunpack.c.h.b16 %v535
        %v1697 = vunpack.c.l.b16 %v536
        %v1698 = vunpack.c.h.b16 %v536
        %v1699 = vunpack.c.l.b16 %v537
        %v1700 = vunpack.c.h.b16 %v537
        %v1701 = vunpack.c.l.b16 %v538
        %v1702 = vunpack.c.h.b16 %v538
        %v1703 = vunpack.c.l.b16 %v539
        %v1704 = vunpack.c.h.b16 %v539
        %v1705 = vunpack.c.l.b16 %v540
        %v1706 = vunpack.c.h.b16 %v540
        %v1707 = vunpack.c.l.b16 %v541
        %v1708 = vunpack.c.h.b16 %v541
        %v1709 = vunpack.c.l.b16 %v542
        %v1710 = vunpack.c.h.b16 %v542
        %v1711 = vunpack.c.l.b16 %v543
        %v1712 = vunpack.c.h.b16 %v543
        %v1713 = vunpack.c.l.b16 %v544
        %v1714 = vunpack.c.h.b16 %v544
        %v1715 = vunpack.c.l.b16 %v545
        %v1716 = vunpack.c.h.b16 %v545
        %v1717 = vunpack.c.l.b16 %v546
        %v1718 = vunpack.c.h.b16 %v546
        %v1719 = vunpack.c.l.b16 %v547
        %v1720 = vunpack.c.h.b16 %v547
        %v1721 = vunpack.c.l.b16 %v548
        %v1722 = vunpack.c.h.b16 %v548
        %v1723 = vunpack.c.l.b16 %v549
        %v1724 = vunpack.c.h.b16 %v549
        %v1725 = vunpack.c.l.b16 %v550
        %v1726 = vunpack.c.h.b16 %v550
        %v1727 = vunpack.c.l.b16 %v551
        %v1728 = vunpack.c.h.b16 %v551
        %v1729 = vunpack.c.l.b16 %v552
        %v1730 = vunpack.c.h.b16 %v552
        %v1731 = vunpack.c.l.b16 %v553
        %v1732 = vunpack.c.h.b16 %v553
        %v1733 = vunpack.c.l.b16 %v554
        %v1734 = vunpack.c.h.b16 %v554
        %v1735 = vunpack.c.l.b16 %v555
        %v1736 = vunpack.c.h.b16 %v555
        %v1737 = vunpack.c.l.b16 %v556
        %v1738 = vunpack.c.h.b16 %v556
        %v1739 = vunpack.c.l.b16 %v557
        %v1740 = vunpack.c.h.b16 %v557
        %v1741 = vunpack.c.l.b16 %v558
        %v1742 = vunpack.c.h.b16 %v558
        %v1743 = vunpack.c.l.b16 %v559
        %v1744 = vunpack.c.h.b16 %v559
        %v1745 = vunpack.c.l.b16 %v560
        %v1746 = vunpack.c.h.b16 %v560
        %v1747 = vunpack.c.l.b16 %v561
        %v1748 = vunpack.c.h.b16 %v561
        %v1749 = vunpack.c.l.b16 %v562
        %v1750 = vunpack.c.h.b16 %v562
        %v1751 = vunpack.c.l.b16 %v563
        %v1752 = vunpack.c.h.b16 %v563
        %v1753 = vunpack.c.l.b16 %v564
        %v1754 = vunpack.c.h.b16 %v564
        %v1755 = vunpack.c.l.b16 %v565
        %v1756 = vunpack.c.h.b16 %v565
        %v1757 = vunpack.c.l.b16 %v566
        %v1758 = vunpack.c.h.b16 %v566
        %v1759 = vunpack.c.l.b16 %v567
        %v1760 = vunpack.c.h.b16 %v567
        %v1761 = vunpack.c.l.b16 %v568
        %v1762 = vunpack.c.h.b16 %v568
        %v1763 = vunpack.c.l.b16 %v569
        %v1764 = vunpack.c.h.b16 %v569
        %v1765 = vunpack.c.l.b16 %v570
        %v1766 = vunpack.c.h.b16 %v570
        %v1767 = vunpack.c.l.b16 %v571
        %v1768 = vunpack.c.h.b16 %v571
        %v1769 = vunpack.c.l.b16 %v572
        %v1770 = vunpack.c.h.b16 %v572
        %v1771 = vunpack.c.l.b16 %v573
        %v1772 = vunpack.c.h.b16 %v573
        %v1773 = vunpack.c.l.b16 %v574
        %v1774 = vunpack.c.h.b16 %v574
        %v1775 = vunpack.c.l.b16 %v575
        %v1776 = vunpack.c.h.b16 %v575
        %v1777 = vunpack.c.l.b16 %v576
        %v1778 = vunpack.c.h.b16 %v576
        %v1779 = vunpack.c.l.b16 %v577
        %v1780 = vunpack.c.h.b16 %v577
        %v1781 = vunpack.c.l.b16 %v578
        %v1782 = vunpack.c.h.b16 %v578
        %v1783 = vunpack.c.l.b16 %v579
        %v1784 = vunpack.c.h.b16 %v579
        %v1785 = vunpack.c.l.b16 %v580
        %v1786 = vunpack.c.h.b16 %v580
        %v1787 = vunpack.c.l.b16 %v581
        %v1788 = vunpack.c.h.b16 %v581
        %v1789 = vunpack.c.l.b16 %v582
        %v1790 = vunpack.c.h.b16 %v582
        %v1791 = vunpack.c.l.b16 %v583
        %v1792 = vunpack.c.h.b16 %v583
        %v1793 = vunpack.c.l.b16 %v584
        %v1794 = vunpack.c.h.b16 %v584
        %v1795 = vunpack.c.l.b16 %v585
        %v1796 = vunpack.c.h.b16 %v585
        %v1797 = vunpack.c.l.b16 %v586
        %v1798 = vunpack.c.h.b16 %v586
        %v1799 = vunpack.c.l.b16 %v587
        %v1800 = vunpack.c.h.b16 %v587
        %v1801 = vunpack.c.l.b16 %v588
        %v1802 = vunpack.c.h.b16 %v588
        %v1803 = vunpack.c.l.b16 %v589
        %v1804 = vunpack.c.h.b16 %v589
        %v1805 = vunpack.c.l.b16 %v590
        %v1806 = vunpack.c.h.b16 %v590
        %v1807 = vunpack.c.l.b16 %v591
        %v1808 = vunpack.c.h.b16 %v591
        %v1809 = vunpack.c.l.b16 %v592
        %v1810 = vunpack.c.h.b16 %v592
        %v1811 = vunpack.c.l.b16 %v593
        %v1812 = vunpack.c.h.b16 %v593
        %v1813 = vunpack.c.l.b16 %v594
        %v1814 = vunpack.c.h.b16 %v594
        %v1815 = vunpack.c.l.b16 %v595
        %v1816 = vunpack.c.h.b16 %v595
        %v1817 = vunpack.c.l.b16 %v596
        %v1818 = vunpack.c.h.b16 %v596
        %v1819 = vunpack.c.l.b16 %v597
        %v1820 = vunpack.c.h.b16 %v597
        %v1821 = vunpack.c.l.b16 %v598
        %v1822 = vunpack.c.h.b16 %v598
        %v1823 = vunpack.c.l.b16 %v599
        %v1824 = vunpack.c.h.b16 %v599
        %v1825 = vunpack.c.l.b16 %v600
        %v1826 = vunpack.c.h.b16 %v600
        %v1827 = vunpack.c.l.b16 %v601
        %v1828 = vunpack.c.h.b16 %v601
        %v1829 = vunpack.c.l.b16 %v602
        %v1830 = vunpack.c.h.b16 %v602
        %v1831 = vunpack.c.l.b16 %v603
        %v1832 = vunpack.c.h.b16 %v603
        %v1833 = vunpack.c.l.b16 %v604
        %v1834 = vunpack.c.h.b16 %v604
        %v1835 = vunpack.c.l.b16 %v605
        %v1836 = vunpack.c.h.b16 %v605
        %v1837 = vunpack.c.l.b16 %v606
        %v1838 = vunpack.c.h.b16 %v606
        %v1839 = vunpack.c.l.b16 %v607
        %v1840 = vunpack.c.h.b16 %v607
        %v1841 = vunpack.c.l.b16 %v608
        %v1842 = vunpack.c.h.b16 %v608
        %v1843 = vunpack.c.l.b16 %v609
        %v1844 = vunpack.c.h.b16 %v609
        %v1845 = vunpack.c.l.b16 %v610
        %v1846 = vunpack.c.h.b16 %v610
        %v1847 = vunpack.c.l.b16 %v611
        %v1848 = vunpack.c.h.b16 %v611
        %v1849 = vunpack.c.l.b16 %v612
        %v1850 = vunpack.c.h.b16 %v612
        %v1851 = vunpack.c.l.b16 %v613
        %v1852 = vunpack.c.h.b16 %v613
        %v1853 = vunpack.c.l.b16 %v614
        %v1854 = vunpack.c.h.b16 %v614
        %v1855 = vunpack.c.l.b16 %v615
        %v1856 = vunpack.c.h.b16 %v615
        %v1857 = vunpack.c.l.b16 %v616
        %v1858 = vunpack.c.h.b16 %v616
        %v1859 = vunpack.c.l.b16 %v617
        %v1860 = vunpack.c.h.b16 %v617
        %v1861 = vunpack.c.l.b16 %v618
        %v1862 = vunpack.c.h.b16 %v618
        %v1863 = vunpack.c.l.b16 %v619
        %v1864 = vunpack.c.h.b16 %v619
        %v1865 = vunpack.c.l.b16 %v620
        %v1866 = vunpack.c.h.b16 %v620
        %v1867 = vunpack.c.l.b16 %v621
        %v1868 = vunpack.c.h.b16 %v621
        %v1869 = vunpack.c.l.b16 %v622
        %v1870 = vunpack.c.h.b16 %v622
        %v1871 = vunpack.c.l.b16 %v623
        %v1872 = vunpack.c.h.b16 %v623
        %v1873 = vunpack.c.l.b16 %v624
        %v1874 = vunpack.c.h.b16 %v624
        %v1875 = vunpack.c.l.b16 %v625
        %v1876 = vunpack.c.h.b16 %v625
        %v1877 = vunpack.c.l.b16 %v626
        %v1878 = vunpack.c.h.b16 %v626
        %v1879 = vunpack.c.l.b16 %v627
        %v1880 = vunpack.c.h.b16 %v627
        %v1881 = vunpack.c.l.b16 %v628
        %v1882 = vunpack.c.h.b16 %v628
        %v1883 = vunpack.c.l.b16 %v629
        %v1884 = vunpack.c.h.b16 %v629
        %v1885 = vunpack.c.l.b16 %v630
        %v1886 = vunpack.c.h.b16 %v630
        %v1887 = vunpack.c.l.b16 %v631
        %v1888 = vunpack.c.h.b16 %v631
        %v1889 = vunpack.c.l.b16 %v632
        %v1890 = vunpack.c.h.b16 %v632
        %v1891 = vunpack.c.l.b16 %v633
        %v1892 = vunpack.c.h.b16 %v633
        %v1893 = vunpack.c.l.b16 %v634
        %v1894 = vunpack.c.h.b16 %v634
        %v1895 = vunpack.c.l.b16 %v635
        %v1896 = vunpack.c.h.b16 %v635
        %v1897 = vunpack.c.l.b16 %v636
        %v1898 = vunpack.c.h.b16 %v636
        %v1899 = vunpack.c.l.b16 %v637
        %v1900 = vunpack.c.h.b16 %v637
        %v1901 = vunpack.c.l.b16 %v638
        %v1902 = vunpack.c.h.b16 %v638
        %v1903 = vunpack.c.l.b16 %v639
        %v1904 = vunpack.c.h.b16 %v639
        %v1905 = vunpack.c.l.b16 %v640
        %v1906 = vunpack.c.h.b16 %v640
        %v1907 = vunpack.c.l.b16 %v641
        %v1908 = vunpack.c.h.b16 %v641
        %v1909 = vunpack.c.l.b16 %v642
        %v1910 = vunpack.c.h.b16 %v642
        %v1911 = vunpack.c.l.b16 %v643
        %v1912 = vunpack.c.h.b16 %v643
        %v1913 = vunpack.c.l.b16 %v644
        %v1914 = vunpack.c.h.b16 %v644
        %v1915 = vunpack.c.l.b16 %v645
        %v1916 = vunpack.c.h.b16 %v645
        %v1917 = vunpack.c.l.b16 %v646
        %v1918 = vunpack.c.h.b16 %v646
        %v1919 = vunpack.c.l.b16 %v647
        %v1920 = vunpack.c.h.b16 %v647
        %v1921 = vunpack.c.l.b16 %v648
        %v1922 = vunpack.c.h.b16 %v648
        %v1923 = vunpack.c.l.b16 %v649
        %v1924 = vunpack.c.h.b16 %v649
        %v1925 = vunpack.c.l.b16 %v650
        %v1926 = vunpack.c.h.b16 %v650
        %v1927 = vunpack.c.l.b16 %v651
        %v1928 = vunpack.c.h.b16 %v651
        %v1929 = vunpack.c.l.b16 %v652
        %v1930 = vunpack.c.h.b16 %v652
        %v1931 = vunpack.c.l.b16 %v653
        %v1932 = vunpack.c.h.b16 %v653
        %v1933 = vunpack.c.l.b16 %v654
        %v1934 = vunpack.c.h.b16 %v654
        %v1935 = vunpack.c.l.b16 %v655
        %v1936 = vunpack.c.h.b16 %v655
        %v1937 = vunpack.c.l.b16 %v656
        %v1938 = vunpack.c.h.b16 %v656
        %v1939 = vunpack.c.l.b16 %v657
        %v1940 = vunpack.c.h.b16 %v657
        %v1941 = vunpack.c.l.b16 %v658
        %v1942 = vunpack.c.h.b16 %v658
        %v1943 = vunpack.c.l.b16 %v659
        %v1944 = vunpack.c.h.b16 %v659
        %v1945 = vunpack.c.l.b16 %v660
        %v1946 = vunpack.c.h.b16 %v660
        %v1947 = vunpack.c.l.b16 %v661
        %v1948 = vunpack.c.h.b16 %v661
        %v1949 = vunpack.c.l.b16 %v662
        %v1950 = vunpack.c.h.b16 %v662
        %v1951 = vunpack.c.l.b16 %v663
        %v1952 = vunpack.c.h.b16 %v663
        %v1953 = vunpack.c.l.b16 %v664
        %v1954 = vunpack.c.h.b16 %v664
        %v1955 = vunpack.c.l.b16 %v665
        %v1956 = vunpack.c.h.b16 %v665
        %v1957 = vunpack.c.l.b16 %v666
        %v1958 = vunpack.c.h.b16 %v666
        %v1959 = vunpack.c.l.b16 %v667
        %v1960 = vunpack.c.h.b16 %v667
        %v1961 = vunpack.c.l.b16 %v668
        %v1962 = vunpack.c.h.b16 %v668
        %v1963 = vunpack.c.l.b16 %v669
        %v1964 = vunpack.c.h.b16 %v669
        %v1965 = vunpack.c.l.b16 %v670
        %v1966 = vunpack.c.h.b16 %v670
        %v1967 = vunpack.c.l.b16 %v671
        %v1968 = vunpack.c.h.b16 %v671
        %v1969 = vunpack.c.l.b16 %v672
        %v1970 = vunpack.c.h.b16 %v672
        %v1971 = vunpack.c.l.b16 %v673
        %v1972 = vunpack.c.h.b16 %v673
        %v1973 = vunpack.c.l.b16 %v674
        %v1974 = vunpack.c.h.b16 %v674
        %v1975 = vunpack.c.l.b16 %v675
        %v1976 = vunpack.c.h.b16 %v675
        %v1977 = vunpack.c.l.b16 %v676
        %v1978 = vunpack.c.h.b16 %v676
        %v1979 = vunpack.c.l.b16 %v677
        %v1980 = vunpack.c.h.b16 %v677
        %v1981 = vunpack.c.l.b16 %v678
        %v1982 = vunpack.c.h.b16 %v678
        %v1983 = vunpack.c.l.b16 %v679
        %v1984 = vunpack.c.h.b16 %v679
        %v1985 = vunpack.c.l.b16 %v680
        %v1986 = vunpack.c.h.b16 %v680
        %v1987 = vunpack.c.l.b16 %v681
        %v1988 = vunpack.c.h.b16 %v681
        %v1989 = vunpack.c.l.b16 %v682
        %v1990 = vunpack.c.h.b16 %v682
        %v1991 = vunpack.c.l.b16 %v683
        %v1992 = vunpack.c.h.b16 %v683
        %v1993 = vunpack.c.l.b16 %v684
        %v1994 = vunpack.c.h.b16 %v684
        %v1995 = vunpack.c.l.b16 %v685
        %v1996 = vunpack.c.h.b16 %v685
        %v1997 = vunpack.c.l.b16 %v686
        %v1998 = vunpack.c.h.b16 %v686
        %v1999 = vunpack.c.l.b16 %v687
        %v2000 = vunpack.c.h.b16 %v687
        %v2001 = vunpack.c.l.b16 %v688
        %v2002 = vunpack.c.h.b16 %v688
        %v2003 = vunpack.c.l.b16 %v689
        %v2004 = vunpack.c.h.b16 %v689
        %v2005 = vunpack.c.l.b16 %v690
        %v2006 = vunpack.c.h.b16 %v690
        %v2007 = vunpack.c.l.b16 %v691
        %v2008 = vunpack.c.h.b16 %v691
        %v2009 = vunpack.c.l.b16 %v692
        %v2010 = vunpack.c.h.b16 %v692
        %v2011 = vunpack.c.l.b16 %v693
        %v2012 = vunpack.c.h.b16 %v693
        %v2013 = vunpack.c.l.b16 %v694
        %v2014 = vunpack.c.h.b16 %v694
        %v2015 = vunpack.c.l.b16 %v695
        %v2016 = vunpack.c.h.b16 %v695
        %v2017 = vunpack.c.l.b16 %v696
        %v2018 = vunpack.c.h.b16 %v696
        %v2019 = vunpack.c.l.b16 %v697
        %v2020 = vunpack.c.h.b16 %v697
        %v2021 = vunpack.c.l.b16 %v698
        %v2022 = vunpack.c.h.b16 %v698
        %v2023 = vunpack.c.l.b16 %v699
        %v2024 = vunpack.c.h.b16 %v699
        %v2025 = vunpack.c.l.b16 %v700
        %v2026 = vunpack.c.h.b16 %v700
        %v2027 = vunpack.c.l.b16 %v701
        %v2028 = vunpack.c.h.b16 %v701
        %v2029 = vunpack.c.l.b16 %v702
        %v2030 = vunpack.c.h.b16 %v702
        %v2031 = vunpack.c.l.b16 %v703
        %v2032 = vunpack.c.h.b16 %v703
        %v2033 = vunpack.c.l.b16 %v704
        %v2034 = vunpack.c.h.b16 %v704
        %v2035 = vunpack.c.l.b16 %v705
        %v2036 = vunpack.c.h.b16 %v705
        %v2037 = vunpack.c.l.b16 %v706
        %v2038 = vunpack.c.h.b16 %v706
        %v2039 = vunpack.c.l.b16 %v707
        %v2040 = vunpack.c.h.b16 %v707
        %v2041 = vunpack.c.l.b16 %v708
        %v2042 = vunpack.c.h.b16 %v708
        %v2043 = vunpack.c.l.b16 %v709
        %v2044 = vunpack.c.h.b16 %v709
        %v2045 = vunpack.c.l.b16 %v710
        %v2046 = vunpack.c.h.b16 %v710
        %v2047 = vunpack.c.l.b16 %v711
        %v2048 = vunpack.c.h.b16 %v711
        %v2049 = vunpack.c.l.b16 %v712
        %v2050 = vunpack.c.h.b16 %v712
        %v2051 = vunpack.c.l.b16 %v713
        %v2052 = vunpack.c.h.b16 %v713
        %v2053 = vunpack.c.l.b16 %v714
        %v2054 = vunpack.c.h.b16 %v714
        %v2055 = vunpack.c.l.b16 %v715
        %v2056 = vunpack.c.h.b16 %v715
        %v2057 = vunpack.c.l.b16 %v716
        %v2058 = vunpack.c.h.b16 %v716
        %v2059 = vunpack.c.l.b16 %v717
        %v2060 = vunpack.c.h.b16 %v717
        %v2061 = vunpack.c.l.b16 %v718
        %v2062 = vunpack.c.h.b16 %v718
        %v2063 = vunpack.c.l.b16 %v719
        %v2064 = vunpack.c.h.b16 %v719
        %v2065 = vunpack.c.l.b16 %v720
        %v2066 = vunpack.c.h.b16 %v720
        %v2067 = vunpack.c.l.b16 %v721
        %v2068 = vunpack.c.h.b16 %v721
        %v2069 = vunpack.c.l.b16 %v722
        %v2070 = vunpack.c.h.b16 %v722
        %v2071 = vunpack.c.l.b16 %v723
        %v2072 = vunpack.c.h.b16 %v723
        %v2073 = vunpack.c.l.b16 %v724
        %v2074 = vunpack.c.h.b16 %v724
        %v2075 = vunpack.c.l.b16 %v725
        %v2076 = vunpack.c.h.b16 %v725
        %v2077 = vunpack.c.l.b16 %v726
        %v2078 = vunpack.c.h.b16 %v726
        %v2079 = vunpack.c.l.b16 %v727
        %v2080 = vunpack.c.h.b16 %v727
        %v2081 = vunpack.c.l.b16 %v728
        %v2082 = vunpack.c.h.b16 %v728
        %v2083 = vunpack.c.l.b16 %v729
        %v2084 = vunpack.c.h.b16 %v729
        %v2085 = vunpack.c.l.b16 %v730
        %v2086 = vunpack.c.h.b16 %v730
        %v2087 = vunpack.c.l.b16 %v731
        %v2088 = vunpack.c.h.b16 %v731
        %v2089 = vunpack.c.l.b16 %v732
        %v2090 = vunpack.c.h.b16 %v732
        %v2091 = vunpack.c.l.b16 %v733
        %v2092 = vunpack.c.h.b16 %v733
        %v2093 = vunpack.c.l.b16 %v734
        %v2094 = vunpack.c.h.b16 %v734
        %v2095 = vunpack.c.l.b16 %v735
        %v2096 = vunpack.c.h.b16 %v735
        %v2097 = vunpack.c.l.b16 %v736
        %v2098 = vunpack.c.h.b16 %v736
        %v2099 = vunpack.c.l.b16 %v737
        %v2100 = vunpack.c.h.b16 %v737
        %v2101 = vunpack.c.l.b16 %v738
        %v2102 = vunpack.c.h.b16 %v738
        %v2103 = vunpack.c.l.b16 %v739
        %v2104 = vunpack.c.h.b16 %v739
        %v2105 = vunpack.c.l.b16 %v740
        %v2106 = vunpack.c.h.b16 %v740
        %v2107 = vunpack.c.l.b16 %v741
        %v2108 = vunpack.c.h.b16 %v741
        %v2109 = vunpack.c.l.b16 %v742
        %v2110 = vunpack.c.h.b16 %v742
        %v2111 = vunpack.c.l.b16 %v743
        %v2112 = vunpack.c.h.b16 %v743
        %v2113 = vunpack.c.l.b16 %v744
        %v2114 = vunpack.c.h.b16 %v744
        %v2115 = vunpack.c.l.b16 %v745
        %v2116 = vunpack.c.h.b16 %v745
        %v2117 = vunpack.c.l.b16 %v746
        %v2118 = vunpack.c.h.b16 %v746
        %v2119 = vunpack.c.l.b16 %v747
        %v2120 = vunpack.c.h.b16 %v747
        %v2121 = vunpack.c.l.b16 %v748
        %v2122 = vunpack.c.h.b16 %v748
        %v2123 = vunpack.c.l.b16 %v749
        %v2124 = vunpack.c.h.b16 %v749
        %v2125 = vunpack.c.l.b16 %v750
        %v2126 = vunpack.c.h.b16 %v750
        %v2127 = vunpack.c.l.b16 %v751
        %v2128 = vunpack.c.h.b16 %v751
        %v2129 = vunpack.c.l.b16 %v752
        %v2130 = vunpack.c.h.b16 %v752
        %v2131 = vunpack.c.l.b16 %v753
        %v2132 = vunpack.c.h.b16 %v753
        %v2133 = vunpack.c.l.b16 %v754
        %v2134 = vunpack.c.h.b16 %v754
        %v2135 = vunpack.c.l.b16 %v755
        %v2136 = vunpack.c.h.b16 %v755
        %v2137 = vunpack.c.l.b16 %v756
        %v2138 = vunpack.c.h.b16 %v756
        %v2139 = vunpack.c.l.b16 %v757
        %v2140 = vunpack.c.h.b16 %v757
        %v2141 = vunpack.c.l.b16 %v758
        %v2142 = vunpack.c.h.b16 %v758
        %v2143 = vunpack.c.l.b16 %v759
        %v2144 = vunpack.c.h.b16 %v759
        %v2145 = vunpack.c.l.b16 %v760
        %v2146 = vunpack.c.h.b16 %v760
        %v2147 = vunpack.c.l.b16 %v761
        %v2148 = vunpack.c.h.b16 %v761
        %v2149 = vunpack.c.l.b16 %v762
        %v2150 = vunpack.c.h.b16 %v762
        %v2151 = vunpack.c.l.b16 %v763
        %v2152 = vunpack.c.h.b16 %v763
        %v2153 = vunpack.c.l.b16 %v764
        %v2154 = vunpack.c.h.b16 %v764
        %v2155 = vunpack.c.l.b16 %v765
        %v2156 = vunpack.c.h.b16 %v765
        %v2157 = vunpack.c.l.b16 %v766
        %v2158 = vunpack.c.h.b16 %v766
        %v2159 = vunpack.c.l.b16 %v767
        %v2160 = vunpack.c.h.b16 %v767
        %v2161 = vunpack.c.l.b16 %v768
        %v2162 = vunpack.c.h.b16 %v768
        %v2163 = vunpack.c.l.b16 %v769
        %v2164 = vunpack.c.h.b16 %v769
        %v2165 = vunpack.c.l.b16 %v770
        %v2166 = vunpack.c.h.b16 %v770
        %v2167 = vunpack.c.l.b16 %v771
        %v2168 = vunpack.c.h.b16 %v771
        %v2169 = vunpack.c.l.b16 %v772
        %v2170 = vunpack.c.h.b16 %v772
        %v2171 = vunpack.c.l.b16 %v773
        %v2172 = vunpack.c.h.b16 %v773
        %v2173 = vunpack.c.l.b16 %v774
        %v2174 = vunpack.c.h.b16 %v774
        %v2175 = vunpack.c.l.b16 %v775
        %v2176 = vunpack.c.h.b16 %v775
        %v2177 = vunpack.c.l.b16 %v776
        %v2178 = vunpack.c.h.b16 %v776
        %v2179 = vunpack.c.l.b16 %v777
        %v2180 = vunpack.c.h.b16 %v777
        %v2181 = vunpack.c.l.b16 %v778
        %v2182 = vunpack.c.h.b16 %v778
        %v2183 = vunpack.c.l.b16 %v779
        %v2184 = vunpack.c.h.b16 %v779
        %v2185 = vunpack.c.l.b16 %v780
        %v2186 = vunpack.c.h.b16 %v780
        %v2187 = vunpack.c.l.b16 %v781
        %v2188 = vunpack.c.h.b16 %v781
        %v2189 = vunpack.c.l.b16 %v782
        %v2190 = vunpack.c.h.b16 %v782
        %v2191 = vunpack.c.l.b16 %v783
        %v2192 = vunpack.c.h.b16 %v783
        %v2193 = vunpack.c.l.b16 %v784
        %v2194 = vunpack.c.h.b16 %v784
        %v2195 = vunpack.c.l.b16 %v785
        %v2196 = vunpack.c.h.b16 %v785
        %v2197 = vunpack.c.l.b16 %v786
        %v2198 = vunpack.c.h.b16 %v786
        %v2199 = vunpack.c.l.b16 %v787
        %v2200 = vunpack.c.h.b16 %v787
        %v2201 = vunpack.c.l.b16 %v788
        %v2202 = vunpack.c.h.b16 %v788
        %v2203 = vunpack.c.l.b16 %v789
        %v2204 = vunpack.c.h.b16 %v789
        %v2205 = vunpack.c.l.b16 %v790
        %v2206 = vunpack.c.h.b16 %v790
        %v2207 = vunpack.c.l.b16 %v791
        %v2208 = vunpack.c.h.b16 %v791
        %v2209 = vunpack.c.l.b16 %v792
        %v2210 = vunpack.c.h.b16 %v792
        %v2211 = vunpack.c.l.b16 %v793
        %v2212 = vunpack.c.h.b16 %v793
        %v2213 = vunpack.c.l.b16 %v794
        %v2214 = vunpack.c.h.b16 %v794
        %v2215 = vunpack.c.l.b16 %v795
        %v2216 = vunpack.c.h.b16 %v795
        %v2217 = vunpack.c.l.b16 %v796
        %v2218 = vunpack.c.h.b16 %v796
        %v2219 = vunpack.c.l.b16 %v797
        %v2220 = vunpack.c.h.b16 %v797
        %v2221 = vunpack.c.l.b16 %v798
        %v2222 = vunpack.c.h.b16 %v798
        %v2223 = vunpack.c.l.b16 %v799
        %v2224 = vunpack.c.h.b16 %v799
        %v2225 = vunpack.c.l.b16 %v800
        %v2226 = vunpack.c.h.b16 %v800
        %v2227 = vunpack.c.l.b16 %v801
        %v2228 = vunpack.c.h.b16 %v801
        %v2229 = vunpack.c.l.b16 %v802
        %v2230 = vunpack.c.h.b16 %v802
        %v2231 = vunpack.c.l.b16 %v803
        %v2232 = vunpack.c.h.b16 %v803
        %v2233 = vunpack.c.l.b16 %v804
        %v2234 = vunpack.c.h.b16 %v804
        %v2235 = vunpack.c.l.b16 %v805
        %v2236 = vunpack.c.h.b16 %v805
        %v2237 = vunpack.c.l.b16 %v806
        %v2238 = vunpack.c.h.b16 %v806
        %v2239 = vunpack.c.l.b16 %v807
        %v2240 = vunpack.c.h.b16 %v807
        %v2241 = vunpack.c.l.b16 %v808
        %v2242 = vunpack.c.h.b16 %v808
        %v2243 = vunpack.c.l.b16 %v809
        %v2244 = vunpack.c.h.b16 %v809
        %v2245 = vunpack.c.l.b16 %v810
        %v2246 = vunpack.c.h.b16 %v810
        %v2247 = vunpack.c.l.b16 %v811
        %v2248 = vunpack.c.h.b16 %v811
        %v2249 = vunpack.c.l.b16 %v812
        %v2250 = vunpack.c.h.b16 %v812
        %v2251 = vunpack.c.l.b16 %v813
        %v2252 = vunpack.c.h.b16 %v813
        %v2253 = vunpack.c.l.b16 %v814
        %v2254 = vunpack.c.h.b16 %v814
        %v2255 = vunpack.c.l.b16 %v815
        %v2256 = vunpack.c.h.b16 %v815
        %v2257 = vunpack.c.l.b16 %v816
        %v2258 = vunpack.c.h.b16 %v816
        %v2259 = vunpack.c.l.b16 %v817
        %v2260 = vunpack.c.h.b16 %v817
        %v2261 = vunpack.c.l.b16 %v818
        %v2262 = vunpack.c.h.b16 %v818
        %v2263 = vunpack.c.l.b16 %v819
        %v2264 = vunpack.c.h.b16 %v819
        %v2265 = vunpack.c.l.b16 %v820
        %v2266 = vunpack.c.h.b16 %v820
        %v2267 = vunpack.c.l.b16 %v821
        %v2268 = vunpack.c.h.b16 %v821
        %v2269 = vunpack.c.l.b16 %v822
        %v2270 = vunpack.c.h.b16 %v822
        %v2271 = vunpack.c.l.b16 %v823
        %v2272 = vunpack.c.h.b16 %v823
        %v2273 = vunpack.c.l.b16 %v824
        %v2274 = vunpack.c.h.b16 %v824
        %v2275 = vunpack.c.l.b16 %v825
        %v2276 = vunpack.c.h.b16 %v825
        %v2277 = vunpack.c.l.b16 %v826
        %v2278 = vunpack.c.h.b16 %v826
        %v2279 = vunpack.c.l.b16 %v827
        %v2280 = vunpack.c.h.b16 %v827
        %v2281 = vunpack.c.l.b16 %v828
        %v2282 = vunpack.c.h.b16 %v828
        %v2283 = vunpack.c.l.b16 %v829
        %v2284 = vunpack.c.h.b16 %v829
        %v2285 = vunpack.c.l.b16 %v830
        %v2286 = vunpack.c.h.b16 %v830
        %v2287 = vunpack.c.l.b16 %v831
        %v2288 = vunpack.c.h.b16 %v831
        %v2289 = vunpack.c.l.b16 %v832
        %v2290 = vunpack.c.h.b16 %v832
        %v2291 = vunpack.c.l.b16 %v833
        %v2292 = vunpack.c.h.b16 %v833
        %v2293 = vunpack.c.l.b16 %v834
        %v2294 = vunpack.c.h.b16 %v834
        %v2295 = vunpack.c.l.b16 %v835
        %v2296 = vunpack.c.h.b16 %v835
        %v2297 = vunpack.c.l.b16 %v836
        %v2298 = vunpack.c.h.b16 %v836
        %v2299 = vunpack.c.l.b16 %v837
        %v2300 = vunpack.c.h.b16 %v837
        %v2301 = vunpack.c.l.b16 %v838
        %v2302 = vunpack.c.h.b16 %v838
        %v2303 = vunpack.c.l.b16 %v839
        %v2304 = vunpack.c.h.b16 %v839
        %v2305 = vunpack.c.l.b16 %v840
        %v2306 = vunpack.c.h.b16 %v840
        %v2307 = vunpack.c.l.b16 %v841
        %v2308 = vunpack.c.h.b16 %v841
        %v2309 = vunpack.c.l.b16 %v842
        %v2310 = vunpack.c.h.b16 %v842
        %v2311 = vunpack.c.l.b16 %v843
        %v2312 = vunpack.c.h.b16 %v843
        %v2313 = vunpack.c.l.b16 %v844
        %v2314 = vunpack.c.h.b16 %v844
        %v2315 = vunpack.c.l.b16 %v845
        %v2316 = vunpack.c.h.b16 %v845
        %v2317 = vunpack.c.l.b16 %v846
        %v2318 = vunpack.c.h.b16 %v846
        %v2319 = vunpack.c.l.b16 %v847
        %v2320 = vunpack.c.h.b16 %v847
        %v2321 = vunpack.c.l.b16 %v848
        %v2322 = vunpack.c.h.b16 %v848
        %v2323 = vunpack.c.l.b16 %v849
        %v2324 = vunpack.c.h.b16 %v849
        %v2325 = vunpack.c.l.b16 %v850
        %v2326 = vunpack.c.h.b16 %v850
        %v2327 = vunpack.c.l.b16 %v851
        %v2328 = vunpack.c.h.b16 %v851
        %v2329 = vunpack.c.l.b16 %v852
        %v2330 = vunpack.c.h.b16 %v852
        %v2331 = vunpack.c.l.b16 %v853
        %v2332 = vunpack.c.h.b16 %v853
        %v2333 = vunpack.c.l.b16 %v854
        %v2334 = vunpack.c.h.b16 %v854
        %v2335 = vunpack.c.l.b16 %v855
        %v2336 = vunpack.c.h.b16 %v855
        %v2337 = vunpack.c.l.b16 %v856
        %v2338 = vunpack.c.h.b16 %v856
        %v2339 = vunpack.c.l.b16 %v857
        %v2340 = vunpack.c.h.b16 %v857
        %v2341 = vunpack.c.l.b16 %v858
        %v2342 = vunpack.c.h.b16 %v858
        %v2343 = vunpack.c.l.b16 %v859
        %v2344 = vunpack.c.h.b16 %v859
        %v2345 = vunpack.c.l.b16 %v860
        %v2346 = vunpack.c.h.b16 %v860
        %v2347 = vunpack.c.l.b16 %v861
        %v2348 = vunpack.c.h.b16 %v861
        %v2349 = vunpack.c.l.b16 %v862
        %v2350 = vunpack.c.h.b16 %v862
        %v2351 = vunpack.c.l.b16 %v863
        %v2352 = vunpack.c.h.b16 %v863
        %v2353 = vunpack.c.l.b16 %v864
        %v2354 = vunpack.c.h.b16 %v864
        %v2355 = vunpack.c.l.b16 %v865
        %v2356 = vunpack.c.h.b16 %v865
        %v2357 = vunpack.c.l.b16 %v866
        %v2358 = vunpack.c.h.b16 %v866
        %v2359 = vunpack.c.l.b16 %v867
        %v2360 = vunpack.c.h.b16 %v867
        %v2361 = vunpack.c.l.b16 %v868
        %v2362 = vunpack.c.h.b16 %v868
        %v2363 = vunpack.c.l.b16 %v869
        %v2364 = vunpack.c.h.b16 %v869
        %v2365 = vunpack.c.l.b16 %v870
        %v2366 = vunpack.c.h.b16 %v870
        %v2367 = vunpack.c.l.b16 %v871
        %v2368 = vunpack.c.h.b16 %v871
        %v2369 = vunpack.c.l.b16 %v872
        %v2370 = vunpack.c.h.b16 %v872
        %v2371 = vunpack.c.l.b16 %v873
        %v2372 = vunpack.c.h.b16 %v873
        %v2373 = vunpack.c.l.b16 %v874
        %v2374 = vunpack.c.h.b16 %v874
        %v2375 = vunpack.c.l.b16 %v875
        %v2376 = vunpack.c.h.b16 %v875
        %v2377 = vunpack.c.l.b16 %v876
        %v2378 = vunpack.c.h.b16 %v876
        %v2379 = vunpack.c.l.b16 %v877
        %v2380 = vunpack.c.h.b16 %v877
        %v2381 = vunpack.c.l.b16 %v878
        %v2382 = vunpack.c.h.b16 %v878
        %v2383 = vunpack.c.l.b16 %v879
        %v2384 = vunpack.c.h.b16 %v879
        %v2385 = vunpack.c.l.b16 %v880
        %v2386 = vunpack.c.h.b16 %v880
        %v2387 = vunpack.c.l.b16 %v881
        %v2388 = vunpack.c.h.b16 %v881
        %v2389 = vunpack.c.l.b16 %v882
        %v2390 = vunpack.c.h.b16 %v882
        %v2391 = vunpack.c.l.b16 %v883
        %v2392 = vunpack.c.h.b16 %v883
        %v2393 = vunpack.c.l.b16 %v884
        %v2394 = vunpack.c.h.b16 %v884
        %v2395 = vunpack.c.l.b16 %v885
        %v2396 = vunpack.c.h.b16 %v885
        %v2397 = vunpack.c.l.b16 %v886
        %v2398 = vunpack.c.h.b16 %v886
        %v2399 = vunpack.c.l.b16 %v887
        %v2400 = vunpack.c.h.b16 %v887
        %v2401 = vunpack.c.l.b16 %v888
        %v2402 = vunpack.c.h.b16 %v888
        %v2403 = vunpack.c.l.b16 %v889
        %v2404 = vunpack.c.h.b16 %v889
        %v2405 = vunpack.c.l.b16 %v890
        %v2406 = vunpack.c.h.b16 %v890
        %v2407 = vunpack.c.l.b16 %v891
        %v2408 = vunpack.c.h.b16 %v891
        %v2409 = vunpack.c.l.b16 %v892
        %v2410 = vunpack.c.h.b16 %v892
        %v2411 = vunpack.c.l.b16 %v893
        %v2412 = vunpack.c.h.b16 %v893
        %v2413 = vunpack.c.l.b16 %v894
        %v2414 = vunpack.c.h.b16 %v894
        %v2415 = vunpack.c.l.b16 %v895
        %v2416 = vunpack.c.h.b16 %v895
        %v2417 = vunpack.c.l.b16 %v896
        %v2418 = vunpack.c.h.b16 %v896
        %v2419 = vunpack.c.l.b16 %v897
        %v2420 = vunpack.c.h.b16 %v897
        %v2421 = vunpack.c.l.b16 %v898
        %v2422 = vunpack.c.h.b16 %v898
        %v2423 = vunpack.c.l.b16 %v899
        %v2424 = vunpack.c.h.b16 %v899
        %v2425 = vunpack.c.l.b16 %v900
        %v2426 = vunpack.c.h.b16 %v900
        %v2427 = vunpack.c.l.b16 %v901
        %v2428 = vunpack.c.h.b16 %v901
        %v2429 = vunpack.c.l.b16 %v902
        %v2430 = vunpack.c.h.b16 %v902
        %v2431 = vunpack.c.l.b16 %v903
        %v2432 = vunpack.c.h.b16 %v903
        %v2433 = vunpack.c.l.b16 %v904
        %v2434 = vunpack.c.h.b16 %v904
        %v2435 = vunpack.c.l.b16 %v905
        %v2436 = vunpack.c.h.b16 %v905
        %v2437 = vunpack.c.l.b16 %v906
        %v2438 = vunpack.c.h.b16 %v906
        %v2439 = vunpack.c.l.b16 %v907
        %v2440 = vunpack.c.h.b16 %v907
        %v2441 = vunpack.c.l.b16 %v908
        %v2442 = vunpack.c.h.b16 %v908
        %v2443 = vunpack.c.l.b16 %v909
        %v2444 = vunpack.c.h.b16 %v909
        %v2445 = vunpack.c.l.b16 %v910
        %v2446 = vunpack.c.h.b16 %v910
        %v2447 = vunpack.c.l.b16 %v911
        %v2448 = vunpack.c.h.b16 %v911
        %v2449 = vunpack.c.l.b16 %v912
        %v2450 = vunpack.c.h.b16 %v912
        %v2451 = vunpack.c.l.b16 %v913
        %v2452 = vunpack.c.h.b16 %v913
        %v2453 = vunpack.c.l.b16 %v914
        %v2454 = vunpack.c.h.b16 %v914
        %v2455 = vunpack.c.l.b16 %v915
        %v2456 = vunpack.c.h.b16 %v915
        %v2457 = vunpack.c.l.b16 %v916
        %v2458 = vunpack.c.h.b16 %v916
        %v2459 = vunpack.c.l.b16 %v917
        %v2460 = vunpack.c.h.b16 %v917
        %v2461 = vunpack.c.l.b16 %v918
        %v2462 = vunpack.c.h.b16 %v918
        %v2463 = vunpack.c.l.b16 %v919
        %v2464 = vunpack.c.h.b16 %v919
        %v2465 = vunpack.c.l.b16 %v920
        %v2466 = vunpack.c.h.b16 %v920
        %v2467 = vunpack.c.l.b16 %v921
        %v2468 = vunpack.c.h.b16 %v921
        %v2469 = vunpack.c.l.b16 %v922
        %v2470 = vunpack.c.h.b16 %v922
        %v2471 = vunpack.c.l.b16 %v923
        %v2472 = vunpack.c.h.b16 %v923
        %v2473 = vunpack.c.l.b16 %v924
        %v2474 = vunpack.c.h.b16 %v924
        %v2475 = vunpack.c.l.b16 %v925
        %v2476 = vunpack.c.h.b16 %v925
        %v2477 = vunpack.c.l.b16 %v926
        %v2478 = vunpack.c.h.b16 %v926
        %v2479 = vunpack.c.l.b16 %v927
        %v2480 = vunpack.c.h.b16 %v927
        %v2481 = vunpack.c.l.b16 %v928
        %v2482 = vunpack.c.h.b16 %v928
        %v2483 = vunpack.c.l.b16 %v929
        %v2484 = vunpack.c.h.b16 %v929
        %v2485 = vunpack.c.l.b16 %v930
        %v2486 = vunpack.c.h.b16 %v930
        %v2487 = vunpack.c.l.b16 %v931
        %v2488 = vunpack.c.h.b16 %v931
        %v2489 = vunpack.c.l.b16 %v932
        %v2490 = vunpack.c.h.b16 %v932
        %v2491 = vunpack.c.l.b16 %v933
        %v2492 = vunpack.c.h.b16 %v933
        %v2493 = vunpack.c.l.b16 %v934
        %v2494 = vunpack.c.h.b16 %v934
        %v2495 = vunpack.c.l.b16 %v935
        %v2496 = vunpack.c.h.b16 %v935
        %v2497 = vunpack.c.l.b16 %v936
        %v2498 = vunpack.c.h.b16 %v936
        %v2499 = vunpack.c.l.b16 %v937
        %v2500 = vunpack.c.h.b16 %v937
        %v2501 = vunpack.c.l.b16 %v938
        %v2502 = vunpack.c.h.b16 %v938
        %v2503 = vpack.c.b16 %v1487, %v1479
        %v2504 = vpack.c.b16 %v1488, %v1480
        %v2505 = vpack.c.b16 %v1489, %v1481
        %v2506 = vpack.c.b16 %v1490, %v1482
        %v2507 = vpack.c.b16 %v1491, %v1483
        %v2508 = vpack.c.b16 %v1492, %v1484
        %v2509 = vpack.c.b16 %v1493, %v1485
        %v2510 = vpack.c.b16 %v1494, %v1486
        %v2511 = vpack.c.b16 %v1503, %v1495
        %v2512 = vpack.c.b16 %v1504, %v1496
        %v2513 = vpack.c.b16 %v1505, %v1497
        %v2514 = vpack.c.b16 %v1506, %v1498
        %v2515 = vpack.c.b16 %v1507, %v1499
        %v2516 = vpack.c.b16 %v1508, %v1500
        %v2517 = vpack.c.b16 %v1509, %v1501
        %v2518 = vpack.c.b16 %v1510, %v1502
        %v2519 = vpack.c.b16 %v1519, %v1511
        %v2520 = vpack.c.b16 %v1520, %v1512
        %v2521 = vpack.c.b16 %v1521, %v1513
        %v2522 = vpack.c.b16 %v1522, %v1514
        %v2523 = vpack.c.b16 %v1523, %v1515
        %v2524 = vpack.c.b16 %v1524, %v1516
        %v2525 = vpack.c.b16 %v1525, %v1517
        %v2526 = vpack.c.b16 %v1526, %v1518
        %v2527 = vpack.c.b16 %v1535, %v1527
        %v2528 = vpack.c.b16 %v1536, %v1528
        %v2529 = vpack.c.b16 %v1537, %v1529
        %v2530 = vpack.c.b16 %v1538, %v1530
        %v2531 = vpack.c.b16 %v1539, %v1531
        %v2532 = vpack.c.b16 %v1540, %v1532
        %v2533 = vpack.c.b16 %v1541, %v1533
        %v2534 = vpack.c.b16 %v1542, %v1534
        %v2535 = vpack.c.b16 %v1551, %v1543
        %v2536 = vpack.c.b16 %v1552, %v1544
        %v2537 = vpack.c.b16 %v1553, %v1545
        %v2538 = vpack.c.b16 %v1554, %v1546
        %v2539 = vpack.c.b16 %v1555, %v1547
        %v2540 = vpack.c.b16 %v1556, %v1548
        %v2541 = vpack.c.b16 %v1557, %v1549
        %v2542 = vpack.c.b16 %v1558, %v1550
        %v2543 = vpack.c.b16 %v1567, %v1559
        %v2544 = vpack.c.b16 %v1568, %v1560
        %v2545 = vpack.c.b16 %v1569, %v1561
        %v2546 = vpack.c.b16 %v1570, %v1562
        %v2547 = vpack.c.b16 %v1571, %v1563
        %v2548 = vpack.c.b16 %v1572, %v1564
        %v2549 = vpack.c.b16 %v1573, %v1565
        %v2550 = vpack.c.b16 %v1574, %v1566
        %v2551 = vpack.c.b16 %v1583, %v1575
        %v2552 = vpack.c.b16 %v1584, %v1576
        %v2553 = vpack.c.b16 %v1585, %v1577
        %v2554 = vpack.c.b16 %v1586, %v1578
        %v2555 = vpack.c.b16 %v1587, %v1579
        %v2556 = vpack.c.b16 %v1588, %v1580
        %v2557 = vpack.c.b16 %v1589, %v1581
        %v2558 = vpack.c.b16 %v1590, %v1582
        %v2559 = vpack.c.b16 %v1599, %v1591
        %v2560 = vpack.c.b16 %v1600, %v1592
        %v2561 = vpack.c.b16 %v1601, %v1593
        %v2562 = vpack.c.b16 %v1602, %v1594
        %v2563 = vpack.c.b16 %v1603, %v1595
        %v2564 = vpack.c.b16 %v1604, %v1596
        %v2565 = vpack.c.b16 %v1605, %v1597
        %v2566 = vpack.c.b16 %v1606, %v1598
        %v2567 = vpack.c.b16 %v1615, %v1607
        %v2568 = vpack.c.b16 %v1616, %v1608
        %v2569 = vpack.c.b16 %v1617, %v1609
        %v2570 = vpack.c.b16 %v1618, %v1610
        %v2571 = vpack.c.b16 %v1619, %v1611
        %v2572 = vpack.c.b16 %v1620, %v1612
        %v2573 = vpack.c.b16 %v1621, %v1613
        %v2574 = vpack.c.b16 %v1622, %v1614
        %v2575 = vpack.c.b16 %v1631, %v1623
        %v2576 = vpack.c.b16 %v1632, %v1624
        %v2577 = vpack.c.b16 %v1633, %v1625
        %v2578 = vpack.c.b16 %v1634, %v1626
        %v2579 = vpack.c.b16 %v1635, %v1627
        %v2580 = vpack.c.b16 %v1636, %v1628
        %v2581 = vpack.c.b16 %v1637, %v1629
        %v2582 = vpack.c.b16 %v1638, %v1630
        %v2583 = vpack.c.b16 %v1647, %v1639
        %v2584 = vpack.c.b16 %v1648, %v1640
        %v2585 = vpack.c.b16 %v1649, %v1641
        %v2586 = vpack.c.b16 %v1650, %v1642
        %v2587 = vpack.c.b16 %v1651, %v1643
        %v2588 = vpack.c.b16 %v1652, %v1644
        %v2589 = vpack.c.b16 %v1653, %v1645
        %v2590 = vpack.c.b16 %v1654, %v1646
        %v2591 = vpack.c.b16 %v1663, %v1655
        %v2592 = vpack.c.b16 %v1664, %v1656
        %v2593 = vpack.c.b16 %v1665, %v1657
        %v2594 = vpack.c.b16 %v1666, %v1658
        %v2595 = vpack.c.b16 %v1667, %v1659
        %v2596 = vpack.c.b16 %v1668, %v1660
        %v2597 = vpack.c.b16 %v1669, %v1661
        %v2598 = vpack.c.b16 %v1670, %v1662
        %v2599 = vpack.c.b16 %v1679, %v1671
        %v2600 = vpack.c.b16 %v1680, %v1672
        %v2601 = vpack.c.b16 %v1681, %v1673
        %v2602 = vpack.c.b16 %v1682, %v1674
        %v2603 = vpack.c.b16 %v1683, %v1675
        %v2604 = vpack.c.b16 %v1684, %v1676
        %v2605 = vpack.c.b16 %v1685, %v1677
        %v2606 = vpack.c.b16 %v1686, %v1678
        %v2607 = vpack.c.b16 %v1695, %v1687
        %v2608 = vpack.c.b16 %v1696, %v1688
        %v2609 = vpack.c.b16 %v1697, %v1689
        %v2610 = vpack.c.b16 %v1698, %v1690
        %v2611 = vpack.c.b16 %v1699, %v1691
        %v2612 = vpack.c.b16 %v1700, %v1692
        %v2613 = vpack.c.b16 %v1701, %v1693
        %v2614 = vpack.c.b16 %v1702, %v1694
        %v2615 = vpack.c.b16 %v1711, %v1703
        %v2616 = vpack.c.b16 %v1712, %v1704
        %v2617 = vpack.c.b16 %v1713, %v1705
        %v2618 = vpack.c.b16 %v1714, %v1706
        %v2619 = vpack.c.b16 %v1715, %v1707
        %v2620 = vpack.c.b16 %v1716, %v1708
        %v2621 = vpack.c.b16 %v1717, %v1709
        %v2622 = vpack.c.b16 %v1718, %v1710
        %v2623 = vpack.c.b16 %v1727, %v1719
        %v2624 = vpack.c.b16 %v1728, %v1720
        %v2625 = vpack.c.b16 %v1729, %v1721
        %v2626 = vpack.c.b16 %v1730, %v1722
        %v2627 = vpack.c.b16 %v1731, %v1723
        %v2628 = vpack.c.b16 %v1732, %v1724
        %v2629 = vpack.c.b16 %v1733, %v1725
        %v2630 = vpack.c.b16 %v1734, %v1726
        %v2631 = vpack.c.b16 %v1743, %v1735
        %v2632 = vpack.c.b16 %v1744, %v1736
        %v2633 = vpack.c.b16 %v1745, %v1737
        %v2634 = vpack.c.b16 %v1746, %v1738
        %v2635 = vpack.c.b16 %v1747, %v1739
        %v2636 = vpack.c.b16 %v1748, %v1740
        %v2637 = vpack.c.b16 %v1749, %v1741
        %v2638 = vpack.c.b16 %v1750, %v1742
        %v2639 = vpack.c.b16 %v1759, %v1751
        %v2640 = vpack.c.b16 %v1760, %v1752
        %v2641 = vpack.c.b16 %v1761, %v1753
        %v2642 = vpack.c.b16 %v1762, %v1754
        %v2643 = vpack.c.b16 %v1763, %v1755
        %v2644 = vpack.c.b16 %v1764, %v1756
        %v2645 = vpack.c.b16 %v1765, %v1757
        %v2646 = vpack.c.b16 %v1766, %v1758
        %v2647 = vpack.c.b16 %v1775, %v1767
        %v2648 = vpack.c.b16 %v1776, %v1768
        %v2649 = vpack.c.b16 %v1777, %v1769
        %v2650 = vpack.c.b16 %v1778, %v1770
        %v2651 = vpack.c.b16 %v1779, %v1771
        %v2652 = vpack.c.b16 %v1780, %v1772
        %v2653 = vpack.c.b16 %v1781, %v1773
        %v2654 = vpack.c.b16 %v1782, %v1774
        %v2655 = vpack.c.b16 %v1791, %v1783
        %v2656 = vpack.c.b16 %v1792, %v1784
        %v2657 = vpack.c.b16 %v1793, %v1785
        %v2658 = vpack.c.b16 %v1794, %v1786
        %v2659 = vpack.c.b16 %v1795, %v1787
        %v2660 = vpack.c.b16 %v1796, %v1788
        %v2661 = vpack.c.b16 %v1797, %v1789
        %v2662 = vpack.c.b16 %v1798, %v1790
        %v2663 = vpack.c.b16 %v1807, %v1799
        %v2664 = vpack.c.b16 %v1808, %v1800
        %v2665 = vpack.c.b16 %v1809, %v1801
        %v2666 = vpack.c.b16 %v1810, %v1802
        %v2667 = vpack.c.b16 %v1811, %v1803
        %v2668 = vpack.c.b16 %v1812, %v1804
        %v2669 = vpack.c.b16 %v1813, %v1805
        %v2670 = vpack.c.b16 %v1814, %v1806
        %v2671 = vpack.c.b16 %v1823, %v1815
        %v2672 = vpack.c.b16 %v1824, %v1816
        %v2673 = vpack.c.b16 %v1825, %v1817
        %v2674 = vpack.c.b16 %v1826, %v1818
        %v2675 = vpack.c.b16 %v1827, %v1819
        %v2676 = vpack.c.b16 %v1828, %v1820
        %v2677 = vpack.c.b16 %v1829, %v1821
        %v2678 = vpack.c.b16 %v1830, %v1822
        %v2679 = vpack.c.b16 %v1839, %v1831
        %v2680 = vpack.c.b16 %v1840, %v1832
        %v2681 = vpack.c.b16 %v1841, %v1833
        %v2682 = vpack.c.b16 %v1842, %v1834
        %v2683 = vpack.c.b16 %v1843, %v1835
        %v2684 = vpack.c.b16 %v1844, %v1836
        %v2685 = vpack.c.b16 %v1845, %v1837
        %v2686 = vpack.c.b16 %v1846, %v1838
        %v2687 = vpack.c.b16 %v1855, %v1847
        %v2688 = vpack.c.b16 %v1856, %v1848
        %v2689 = vpack.c.b16 %v1857, %v1849
        %v2690 = vpack.c.b16 %v1858, %v1850
        %v2691 = vpack.c.b16 %v1859, %v1851
        %v2692 = vpack.c.b16 %v1860, %v1852
        %v2693 = vpack.c.b16 %v1861, %v1853
        %v2694 = vpack.c.b16 %v1862, %v1854
        %v2695 = vpack.c.b16 %v1871, %v1863
        %v2696 = vpack.c.b16 %v1872, %v1864
        %v2697 = vpack.c.b16 %v1873, %v1865
        %v2698 = vpack.c.b16 %v1874, %v1866
        %v2699 = vpack.c.b16 %v1875, %v1867
        %v2700 = vpack.c.b16 %v1876, %v1868
        %v2701 = vpack.c.b16 %v1877, %v1869
        %v2702 = vpack.c.b16 %v1878, %v1870
        %v2703 = vpack.c.b16 %v1887, %v1879
        %v2704 = vpack.c.b16 %v1888, %v1880
        %v2705 = vpack.c.b16 %v1889, %v1881
        %v2706 = vpack.c.b16 %v1890, %v1882
        %v2707 = vpack.c.b16 %v1891, %v1883
        %v2708 = vpack.c.b16 %v1892, %v1884
        %v2709 = vpack.c.b16 %v1893, %v1885
        %v2710 = vpack.c.b16 %v1894, %v1886
        %v2711 = vpack.c.b16 %v1903, %v1895
        %v2712 = vpack.c.b16 %v1904, %v1896
        %v2713 = vpack.c.b16 %v1905, %v1897
        %v2714 = vpack.c.b16 %v1906, %v1898
        %v2715 = vpack.c.b16 %v1907, %v1899
        %v2716 = vpack.c.b16 %v1908, %v1900
        %v2717 = vpack.c.b16 %v1909, %v1901
        %v2718 = vpack.c.b16 %v1910, %v1902
        %v2719 = vpack.c.b16 %v1919, %v1911
        %v2720 = vpack.c.b16 %v1920, %v1912
        %v2721 = vpack.c.b16 %v1921, %v1913
        %v2722 = vpack.c.b16 %v1922, %v1914
        %v2723 = vpack.c.b16 %v1923, %v1915
        %v2724 = vpack.c.b16 %v1924, %v1916
        %v2725 = vpack.c.b16 %v1925, %v1917
        %v2726 = vpack.c.b16 %v1926, %v1918
        %v2727 = vpack.c.b16 %v1935, %v1927
        %v2728 = vpack.c.b16 %v1936, %v1928
        %v2729 = vpack.c.b16 %v1937, %v1929
        %v2730 = vpack.c.b16 %v1938, %v1930
        %v2731 = vpack.c.b16 %v1939, %v1931
        %v2732 = vpack.c.b16 %v1940, %v1932
        %v2733 = vpack.c.b16 %v1941, %v1933
        %v2734 = vpack.c.b16 %v1942, %v1934
        %v2735 = vpack.c.b16 %v1951, %v1943
        %v2736 = vpack.c.b16 %v1952, %v1944
        %v2737 = vpack.c.b16 %v1953, %v1945
        %v2738 = vpack.c.b16 %v1954, %v1946
        %v2739 = vpack.c.b16 %v1955, %v1947
        %v2740 = vpack.c.b16 %v1956, %v1948
        %v2741 = vpack.c.b16 %v1957, %v1949
        %v2742 = vpack.c.b16 %v1958, %v1950
        %v2743 = vpack.c.b16 %v1967, %v1959
        %v2744 = vpack.c.b16 %v1968, %v1960
        %v2745 = vpack.c.b16 %v1969, %v1961
        %v2746 = vpack.c.b16 %v1970, %v1962
        %v2747 = vpack.c.b16 %v1971, %v1963
        %v2748 = vpack.c.b16 %v1972, %v1964
        %v2749 = vpack.c.b16 %v1973, %v1965
        %v2750 = vpack.c.b16 %v1974, %v1966
        %v2751 = vpack.c.b16 %v1983, %v1975
        %v2752 = vpack.c.b16 %v1984, %v1976
        %v2753 = vpack.c.b16 %v1985, %v1977
        %v2754 = vpack.c.b16 %v1986, %v1978
        %v2755 = vpack.c.b16 %v1987, %v1979
        %v2756 = vpack.c.b16 %v1988, %v1980
        %v2757 = vpack.c.b16 %v1989, %v1981
        %v2758 = vpack.c.b16 %v1990, %v1982
        %v2759 = vpack.c.b16 %v1999, %v1991
        %v2760 = vpack.c.b16 %v2000, %v1992
        %v2761 = vpack.c.b16 %v2001, %v1993
        %v2762 = vpack.c.b16 %v2002, %v1994
        %v2763 = vpack.c.b16 %v2003, %v1995
        %v2764 = vpack.c.b16 %v2004, %v1996
        %v2765 = vpack.c.b16 %v2005, %v1997
        %v2766 = vpack.c.b16 %v2006, %v1998
        %v2767 = vpack.c.b16 %v2015, %v2007
        %v2768 = vpack.c.b16 %v2016, %v2008
        %v2769 = vpack.c.b16 %v2017, %v2009
        %v2770 = vpack.c.b16 %v2018, %v2010
        %v2771 = vpack.c.b16 %v2019, %v2011
        %v2772 = vpack.c.b16 %v2020, %v2012
        %v2773 = vpack.c.b16 %v2021, %v2013
        %v2774 = vpack.c.b16 %v2022, %v2014
        %v2775 = vpack.c.b16 %v2031, %v2023
        %v2776 = vpack.c.b16 %v2032, %v2024
        %v2777 = vpack.c.b16 %v2033, %v2025
        %v2778 = vpack.c.b16 %v2034, %v2026
        %v2779 = vpack.c.b16 %v2035, %v2027
        %v2780 = vpack.c.b16 %v2036, %v2028
        %v2781 = vpack.c.b16 %v2037, %v2029
        %v2782 = vpack.c.b16 %v2038, %v2030
        %v2783 = vpack.c.b16 %v2047, %v2039
        %v2784 = vpack.c.b16 %v2048, %v2040
        %v2785 = vpack.c.b16 %v2049, %v2041
        %v2786 = vpack.c.b16 %v2050, %v2042
        %v2787 = vpack.c.b16 %v2051, %v2043
        %v2788 = vpack.c.b16 %v2052, %v2044
        %v2789 = vpack.c.b16 %v2053, %v2045
        %v2790 = vpack.c.b16 %v2054, %v2046
        %v2791 = vpack.c.b16 %v2063, %v2055
        %v2792 = vpack.c.b16 %v2064, %v2056
        %v2793 = vpack.c.b16 %v2065, %v2057
        %v2794 = vpack.c.b16 %v2066, %v2058
        %v2795 = vpack.c.b16 %v2067, %v2059
        %v2796 = vpack.c.b16 %v2068, %v2060
        %v2797 = vpack.c.b16 %v2069, %v2061
        %v2798 = vpack.c.b16 %v2070, %v2062
        %v2799 = vpack.c.b16 %v2079, %v2071
        %v2800 = vpack.c.b16 %v2080, %v2072
        %v2801 = vpack.c.b16 %v2081, %v2073
        %v2802 = vpack.c.b16 %v2082, %v2074
        %v2803 = vpack.c.b16 %v2083, %v2075
        %v2804 = vpack.c.b16 %v2084, %v2076
        %v2805 = vpack.c.b16 %v2085, %v2077
        %v2806 = vpack.c.b16 %v2086, %v2078
        %v2807 = vpack.c.b16 %v2095, %v2087
        %v2808 = vpack.c.b16 %v2096, %v2088
        %v2809 = vpack.c.b16 %v2097, %v2089
        %v2810 = vpack.c.b16 %v2098, %v2090
        %v2811 = vpack.c.b16 %v2099, %v2091
        %v2812 = vpack.c.b16 %v2100, %v2092
        %v2813 = vpack.c.b16 %v2101, %v2093
        %v2814 = vpack.c.b16 %v2102, %v2094
        %v2815 = vpack.c.b16 %v2111, %v2103
        %v2816 = vpack.c.b16 %v2112, %v2104
        %v2817 = vpack.c.b16 %v2113, %v2105
        %v2818 = vpack.c.b16 %v2114, %v2106
        %v2819 = vpack.c.b16 %v2115, %v2107
        %v2820 = vpack.c.b16 %v2116, %v2108
        %v2821 = vpack.c.b16 %v2117, %v2109
        %v2822 = vpack.c.b16 %v2118, %v2110
        %v2823 = vpack.c.b16 %v2127, %v2119
        %v2824 = vpack.c.b16 %v2128, %v2120
        %v2825 = vpack.c.b16 %v2129, %v2121
        %v2826 = vpack.c.b16 %v2130, %v2122
        %v2827 = vpack.c.b16 %v2131, %v2123
        %v2828 = vpack.c.b16 %v2132, %v2124
        %v2829 = vpack.c.b16 %v2133, %v2125
        %v2830 = vpack.c.b16 %v2134, %v2126
        %v2831 = vpack.c.b16 %v2143, %v2135
        %v2832 = vpack.c.b16 %v2144, %v2136
        %v2833 = vpack.c.b16 %v2145, %v2137
        %v2834 = vpack.c.b16 %v2146, %v2138
        %v2835 = vpack.c.b16 %v2147, %v2139
        %v2836 = vpack.c.b16 %v2148, %v2140
        %v2837 = vpack.c.b16 %v2149, %v2141
        %v2838 = vpack.c.b16 %v2150, %v2142
        %v2839 = vpack.c.b16 %v2159, %v2151
        %v2840 = vpack.c.b16 %v2160, %v2152
        %v2841 = vpack.c.b16 %v2161, %v2153
        %v2842 = vpack.c.b16 %v2162, %v2154
        %v2843 = vpack.c.b16 %v2163, %v2155
        %v2844 = vpack.c.b16 %v2164, %v2156
        %v2845 = vpack.c.b16 %v2165, %v2157
        %v2846 = vpack.c.b16 %v2166, %v2158
        %v2847 = vpack.c.b16 %v2175, %v2167
        %v2848 = vpack.c.b16 %v2176, %v2168
        %v2849 = vpack.c.b16 %v2177, %v2169
        %v2850 = vpack.c.b16 %v2178, %v2170
        %v2851 = vpack.c.b16 %v2179, %v2171
        %v2852 = vpack.c.b16 %v2180, %v2172
        %v2853 = vpack.c.b16 %v2181, %v2173
        %v2854 = vpack.c.b16 %v2182, %v2174
        %v2855 = vpack.c.b16 %v2191, %v2183
        %v2856 = vpack.c.b16 %v2192, %v2184
        %v2857 = vpack.c.b16 %v2193, %v2185
        %v2858 = vpack.c.b16 %v2194, %v2186
        %v2859 = vpack.c.b16 %v2195, %v2187
        %v2860 = vpack.c.b16 %v2196, %v2188
        %v2861 = vpack.c.b16 %v2197, %v2189
        %v2862 = vpack.c.b16 %v2198, %v2190
        %v2863 = vpack.c.b16 %v2207, %v2199
        %v2864 = vpack.c.b16 %v2208, %v2200
        %v2865 = vpack.c.b16 %v2209, %v2201
        %v2866 = vpack.c.b16 %v2210, %v2202
        %v2867 = vpack.c.b16 %v2211, %v2203
        %v2868 = vpack.c.b16 %v2212, %v2204
        %v2869 = vpack.c.b16 %v2213, %v2205
        %v2870 = vpack.c.b16 %v2214, %v2206
        %v2871 = vpack.c.b16 %v2223, %v2215
        %v2872 = vpack.c.b16 %v2224, %v2216
        %v2873 = vpack.c.b16 %v2225, %v2217
        %v2874 = vpack.c.b16 %v2226, %v2218
        %v2875 = vpack.c.b16 %v2227, %v2219
        %v2876 = vpack.c.b16 %v2228, %v2220
        %v2877 = vpack.c.b16 %v2229, %v2221
        %v2878 = vpack.c.b16 %v2230, %v2222
        %v2879 = vpack.c.b16 %v2239, %v2231
        %v2880 = vpack.c.b16 %v2240, %v2232
        %v2881 = vpack.c.b16 %v2241, %v2233
        %v2882 = vpack.c.b16 %v2242, %v2234
        %v2883 = vpack.c.b16 %v2243, %v2235
        %v2884 = vpack.c.b16 %v2244, %v2236
        %v2885 = vpack.c.b16 %v2245, %v2237
        %v2886 = vpack.c.b16 %v2246, %v2238
        %v2887 = vpack.c.b16 %v2255, %v2247
        %v2888 = vpack.c.b16 %v2256, %v2248
        %v2889 = vpack.c.b16 %v2257, %v2249
        %v2890 = vpack.c.b16 %v2258, %v2250
        %v2891 = vpack.c.b16 %v2259, %v2251
        %v2892 = vpack.c.b16 %v2260, %v2252
        %v2893 = vpack.c.b16 %v2261, %v2253
        %v2894 = vpack.c.b16 %v2262, %v2254
        %v2895 = vpack.c.b16 %v2271, %v2263
        %v2896 = vpack.c.b16 %v2272, %v2264
        %v2897 = vpack.c.b16 %v2273, %v2265
        %v2898 = vpack.c.b16 %v2274, %v2266
        %v2899 = vpack.c.b16 %v2275, %v2267
        %v2900 = vpack.c.b16 %v2276, %v2268
        %v2901 = vpack.c.b16 %v2277, %v2269
        %v2902 = vpack.c.b16 %v2278, %v2270
        %v2903 = vpack.c.b16 %v2287, %v2279
        %v2904 = vpack.c.b16 %v2288, %v2280
        %v2905 = vpack.c.b16 %v2289, %v2281
        %v2906 = vpack.c.b16 %v2290, %v2282
        %v2907 = vpack.c.b16 %v2291, %v2283
        %v2908 = vpack.c.b16 %v2292, %v2284
        %v2909 = vpack.c.b16 %v2293, %v2285
        %v2910 = vpack.c.b16 %v2294, %v2286
        %v2911 = vpack.c.b16 %v2303, %v2295
        %v2912 = vpack.c.b16 %v2304, %v2296
        %v2913 = vpack.c.b16 %v2305, %v2297
        %v2914 = vpack.c.b16 %v2306, %v2298
        %v2915 = vpack.c.b16 %v2307, %v2299
        %v2916 = vpack.c.b16 %v2308, %v2300
        %v2917 = vpack.c.b16 %v2309, %v2301
        %v2918 = vpack.c.b16 %v2310, %v2302
        %v2919 = vpack.c.b16 %v2319, %v2311
        %v2920 = vpack.c.b16 %v2320, %v2312
        %v2921 = vpack.c.b16 %v2321, %v2313
        %v2922 = vpack.c.b16 %v2322, %v2314
        %v2923 = vpack.c.b16 %v2323, %v2315
        %v2924 = vpack.c.b16 %v2324, %v2316
        %v2925 = vpack.c.b16 %v2325, %v2317
        %v2926 = vpack.c.b16 %v2326, %v2318
        %v2927 = vpack.c.b16 %v2335, %v2327
        %v2928 = vpack.c.b16 %v2336, %v2328
        %v2929 = vpack.c.b16 %v2337, %v2329
        %v2930 = vpack.c.b16 %v2338, %v2330
        %v2931 = vpack.c.b16 %v2339, %v2331
        %v2932 = vpack.c.b16 %v2340, %v2332
        %v2933 = vpack.c.b16 %v2341, %v2333
        %v2934 = vpack.c.b16 %v2342, %v2334
        %v2935 = vpack.c.b16 %v2351, %v2343
        %v2936 = vpack.c.b16 %v2352, %v2344
        %v2937 = vpack.c.b16 %v2353, %v2345
        %v2938 = vpack.c.b16 %v2354, %v2346
        %v2939 = vpack.c.b16 %v2355, %v2347
        %v2940 = vpack.c.b16 %v2356, %v2348
        %v2941 = vpack.c.b16 %v2357, %v2349
        %v2942 = vpack.c.b16 %v2358, %v2350
        %v2943 = vpack.c.b16 %v2367, %v2359
        %v2944 = vpack.c.b16 %v2368, %v2360
        %v2945 = vpack.c.b16 %v2369, %v2361
        %v2946 = vpack.c.b16 %v2370, %v2362
        %v2947 = vpack.c.b16 %v2371, %v2363
        %v2948 = vpack.c.b16 %v2372, %v2364
        %v2949 = vpack.c.b16 %v2373, %v2365
        %v2950 = vpack.c.b16 %v2374, %v2366
        %v2951 = vpack.c.b16 %v2383, %v2375
        %v2952 = vpack.c.b16 %v2384, %v2376
        %v2953 = vpack.c.b16 %v2385, %v2377
        %v2954 = vpack.c.b16 %v2386, %v2378
        %v2955 = vpack.c.b16 %v2387, %v2379
        %v2956 = vpack.c.b16 %v2388, %v2380
        %v2957 = vpack.c.b16 %v2389, %v2381
        %v2958 = vpack.c.b16 %v2390, %v2382
        %v2959 = vpack.c.b16 %v2399, %v2391
        %v2960 = vpack.c.b16 %v2400, %v2392
        %v2961 = vpack.c.b16 %v2401, %v2393
        %v2962 = vpack.c.b16 %v2402, %v2394
        %v2963 = vpack.c.b16 %v2403, %v2395
        %v2964 = vpack.c.b16 %v2404, %v2396
        %v2965 = vpack.c.b16 %v2405, %v2397
        %v2966 = vpack.c.b16 %v2406, %v2398
        %v2967 = vpack.c.b16 %v2415, %v2407
        %v2968 = vpack.c.b16 %v2416, %v2408
        %v2969 = vpack.c.b16 %v2417, %v2409
        %v2970 = vpack.c.b16 %v2418, %v2410
        %v2971 = vpack.c.b16 %v2419, %v2411
        %v2972 = vpack.c.b16 %v2420, %v2412
        %v2973 = vpack.c.b16 %v2421, %v2413
        %v2974 = vpack.c.b16 %v2422, %v2414
        %v2975 = vpack.c.b16 %v2431, %v2423
        %v2976 = vpack.c.b16 %v2432, %v2424
        %v2977 = vpack.c.b16 %v2433, %v2425
        %v2978 = vpack.c.b16 %v2434, %v2426
        %v2979 = vpack.c.b16 %v2435, %v2427
        %v2980 = vpack.c.b16 %v2436, %v2428
        %v2981 = vpack.c.b16 %v2437, %v2429
        %v2982 = vpack.c.b16 %v2438, %v2430
        %v2983 = vpack.c.b16 %v2447, %v2439
        %v2984 = vpack.c.b16 %v2448, %v2440
        %v2985 = vpack.c.b16 %v2449, %v2441
        %v2986 = vpack.c.b16 %v2450, %v2442
        %v2987 = vpack.c.b16 %v2451, %v2443
        %v2988 = vpack.c.b16 %v2452, %v2444
        %v2989 = vpack.c.b16 %v2453, %v2445
        %v2990 = vpack.c.b16 %v2454, %v2446
        %v2991 = vpack.c.b16 %v2463, %v2455
        %v2992 = vpack.c.b16 %v2464, %v2456
        %v2993 = vpack.c.b16 %v2465, %v2457
        %v2994 = vpack.c.b16 %v2466, %v2458
        %v2995 = vpack.c.b16 %v2467, %v2459
        %v2996 = vpack.c.b16 %v2468, %v2460
        %v2997 = vpack.c.b16 %v2469, %v2461
        %v2998 = vpack.c.b16 %v2470, %v2462
        %v2999 = vpack.c.b16 %v2479, %v2471
        %v3000 = vpack.c.b16 %v2480, %v2472
        %v3001 = vpack.c.b16 %v2481, %v2473
        %v3002 = vpack.c.b16 %v2482, %v2474
        %v3003 = vpack.c.b16 %v2483, %v2475
        %v3004 = vpack.c.b16 %v2484, %v2476
        %v3005 = vpack.c.b16 %v2485, %v2477
        %v3006 = vpack.c.b16 %v2486, %v2478
        %v3007 = vpack.c.b16 %v2495, %v2487
        %v3008 = vpack.c.b16 %v2496, %v2488
        %v3009 = vpack.c.b16 %v2497, %v2489
        %v3010 = vpack.c.b16 %v2498, %v2490
        %v3011 = vpack.c.b16 %v2499, %v2491
        %v3012 = vpack.c.b16 %v2500, %v2492
        %v3013 = vpack.c.b16 %v2501, %v2493
        %v3014 = vpack.c.b16 %v2502, %v2494
        %3527 = vmatprep.subr.bf16.mxu0 %v2560
        %3528 = vmatpush1.bf16.msra.mxu0 %v2559
        %3529 = vmatprep.subr.bf16.mxu0 %v2552
        %3530 = vmatpush1.bf16.msra.mxu0 %v2551
        %3531 = vmatprep.subr.bf16.mxu0 %v2544
        %3532 = vmatpush1.bf16.msra.mxu0 %v2543
        %3533 = vmatprep.subr.bf16.mxu0 %v2536
        %3534 = vmatpush1.bf16.msra.mxu0 %v2535
        %3535 = vmatprep.subr.bf16.mxu0 %v2528
        %3536 = vmatpush1.bf16.msra.mxu0 %v2527
        %3537 = vmatprep.subr.bf16.mxu0 %v2520
        %3538 = vmatpush1.bf16.msra.mxu0 %v2519
        %3539 = vmatprep.subr.bf16.mxu0 %v2512
        %3540 = vmatpush1.bf16.msra.mxu0 %v2511
        %3541 = vmatprep.subr.bf16.mxu0 %v2504
        %3542 = vmatpush1.bf16.msra.mxu0 %v2503
        %3543 = vmatprep.subr.bf16.mxu0 %v2624
        %3544 = vmatpush2.bf16.msra.mxu0 %v2623
        %3545 = vmatprep.subr.bf16.mxu0 %v2616
        %3546 = vmatpush2.bf16.msra.mxu0 %v2615
        %3547 = vmatprep.subr.bf16.mxu0 %v2608
        %3548 = vmatpush2.bf16.msra.mxu0 %v2607
        %3549 = vmatprep.subr.bf16.mxu0 %v2600
        %3550 = vmatpush2.bf16.msra.mxu0 %v2599
        %3551 = vmatprep.subr.bf16.mxu0 %v2592
        %3552 = vmatpush2.bf16.msra.mxu0 %v2591
        %3553 = vmatprep.subr.bf16.mxu0 %v2584
        %3554 = vmatpush2.bf16.msra.mxu0 %v2583
        %3555 = vmatprep.subr.bf16.mxu0 %v2576
        %3556 = vmatpush2.bf16.msra.mxu0 %v2575
        %3557 = vmatprep.subr.bf16.mxu0 %v2568
        %3558 = vmatpush2.bf16.msra.mxu0 %v2567
        %3559 = vmatprep.mubr.bf16.mxu0 %v952
        %3560 = vmatmul.mubr.bf16.gmra.mxu0 %v951
        %v3561 = vpop.f32.mrf.mxu0
        %v3562 = vadd.f32 0.0, %v3561
        %v3563 = vpop.f32.mrf.mxu0
        %v3564 = vadd.f32 0.0, %v3563
        %v3565 = vpop.f32.mrf.mxu0
        %v3566 = vpop.f32.mrf.mxu0
        %3567 = vdwg.mxu0
        %3568 = vmatprep.subr.bf16.mxu0 %v2688
        %3569 = vmatpush1.bf16.msra.mxu0 %v2687
        %3570 = vmatprep.subr.bf16.mxu0 %v2680
        %3571 = vmatpush1.bf16.msra.mxu0 %v2679
        %3572 = vmatprep.subr.bf16.mxu0 %v2672
        %3573 = vmatpush1.bf16.msra.mxu0 %v2671
        %3574 = vmatprep.subr.bf16.mxu0 %v2664
        %3575 = vmatpush1.bf16.msra.mxu0 %v2663
        %3576 = vmatprep.subr.bf16.mxu0 %v2656
        %3577 = vmatpush1.bf16.msra.mxu0 %v2655
        %3578 = vmatprep.subr.bf16.mxu0 %v2648
        %3579 = vmatpush1.bf16.msra.mxu0 %v2647
        %3580 = vmatprep.subr.bf16.mxu0 %v2640
        %3581 = vmatpush1.bf16.msra.mxu0 %v2639
        %3582 = vmatprep.subr.bf16.mxu0 %v2632
        %3583 = vmatpush1.bf16.msra.mxu0 %v2631
        %3584 = vmatprep.subr.bf16.mxu0 %v2752
        %3585 = vmatpush2.bf16.msra.mxu0 %v2751
        %3586 = vmatprep.subr.bf16.mxu0 %v2744
        %3587 = vmatpush2.bf16.msra.mxu0 %v2743
        %3588 = vmatprep.subr.bf16.mxu0 %v2736
        %3589 = vmatpush2.bf16.msra.mxu0 %v2735
        %3590 = vmatprep.subr.bf16.mxu0 %v2728
        %3591 = vmatpush2.bf16.msra.mxu0 %v2727
        %3592 = vmatprep.subr.bf16.mxu0 %v2720
        %3593 = vmatpush2.bf16.msra.mxu0 %v2719
        %3594 = vmatprep.subr.bf16.mxu0 %v2712
        %3595 = vmatpush2.bf16.msra.mxu0 %v2711
        %3596 = vmatprep.subr.bf16.mxu0 %v2704
        %3597 = vmatpush2.bf16.msra.mxu0 %v2703
        %3598 = vmatprep.subr.bf16.mxu0 %v2696
        %3599 = vmatpush2.bf16.msra.mxu0 %v2695
        %3600 = vmatprep.mubr.bf16.mxu0 %v954
        %3601 = vmatmul.mubr.bf16.gmra.mxu0 %v953
        %v3602 = vpop.f32.mrf.mxu0
        %v3603 = vadd.f32 %v3562, %v3602
        %v3604 = vpop.f32.mrf.mxu0
        %v3605 = vadd.f32 %v3564, %v3604
        %v3606 = vpop.f32.mrf.mxu0
        %v3607 = vpop.f32.mrf.mxu0
        %3608 = vdwg.mxu0
        %3609 = vmatprep.subr.bf16.mxu0 %v2816
        %3610 = vmatpush1.bf16.msra.mxu0 %v2815
        %3611 = vmatprep.subr.bf16.mxu0 %v2808
        %3612 = vmatpush1.bf16.msra.mxu0 %v2807
        %3613 = vmatprep.subr.bf16.mxu0 %v2800
        %3614 = vmatpush1.bf16.msra.mxu0 %v2799
        %3615 = vmatprep.subr.bf16.mxu0 %v2792
        %3616 = vmatpush1.bf16.msra.mxu0 %v2791
        %3617 = vmatprep.subr.bf16.mxu0 %v2784
        %3618 = vmatpush1.bf16.msra.mxu0 %v2783
        %3619 = vmatprep.subr.bf16.mxu0 %v2776
        %3620 = vmatpush1.bf16.msra.mxu0 %v2775
        %3621 = vmatprep.subr.bf16.mxu0 %v2768
        %3622 = vmatpush1.bf16.msra.mxu0 %v2767
        %3623 = vmatprep.subr.bf16.mxu0 %v2760
        %3624 = vmatpush1.bf16.msra.mxu0 %v2759
        %3625 = vmatprep.subr.bf16.mxu0 %v2880
        %3626 = vmatpush2.bf16.msra.mxu0 %v2879
        %3627 = vmatprep.subr.bf16.mxu0 %v2872
        %3628 = vmatpush2.bf16.msra.mxu0 %v2871
        %3629 = vmatprep.subr.bf16.mxu0 %v2864
        %3630 = vmatpush2.bf16.msra.mxu0 %v2863
        %3631 = vmatprep.subr.bf16.mxu0 %v2856
        %3632 = vmatpush2.bf16.msra.mxu0 %v2855
        %3633 = vmatprep.subr.bf16.mxu0 %v2848
        %3634 = vmatpush2.bf16.msra.mxu0 %v2847
        %3635 = vmatprep.subr.bf16.mxu0 %v2840
        %3636 = vmatpush2.bf16.msra.mxu0 %v2839
        %3637 = vmatprep.subr.bf16.mxu0 %v2832
        %3638 = vmatpush2.bf16.msra.mxu0 %v2831
        %3639 = vmatprep.subr.bf16.mxu0 %v2824
        %3640 = vmatpush2.bf16.msra.mxu0 %v2823
        %3641 = vmatprep.mubr.bf16.mxu0 %v956
        %3642 = vmatmul.mubr.bf16.gmra.mxu0 %v955
        %v3643 = vpop.f32.mrf.mxu0
        %v3644 = vadd.f32 %v3603, %v3643
        %v3645 = vpop.f32.mrf.mxu0
        %v3646 = vadd.f32 %v3605, %v3645
        %v3647 = vpop.f32.mrf.mxu0
        %v3648 = vpop.f32.mrf.mxu0
        %3649 = vdwg.mxu0
        %3650 = vmatprep.subr.bf16.mxu0 %v2944
        %3651 = vmatpush1.bf16.msra.mxu0 %v2943
        %3652 = vmatprep.subr.bf16.mxu0 %v2936
        %3653 = vmatpush1.bf16.msra.mxu0 %v2935
        %3654 = vmatprep.subr.bf16.mxu0 %v2928
        %3655 = vmatpush1.bf16.msra.mxu0 %v2927
        %3656 = vmatprep.subr.bf16.mxu0 %v2920
        %3657 = vmatpush1.bf16.msra.mxu0 %v2919
        %3658 = vmatprep.subr.bf16.mxu0 %v2912
        %3659 = vmatpush1.bf16.msra.mxu0 %v2911
        %3660 = vmatprep.subr.bf16.mxu0 %v2904
        %3661 = vmatpush1.bf16.msra.mxu0 %v2903
        %3662 = vmatprep.subr.bf16.mxu0 %v2896
        %3663 = vmatpush1.bf16.msra.mxu0 %v2895
        %3664 = vmatprep.subr.bf16.mxu0 %v2888
        %3665 = vmatpush1.bf16.msra.mxu0 %v2887
        %3666 = vmatprep.subr.bf16.mxu0 %v3008
        %3667 = vmatpush2.bf16.msra.mxu0 %v3007
        %3668 = vmatprep.subr.bf16.mxu0 %v3000
        %3669 = vmatpush2.bf16.msra.mxu0 %v2999
        %3670 = vmatprep.subr.bf16.mxu0 %v2992
        %3671 = vmatpush2.bf16.msra.mxu0 %v2991
        %3672 = vmatprep.subr.bf16.mxu0 %v2984
        %3673 = vmatpush2.bf16.msra.mxu0 %v2983
        %3674 = vmatprep.subr.bf16.mxu0 %v2976
        %3675 = vmatpush2.bf16.msra.mxu0 %v2975
        %3676 = vmatprep.subr.bf16.mxu0 %v2968
        %3677 = vmatpush2.bf16.msra.mxu0 %v2967
        %3678 = vmatprep.subr.bf16.mxu0 %v2960
        %3679 = vmatpush2.bf16.msra.mxu0 %v2959
        %3680 = vmatprep.subr.bf16.mxu0 %v2952
        %3681 = vmatpush2.bf16.msra.mxu0 %v2951
        %3682 = vmatprep.mubr.bf16.mxu0 %v958
        %3683 = vmatmul.mubr.bf16.gmra.mxu0 %v957
        %v3684 = vpop.f32.mrf.mxu0
        %v3685 = vadd.f32 %v3644, %v3684
        %v3686 = vpop.f32.mrf.mxu0
        %v3687 = vadd.f32 %v3646, %v3686
        %v3688 = vpop.f32.mrf.mxu0
        %v3689 = vpop.f32.mrf.mxu0
        %3690 = vdwg.mxu0
        %3691 = vmatprep.subr.bf16.mxu0 %v2562
        %3692 = vmatpush1.bf16.msra.mxu0 %v2561
        %3693 = vmatprep.subr.bf16.mxu0 %v2554
        %3694 = vmatpush1.bf16.msra.mxu0 %v2553
        %3695 = vmatprep.subr.bf16.mxu0 %v2546
        %3696 = vmatpush1.bf16.msra.mxu0 %v2545
        %3697 = vmatprep.subr.bf16.mxu0 %v2538
        %3698 = vmatpush1.bf16.msra.mxu0 %v2537
        %3699 = vmatprep.subr.bf16.mxu0 %v2530
        %3700 = vmatpush1.bf16.msra.mxu0 %v2529
        %3701 = vmatprep.subr.bf16.mxu0 %v2522
        %3702 = vmatpush1.bf16.msra.mxu0 %v2521
        %3703 = vmatprep.subr.bf16.mxu0 %v2514
        %3704 = vmatpush1.bf16.msra.mxu0 %v2513
        %3705 = vmatprep.subr.bf16.mxu0 %v2506
        %3706 = vmatpush1.bf16.msra.mxu0 %v2505
        %3707 = vmatprep.subr.bf16.mxu0 %v2626
        %3708 = vmatpush2.bf16.msra.mxu0 %v2625
        %3709 = vmatprep.subr.bf16.mxu0 %v2618
        %3710 = vmatpush2.bf16.msra.mxu0 %v2617
        %3711 = vmatprep.subr.bf16.mxu0 %v2610
        %3712 = vmatpush2.bf16.msra.mxu0 %v2609
        %3713 = vmatprep.subr.bf16.mxu0 %v2602
        %3714 = vmatpush2.bf16.msra.mxu0 %v2601
        %3715 = vmatprep.subr.bf16.mxu0 %v2594
        %3716 = vmatpush2.bf16.msra.mxu0 %v2593
        %3717 = vmatprep.subr.bf16.mxu0 %v2586
        %3718 = vmatpush2.bf16.msra.mxu0 %v2585
        %3719 = vmatprep.subr.bf16.mxu0 %v2578
        %3720 = vmatpush2.bf16.msra.mxu0 %v2577
        %3721 = vmatprep.subr.bf16.mxu0 %v2570
        %3722 = vmatpush2.bf16.msra.mxu0 %v2569
        %3723 = vmatprep.mubr.bf16.mxu0 %v952
        %3724 = vmatmul.mubr.bf16.gmra.mxu0 %v951
        %v3725 = vpop.f32.mrf.mxu0
        %v3726 = vadd.f32 0.0, %v3725
        %v3727 = vpop.f32.mrf.mxu0
        %v3728 = vadd.f32 0.0, %v3727
        %v3729 = vpop.f32.mrf.mxu0
        %v3730 = vpop.f32.mrf.mxu0
        %3731 = vdwg.mxu0
        %3732 = vmatprep.subr.bf16.mxu0 %v2690
        %3733 = vmatpush1.bf16.msra.mxu0 %v2689
        %3734 = vmatprep.subr.bf16.mxu0 %v2682
        %3735 = vmatpush1.bf16.msra.mxu0 %v2681
        %3736 = vmatprep.subr.bf16.mxu0 %v2674
        %3737 = vmatpush1.bf16.msra.mxu0 %v2673
        %3738 = vmatprep.subr.bf16.mxu0 %v2666
        %3739 = vmatpush1.bf16.msra.mxu0 %v2665
        %3740 = vmatprep.subr.bf16.mxu0 %v2658
        %3741 = vmatpush1.bf16.msra.mxu0 %v2657
        %3742 = vmatprep.subr.bf16.mxu0 %v2650
        %3743 = vmatpush1.bf16.msra.mxu0 %v2649
        %3744 = vmatprep.subr.bf16.mxu0 %v2642
        %3745 = vmatpush1.bf16.msra.mxu0 %v2641
        %3746 = vmatprep.subr.bf16.mxu0 %v2634
        %3747 = vmatpush1.bf16.msra.mxu0 %v2633
        %3748 = vmatprep.subr.bf16.mxu0 %v2754
        %3749 = vmatpush2.bf16.msra.mxu0 %v2753
        %3750 = vmatprep.subr.bf16.mxu0 %v2746
        %3751 = vmatpush2.bf16.msra.mxu0 %v2745
        %3752 = vmatprep.subr.bf16.mxu0 %v2738
        %3753 = vmatpush2.bf16.msra.mxu0 %v2737
        %3754 = vmatprep.subr.bf16.mxu0 %v2730
        %3755 = vmatpush2.bf16.msra.mxu0 %v2729
        %3756 = vmatprep.subr.bf16.mxu0 %v2722
        %3757 = vmatpush2.bf16.msra.mxu0 %v2721
        %3758 = vmatprep.subr.bf16.mxu0 %v2714
        %3759 = vmatpush2.bf16.msra.mxu0 %v2713
        %3760 = vmatprep.subr.bf16.mxu0 %v2706
        %3761 = vmatpush2.bf16.msra.mxu0 %v2705
        %3762 = vmatprep.subr.bf16.mxu0 %v2698
        %3763 = vmatpush2.bf16.msra.mxu0 %v2697
        %3764 = vmatprep.mubr.bf16.mxu0 %v954
        %3765 = vmatmul.mubr.bf16.gmra.mxu0 %v953
        %v3766 = vpop.f32.mrf.mxu0
        %v3767 = vadd.f32 %v3726, %v3766
        %v3768 = vpop.f32.mrf.mxu0
        %v3769 = vadd.f32 %v3728, %v3768
        %v3770 = vpop.f32.mrf.mxu0
        %v3771 = vpop.f32.mrf.mxu0
        %3772 = vdwg.mxu0
        %3773 = vmatprep.subr.bf16.mxu0 %v2818
        %3774 = vmatpush1.bf16.msra.mxu0 %v2817
        %3775 = vmatprep.subr.bf16.mxu0 %v2810
        %3776 = vmatpush1.bf16.msra.mxu0 %v2809
        %3777 = vmatprep.subr.bf16.mxu0 %v2802
        %3778 = vmatpush1.bf16.msra.mxu0 %v2801
        %3779 = vmatprep.subr.bf16.mxu0 %v2794
        %3780 = vmatpush1.bf16.msra.mxu0 %v2793
        %3781 = vmatprep.subr.bf16.mxu0 %v2786
        %3782 = vmatpush1.bf16.msra.mxu0 %v2785
        %3783 = vmatprep.subr.bf16.mxu0 %v2778
        %3784 = vmatpush1.bf16.msra.mxu0 %v2777
        %3785 = vmatprep.subr.bf16.mxu0 %v2770
        %3786 = vmatpush1.bf16.msra.mxu0 %v2769
        %3787 = vmatprep.subr.bf16.mxu0 %v2762
        %3788 = vmatpush1.bf16.msra.mxu0 %v2761
        %3789 = vmatprep.subr.bf16.mxu0 %v2882
        %3790 = vmatpush2.bf16.msra.mxu0 %v2881
        %3791 = vmatprep.subr.bf16.mxu0 %v2874
        %3792 = vmatpush2.bf16.msra.mxu0 %v2873
        %3793 = vmatprep.subr.bf16.mxu0 %v2866
        %3794 = vmatpush2.bf16.msra.mxu0 %v2865
        %3795 = vmatprep.subr.bf16.mxu0 %v2858
        %3796 = vmatpush2.bf16.msra.mxu0 %v2857
        %3797 = vmatprep.subr.bf16.mxu0 %v2850
        %3798 = vmatpush2.bf16.msra.mxu0 %v2849
        %3799 = vmatprep.subr.bf16.mxu0 %v2842
        %3800 = vmatpush2.bf16.msra.mxu0 %v2841
        %3801 = vmatprep.subr.bf16.mxu0 %v2834
        %3802 = vmatpush2.bf16.msra.mxu0 %v2833
        %3803 = vmatprep.subr.bf16.mxu0 %v2826
        %3804 = vmatpush2.bf16.msra.mxu0 %v2825
        %3805 = vmatprep.mubr.bf16.mxu0 %v956
        %3806 = vmatmul.mubr.bf16.gmra.mxu0 %v955
        %v3807 = vpop.f32.mrf.mxu0
        %v3808 = vadd.f32 %v3767, %v3807
        %v3809 = vpop.f32.mrf.mxu0
        %v3810 = vadd.f32 %v3769, %v3809
        %v3811 = vpop.f32.mrf.mxu0
        %v3812 = vpop.f32.mrf.mxu0
        %3813 = vdwg.mxu0
        %3814 = vmatprep.subr.bf16.mxu0 %v2946
        %3815 = vmatpush1.bf16.msra.mxu0 %v2945
        %3816 = vmatprep.subr.bf16.mxu0 %v2938
        %3817 = vmatpush1.bf16.msra.mxu0 %v2937
        %3818 = vmatprep.subr.bf16.mxu0 %v2930
        %3819 = vmatpush1.bf16.msra.mxu0 %v2929
        %3820 = vmatprep.subr.bf16.mxu0 %v2922
        %3821 = vmatpush1.bf16.msra.mxu0 %v2921
        %3822 = vmatprep.subr.bf16.mxu0 %v2914
        %3823 = vmatpush1.bf16.msra.mxu0 %v2913
        %3824 = vmatprep.subr.bf16.mxu0 %v2906
        %3825 = vmatpush1.bf16.msra.mxu0 %v2905
        %3826 = vmatprep.subr.bf16.mxu0 %v2898
        %3827 = vmatpush1.bf16.msra.mxu0 %v2897
        %3828 = vmatprep.subr.bf16.mxu0 %v2890
        %3829 = vmatpush1.bf16.msra.mxu0 %v2889
        %3830 = vmatprep.subr.bf16.mxu0 %v3010
        %3831 = vmatpush2.bf16.msra.mxu0 %v3009
        %3832 = vmatprep.subr.bf16.mxu0 %v3002
        %3833 = vmatpush2.bf16.msra.mxu0 %v3001
        %3834 = vmatprep.subr.bf16.mxu0 %v2994
        %3835 = vmatpush2.bf16.msra.mxu0 %v2993
        %3836 = vmatprep.subr.bf16.mxu0 %v2986
        %3837 = vmatpush2.bf16.msra.mxu0 %v2985
        %3838 = vmatprep.subr.bf16.mxu0 %v2978
        %3839 = vmatpush2.bf16.msra.mxu0 %v2977
        %3840 = vmatprep.subr.bf16.mxu0 %v2970
        %3841 = vmatpush2.bf16.msra.mxu0 %v2969
        %3842 = vmatprep.subr.bf16.mxu0 %v2962
        %3843 = vmatpush2.bf16.msra.mxu0 %v2961
        %3844 = vmatprep.subr.bf16.mxu0 %v2954
        %3845 = vmatpush2.bf16.msra.mxu0 %v2953
        %3846 = vmatprep.mubr.bf16.mxu0 %v958
        %3847 = vmatmul.mubr.bf16.gmra.mxu0 %v957
        %v3848 = vpop.f32.mrf.mxu0
        %v3849 = vadd.f32 %v3808, %v3848
        %v3850 = vpop.f32.mrf.mxu0
        %v3851 = vadd.f32 %v3810, %v3850
        %v3852 = vpop.f32.mrf.mxu0
        %v3853 = vpop.f32.mrf.mxu0
        %3854 = vdwg.mxu0
        %3855 = vmatprep.subr.bf16.mxu0 %v2564
        %3856 = vmatpush1.bf16.msra.mxu0 %v2563
        %3857 = vmatprep.subr.bf16.mxu0 %v2556
        %3858 = vmatpush1.bf16.msra.mxu0 %v2555
        %3859 = vmatprep.subr.bf16.mxu0 %v2548
        %3860 = vmatpush1.bf16.msra.mxu0 %v2547
        %3861 = vmatprep.subr.bf16.mxu0 %v2540
        %3862 = vmatpush1.bf16.msra.mxu0 %v2539
        %3863 = vmatprep.subr.bf16.mxu0 %v2532
        %3864 = vmatpush1.bf16.msra.mxu0 %v2531
        %3865 = vmatprep.subr.bf16.mxu0 %v2524
        %3866 = vmatpush1.bf16.msra.mxu0 %v2523
        %3867 = vmatprep.subr.bf16.mxu0 %v2516
        %3868 = vmatpush1.bf16.msra.mxu0 %v2515
        %3869 = vmatprep.subr.bf16.mxu0 %v2508
        %3870 = vmatpush1.bf16.msra.mxu0 %v2507
        %3871 = vmatprep.subr.bf16.mxu0 %v2628
        %3872 = vmatpush2.bf16.msra.mxu0 %v2627
        %3873 = vmatprep.subr.bf16.mxu0 %v2620
        %3874 = vmatpush2.bf16.msra.mxu0 %v2619
        %3875 = vmatprep.subr.bf16.mxu0 %v2612
        %3876 = vmatpush2.bf16.msra.mxu0 %v2611
        %3877 = vmatprep.subr.bf16.mxu0 %v2604
        %3878 = vmatpush2.bf16.msra.mxu0 %v2603
        %3879 = vmatprep.subr.bf16.mxu0 %v2596
        %3880 = vmatpush2.bf16.msra.mxu0 %v2595
        %3881 = vmatprep.subr.bf16.mxu0 %v2588
        %3882 = vmatpush2.bf16.msra.mxu0 %v2587
        %3883 = vmatprep.subr.bf16.mxu0 %v2580
        %3884 = vmatpush2.bf16.msra.mxu0 %v2579
        %3885 = vmatprep.subr.bf16.mxu0 %v2572
        %3886 = vmatpush2.bf16.msra.mxu0 %v2571
        %3887 = vmatprep.mubr.bf16.mxu0 %v952
        %3888 = vmatmul.mubr.bf16.gmra.mxu0 %v951
        %v3889 = vpop.f32.mrf.mxu0
        %v3890 = vadd.f32 0.0, %v3889
        %v3891 = vpop.f32.mrf.mxu0
        %v3892 = vadd.f32 0.0, %v3891
        %v3893 = vpop.f32.mrf.mxu0
        %v3894 = vpop.f32.mrf.mxu0
        %3895 = vdwg.mxu0
        %3896 = vmatprep.subr.bf16.mxu0 %v2692
        %3897 = vmatpush1.bf16.msra.mxu0 %v2691
        %3898 = vmatprep.subr.bf16.mxu0 %v2684
        %3899 = vmatpush1.bf16.msra.mxu0 %v2683
        %3900 = vmatprep.subr.bf16.mxu0 %v2676
        %3901 = vmatpush1.bf16.msra.mxu0 %v2675
        %3902 = vmatprep.subr.bf16.mxu0 %v2668
        %3903 = vmatpush1.bf16.msra.mxu0 %v2667
        %3904 = vmatprep.subr.bf16.mxu0 %v2660
        %3905 = vmatpush1.bf16.msra.mxu0 %v2659
        %3906 = vmatprep.subr.bf16.mxu0 %v2652
        %3907 = vmatpush1.bf16.msra.mxu0 %v2651
        %3908 = vmatprep.subr.bf16.mxu0 %v2644
        %3909 = vmatpush1.bf16.msra.mxu0 %v2643
        %3910 = vmatprep.subr.bf16.mxu0 %v2636
        %3911 = vmatpush1.bf16.msra.mxu0 %v2635
        %3912 = vmatprep.subr.bf16.mxu0 %v2756
        %3913 = vmatpush2.bf16.msra.mxu0 %v2755
        %3914 = vmatprep.subr.bf16.mxu0 %v2748
        %3915 = vmatpush2.bf16.msra.mxu0 %v2747
        %3916 = vmatprep.subr.bf16.mxu0 %v2740
        %3917 = vmatpush2.bf16.msra.mxu0 %v2739
        %3918 = vmatprep.subr.bf16.mxu0 %v2732
        %3919 = vmatpush2.bf16.msra.mxu0 %v2731
        %3920 = vmatprep.subr.bf16.mxu0 %v2724
        %3921 = vmatpush2.bf16.msra.mxu0 %v2723
        %3922 = vmatprep.subr.bf16.mxu0 %v2716
        %3923 = vmatpush2.bf16.msra.mxu0 %v2715
        %3924 = vmatprep.subr.bf16.mxu0 %v2708
        %3925 = vmatpush2.bf16.msra.mxu0 %v2707
        %3926 = vmatprep.subr.bf16.mxu0 %v2700
        %3927 = vmatpush2.bf16.msra.mxu0 %v2699
        %3928 = vmatprep.mubr.bf16.mxu0 %v954
        %3929 = vmatmul.mubr.bf16.gmra.mxu0 %v953
        %v3930 = vpop.f32.mrf.mxu0
        %v3931 = vadd.f32 %v3890, %v3930
        %v3932 = vpop.f32.mrf.mxu0
        %v3933 = vadd.f32 %v3892, %v3932
        %v3934 = vpop.f32.mrf.mxu0
        %v3935 = vpop.f32.mrf.mxu0
        %3936 = vdwg.mxu0
        %3937 = vmatprep.subr.bf16.mxu0 %v2820
        %3938 = vmatpush1.bf16.msra.mxu0 %v2819
        %3939 = vmatprep.subr.bf16.mxu0 %v2812
        %3940 = vmatpush1.bf16.msra.mxu0 %v2811
        %3941 = vmatprep.subr.bf16.mxu0 %v2804
        %3942 = vmatpush1.bf16.msra.mxu0 %v2803
        %3943 = vmatprep.subr.bf16.mxu0 %v2796
        %3944 = vmatpush1.bf16.msra.mxu0 %v2795
        %3945 = vmatprep.subr.bf16.mxu0 %v2788
        %3946 = vmatpush1.bf16.msra.mxu0 %v2787
        %3947 = vmatprep.subr.bf16.mxu0 %v2780
        %3948 = vmatpush1.bf16.msra.mxu0 %v2779
        %3949 = vmatprep.subr.bf16.mxu0 %v2772
        %3950 = vmatpush1.bf16.msra.mxu0 %v2771
        %3951 = vmatprep.subr.bf16.mxu0 %v2764
        %3952 = vmatpush1.bf16.msra.mxu0 %v2763
        %3953 = vmatprep.subr.bf16.mxu0 %v2884
        %3954 = vmatpush2.bf16.msra.mxu0 %v2883
        %3955 = vmatprep.subr.bf16.mxu0 %v2876
        %3956 = vmatpush2.bf16.msra.mxu0 %v2875
        %3957 = vmatprep.subr.bf16.mxu0 %v2868
        %3958 = vmatpush2.bf16.msra.mxu0 %v2867
        %3959 = vmatprep.subr.bf16.mxu0 %v2860
        %3960 = vmatpush2.bf16.msra.mxu0 %v2859
        %3961 = vmatprep.subr.bf16.mxu0 %v2852
        %3962 = vmatpush2.bf16.msra.mxu0 %v2851
        %3963 = vmatprep.subr.bf16.mxu0 %v2844
        %3964 = vmatpush2.bf16.msra.mxu0 %v2843
        %3965 = vmatprep.subr.bf16.mxu0 %v2836
        %3966 = vmatpush2.bf16.msra.mxu0 %v2835
        %3967 = vmatprep.subr.bf16.mxu0 %v2828
        %3968 = vmatpush2.bf16.msra.mxu0 %v2827
        %3969 = vmatprep.mubr.bf16.mxu0 %v956
        %3970 = vmatmul.mubr.bf16.gmra.mxu0 %v955
        %v3971 = vpop.f32.mrf.mxu0
        %v3972 = vadd.f32 %v3931, %v3971
        %v3973 = vpop.f32.mrf.mxu0
        %v3974 = vadd.f32 %v3933, %v3973
        %v3975 = vpop.f32.mrf.mxu0
        %v3976 = vpop.f32.mrf.mxu0
        %3977 = vdwg.mxu0
        %3978 = vmatprep.subr.bf16.mxu0 %v2948
        %3979 = vmatpush1.bf16.msra.mxu0 %v2947
        %3980 = vmatprep.subr.bf16.mxu0 %v2940
        %3981 = vmatpush1.bf16.msra.mxu0 %v2939
        %3982 = vmatprep.subr.bf16.mxu0 %v2932
        %3983 = vmatpush1.bf16.msra.mxu0 %v2931
        %3984 = vmatprep.subr.bf16.mxu0 %v2924
        %3985 = vmatpush1.bf16.msra.mxu0 %v2923
        %3986 = vmatprep.subr.bf16.mxu0 %v2916
        %3987 = vmatpush1.bf16.msra.mxu0 %v2915
        %3988 = vmatprep.subr.bf16.mxu0 %v2908
        %3989 = vmatpush1.bf16.msra.mxu0 %v2907
        %3990 = vmatprep.subr.bf16.mxu0 %v2900
        %3991 = vmatpush1.bf16.msra.mxu0 %v2899
        %3992 = vmatprep.subr.bf16.mxu0 %v2892
        %3993 = vmatpush1.bf16.msra.mxu0 %v2891
        %3994 = vmatprep.subr.bf16.mxu0 %v3012
        %3995 = vmatpush2.bf16.msra.mxu0 %v3011
        %3996 = vmatprep.subr.bf16.mxu0 %v3004
        %3997 = vmatpush2.bf16.msra.mxu0 %v3003
        %3998 = vmatprep.subr.bf16.mxu0 %v2996
        %3999 = vmatpush2.bf16.msra.mxu0 %v2995
        %4000 = vmatprep.subr.bf16.mxu0 %v2988
        %4001 = vmatpush2.bf16.msra.mxu0 %v2987
        %4002 = vmatprep.subr.bf16.mxu0 %v2980
        %4003 = vmatpush2.bf16.msra.mxu0 %v2979
        %4004 = vmatprep.subr.bf16.mxu0 %v2972
        %4005 = vmatpush2.bf16.msra.mxu0 %v2971
        %4006 = vmatprep.subr.bf16.mxu0 %v2964
        %4007 = vmatpush2.bf16.msra.mxu0 %v2963
        %4008 = vmatprep.subr.bf16.mxu0 %v2956
        %4009 = vmatpush2.bf16.msra.mxu0 %v2955
        %4010 = vmatprep.mubr.bf16.mxu0 %v958
        %4011 = vmatmul.mubr.bf16.gmra.mxu0 %v957
        %v4012 = vpop.f32.mrf.mxu0
        %v4013 = vadd.f32 %v3972, %v4012
        %v4014 = vpop.f32.mrf.mxu0
        %v4015 = vadd.f32 %v3974, %v4014
        %v4016 = vpop.f32.mrf.mxu0
        %v4017 = vpop.f32.mrf.mxu0
        %4018 = vdwg.mxu0
        %4019 = vmatprep.subr.bf16.mxu0 %v2566
        %4020 = vmatpush1.bf16.msra.mxu0 %v2565
        %4021 = vmatprep.subr.bf16.mxu0 %v2558
        %4022 = vmatpush1.bf16.msra.mxu0 %v2557
        %4023 = vmatprep.subr.bf16.mxu0 %v2550
        %4024 = vmatpush1.bf16.msra.mxu0 %v2549
        %4025 = vmatprep.subr.bf16.mxu0 %v2542
        %4026 = vmatpush1.bf16.msra.mxu0 %v2541
        %4027 = vmatprep.subr.bf16.mxu0 %v2534
        %4028 = vmatpush1.bf16.msra.mxu0 %v2533
        %4029 = vmatprep.subr.bf16.mxu0 %v2526
        %4030 = vmatpush1.bf16.msra.mxu0 %v2525
        %4031 = vmatprep.subr.bf16.mxu0 %v2518
        %4032 = vmatpush1.bf16.msra.mxu0 %v2517
        %4033 = vmatprep.subr.bf16.mxu0 %v2510
        %4034 = vmatpush1.bf16.msra.mxu0 %v2509
        %4035 = vmatprep.subr.bf16.mxu0 %v2630
        %4036 = vmatpush2.bf16.msra.mxu0 %v2629
        %4037 = vmatprep.subr.bf16.mxu0 %v2622
        %4038 = vmatpush2.bf16.msra.mxu0 %v2621
        %4039 = vmatprep.subr.bf16.mxu0 %v2614
        %4040 = vmatpush2.bf16.msra.mxu0 %v2613
        %4041 = vmatprep.subr.bf16.mxu0 %v2606
        %4042 = vmatpush2.bf16.msra.mxu0 %v2605
        %4043 = vmatprep.subr.bf16.mxu0 %v2598
        %4044 = vmatpush2.bf16.msra.mxu0 %v2597
        %4045 = vmatprep.subr.bf16.mxu0 %v2590
        %4046 = vmatpush2.bf16.msra.mxu0 %v2589
        %4047 = vmatprep.subr.bf16.mxu0 %v2582
        %4048 = vmatpush2.bf16.msra.mxu0 %v2581
        %4049 = vmatprep.subr.bf16.mxu0 %v2574
        %4050 = vmatpush2.bf16.msra.mxu0 %v2573
        %4051 = vmatprep.mubr.bf16.mxu0 %v952
        %4052 = vmatmul.mubr.bf16.gmra.mxu0 %v951
        %v4053 = vpop.f32.mrf.mxu0
        %v4054 = vadd.f32 0.0, %v4053
        %v4055 = vpop.f32.mrf.mxu0
        %v4056 = vadd.f32 0.0, %v4055
        %v4057 = vpop.f32.mrf.mxu0
        %v4058 = vpop.f32.mrf.mxu0
        %4059 = vdwg.mxu0
        %4060 = vmatprep.subr.bf16.mxu0 %v2694
        %4061 = vmatpush1.bf16.msra.mxu0 %v2693
        %4062 = vmatprep.subr.bf16.mxu0 %v2686
        %4063 = vmatpush1.bf16.msra.mxu0 %v2685
        %4064 = vmatprep.subr.bf16.mxu0 %v2678
        %4065 = vmatpush1.bf16.msra.mxu0 %v2677
        %4066 = vmatprep.subr.bf16.mxu0 %v2670
        %4067 = vmatpush1.bf16.msra.mxu0 %v2669
        %4068 = vmatprep.subr.bf16.mxu0 %v2662
        %4069 = vmatpush1.bf16.msra.mxu0 %v2661
        %4070 = vmatprep.subr.bf16.mxu0 %v2654
        %4071 = vmatpush1.bf16.msra.mxu0 %v2653
        %4072 = vmatprep.subr.bf16.mxu0 %v2646
        %4073 = vmatpush1.bf16.msra.mxu0 %v2645
        %4074 = vmatprep.subr.bf16.mxu0 %v2638
        %4075 = vmatpush1.bf16.msra.mxu0 %v2637
        %4076 = vmatprep.subr.bf16.mxu0 %v2758
        %4077 = vmatpush2.bf16.msra.mxu0 %v2757
        %4078 = vmatprep.subr.bf16.mxu0 %v2750
        %4079 = vmatpush2.bf16.msra.mxu0 %v2749
        %4080 = vmatprep.subr.bf16.mxu0 %v2742
        %4081 = vmatpush2.bf16.msra.mxu0 %v2741
        %4082 = vmatprep.subr.bf16.mxu0 %v2734
        %4083 = vmatpush2.bf16.msra.mxu0 %v2733
        %4084 = vmatprep.subr.bf16.mxu0 %v2726
        %4085 = vmatpush2.bf16.msra.mxu0 %v2725
        %4086 = vmatprep.subr.bf16.mxu0 %v2718
        %4087 = vmatpush2.bf16.msra.mxu0 %v2717
        %4088 = vmatprep.subr.bf16.mxu0 %v2710
        %4089 = vmatpush2.bf16.msra.mxu0 %v2709
        %4090 = vmatprep.subr.bf16.mxu0 %v2702
        %4091 = vmatpush2.bf16.msra.mxu0 %v2701
        %4092 = vmatprep.mubr.bf16.mxu0 %v954
        %4093 = vmatmul.mubr.bf16.gmra.mxu0 %v953
        %v4094 = vpop.f32.mrf.mxu0
        %v4095 = vadd.f32 %v4054, %v4094
        %v4096 = vpop.f32.mrf.mxu0
        %v4097 = vadd.f32 %v4056, %v4096
        %v4098 = vpop.f32.mrf.mxu0
        %v4099 = vpop.f32.mrf.mxu0
        %4100 = vdwg.mxu0
        %4101 = vmatprep.subr.bf16.mxu0 %v2822
        %4102 = vmatpush1.bf16.msra.mxu0 %v2821
        %4103 = vmatprep.subr.bf16.mxu0 %v2814
        %4104 = vmatpush1.bf16.msra.mxu0 %v2813
        %4105 = vmatprep.subr.bf16.mxu0 %v2806
        %4106 = vmatpush1.bf16.msra.mxu0 %v2805
        %4107 = vmatprep.subr.bf16.mxu0 %v2798
        %4108 = vmatpush1.bf16.msra.mxu0 %v2797
        %4109 = vmatprep.subr.bf16.mxu0 %v2790
        %4110 = vmatpush1.bf16.msra.mxu0 %v2789
        %4111 = vmatprep.subr.bf16.mxu0 %v2782
        %4112 = vmatpush1.bf16.msra.mxu0 %v2781
        %4113 = vmatprep.subr.bf16.mxu0 %v2774
        %4114 = vmatpush1.bf16.msra.mxu0 %v2773
        %4115 = vmatprep.subr.bf16.mxu0 %v2766
        %4116 = vmatpush1.bf16.msra.mxu0 %v2765
        %4117 = vmatprep.subr.bf16.mxu0 %v2886
        %4118 = vmatpush2.bf16.msra.mxu0 %v2885
        %4119 = vmatprep.subr.bf16.mxu0 %v2878
        %4120 = vmatpush2.bf16.msra.mxu0 %v2877
        %4121 = vmatprep.subr.bf16.mxu0 %v2870
        %4122 = vmatpush2.bf16.msra.mxu0 %v2869
        %4123 = vmatprep.subr.bf16.mxu0 %v2862
        %4124 = vmatpush2.bf16.msra.mxu0 %v2861
        %4125 = vmatprep.subr.bf16.mxu0 %v2854
        %4126 = vmatpush2.bf16.msra.mxu0 %v2853
        %4127 = vmatprep.subr.bf16.mxu0 %v2846
        %4128 = vmatpush2.bf16.msra.mxu0 %v2845
        %4129 = vmatprep.subr.bf16.mxu0 %v2838
        %4130 = vmatpush2.bf16.msra.mxu0 %v2837
        %4131 = vmatprep.subr.bf16.mxu0 %v2830
        %4132 = vmatpush2.bf16.msra.mxu0 %v2829
        %4133 = vmatprep.mubr.bf16.mxu0 %v956
        %4134 = vmatmul.mubr.bf16.gmra.mxu0 %v955
        %v4135 = vpop.f32.mrf.mxu0
        %v4136 = vadd.f32 %v4095, %v4135
        %v4137 = vpop.f32.mrf.mxu0
        %v4138 = vadd.f32 %v4097, %v4137
        %v4139 = vpop.f32.mrf.mxu0
        %v4140 = vpop.f32.mrf.mxu0
        %4141 = vdwg.mxu0
        %4142 = vmatprep.subr.bf16.mxu0 %v2950
        %4143 = vmatpush1.bf16.msra.mxu0 %v2949
        %4144 = vmatprep.subr.bf16.mxu0 %v2942
        %4145 = vmatpush1.bf16.msra.mxu0 %v2941
        %4146 = vmatprep.subr.bf16.mxu0 %v2934
        %4147 = vmatpush1.bf16.msra.mxu0 %v2933
        %4148 = vmatprep.subr.bf16.mxu0 %v2926
        %4149 = vmatpush1.bf16.msra.mxu0 %v2925
        %4150 = vmatprep.subr.bf16.mxu0 %v2918
        %4151 = vmatpush1.bf16.msra.mxu0 %v2917
        %4152 = vmatprep.subr.bf16.mxu0 %v2910
        %4153 = vmatpush1.bf16.msra.mxu0 %v2909
        %4154 = vmatprep.subr.bf16.mxu0 %v2902
        %4155 = vmatpush1.bf16.msra.mxu0 %v2901
        %4156 = vmatprep.subr.bf16.mxu0 %v2894
        %4157 = vmatpush1.bf16.msra.mxu0 %v2893
        %4158 = vmatprep.subr.bf16.mxu0 %v3014
        %4159 = vmatpush2.bf16.msra.mxu0 %v3013
        %4160 = vmatprep.subr.bf16.mxu0 %v3006
        %4161 = vmatpush2.bf16.msra.mxu0 %v3005
        %4162 = vmatprep.subr.bf16.mxu0 %v2998
        %4163 = vmatpush2.bf16.msra.mxu0 %v2997
        %4164 = vmatprep.subr.bf16.mxu0 %v2990
        %4165 = vmatpush2.bf16.msra.mxu0 %v2989
        %4166 = vmatprep.subr.bf16.mxu0 %v2982
        %4167 = vmatpush2.bf16.msra.mxu0 %v2981
        %4168 = vmatprep.subr.bf16.mxu0 %v2974
        %4169 = vmatpush2.bf16.msra.mxu0 %v2973
        %4170 = vmatprep.subr.bf16.mxu0 %v2966
        %4171 = vmatpush2.bf16.msra.mxu0 %v2965
        %4172 = vmatprep.subr.bf16.mxu0 %v2958
        %4173 = vmatpush2.bf16.msra.mxu0 %v2957
        %4174 = vmatprep.mubr.bf16.mxu0 %v958
        %4175 = vmatmul.mubr.bf16.gmra.mxu0 %v957
        %v4176 = vpop.f32.mrf.mxu0
        %v4177 = vadd.f32 %v4136, %v4176
        %v4178 = vpop.f32.mrf.mxu0
        %v4179 = vadd.f32 %v4138, %v4178
        %v4180 = vpop.f32.mrf.mxu0
        %v4181 = vpop.f32.mrf.mxu0
        %4182 = vdwg.mxu0
        %v4183 = vld [vmem:[#allocation2] sm:$0xff]
        %v4184 = vrot.slane %v3685, 4
        %v4185 = vadd.f32 %v3685, %v4184
        %v4186 = vrot.slane %v4185, 2
        %v4187 = vadd.f32 %v4185, %v4186
        %v4188 = vrot.slane %v4187, 1
        %v4189 = vadd.f32 %v4187, %v4188
        %v4190 = vrot.slane %v3687, 4
        %v4191 = vadd.f32 %v3687, %v4190
        %v4192 = vrot.slane %v4191, 2
        %v4193 = vadd.f32 %v4191, %v4192
        %v4194 = vrot.slane %v4193, 1
        %v4195 = vadd.f32 %v4193, %v4194
        %v4196 = vrot.slane %v3849, 4
        %v4197 = vadd.f32 %v3849, %v4196
        %v4198 = vrot.slane %v4197, 2
        %v4199 = vadd.f32 %v4197, %v4198
        %v4200 = vrot.slane %v4199, 1
        %v4201 = vadd.f32 %v4199, %v4200
        %v4202 = vrot.slane %v3851, 4
        %v4203 = vadd.f32 %v3851, %v4202
        %v4204 = vrot.slane %v4203, 2
        %v4205 = vadd.f32 %v4203, %v4204
        %v4206 = vrot.slane %v4205, 1
        %v4207 = vadd.f32 %v4205, %v4206
        %v4208 = vrot.slane %v4013, 4
        %v4209 = vadd.f32 %v4013, %v4208
        %v4210 = vrot.slane %v4209, 2
        %v4211 = vadd.f32 %v4209, %v4210
        %v4212 = vrot.slane %v4211, 1
        %v4213 = vadd.f32 %v4211, %v4212
        %v4214 = vrot.slane %v4015, 4
        %v4215 = vadd.f32 %v4015, %v4214
        %v4216 = vrot.slane %v4215, 2
        %v4217 = vadd.f32 %v4215, %v4216
        %v4218 = vrot.slane %v4217, 1
        %v4219 = vadd.f32 %v4217, %v4218
        %v4220 = vrot.slane %v4177, 4
        %v4221 = vadd.f32 %v4177, %v4220
        %v4222 = vrot.slane %v4221, 2
        %v4223 = vadd.f32 %v4221, %v4222
        %v4224 = vrot.slane %v4223, 1
        %v4225 = vadd.f32 %v4223, %v4224
        %v4226 = vrot.slane %v4179, 4
        %v4227 = vadd.f32 %v4179, %v4226
        %v4228 = vrot.slane %v4227, 2
        %v4229 = vadd.f32 %v4227, %v4228
        %v4230 = vrot.slane %v4229, 1
        %v4231 = vadd.f32 %v4229, %v4230
        %v4240 = vcombine.low %v4189, %v4195
        %v4241 = vcombine.low %v4201, %v4207
        %v4242 = vcombine.low %v4213, %v4219
        %v4243 = vcombine.low %v4225, %v4231
        %v4245 = vunpack.c.l.s4 1966171168
        %v4246 = vunpack.c.0.s8 %v4245
        %v4247 = vlaneseq
        %v4248 = vshrl.u32 %v4247, 7
        %v4249 = vsub.s32 %v4246, %v4248
        %v4250 = vrot.slane %v4240, %v4249
        %v4252 = vunpack.c.l.s4 1966171168
        %v4253 = vunpack.c.0.s8 %v4252
        %v4254 = vlaneseq
        %v4255 = vshrl.u32 %v4254, 7
        %v4256 = vsub.s32 %v4253, %v4255
        %v4257 = vrot.slane %v4241, %v4256
        %v4259 = vunpack.c.l.s4 1966171168
        %v4260 = vunpack.c.0.s8 %v4259
        %v4261 = vlaneseq
        %v4262 = vshrl.u32 %v4261, 7
        %v4263 = vsub.s32 %v4260, %v4262
        %v4264 = vrot.slane %v4242, %v4263
        %v4266 = vunpack.c.l.s4 1966171168
        %v4267 = vunpack.c.0.s8 %v4266
        %v4268 = vlaneseq
        %v4269 = vshrl.u32 %v4268, 7
        %v4270 = vsub.s32 %v4267, %v4269
        %v4271 = vrot.slane %v4243, %v4270
        %v4272 = vcombine.low %v4250, %v4257
        %v4273 = vcombine.low %v4264, %v4271
        %v4275 = vunpack.c.l.s4 1966171168
        %v4276 = vunpack.c.0.s8 %v4275
        %v4277 = vlaneseq
        %v4278 = vshrl.u32 %v4277, 7
        %v4279 = vsub.s32 %v4276, %v4278
        %v4280 = vrot.slane %v4272, %v4279
        %v4282 = vunpack.c.l.s4 1966171168
        %v4283 = vunpack.c.0.s8 %v4282
        %v4284 = vlaneseq
        %v4285 = vshrl.u32 %v4284, 7
        %v4286 = vsub.s32 %v4283, %v4285
        %v4287 = vrot.slane %v4273, %v4286
        %v4288 = vcombine.low %v4280, %v4287
        %v4290 = vadd.f32 %v4183, %v4288
        %4291 = vst [vmem:[#allocation2] sm:$0xff] %v4290
        %v4292 = vld [vmem:[#allocation3] sm:$0xff]
        %v4293 = vunpack.c.l.bf16 %v423
        %v4294 = vunpack.c.h.bf16 %v423
        %v4295 = vunpack.c.l.bf16 %v424
        %v4296 = vunpack.c.h.bf16 %v424
        %v4297 = vunpack.c.l.bf16 %v425
        %v4298 = vunpack.c.h.bf16 %v425
        %v4299 = vunpack.c.l.bf16 %v426
        %v4300 = vunpack.c.h.bf16 %v426
        %v4301 = vrot.slane %v4293, 4
        %v4302 = vadd.f32 %v4293, %v4301
        %v4303 = vrot.slane %v4302, 2
        %v4304 = vadd.f32 %v4302, %v4303
        %v4305 = vrot.slane %v4304, 1
        %v4306 = vadd.f32 %v4304, %v4305
        %v4307 = vrot.slane %v4294, 4
        %v4308 = vadd.f32 %v4294, %v4307
        %v4309 = vrot.slane %v4308, 2
        %v4310 = vadd.f32 %v4308, %v4309
        %v4311 = vrot.slane %v4310, 1
        %v4312 = vadd.f32 %v4310, %v4311
        %v4313 = vrot.slane %v4295, 4
        %v4314 = vadd.f32 %v4295, %v4313
        %v4315 = vrot.slane %v4314, 2
        %v4316 = vadd.f32 %v4314, %v4315
        %v4317 = vrot.slane %v4316, 1
        %v4318 = vadd.f32 %v4316, %v4317
        %v4319 = vrot.slane %v4296, 4
        %v4320 = vadd.f32 %v4296, %v4319
        %v4321 = vrot.slane %v4320, 2
        %v4322 = vadd.f32 %v4320, %v4321
        %v4323 = vrot.slane %v4322, 1
        %v4324 = vadd.f32 %v4322, %v4323
        %v4325 = vrot.slane %v4297, 4
        %v4326 = vadd.f32 %v4297, %v4325
        %v4327 = vrot.slane %v4326, 2
        %v4328 = vadd.f32 %v4326, %v4327
        %v4329 = vrot.slane %v4328, 1
        %v4330 = vadd.f32 %v4328, %v4329
        %v4331 = vrot.slane %v4298, 4
        %v4332 = vadd.f32 %v4298, %v4331
        %v4333 = vrot.slane %v4332, 2
        %v4334 = vadd.f32 %v4332, %v4333
        %v4335 = vrot.slane %v4334, 1
        %v4336 = vadd.f32 %v4334, %v4335
        %v4337 = vrot.slane %v4299, 4
        %v4338 = vadd.f32 %v4299, %v4337
        %v4339 = vrot.slane %v4338, 2
        %v4340 = vadd.f32 %v4338, %v4339
        %v4341 = vrot.slane %v4340, 1
        %v4342 = vadd.f32 %v4340, %v4341
        %v4343 = vrot.slane %v4300, 4
        %v4344 = vadd.f32 %v4300, %v4343
        %v4345 = vrot.slane %v4344, 2
        %v4346 = vadd.f32 %v4344, %v4345
        %v4347 = vrot.slane %v4346, 1
        %v4348 = vadd.f32 %v4346, %v4347
        %v4357 = vcombine.low %v4306, %v4312
        %v4358 = vcombine.low %v4318, %v4324
        %v4359 = vcombine.low %v4330, %v4336
        %v4360 = vcombine.low %v4342, %v4348
        %v4362 = vunpack.c.l.s4 1966171168
        %v4363 = vunpack.c.0.s8 %v4362
        %v4364 = vlaneseq
        %v4365 = vshrl.u32 %v4364, 7
        %v4366 = vsub.s32 %v4363, %v4365
        %v4367 = vrot.slane %v4357, %v4366
        %v4369 = vunpack.c.l.s4 1966171168
        %v4370 = vunpack.c.0.s8 %v4369
        %v4371 = vlaneseq
        %v4372 = vshrl.u32 %v4371, 7
        %v4373 = vsub.s32 %v4370, %v4372
        %v4374 = vrot.slane %v4358, %v4373
        %v4376 = vunpack.c.l.s4 1966171168
        %v4377 = vunpack.c.0.s8 %v4376
        %v4378 = vlaneseq
        %v4379 = vshrl.u32 %v4378, 7
        %v4380 = vsub.s32 %v4377, %v4379
        %v4381 = vrot.slane %v4359, %v4380
        %v4383 = vunpack.c.l.s4 1966171168
        %v4384 = vunpack.c.0.s8 %v4383
        %v4385 = vlaneseq
        %v4386 = vshrl.u32 %v4385, 7
        %v4387 = vsub.s32 %v4384, %v4386
        %v4388 = vrot.slane %v4360, %v4387
        %v4389 = vcombine.low %v4367, %v4374
        %v4390 = vcombine.low %v4381, %v4388
        %v4392 = vunpack.c.l.s4 1966171168
        %v4393 = vunpack.c.0.s8 %v4392
        %v4394 = vlaneseq
        %v4395 = vshrl.u32 %v4394, 7
        %v4396 = vsub.s32 %v4393, %v4395
        %v4397 = vrot.slane %v4389, %v4396
        %v4399 = vunpack.c.l.s4 1966171168
        %v4400 = vunpack.c.0.s8 %v4399
        %v4401 = vlaneseq
        %v4402 = vshrl.u32 %v4401, 7
        %v4403 = vsub.s32 %v4400, %v4402
        %v4404 = vrot.slane %v4390, %v4403
        %v4405 = vcombine.low %v4397, %v4404
        %v4407 = vadd.f32 %v4292, %v4405
        %4408 = vst [vmem:[#allocation3] sm:$0xff] %v4407
        // Predicated region
        $region85: #{tpu_custom_call.1} parent=51 // pred_check
          %p4409 = pneg %p417
        $region86: #{tpu_custom_call.1} parent=51 // pred_check_branch
          %4411 = sbr.rel (%p4409) target = $region88
        $region87: #{tpu_custom_call.1} parent=51 // pred_region
          %v4412 = vld [vmem:[#allocation3] sm:$0xff]
          %v4414 = vlaneseq
          %v4415 = vshrl.u32 %v4414, 7
          %v4416 = vsub.s32 0, %v4415
          %v4417 = vrot.slane %v4412, %v4416
          %v4418 = vlaneseq
          %v4419 = vshrl.u32 %v4418, 7
          %v4420 = vsub.s32 1, %v4419
          %v4421 = vrot.slane %v4412, %v4420
          %v4422 = vlaneseq
          %v4423 = vshrl.u32 %v4422, 7
          %v4424 = vsub.s32 2, %v4423
          %v4425 = vrot.slane %v4412, %v4424
          %v4426 = vlaneseq
          %v4427 = vshrl.u32 %v4426, 7
          %v4428 = vsub.s32 3, %v4427
          %v4429 = vrot.slane %v4412, %v4428
          %v4430 = vlaneseq
          %v4431 = vshrl.u32 %v4430, 7
          %v4432 = vsub.s32 4, %v4431
          %v4433 = vrot.slane %v4412, %v4432
          %v4434 = vlaneseq
          %v4435 = vshrl.u32 %v4434, 7
          %v4436 = vsub.s32 5, %v4435
          %v4437 = vrot.slane %v4412, %v4436
          %v4438 = vlaneseq
          %v4439 = vshrl.u32 %v4438, 7
          %v4440 = vsub.s32 6, %v4439
          %v4441 = vrot.slane %v4412, %v4440
          %v4442 = vlaneseq
          %v4443 = vshrl.u32 %v4442, 7
          %v4444 = vsub.s32 7, %v4443
          %v4445 = vrot.slane %v4412, %v4444
          %v4454 = vpack.c.bf16 %v4417, %v4417
          %v4455 = vpack.c.bf16 %v4421, %v4421
          %v4456 = vpack.c.bf16 %v4425, %v4425
          %v4457 = vpack.c.bf16 %v4429, %v4429
          %v4458 = vpack.c.bf16 %v4433, %v4433
          %v4459 = vpack.c.bf16 %v4437, %v4437
          %v4460 = vpack.c.bf16 %v4441, %v4441
          %v4461 = vpack.c.bf16 %v4445, %v4445
          %v4462 = vld [vmem:[%s2] sm:$0xf]
          %v4463 = vld [vmem:[%s2 + $0x4] sm:$0xf]
          %v4464 = vld [vmem:[%s2 + $0x8] sm:$0xf]
          %v4465 = vld [vmem:[%s2 + $0xc] sm:$0xf]
          %v4466 = vld [vmem:[%s2 + $0x10] sm:$0xf]
          %v4467 = vld [vmem:[%s2 + $0x14] sm:$0xf]
          %v4468 = vld [vmem:[%s2 + $0x18] sm:$0xf]
          %v4469 = vld [vmem:[%s2 + $0x1c] sm:$0xf]
          %v4470 = vld [vmem:[%s2 + $0x20] sm:$0xf]
          %v4471 = vld [vmem:[%s2 + $0x24] sm:$0xf]
          %v4472 = vld [vmem:[%s2 + $0x28] sm:$0xf]
          %v4473 = vld [vmem:[%s2 + $0x2c] sm:$0xf]
          %v4474 = vld [vmem:[%s2 + $0x30] sm:$0xf]
          %v4475 = vld [vmem:[%s2 + $0x34] sm:$0xf]
          %v4476 = vld [vmem:[%s2 + $0x38] sm:$0xf]
          %v4477 = vld [vmem:[%s2 + $0x3c] sm:$0xf]
          %v4478 = vld [vmem:[%s2 + $0x40] sm:$0xf]
          %v4479 = vld [vmem:[%s2 + $0x44] sm:$0xf]
          %v4480 = vld [vmem:[%s2 + $0x48] sm:$0xf]
          %v4481 = vld [vmem:[%s2 + $0x4c] sm:$0xf]
          %v4482 = vld [vmem:[%s2 + $0x50] sm:$0xf]
          %v4483 = vld [vmem:[%s2 + $0x54] sm:$0xf]
          %v4484 = vld [vmem:[%s2 + $0x58] sm:$0xf]
          %v4485 = vld [vmem:[%s2 + $0x5c] sm:$0xf]
          %v4486 = vld [vmem:[%s2 + $0x60] sm:$0xf]
          %v4487 = vld [vmem:[%s2 + $0x64] sm:$0xf]
          %v4488 = vld [vmem:[%s2 + $0x68] sm:$0xf]
          %v4489 = vld [vmem:[%s2 + $0x6c] sm:$0xf]
          %v4490 = vld [vmem:[%s2 + $0x70] sm:$0xf]
          %v4491 = vld [vmem:[%s2 + $0x74] sm:$0xf]
          %v4492 = vld [vmem:[%s2 + $0x78] sm:$0xf]
          %v4493 = vld [vmem:[%s2 + $0x7c] sm:$0xf]
          %v4494 = vld [vmem:[%s2 + $0x80] sm:$0xf]
          %v4495 = vld [vmem:[%s2 + $0x84] sm:$0xf]
          %v4496 = vld [vmem:[%s2 + $0x88] sm:$0xf]
          %v4497 = vld [vmem:[%s2 + $0x8c] sm:$0xf]
          %v4498 = vld [vmem:[%s2 + $0x90] sm:$0xf]
          %v4499 = vld [vmem:[%s2 + $0x94] sm:$0xf]
          %v4500 = vld [vmem:[%s2 + $0x98] sm:$0xf]
          %v4501 = vld [vmem:[%s2 + $0x9c] sm:$0xf]
          %v4502 = vld [vmem:[%s2 + $0xa0] sm:$0xf]
          %v4503 = vld [vmem:[%s2 + $0xa4] sm:$0xf]
          %v4504 = vld [vmem:[%s2 + $0xa8] sm:$0xf]
          %v4505 = vld [vmem:[%s2 + $0xac] sm:$0xf]
          %v4506 = vld [vmem:[%s2 + $0xb0] sm:$0xf]
          %v4507 = vld [vmem:[%s2 + $0xb4] sm:$0xf]
          %v4508 = vld [vmem:[%s2 + $0xb8] sm:$0xf]
          %v4509 = vld [vmem:[%s2 + $0xbc] sm:$0xf]
          %v4510 = vld [vmem:[%s2 + $0xc0] sm:$0xf]
          %v4511 = vld [vmem:[%s2 + $0xc4] sm:$0xf]
          %v4512 = vld [vmem:[%s2 + $0xc8] sm:$0xf]
          %v4513 = vld [vmem:[%s2 + $0xcc] sm:$0xf]
          %v4514 = vld [vmem:[%s2 + $0xd0] sm:$0xf]
          %v4515 = vld [vmem:[%s2 + $0xd4] sm:$0xf]
          %v4516 = vld [vmem:[%s2 + $0xd8] sm:$0xf]
          %v4517 = vld [vmem:[%s2 + $0xdc] sm:$0xf]
          %v4518 = vld [vmem:[%s2 + $0xe0] sm:$0xf]
          %v4519 = vld [vmem:[%s2 + $0xe4] sm:$0xf]
          %v4520 = vld [vmem:[%s2 + $0xe8] sm:$0xf]
          %v4521 = vld [vmem:[%s2 + $0xec] sm:$0xf]
          %v4522 = vld [vmem:[%s2 + $0xf0] sm:$0xf]
          %v4523 = vld [vmem:[%s2 + $0xf4] sm:$0xf]
          %v4524 = vld [vmem:[%s2 + $0xf8] sm:$0xf]
          %v4525 = vld [vmem:[%s2 + $0xfc] sm:$0xf]
          %v4526 = vld [vmem:[%s2 + $0x100] sm:$0xf]
          %v4527 = vld [vmem:[%s2 + $0x104] sm:$0xf]
          %v4528 = vld [vmem:[%s2 + $0x108] sm:$0xf]
          %v4529 = vld [vmem:[%s2 + $0x10c] sm:$0xf]
          %v4530 = vld [vmem:[%s2 + $0x110] sm:$0xf]
          %v4531 = vld [vmem:[%s2 + $0x114] sm:$0xf]
          %v4532 = vld [vmem:[%s2 + $0x118] sm:$0xf]
          %v4533 = vld [vmem:[%s2 + $0x11c] sm:$0xf]
          %v4534 = vld [vmem:[%s2 + $0x120] sm:$0xf]
          %v4535 = vld [vmem:[%s2 + $0x124] sm:$0xf]
          %v4536 = vld [vmem:[%s2 + $0x128] sm:$0xf]
          %v4537 = vld [vmem:[%s2 + $0x12c] sm:$0xf]
          %v4538 = vld [vmem:[%s2 + $0x130] sm:$0xf]
          %v4539 = vld [vmem:[%s2 + $0x134] sm:$0xf]
          %v4540 = vld [vmem:[%s2 + $0x138] sm:$0xf]
          %v4541 = vld [vmem:[%s2 + $0x13c] sm:$0xf]
          %v4542 = vld [vmem:[%s2 + $0x140] sm:$0xf]
          %v4543 = vld [vmem:[%s2 + $0x144] sm:$0xf]
          %v4544 = vld [vmem:[%s2 + $0x148] sm:$0xf]
          %v4545 = vld [vmem:[%s2 + $0x14c] sm:$0xf]
          %v4546 = vld [vmem:[%s2 + $0x150] sm:$0xf]
          %v4547 = vld [vmem:[%s2 + $0x154] sm:$0xf]
          %v4548 = vld [vmem:[%s2 + $0x158] sm:$0xf]
          %v4549 = vld [vmem:[%s2 + $0x15c] sm:$0xf]
          %v4550 = vld [vmem:[%s2 + $0x160] sm:$0xf]
          %v4551 = vld [vmem:[%s2 + $0x164] sm:$0xf]
          %v4552 = vld [vmem:[%s2 + $0x168] sm:$0xf]
          %v4553 = vld [vmem:[%s2 + $0x16c] sm:$0xf]
          %v4554 = vld [vmem:[%s2 + $0x170] sm:$0xf]
          %v4555 = vld [vmem:[%s2 + $0x174] sm:$0xf]
          %v4556 = vld [vmem:[%s2 + $0x178] sm:$0xf]
          %v4557 = vld [vmem:[%s2 + $0x17c] sm:$0xf]
          %v4558 = vld [vmem:[%s2 + $0x180] sm:$0xf]
          %v4559 = vld [vmem:[%s2 + $0x184] sm:$0xf]
          %v4560 = vld [vmem:[%s2 + $0x188] sm:$0xf]
          %v4561 = vld [vmem:[%s2 + $0x18c] sm:$0xf]
          %v4562 = vld [vmem:[%s2 + $0x190] sm:$0xf]
          %v4563 = vld [vmem:[%s2 + $0x194] sm:$0xf]
          %v4564 = vld [vmem:[%s2 + $0x198] sm:$0xf]
          %v4565 = vld [vmem:[%s2 + $0x19c] sm:$0xf]
          %v4566 = vld [vmem:[%s2 + $0x1a0] sm:$0xf]
          %v4567 = vld [vmem:[%s2 + $0x1a4] sm:$0xf]
          %v4568 = vld [vmem:[%s2 + $0x1a8] sm:$0xf]
          %v4569 = vld [vmem:[%s2 + $0x1ac] sm:$0xf]
          %v4570 = vld [vmem:[%s2 + $0x1b0] sm:$0xf]
          %v4571 = vld [vmem:[%s2 + $0x1b4] sm:$0xf]
          %v4572 = vld [vmem:[%s2 + $0x1b8] sm:$0xf]
          %v4573 = vld [vmem:[%s2 + $0x1bc] sm:$0xf]
          %v4574 = vld [vmem:[%s2 + $0x1c0] sm:$0xf]
          %v4575 = vld [vmem:[%s2 + $0x1c4] sm:$0xf]
          %v4576 = vld [vmem:[%s2 + $0x1c8] sm:$0xf]
          %v4577 = vld [vmem:[%s2 + $0x1cc] sm:$0xf]
          %v4578 = vld [vmem:[%s2 + $0x1d0] sm:$0xf]
          %v4579 = vld [vmem:[%s2 + $0x1d4] sm:$0xf]
          %v4580 = vld [vmem:[%s2 + $0x1d8] sm:$0xf]
          %v4581 = vld [vmem:[%s2 + $0x1dc] sm:$0xf]
          %v4582 = vld [vmem:[%s2 + $0x1e0] sm:$0xf]
          %v4583 = vld [vmem:[%s2 + $0x1e4] sm:$0xf]
          %v4584 = vld [vmem:[%s2 + $0x1e8] sm:$0xf]
          %v4585 = vld [vmem:[%s2 + $0x1ec] sm:$0xf]
          %v4586 = vld [vmem:[%s2 + $0x1f0] sm:$0xf]
          %v4587 = vld [vmem:[%s2 + $0x1f4] sm:$0xf]
          %v4588 = vld [vmem:[%s2 + $0x1f8] sm:$0xf]
          %v4589 = vld [vmem:[%s2 + $0x1fc] sm:$0xf]
          %v4718 = vunpack.c.l.b16 %v4462
          %v4719 = vunpack.c.l.b16 %v4463
          %v4720 = vunpack.c.l.b16 %v4464
          %v4721 = vunpack.c.l.b16 %v4465
          %v4722 = vunpack.c.l.b16 %v4466
          %v4723 = vunpack.c.l.b16 %v4467
          %v4724 = vunpack.c.l.b16 %v4468
          %v4725 = vunpack.c.l.b16 %v4469
          %v4726 = vunpack.c.l.b16 %v4470
          %v4727 = vunpack.c.l.b16 %v4471
          %v4728 = vunpack.c.l.b16 %v4472
          %v4729 = vunpack.c.l.b16 %v4473
          %v4730 = vunpack.c.l.b16 %v4474
          %v4731 = vunpack.c.l.b16 %v4475
          %v4732 = vunpack.c.l.b16 %v4476
          %v4733 = vunpack.c.l.b16 %v4477
          %v4734 = vunpack.c.l.b16 %v4478
          %v4735 = vunpack.c.l.b16 %v4479
          %v4736 = vunpack.c.l.b16 %v4480
          %v4737 = vunpack.c.l.b16 %v4481
          %v4738 = vunpack.c.l.b16 %v4482
          %v4739 = vunpack.c.l.b16 %v4483
          %v4740 = vunpack.c.l.b16 %v4484
          %v4741 = vunpack.c.l.b16 %v4485
          %v4742 = vunpack.c.l.b16 %v4486
          %v4743 = vunpack.c.l.b16 %v4487
          %v4744 = vunpack.c.l.b16 %v4488
          %v4745 = vunpack.c.l.b16 %v4489
          %v4746 = vunpack.c.l.b16 %v4490
          %v4747 = vunpack.c.l.b16 %v4491
          %v4748 = vunpack.c.l.b16 %v4492
          %v4749 = vunpack.c.l.b16 %v4493
          %v4750 = vunpack.c.l.b16 %v4494
          %v4751 = vunpack.c.l.b16 %v4495
          %v4752 = vunpack.c.l.b16 %v4496
          %v4753 = vunpack.c.l.b16 %v4497
          %v4754 = vunpack.c.l.b16 %v4498
          %v4755 = vunpack.c.l.b16 %v4499
          %v4756 = vunpack.c.l.b16 %v4500
          %v4757 = vunpack.c.l.b16 %v4501
          %v4758 = vunpack.c.l.b16 %v4502
          %v4759 = vunpack.c.l.b16 %v4503
          %v4760 = vunpack.c.l.b16 %v4504
          %v4761 = vunpack.c.l.b16 %v4505
          %v4762 = vunpack.c.l.b16 %v4506
          %v4763 = vunpack.c.l.b16 %v4507
          %v4764 = vunpack.c.l.b16 %v4508
          %v4765 = vunpack.c.l.b16 %v4509
          %v4766 = vunpack.c.l.b16 %v4510
          %v4767 = vunpack.c.l.b16 %v4511
          %v4768 = vunpack.c.l.b16 %v4512
          %v4769 = vunpack.c.l.b16 %v4513
          %v4770 = vunpack.c.l.b16 %v4514
          %v4771 = vunpack.c.l.b16 %v4515
          %v4772 = vunpack.c.l.b16 %v4516
          %v4773 = vunpack.c.l.b16 %v4517
          %v4774 = vunpack.c.l.b16 %v4518
          %v4775 = vunpack.c.l.b16 %v4519
          %v4776 = vunpack.c.l.b16 %v4520
          %v4777 = vunpack.c.l.b16 %v4521
          %v4778 = vunpack.c.l.b16 %v4522
          %v4779 = vunpack.c.l.b16 %v4523
          %v4780 = vunpack.c.l.b16 %v4524
          %v4781 = vunpack.c.l.b16 %v4525
          %v4782 = vunpack.c.l.b16 %v4526
          %v4783 = vunpack.c.l.b16 %v4527
          %v4784 = vunpack.c.l.b16 %v4528
          %v4785 = vunpack.c.l.b16 %v4529
          %v4786 = vunpack.c.l.b16 %v4530
          %v4787 = vunpack.c.l.b16 %v4531
          %v4788 = vunpack.c.l.b16 %v4532
          %v4789 = vunpack.c.l.b16 %v4533
          %v4790 = vunpack.c.l.b16 %v4534
          %v4791 = vunpack.c.l.b16 %v4535
          %v4792 = vunpack.c.l.b16 %v4536
          %v4793 = vunpack.c.l.b16 %v4537
          %v4794 = vunpack.c.l.b16 %v4538
          %v4795 = vunpack.c.l.b16 %v4539
          %v4796 = vunpack.c.l.b16 %v4540
          %v4797 = vunpack.c.l.b16 %v4541
          %v4798 = vunpack.c.l.b16 %v4542
          %v4799 = vunpack.c.l.b16 %v4543
          %v4800 = vunpack.c.l.b16 %v4544
          %v4801 = vunpack.c.l.b16 %v4545
          %v4802 = vunpack.c.l.b16 %v4546
          %v4803 = vunpack.c.l.b16 %v4547
          %v4804 = vunpack.c.l.b16 %v4548
          %v4805 = vunpack.c.l.b16 %v4549
          %v4806 = vunpack.c.l.b16 %v4550
          %v4807 = vunpack.c.l.b16 %v4551
          %v4808 = vunpack.c.l.b16 %v4552
          %v4809 = vunpack.c.l.b16 %v4553
          %v4810 = vunpack.c.l.b16 %v4554
          %v4811 = vunpack.c.l.b16 %v4555
          %v4812 = vunpack.c.l.b16 %v4556
          %v4813 = vunpack.c.l.b16 %v4557
          %v4814 = vunpack.c.l.b16 %v4558
          %v4815 = vunpack.c.l.b16 %v4559
          %v4816 = vunpack.c.l.b16 %v4560
          %v4817 = vunpack.c.l.b16 %v4561
          %v4818 = vunpack.c.l.b16 %v4562
          %v4819 = vunpack.c.l.b16 %v4563
          %v4820 = vunpack.c.l.b16 %v4564
          %v4821 = vunpack.c.l.b16 %v4565
          %v4822 = vunpack.c.l.b16 %v4566
          %v4823 = vunpack.c.l.b16 %v4567
          %v4824 = vunpack.c.l.b16 %v4568
          %v4825 = vunpack.c.l.b16 %v4569
          %v4826 = vunpack.c.l.b16 %v4570
          %v4827 = vunpack.c.l.b16 %v4571
          %v4828 = vunpack.c.l.b16 %v4572
          %v4829 = vunpack.c.l.b16 %v4573
          %v4830 = vunpack.c.l.b16 %v4574
          %v4831 = vunpack.c.l.b16 %v4575
          %v4832 = vunpack.c.l.b16 %v4576
          %v4833 = vunpack.c.l.b16 %v4577
          %v4834 = vunpack.c.l.b16 %v4578
          %v4835 = vunpack.c.l.b16 %v4579
          %v4836 = vunpack.c.l.b16 %v4580
          %v4837 = vunpack.c.l.b16 %v4581
          %v4838 = vunpack.c.l.b16 %v4582
          %v4839 = vunpack.c.l.b16 %v4583
          %v4840 = vunpack.c.l.b16 %v4584
          %v4841 = vunpack.c.l.b16 %v4585
          %v4842 = vunpack.c.l.b16 %v4586
          %v4843 = vunpack.c.l.b16 %v4587
          %v4844 = vunpack.c.l.b16 %v4588
          %v4845 = vunpack.c.l.b16 %v4589
          %v4846 = vpack.c.b16 %v4719, %v4718
          %v4847 = vpack.c.b16 %v4721, %v4720
          %v4848 = vpack.c.b16 %v4723, %v4722
          %v4849 = vpack.c.b16 %v4725, %v4724
          %v4850 = vpack.c.b16 %v4727, %v4726
          %v4851 = vpack.c.b16 %v4729, %v4728
          %v4852 = vpack.c.b16 %v4731, %v4730
          %v4853 = vpack.c.b16 %v4733, %v4732
          %v4854 = vpack.c.b16 %v4735, %v4734
          %v4855 = vpack.c.b16 %v4737, %v4736
          %v4856 = vpack.c.b16 %v4739, %v4738
          %v4857 = vpack.c.b16 %v4741, %v4740
          %v4858 = vpack.c.b16 %v4743, %v4742
          %v4859 = vpack.c.b16 %v4745, %v4744
          %v4860 = vpack.c.b16 %v4747, %v4746
          %v4861 = vpack.c.b16 %v4749, %v4748
          %v4862 = vpack.c.b16 %v4751, %v4750
          %v4863 = vpack.c.b16 %v4753, %v4752
          %v4864 = vpack.c.b16 %v4755, %v4754
          %v4865 = vpack.c.b16 %v4757, %v4756
          %v4866 = vpack.c.b16 %v4759, %v4758
          %v4867 = vpack.c.b16 %v4761, %v4760
          %v4868 = vpack.c.b16 %v4763, %v4762
          %v4869 = vpack.c.b16 %v4765, %v4764
          %v4870 = vpack.c.b16 %v4767, %v4766
          %v4871 = vpack.c.b16 %v4769, %v4768
          %v4872 = vpack.c.b16 %v4771, %v4770
          %v4873 = vpack.c.b16 %v4773, %v4772
          %v4874 = vpack.c.b16 %v4775, %v4774
          %v4875 = vpack.c.b16 %v4777, %v4776
          %v4876 = vpack.c.b16 %v4779, %v4778
          %v4877 = vpack.c.b16 %v4781, %v4780
          %v4878 = vpack.c.b16 %v4783, %v4782
          %v4879 = vpack.c.b16 %v4785, %v4784
          %v4880 = vpack.c.b16 %v4787, %v4786
          %v4881 = vpack.c.b16 %v4789, %v4788
          %v4882 = vpack.c.b16 %v4791, %v4790
          %v4883 = vpack.c.b16 %v4793, %v4792
          %v4884 = vpack.c.b16 %v4795, %v4794
          %v4885 = vpack.c.b16 %v4797, %v4796
          %v4886 = vpack.c.b16 %v4799, %v4798
          %v4887 = vpack.c.b16 %v4801, %v4800
          %v4888 = vpack.c.b16 %v4803, %v4802
          %v4889 = vpack.c.b16 %v4805, %v4804
          %v4890 = vpack.c.b16 %v4807, %v4806
          %v4891 = vpack.c.b16 %v4809, %v4808
          %v4892 = vpack.c.b16 %v4811, %v4810
          %v4893 = vpack.c.b16 %v4813, %v4812
          %v4894 = vpack.c.b16 %v4815, %v4814
          %v4895 = vpack.c.b16 %v4817, %v4816
          %v4896 = vpack.c.b16 %v4819, %v4818
          %v4897 = vpack.c.b16 %v4821, %v4820
          %v4898 = vpack.c.b16 %v4823, %v4822
          %v4899 = vpack.c.b16 %v4825, %v4824
          %v4900 = vpack.c.b16 %v4827, %v4826
          %v4901 = vpack.c.b16 %v4829, %v4828
          %v4902 = vpack.c.b16 %v4831, %v4830
          %v4903 = vpack.c.b16 %v4833, %v4832
          %v4904 = vpack.c.b16 %v4835, %v4834
          %v4905 = vpack.c.b16 %v4837, %v4836
          %v4906 = vpack.c.b16 %v4839, %v4838
          %v4907 = vpack.c.b16 %v4841, %v4840
          %v4908 = vpack.c.b16 %v4843, %v4842
          %v4909 = vpack.c.b16 %v4845, %v4844
          %4974 = vmatprep.subr.bf16.mxu0 0
          %4975 = vmatpush1.bf16.msra.mxu0 %v4853
          %4976 = vmatprep.subr.bf16.mxu0 0
          %4977 = vmatpush1.bf16.msra.mxu0 %v4852
          %4978 = vmatprep.subr.bf16.mxu0 0
          %4979 = vmatpush1.bf16.msra.mxu0 %v4851
          %4980 = vmatprep.subr.bf16.mxu0 0
          %4981 = vmatpush1.bf16.msra.mxu0 %v4850
          %4982 = vmatprep.subr.bf16.mxu0 0
          %4983 = vmatpush1.bf16.msra.mxu0 %v4849
          %4984 = vmatprep.subr.bf16.mxu0 0
          %4985 = vmatpush1.bf16.msra.mxu0 %v4848
          %4986 = vmatprep.subr.bf16.mxu0 0
          %4987 = vmatpush1.bf16.msra.mxu0 %v4847
          %4988 = vmatprep.subr.bf16.mxu0 0
          %4989 = vmatpush1.bf16.msra.mxu0 %v4846
          %4990 = vmatprep.subr.bf16.mxu0 0
          %4991 = vmatpush2.bf16.msra.mxu0 %v4861
          %4992 = vmatprep.subr.bf16.mxu0 0
          %4993 = vmatpush2.bf16.msra.mxu0 %v4860
          %4994 = vmatprep.subr.bf16.mxu0 0
          %4995 = vmatpush2.bf16.msra.mxu0 %v4859
          %4996 = vmatprep.subr.bf16.mxu0 0
          %4997 = vmatpush2.bf16.msra.mxu0 %v4858
          %4998 = vmatprep.subr.bf16.mxu0 0
          %4999 = vmatpush2.bf16.msra.mxu0 %v4857
          %5000 = vmatprep.subr.bf16.mxu0 0
          %5001 = vmatpush2.bf16.msra.mxu0 %v4856
          %5002 = vmatprep.subr.bf16.mxu0 0
          %5003 = vmatpush2.bf16.msra.mxu0 %v4855
          %5004 = vmatprep.subr.bf16.mxu0 0
          %5005 = vmatpush2.bf16.msra.mxu0 %v4854
          %5006 = vmatprep.mubr.bf16.mxu0 %v4455
          %5007 = vmatmul.mubr.bf16.gmra.mxu0 %v4454
          %v5008 = vpop.f32.mrf.mxu0
          %v5009 = vadd.f32 0.0, %v5008
          %v5010 = vpop.f32.mrf.mxu0
          %v5011 = vpop.f32.mrf.mxu0
          %v5012 = vpop.f32.mrf.mxu0
          %5013 = vdwg.mxu0
          %5014 = vmatprep.subr.bf16.mxu0 0
          %5015 = vmatpush1.bf16.msra.mxu0 %v4869
          %5016 = vmatprep.subr.bf16.mxu0 0
          %5017 = vmatpush1.bf16.msra.mxu0 %v4868
          %5018 = vmatprep.subr.bf16.mxu0 0
          %5019 = vmatpush1.bf16.msra.mxu0 %v4867
          %5020 = vmatprep.subr.bf16.mxu0 0
          %5021 = vmatpush1.bf16.msra.mxu0 %v4866
          %5022 = vmatprep.subr.bf16.mxu0 0
          %5023 = vmatpush1.bf16.msra.mxu0 %v4865
          %5024 = vmatprep.subr.bf16.mxu0 0
          %5025 = vmatpush1.bf16.msra.mxu0 %v4864
          %5026 = vmatprep.subr.bf16.mxu0 0
          %5027 = vmatpush1.bf16.msra.mxu0 %v4863
          %5028 = vmatprep.subr.bf16.mxu0 0
          %5029 = vmatpush1.bf16.msra.mxu0 %v4862
          %5030 = vmatprep.subr.bf16.mxu0 0
          %5031 = vmatpush2.bf16.msra.mxu0 %v4877
          %5032 = vmatprep.subr.bf16.mxu0 0
          %5033 = vmatpush2.bf16.msra.mxu0 %v4876
          %5034 = vmatprep.subr.bf16.mxu0 0
          %5035 = vmatpush2.bf16.msra.mxu0 %v4875
          %5036 = vmatprep.subr.bf16.mxu0 0
          %5037 = vmatpush2.bf16.msra.mxu0 %v4874
          %5038 = vmatprep.subr.bf16.mxu0 0
          %5039 = vmatpush2.bf16.msra.mxu0 %v4873
          %5040 = vmatprep.subr.bf16.mxu0 0
          %5041 = vmatpush2.bf16.msra.mxu0 %v4872
          %5042 = vmatprep.subr.bf16.mxu0 0
          %5043 = vmatpush2.bf16.msra.mxu0 %v4871
          %5044 = vmatprep.subr.bf16.mxu0 0
          %5045 = vmatpush2.bf16.msra.mxu0 %v4870
          %5046 = vmatprep.mubr.bf16.mxu0 %v4457
          %5047 = vmatmul.mubr.bf16.gmra.mxu0 %v4456
          %v5048 = vpop.f32.mrf.mxu0
          %v5049 = vadd.f32 %v5009, %v5048
          %v5050 = vpop.f32.mrf.mxu0
          %v5051 = vpop.f32.mrf.mxu0
          %v5052 = vpop.f32.mrf.mxu0
          %5053 = vdwg.mxu0
          %5054 = vmatprep.subr.bf16.mxu0 0
          %5055 = vmatpush1.bf16.msra.mxu0 %v4885
          %5056 = vmatprep.subr.bf16.mxu0 0
          %5057 = vmatpush1.bf16.msra.mxu0 %v4884
          %5058 = vmatprep.subr.bf16.mxu0 0
          %5059 = vmatpush1.bf16.msra.mxu0 %v4883
          %5060 = vmatprep.subr.bf16.mxu0 0
          %5061 = vmatpush1.bf16.msra.mxu0 %v4882
          %5062 = vmatprep.subr.bf16.mxu0 0
          %5063 = vmatpush1.bf16.msra.mxu0 %v4881
          %5064 = vmatprep.subr.bf16.mxu0 0
          %5065 = vmatpush1.bf16.msra.mxu0 %v4880
          %5066 = vmatprep.subr.bf16.mxu0 0
          %5067 = vmatpush1.bf16.msra.mxu0 %v4879
          %5068 = vmatprep.subr.bf16.mxu0 0
          %5069 = vmatpush1.bf16.msra.mxu0 %v4878
          %5070 = vmatprep.subr.bf16.mxu0 0
          %5071 = vmatpush2.bf16.msra.mxu0 %v4893
          %5072 = vmatprep.subr.bf16.mxu0 0
          %5073 = vmatpush2.bf16.msra.mxu0 %v4892
          %5074 = vmatprep.subr.bf16.mxu0 0
          %5075 = vmatpush2.bf16.msra.mxu0 %v4891
          %5076 = vmatprep.subr.bf16.mxu0 0
          %5077 = vmatpush2.bf16.msra.mxu0 %v4890
          %5078 = vmatprep.subr.bf16.mxu0 0
          %5079 = vmatpush2.bf16.msra.mxu0 %v4889
          %5080 = vmatprep.subr.bf16.mxu0 0
          %5081 = vmatpush2.bf16.msra.mxu0 %v4888
          %5082 = vmatprep.subr.bf16.mxu0 0
          %5083 = vmatpush2.bf16.msra.mxu0 %v4887
          %5084 = vmatprep.subr.bf16.mxu0 0
          %5085 = vmatpush2.bf16.msra.mxu0 %v4886
          %5086 = vmatprep.mubr.bf16.mxu0 %v4459
          %5087 = vmatmul.mubr.bf16.gmra.mxu0 %v4458
          %v5088 = vpop.f32.mrf.mxu0
          %v5089 = vadd.f32 %v5049, %v5088
          %v5090 = vpop.f32.mrf.mxu0
          %v5091 = vpop.f32.mrf.mxu0
          %v5092 = vpop.f32.mrf.mxu0
          %5093 = vdwg.mxu0
          %5094 = vmatprep.subr.bf16.mxu0 0
          %5095 = vmatpush1.bf16.msra.mxu0 %v4901
          %5096 = vmatprep.subr.bf16.mxu0 0
          %5097 = vmatpush1.bf16.msra.mxu0 %v4900
          %5098 = vmatprep.subr.bf16.mxu0 0
          %5099 = vmatpush1.bf16.msra.mxu0 %v4899
          %5100 = vmatprep.subr.bf16.mxu0 0
          %5101 = vmatpush1.bf16.msra.mxu0 %v4898
          %5102 = vmatprep.subr.bf16.mxu0 0
          %5103 = vmatpush1.bf16.msra.mxu0 %v4897
          %5104 = vmatprep.subr.bf16.mxu0 0
          %5105 = vmatpush1.bf16.msra.mxu0 %v4896
          %5106 = vmatprep.subr.bf16.mxu0 0
          %5107 = vmatpush1.bf16.msra.mxu0 %v4895
          %5108 = vmatprep.subr.bf16.mxu0 0
          %5109 = vmatpush1.bf16.msra.mxu0 %v4894
          %5110 = vmatprep.subr.bf16.mxu0 0
          %5111 = vmatpush2.bf16.msra.mxu0 %v4909
          %5112 = vmatprep.subr.bf16.mxu0 0
          %5113 = vmatpush2.bf16.msra.mxu0 %v4908
          %5114 = vmatprep.subr.bf16.mxu0 0
          %5115 = vmatpush2.bf16.msra.mxu0 %v4907
          %5116 = vmatprep.subr.bf16.mxu0 0
          %5117 = vmatpush2.bf16.msra.mxu0 %v4906
          %5118 = vmatprep.subr.bf16.mxu0 0
          %5119 = vmatpush2.bf16.msra.mxu0 %v4905
          %5120 = vmatprep.subr.bf16.mxu0 0
          %5121 = vmatpush2.bf16.msra.mxu0 %v4904
          %5122 = vmatprep.subr.bf16.mxu0 0
          %5123 = vmatpush2.bf16.msra.mxu0 %v4903
          %5124 = vmatprep.subr.bf16.mxu0 0
          %5125 = vmatpush2.bf16.msra.mxu0 %v4902
          %5126 = vmatprep.mubr.bf16.mxu0 %v4461
          %5127 = vmatmul.mubr.bf16.gmra.mxu0 %v4460
          %v5128 = vpop.f32.mrf.mxu0
          %v5129 = vadd.f32 %v5089, %v5128
          %v5130 = vpop.f32.mrf.mxu0
          %v5131 = vpop.f32.mrf.mxu0
          %v5132 = vpop.f32.mrf.mxu0
          %5133 = vdwg.mxu0
          %v5134 = vpack.c.bf16 %v5129, %v5129
          %v5135 = vld [vmem:[#allocation9] sm:$0xff]
          %v5136 = vld [vmem:[#allocation9 + $0x8] sm:$0xff]
          %v5137 = vld [vmem:[#allocation9 + $0x10] sm:$0xff]
          %v5138 = vld [vmem:[#allocation9 + $0x18] sm:$0xff]
          %v5143 = vunpack.c.l.b16 %v5135
          %v5144 = vunpack.c.h.b16 %v5135
          %v5145 = vunpack.c.l.b16 %v5136
          %v5146 = vunpack.c.h.b16 %v5136
          %v5147 = vunpack.c.l.b16 %v5137
          %v5148 = vunpack.c.h.b16 %v5137
          %v5149 = vunpack.c.l.b16 %v5138
          %v5150 = vunpack.c.h.b16 %v5138
          %v5151 = vpack.c.b16 %v5143, %v5143
          %v5152 = vpack.c.b16 %v5144, %v5144
          %v5153 = vpack.c.b16 %v5145, %v5145
          %v5154 = vpack.c.b16 %v5146, %v5146
          %v5155 = vpack.c.b16 %v5147, %v5147
          %v5156 = vpack.c.b16 %v5148, %v5148
          %v5157 = vpack.c.b16 %v5149, %v5149
          %v5158 = vpack.c.b16 %v5150, %v5150
          %vm5159 = vcmask 64512
          %v5161 = vsel %vm5159, %v5134, 0
          %vm5163 = vcmask 1043456
          %v5165 = vsel %vm5163, %v5151, 0
          %v5168 = vsel %vm5163, %v5152, 0
          %v5171 = vsel %vm5163, %v5153, 0
          %v5174 = vsel %vm5163, %v5154, 0
          %v5177 = vsel %vm5163, %v5155, 0
          %v5180 = vsel %vm5163, %v5156, 0
          %v5183 = vsel %vm5163, %v5157, 0
          %v5186 = vsel %vm5163, %v5158, 0
          %5188 = vmatprep.subr.bf16.mxu0 0
          %5189 = vmatpush1.bf16.msra.mxu0 0
          %5190 = vmatprep.subr.bf16.mxu0 0
          %5191 = vmatpush1.bf16.msra.mxu0 0
          %5192 = vmatprep.subr.bf16.mxu0 0
          %5193 = vmatpush1.bf16.msra.mxu0 0
          %5194 = vmatprep.subr.bf16.mxu0 0
          %5195 = vmatpush1.bf16.msra.mxu0 0
          %5196 = vmatprep.subr.bf16.mxu0 0
          %5197 = vmatpush1.bf16.msra.mxu0 0
          %5198 = vmatprep.subr.bf16.mxu0 0
          %5199 = vmatpush1.bf16.msra.mxu0 0
          %5200 = vmatprep.subr.bf16.mxu0 0
          %5201 = vmatpush1.bf16.msra.mxu0 0
          %5202 = vmatprep.subr.bf16.mxu0 %v5168
          %5203 = vmatpush1.bf16.msra.mxu0 %v5165
          %5204 = vmatprep.subr.bf16.mxu0 0
          %5205 = vmatpush2.bf16.msra.mxu0 0
          %5206 = vmatprep.subr.bf16.mxu0 0
          %5207 = vmatpush2.bf16.msra.mxu0 0
          %5208 = vmatprep.subr.bf16.mxu0 0
          %5209 = vmatpush2.bf16.msra.mxu0 0
          %5210 = vmatprep.subr.bf16.mxu0 0
          %5211 = vmatpush2.bf16.msra.mxu0 0
          %5212 = vmatprep.subr.bf16.mxu0 0
          %5213 = vmatpush2.bf16.msra.mxu0 0
          %5214 = vmatprep.subr.bf16.mxu0 0
          %5215 = vmatpush2.bf16.msra.mxu0 0
          %5216 = vmatprep.subr.bf16.mxu0 0
          %5217 = vmatpush2.bf16.msra.mxu0 0
          %5218 = vmatprep.subr.bf16.mxu0 0
          %5219 = vmatpush2.bf16.msra.mxu0 0
          %5220 = vmatprep.mubr.bf16.mxu0 0
          %5221 = vmatmul.mubr.bf16.gmra.mxu0 %v5161
          %v5222 = vpop.f32.mrf.mxu0
          %v5223 = vadd.f32 0.0, %v5222
          %v5224 = vpop.f32.mrf.mxu0
          %v5225 = vadd.f32 0.0, %v5224
          %v5226 = vpop.f32.mrf.mxu0
          %v5227 = vpop.f32.mrf.mxu0
          %5228 = vdwg.mxu0
          %5229 = vmatprep.subr.bf16.mxu0 0
          %5230 = vmatpush1.bf16.msra.mxu0 0
          %5231 = vmatprep.subr.bf16.mxu0 0
          %5232 = vmatpush1.bf16.msra.mxu0 0
          %5233 = vmatprep.subr.bf16.mxu0 0
          %5234 = vmatpush1.bf16.msra.mxu0 0
          %5235 = vmatprep.subr.bf16.mxu0 0
          %5236 = vmatpush1.bf16.msra.mxu0 0
          %5237 = vmatprep.subr.bf16.mxu0 0
          %5238 = vmatpush1.bf16.msra.mxu0 0
          %5239 = vmatprep.subr.bf16.mxu0 0
          %5240 = vmatpush1.bf16.msra.mxu0 0
          %5241 = vmatprep.subr.bf16.mxu0 0
          %5242 = vmatpush1.bf16.msra.mxu0 0
          %5243 = vmatprep.subr.bf16.mxu0 %v5174
          %5244 = vmatpush1.bf16.msra.mxu0 %v5171
          %5245 = vmatprep.subr.bf16.mxu0 0
          %5246 = vmatpush2.bf16.msra.mxu0 0
          %5247 = vmatprep.subr.bf16.mxu0 0
          %5248 = vmatpush2.bf16.msra.mxu0 0
          %5249 = vmatprep.subr.bf16.mxu0 0
          %5250 = vmatpush2.bf16.msra.mxu0 0
          %5251 = vmatprep.subr.bf16.mxu0 0
          %5252 = vmatpush2.bf16.msra.mxu0 0
          %5253 = vmatprep.subr.bf16.mxu0 0
          %5254 = vmatpush2.bf16.msra.mxu0 0
          %5255 = vmatprep.subr.bf16.mxu0 0
          %5256 = vmatpush2.bf16.msra.mxu0 0
          %5257 = vmatprep.subr.bf16.mxu0 0
          %5258 = vmatpush2.bf16.msra.mxu0 0
          %5259 = vmatprep.subr.bf16.mxu0 0
          %5260 = vmatpush2.bf16.msra.mxu0 0
          %5261 = vmatprep.mubr.bf16.mxu0 0
          %5262 = vmatmul.mubr.bf16.gmra.mxu0 %v5161
          %v5263 = vpop.f32.mrf.mxu0
          %v5264 = vadd.f32 0.0, %v5263
          %v5265 = vpop.f32.mrf.mxu0
          %v5266 = vadd.f32 0.0, %v5265
          %v5267 = vpop.f32.mrf.mxu0
          %v5268 = vpop.f32.mrf.mxu0
          %5269 = vdwg.mxu0
          %5270 = vmatprep.subr.bf16.mxu0 0
          %5271 = vmatpush1.bf16.msra.mxu0 0
          %5272 = vmatprep.subr.bf16.mxu0 0
          %5273 = vmatpush1.bf16.msra.mxu0 0
          %5274 = vmatprep.subr.bf16.mxu0 0
          %5275 = vmatpush1.bf16.msra.mxu0 0
          %5276 = vmatprep.subr.bf16.mxu0 0
          %5277 = vmatpush1.bf16.msra.mxu0 0
          %5278 = vmatprep.subr.bf16.mxu0 0
          %5279 = vmatpush1.bf16.msra.mxu0 0
          %5280 = vmatprep.subr.bf16.mxu0 0
          %5281 = vmatpush1.bf16.msra.mxu0 0
          %5282 = vmatprep.subr.bf16.mxu0 0
          %5283 = vmatpush1.bf16.msra.mxu0 0
          %5284 = vmatprep.subr.bf16.mxu0 %v5180
          %5285 = vmatpush1.bf16.msra.mxu0 %v5177
          %5286 = vmatprep.subr.bf16.mxu0 0
          %5287 = vmatpush2.bf16.msra.mxu0 0
          %5288 = vmatprep.subr.bf16.mxu0 0
          %5289 = vmatpush2.bf16.msra.mxu0 0
          %5290 = vmatprep.subr.bf16.mxu0 0
          %5291 = vmatpush2.bf16.msra.mxu0 0
          %5292 = vmatprep.subr.bf16.mxu0 0
          %5293 = vmatpush2.bf16.msra.mxu0 0
          %5294 = vmatprep.subr.bf16.mxu0 0
          %5295 = vmatpush2.bf16.msra.mxu0 0
          %5296 = vmatprep.subr.bf16.mxu0 0
          %5297 = vmatpush2.bf16.msra.mxu0 0
          %5298 = vmatprep.subr.bf16.mxu0 0
          %5299 = vmatpush2.bf16.msra.mxu0 0
          %5300 = vmatprep.subr.bf16.mxu0 0
          %5301 = vmatpush2.bf16.msra.mxu0 0
          %5302 = vmatprep.mubr.bf16.mxu0 0
          %5303 = vmatmul.mubr.bf16.gmra.mxu0 %v5161
          %v5304 = vpop.f32.mrf.mxu0
          %v5305 = vadd.f32 0.0, %v5304
          %v5306 = vpop.f32.mrf.mxu0
          %v5307 = vadd.f32 0.0, %v5306
          %v5308 = vpop.f32.mrf.mxu0
          %v5309 = vpop.f32.mrf.mxu0
          %5310 = vdwg.mxu0
          %5311 = vmatprep.subr.bf16.mxu0 0
          %5312 = vmatpush1.bf16.msra.mxu0 0
          %5313 = vmatprep.subr.bf16.mxu0 0
          %5314 = vmatpush1.bf16.msra.mxu0 0
          %5315 = vmatprep.subr.bf16.mxu0 0
          %5316 = vmatpush1.bf16.msra.mxu0 0
          %5317 = vmatprep.subr.bf16.mxu0 0
          %5318 = vmatpush1.bf16.msra.mxu0 0
          %5319 = vmatprep.subr.bf16.mxu0 0
          %5320 = vmatpush1.bf16.msra.mxu0 0
          %5321 = vmatprep.subr.bf16.mxu0 0
          %5322 = vmatpush1.bf16.msra.mxu0 0
          %5323 = vmatprep.subr.bf16.mxu0 0
          %5324 = vmatpush1.bf16.msra.mxu0 0
          %5325 = vmatprep.subr.bf16.mxu0 %v5186
          %5326 = vmatpush1.bf16.msra.mxu0 %v5183
          %5327 = vmatprep.subr.bf16.mxu0 0
          %5328 = vmatpush2.bf16.msra.mxu0 0
          %5329 = vmatprep.subr.bf16.mxu0 0
          %5330 = vmatpush2.bf16.msra.mxu0 0
          %5331 = vmatprep.subr.bf16.mxu0 0
          %5332 = vmatpush2.bf16.msra.mxu0 0
          %5333 = vmatprep.subr.bf16.mxu0 0
          %5334 = vmatpush2.bf16.msra.mxu0 0
          %5335 = vmatprep.subr.bf16.mxu0 0
          %5336 = vmatpush2.bf16.msra.mxu0 0
          %5337 = vmatprep.subr.bf16.mxu0 0
          %5338 = vmatpush2.bf16.msra.mxu0 0
          %5339 = vmatprep.subr.bf16.mxu0 0
          %5340 = vmatpush2.bf16.msra.mxu0 0
          %5341 = vmatprep.subr.bf16.mxu0 0
          %5342 = vmatpush2.bf16.msra.mxu0 0
          %5343 = vmatprep.mubr.bf16.mxu0 0
          %5344 = vmatmul.mubr.bf16.gmra.mxu0 %v5161
          %v5345 = vpop.f32.mrf.mxu0
          %v5346 = vadd.f32 0.0, %v5345
          %v5347 = vpop.f32.mrf.mxu0
          %v5348 = vadd.f32 0.0, %v5347
          %v5349 = vpop.f32.mrf.mxu0
          %v5350 = vpop.f32.mrf.mxu0
          %5351 = vdwg.mxu0
          %v5352 = vld [vmem:[#allocation2] sm:$0xff]
          %v5361 = vcombine.low %v5223, %v5225
          %v5362 = vcombine.low %v5264, %v5266
          %v5363 = vcombine.low %v5305, %v5307
          %v5364 = vcombine.low %v5346, %v5348
          %v5366 = vunpack.c.l.s4 1966171168
          %v5367 = vunpack.c.0.s8 %v5366
          %v5368 = vlaneseq
          %v5369 = vshrl.u32 %v5368, 7
          %v5370 = vsub.s32 %v5367, %v5369
          %v5371 = vrot.slane %v5361, %v5370
          %v5373 = vunpack.c.l.s4 1966171168
          %v5374 = vunpack.c.0.s8 %v5373
          %v5375 = vlaneseq
          %v5376 = vshrl.u32 %v5375, 7
          %v5377 = vsub.s32 %v5374, %v5376
          %v5378 = vrot.slane %v5362, %v5377
          %v5380 = vunpack.c.l.s4 1966171168
          %v5381 = vunpack.c.0.s8 %v5380
          %v5382 = vlaneseq
          %v5383 = vshrl.u32 %v5382, 7
          %v5384 = vsub.s32 %v5381, %v5383
          %v5385 = vrot.slane %v5363, %v5384
          %v5387 = vunpack.c.l.s4 1966171168
          %v5388 = vunpack.c.0.s8 %v5387
          %v5389 = vlaneseq
          %v5390 = vshrl.u32 %v5389, 7
          %v5391 = vsub.s32 %v5388, %v5390
          %v5392 = vrot.slane %v5364, %v5391
          %v5393 = vcombine.low %v5371, %v5378
          %v5394 = vcombine.low %v5385, %v5392
          %v5396 = vunpack.c.l.s4 1966171168
          %v5397 = vunpack.c.0.s8 %v5396
          %v5398 = vlaneseq
          %v5399 = vshrl.u32 %v5398, 7
          %v5400 = vsub.s32 %v5397, %v5399
          %v5401 = vrot.slane %v5393, %v5400
          %v5403 = vunpack.c.l.s4 1966171168
          %v5404 = vunpack.c.0.s8 %v5403
          %v5405 = vlaneseq
          %v5406 = vshrl.u32 %v5405, 7
          %v5407 = vsub.s32 %v5404, %v5406
          %v5408 = vrot.slane %v5394, %v5407
          %v5409 = vcombine.low %v5401, %v5408
          %v5411 = vadd.f32 %v5352, %v5409
          %v5412 = vmul.f32 %v5411, 0.125
          %v5414 = vlaneseq
          %v5415 = vshrl.u32 %v5414, 7
          %v5416 = vsub.s32 0, %v5415
          %v5417 = vrot.slane %v5412, %v5416
          %v5418 = vlaneseq
          %v5419 = vshrl.u32 %v5418, 7
          %v5420 = vsub.s32 1, %v5419
          %v5421 = vrot.slane %v5412, %v5420
          %v5422 = vlaneseq
          %v5423 = vshrl.u32 %v5422, 7
          %v5424 = vsub.s32 2, %v5423
          %v5425 = vrot.slane %v5412, %v5424
          %v5426 = vlaneseq
          %v5427 = vshrl.u32 %v5426, 7
          %v5428 = vsub.s32 3, %v5427
          %v5429 = vrot.slane %v5412, %v5428
          %v5430 = vlaneseq
          %v5431 = vshrl.u32 %v5430, 7
          %v5432 = vsub.s32 4, %v5431
          %v5433 = vrot.slane %v5412, %v5432
          %v5434 = vlaneseq
          %v5435 = vshrl.u32 %v5434, 7
          %v5436 = vsub.s32 5, %v5435
          %v5437 = vrot.slane %v5412, %v5436
          %v5438 = vlaneseq
          %v5439 = vshrl.u32 %v5438, 7
          %v5440 = vsub.s32 6, %v5439
          %v5441 = vrot.slane %v5412, %v5440
          %v5442 = vlaneseq
          %v5443 = vshrl.u32 %v5442, 7
          %v5444 = vsub.s32 7, %v5443
          %v5445 = vrot.slane %v5412, %v5444
          %vm5454 = vcmask 1040384
          %v5455 = vsel %vm5454, %v5417, 0.0
          %v5456 = vsel %vm5454, %v5421, 0.0
          %v5457 = vadd.f32 %v5455, %v5456
          %v5458 = vsel %vm5454, %v5425, 0.0
          %v5459 = vadd.f32 %v5457, %v5458
          %v5460 = vsel %vm5454, %v5429, 0.0
          %v5461 = vadd.f32 %v5459, %v5460
          %v5462 = vsel %vm5454, %v5433, 0.0
          %v5463 = vadd.f32 %v5461, %v5462
          %v5464 = vsel %vm5454, %v5437, 0.0
          %v5465 = vadd.f32 %v5463, %v5464
          %v5466 = vsel %vm5454, %v5441, 0.0
          %v5467 = vadd.f32 %v5465, %v5466
          %v5468 = vsel %vm5454, %v5445, 0.0
          %v5469 = vadd.f32 %v5467, %v5468
          %5470 = vadd.xlane.f32.xlu0 %v5469
          %v5471 = vpop.xlane.xlu0 %5470
          %v5472 = vrcp.pop 1024.0
          %v5473 = vmul.f32 %v5471, %v5472
          %v5475 = vlaneseq
          %v5476 = vshrl.u32 %v5475, 7
          %v5477 = vsub.s32 0, %v5476
          %v5478 = vrot.slane %v5473, %v5477
          %v5480 = vsub.f32 %v5412, %v5478
          %v5481 = vmul.f32 %v5480, %v5480
          %v5483 = vlaneseq
          %v5484 = vshrl.u32 %v5483, 7
          %v5485 = vsub.s32 0, %v5484
          %v5486 = vrot.slane %v5481, %v5485
          %v5487 = vlaneseq
          %v5488 = vshrl.u32 %v5487, 7
          %v5489 = vsub.s32 1, %v5488
          %v5490 = vrot.slane %v5481, %v5489
          %v5491 = vlaneseq
          %v5492 = vshrl.u32 %v5491, 7
          %v5493 = vsub.s32 2, %v5492
          %v5494 = vrot.slane %v5481, %v5493
          %v5495 = vlaneseq
          %v5496 = vshrl.u32 %v5495, 7
          %v5497 = vsub.s32 3, %v5496
          %v5498 = vrot.slane %v5481, %v5497
          %v5499 = vlaneseq
          %v5500 = vshrl.u32 %v5499, 7
          %v5501 = vsub.s32 4, %v5500
          %v5502 = vrot.slane %v5481, %v5501
          %v5503 = vlaneseq
          %v5504 = vshrl.u32 %v5503, 7
          %v5505 = vsub.s32 5, %v5504
          %v5506 = vrot.slane %v5481, %v5505
          %v5507 = vlaneseq
          %v5508 = vshrl.u32 %v5507, 7
          %v5509 = vsub.s32 6, %v5508
          %v5510 = vrot.slane %v5481, %v5509
          %v5511 = vlaneseq
          %v5512 = vshrl.u32 %v5511, 7
          %v5513 = vsub.s32 7, %v5512
          %v5514 = vrot.slane %v5481, %v5513
          %v5523 = vsel %vm5454, %v5486, 0.0
          %v5524 = vsel %vm5454, %v5490, 0.0
          %v5525 = vadd.f32 %v5523, %v5524
          %v5526 = vsel %vm5454, %v5494, 0.0
          %v5527 = vadd.f32 %v5525, %v5526
          %v5528 = vsel %vm5454, %v5498, 0.0
          %v5529 = vadd.f32 %v5527, %v5528
          %v5530 = vsel %vm5454, %v5502, 0.0
          %v5531 = vadd.f32 %v5529, %v5530
          %v5532 = vsel %vm5454, %v5506, 0.0
          %v5533 = vadd.f32 %v5531, %v5532
          %v5534 = vsel %vm5454, %v5510, 0.0
          %v5535 = vadd.f32 %v5533, %v5534
          %v5536 = vsel %vm5454, %v5514, 0.0
          %v5537 = vadd.f32 %v5535, %v5536
          %5538 = vadd.xlane.f32.xlu0 %v5537
          %v5539 = vpop.xlane.xlu0 %5538
          %v5540 = vmul.f32 %v5539, %v5472
          %v5541 = vadd.f32 %v5540, 1e-05
          %v5542 = vrsqrt.pop %v5541
          %v5544 = vlaneseq
          %v5545 = vshrl.u32 %v5544, 7
          %v5546 = vsub.s32 0, %v5545
          %v5547 = vrot.slane %v5542, %v5546
          %v5549 = vmul.f32 %v5480, %v5547
          %v5550 = vld [vmem:[#allocation10] sm:$0xff]
          %v5551 = vmul.f32 %v5549, %v5550
          %v5552 = vld [vmem:[#allocation12] sm:$0xff]
          %v5553 = vadd.f32 %v5551, %v5552
          %v5554 = vld [vmem:[#allocation13] sm:$0xff]
          %v5555 = vld [vmem:[#allocation13 + $0x8] sm:$0xff]
          %v5556 = vld [vmem:[#allocation13 + $0x10] sm:$0xff]
          %v5557 = vld [vmem:[#allocation13 + $0x18] sm:$0xff]
          %v5558 = vld [vmem:[#allocation13 + $0x20] sm:$0xff]
          %v5559 = vld [vmem:[#allocation13 + $0x28] sm:$0xff]
          %v5560 = vld [vmem:[#allocation13 + $0x30] sm:$0xff]
          %v5561 = vld [vmem:[#allocation13 + $0x38] sm:$0xff]
          %v5562 = vld [vmem:[#allocation13 + $0x40] sm:$0xff]
          %v5563 = vld [vmem:[#allocation13 + $0x48] sm:$0xff]
          %v5564 = vld [vmem:[#allocation13 + $0x50] sm:$0xff]
          %v5565 = vld [vmem:[#allocation13 + $0x58] sm:$0xff]
          %v5566 = vld [vmem:[#allocation13 + $0x60] sm:$0xff]
          %v5567 = vld [vmem:[#allocation13 + $0x68] sm:$0xff]
          %v5568 = vld [vmem:[#allocation13 + $0x70] sm:$0xff]
          %v5569 = vld [vmem:[#allocation13 + $0x78] sm:$0xff]
          %v5570 = vld [vmem:[#allocation13 + $0x80] sm:$0xff]
          %v5571 = vld [vmem:[#allocation13 + $0x88] sm:$0xff]
          %v5572 = vld [vmem:[#allocation13 + $0x90] sm:$0xff]
          %v5573 = vld [vmem:[#allocation13 + $0x98] sm:$0xff]
          %v5574 = vld [vmem:[#allocation13 + $0xa0] sm:$0xff]
          %v5575 = vld [vmem:[#allocation13 + $0xa8] sm:$0xff]
          %v5576 = vld [vmem:[#allocation13 + $0xb0] sm:$0xff]
          %v5577 = vld [vmem:[#allocation13 + $0xb8] sm:$0xff]
          %v5578 = vld [vmem:[#allocation13 + $0xc0] sm:$0xff]
          %v5579 = vld [vmem:[#allocation13 + $0xc8] sm:$0xff]
          %v5580 = vld [vmem:[#allocation13 + $0xd0] sm:$0xff]
          %v5581 = vld [vmem:[#allocation13 + $0xd8] sm:$0xff]
          %v5582 = vld [vmem:[#allocation13 + $0xe0] sm:$0xff]
          %v5583 = vld [vmem:[#allocation13 + $0xe8] sm:$0xff]
          %v5584 = vld [vmem:[#allocation13 + $0xf0] sm:$0xff]
          %v5585 = vld [vmem:[#allocation13 + $0xf8] sm:$0xff]
          %v5586 = vld [vmem:[#allocation13 + $0x100] sm:$0xff]
          %v5587 = vld [vmem:[#allocation13 + $0x108] sm:$0xff]
          %v5588 = vld [vmem:[#allocation13 + $0x110] sm:$0xff]
          %v5589 = vld [vmem:[#allocation13 + $0x118] sm:$0xff]
          %v5590 = vld [vmem:[#allocation13 + $0x120] sm:$0xff]
          %v5591 = vld [vmem:[#allocation13 + $0x128] sm:$0xff]
          %v5592 = vld [vmem:[#allocation13 + $0x130] sm:$0xff]
          %v5593 = vld [vmem:[#allocation13 + $0x138] sm:$0xff]
          %v5594 = vld [vmem:[#allocation13 + $0x140] sm:$0xff]
          %v5595 = vld [vmem:[#allocation13 + $0x148] sm:$0xff]
          %v5596 = vld [vmem:[#allocation13 + $0x150] sm:$0xff]
          %v5597 = vld [vmem:[#allocation13 + $0x158] sm:$0xff]
          %v5598 = vld [vmem:[#allocation13 + $0x160] sm:$0xff]
          %v5599 = vld [vmem:[#allocation13 + $0x168] sm:$0xff]
          %v5600 = vld [vmem:[#allocation13 + $0x170] sm:$0xff]
          %v5601 = vld [vmem:[#allocation13 + $0x178] sm:$0xff]
          %v5602 = vld [vmem:[#allocation13 + $0x180] sm:$0xff]
          %v5603 = vld [vmem:[#allocation13 + $0x188] sm:$0xff]
          %v5604 = vld [vmem:[#allocation13 + $0x190] sm:$0xff]
          %v5605 = vld [vmem:[#allocation13 + $0x198] sm:$0xff]
          %v5606 = vld [vmem:[#allocation13 + $0x1a0] sm:$0xff]
          %v5607 = vld [vmem:[#allocation13 + $0x1a8] sm:$0xff]
          %v5608 = vld [vmem:[#allocation13 + $0x1b0] sm:$0xff]
          %v5609 = vld [vmem:[#allocation13 + $0x1b8] sm:$0xff]
          %v5610 = vld [vmem:[#allocation13 + $0x1c0] sm:$0xff]
          %v5611 = vld [vmem:[#allocation13 + $0x1c8] sm:$0xff]
          %v5612 = vld [vmem:[#allocation13 + $0x1d0] sm:$0xff]
          %v5613 = vld [vmem:[#allocation13 + $0x1d8] sm:$0xff]
          %v5614 = vld [vmem:[#allocation13 + $0x1e0] sm:$0xff]
          %v5615 = vld [vmem:[#allocation13 + $0x1e8] sm:$0xff]
          %v5616 = vld [vmem:[#allocation13 + $0x1f0] sm:$0xff]
          %v5617 = vld [vmem:[#allocation13 + $0x1f8] sm:$0xff]
          %v5618 = vld [vmem:[#allocation13 + $0x200] sm:$0xff]
          %v5619 = vld [vmem:[#allocation13 + $0x208] sm:$0xff]
          %v5620 = vld [vmem:[#allocation13 + $0x210] sm:$0xff]
          %v5621 = vld [vmem:[#allocation13 + $0x218] sm:$0xff]
          %v5622 = vld [vmem:[#allocation13 + $0x220] sm:$0xff]
          %v5623 = vld [vmem:[#allocation13 + $0x228] sm:$0xff]
          %v5624 = vld [vmem:[#allocation13 + $0x230] sm:$0xff]
          %v5625 = vld [vmem:[#allocation13 + $0x238] sm:$0xff]
          %v5626 = vld [vmem:[#allocation13 + $0x240] sm:$0xff]
          %v5627 = vld [vmem:[#allocation13 + $0x248] sm:$0xff]
          %v5628 = vld [vmem:[#allocation13 + $0x250] sm:$0xff]
          %v5629 = vld [vmem:[#allocation13 + $0x258] sm:$0xff]
          %v5630 = vld [vmem:[#allocation13 + $0x260] sm:$0xff]
          %v5631 = vld [vmem:[#allocation13 + $0x268] sm:$0xff]
          %v5632 = vld [vmem:[#allocation13 + $0x270] sm:$0xff]
          %v5633 = vld [vmem:[#allocation13 + $0x278] sm:$0xff]
          %v5634 = vld [vmem:[#allocation13 + $0x280] sm:$0xff]
          %v5635 = vld [vmem:[#allocation13 + $0x288] sm:$0xff]
          %v5636 = vld [vmem:[#allocation13 + $0x290] sm:$0xff]
          %v5637 = vld [vmem:[#allocation13 + $0x298] sm:$0xff]
          %v5638 = vld [vmem:[#allocation13 + $0x2a0] sm:$0xff]
          %v5639 = vld [vmem:[#allocation13 + $0x2a8] sm:$0xff]
          %v5640 = vld [vmem:[#allocation13 + $0x2b0] sm:$0xff]
          %v5641 = vld [vmem:[#allocation13 + $0x2b8] sm:$0xff]
          %v5642 = vld [vmem:[#allocation13 + $0x2c0] sm:$0xff]
          %v5643 = vld [vmem:[#allocation13 + $0x2c8] sm:$0xff]
          %v5644 = vld [vmem:[#allocation13 + $0x2d0] sm:$0xff]
          %v5645 = vld [vmem:[#allocation13 + $0x2d8] sm:$0xff]
          %v5646 = vld [vmem:[#allocation13 + $0x2e0] sm:$0xff]
          %v5647 = vld [vmem:[#allocation13 + $0x2e8] sm:$0xff]
          %v5648 = vld [vmem:[#allocation13 + $0x2f0] sm:$0xff]
          %v5649 = vld [vmem:[#allocation13 + $0x2f8] sm:$0xff]
          %v5650 = vld [vmem:[#allocation13 + $0x300] sm:$0xff]
          %v5651 = vld [vmem:[#allocation13 + $0x308] sm:$0xff]
          %v5652 = vld [vmem:[#allocation13 + $0x310] sm:$0xff]
          %v5653 = vld [vmem:[#allocation13 + $0x318] sm:$0xff]
          %v5654 = vld [vmem:[#allocation13 + $0x320] sm:$0xff]
          %v5655 = vld [vmem:[#allocation13 + $0x328] sm:$0xff]
          %v5656 = vld [vmem:[#allocation13 + $0x330] sm:$0xff]
          %v5657 = vld [vmem:[#allocation13 + $0x338] sm:$0xff]
          %v5658 = vld [vmem:[#allocation13 + $0x340] sm:$0xff]
          %v5659 = vld [vmem:[#allocation13 + $0x348] sm:$0xff]
          %v5660 = vld [vmem:[#allocation13 + $0x350] sm:$0xff]
          %v5661 = vld [vmem:[#allocation13 + $0x358] sm:$0xff]
          %v5662 = vld [vmem:[#allocation13 + $0x360] sm:$0xff]
          %v5663 = vld [vmem:[#allocation13 + $0x368] sm:$0xff]
          %v5664 = vld [vmem:[#allocation13 + $0x370] sm:$0xff]
          %v5665 = vld [vmem:[#allocation13 + $0x378] sm:$0xff]
          %v5666 = vld [vmem:[#allocation13 + $0x380] sm:$0xff]
          %v5667 = vld [vmem:[#allocation13 + $0x388] sm:$0xff]
          %v5668 = vld [vmem:[#allocation13 + $0x390] sm:$0xff]
          %v5669 = vld [vmem:[#allocation13 + $0x398] sm:$0xff]
          %v5670 = vld [vmem:[#allocation13 + $0x3a0] sm:$0xff]
          %v5671 = vld [vmem:[#allocation13 + $0x3a8] sm:$0xff]
          %v5672 = vld [vmem:[#allocation13 + $0x3b0] sm:$0xff]
          %v5673 = vld [vmem:[#allocation13 + $0x3b8] sm:$0xff]
          %v5674 = vld [vmem:[#allocation13 + $0x3c0] sm:$0xff]
          %v5675 = vld [vmem:[#allocation13 + $0x3c8] sm:$0xff]
          %v5676 = vld [vmem:[#allocation13 + $0x3d0] sm:$0xff]
          %v5677 = vld [vmem:[#allocation13 + $0x3d8] sm:$0xff]
          %v5678 = vld [vmem:[#allocation13 + $0x3e0] sm:$0xff]
          %v5679 = vld [vmem:[#allocation13 + $0x3e8] sm:$0xff]
          %v5680 = vld [vmem:[#allocation13 + $0x3f0] sm:$0xff]
          %v5681 = vld [vmem:[#allocation13 + $0x3f8] sm:$0xff]
          %v5682 = vld [vmem:[#allocation15] sm:$0x1]
          %v5684 = vlaneseq
          %v5685 = vshrl.u32 %v5684, 7
          %v5686 = vsub.s32 0, %v5685
          %v5687 = vrot.slane %v5553, %v5686
          %v5688 = vlaneseq
          %v5689 = vshrl.u32 %v5688, 7
          %v5690 = vsub.s32 1, %v5689
          %v5691 = vrot.slane %v5553, %v5690
          %v5692 = vlaneseq
          %v5693 = vshrl.u32 %v5692, 7
          %v5694 = vsub.s32 2, %v5693
          %v5695 = vrot.slane %v5553, %v5694
          %v5696 = vlaneseq
          %v5697 = vshrl.u32 %v5696, 7
          %v5698 = vsub.s32 3, %v5697
          %v5699 = vrot.slane %v5553, %v5698
          %v5700 = vlaneseq
          %v5701 = vshrl.u32 %v5700, 7
          %v5702 = vsub.s32 4, %v5701
          %v5703 = vrot.slane %v5553, %v5702
          %v5704 = vlaneseq
          %v5705 = vshrl.u32 %v5704, 7
          %v5706 = vsub.s32 5, %v5705
          %v5707 = vrot.slane %v5553, %v5706
          %v5708 = vlaneseq
          %v5709 = vshrl.u32 %v5708, 7
          %v5710 = vsub.s32 6, %v5709
          %v5711 = vrot.slane %v5553, %v5710
          %v5712 = vlaneseq
          %v5713 = vshrl.u32 %v5712, 7
          %v5714 = vsub.s32 7, %v5713
          %v5715 = vrot.slane %v5553, %v5714
          %5724 = vmatprep.subr.mxu0 0.0
          %5725 = vmatpush1.msra.mxu0 %v5569
          %5726 = vmatprep.subr.mxu0 0.0
          %5727 = vmatpush1.msra.mxu0 %v5568
          %5728 = vmatprep.subr.mxu0 0.0
          %5729 = vmatpush1.msra.mxu0 %v5567
          %5730 = vmatprep.subr.mxu0 0.0
          %5731 = vmatpush1.msra.mxu0 %v5566
          %5732 = vmatprep.subr.mxu0 0.0
          %5733 = vmatpush1.msra.mxu0 %v5565
          %5734 = vmatprep.subr.mxu0 0.0
          %5735 = vmatpush1.msra.mxu0 %v5564
          %5736 = vmatprep.subr.mxu0 0.0
          %5737 = vmatpush1.msra.mxu0 %v5563
          %5738 = vmatprep.subr.mxu0 0.0
          %5739 = vmatpush1.msra.mxu0 %v5562
          %5740 = vmatprep.subr.mxu0 0.0
          %5741 = vmatpush1.msra.mxu0 %v5561
          %5742 = vmatprep.subr.mxu0 0.0
          %5743 = vmatpush1.msra.mxu0 %v5560
          %5744 = vmatprep.subr.mxu0 0.0
          %5745 = vmatpush1.msra.mxu0 %v5559
          %5746 = vmatprep.subr.mxu0 0.0
          %5747 = vmatpush1.msra.mxu0 %v5558
          %5748 = vmatprep.subr.mxu0 0.0
          %5749 = vmatpush1.msra.mxu0 %v5557
          %5750 = vmatprep.subr.mxu0 0.0
          %5751 = vmatpush1.msra.mxu0 %v5556
          %5752 = vmatprep.subr.mxu0 0.0
          %5753 = vmatpush1.msra.mxu0 %v5555
          %5754 = vmatprep.subr.mxu0 0.0
          %5755 = vmatpush1.msra.mxu0 %v5554
          %5756 = vmatprep.subr.mxu0 0.0
          %5757 = vmatpush2.msra.mxu0 %v5585
          %5758 = vmatprep.subr.mxu0 0.0
          %5759 = vmatpush2.msra.mxu0 %v5584
          %5760 = vmatprep.subr.mxu0 0.0
          %5761 = vmatpush2.msra.mxu0 %v5583
          %5762 = vmatprep.subr.mxu0 0.0
          %5763 = vmatpush2.msra.mxu0 %v5582
          %5764 = vmatprep.subr.mxu0 0.0
          %5765 = vmatpush2.msra.mxu0 %v5581
          %5766 = vmatprep.subr.mxu0 0.0
          %5767 = vmatpush2.msra.mxu0 %v5580
          %5768 = vmatprep.subr.mxu0 0.0
          %5769 = vmatpush2.msra.mxu0 %v5579
          %5770 = vmatprep.subr.mxu0 0.0
          %5771 = vmatpush2.msra.mxu0 %v5578
          %5772 = vmatprep.subr.mxu0 0.0
          %5773 = vmatpush2.msra.mxu0 %v5577
          %5774 = vmatprep.subr.mxu0 0.0
          %5775 = vmatpush2.msra.mxu0 %v5576
          %5776 = vmatprep.subr.mxu0 0.0
          %5777 = vmatpush2.msra.mxu0 %v5575
          %5778 = vmatprep.subr.mxu0 0.0
          %5779 = vmatpush2.msra.mxu0 %v5574
          %5780 = vmatprep.subr.mxu0 0.0
          %5781 = vmatpush2.msra.mxu0 %v5573
          %5782 = vmatprep.subr.mxu0 0.0
          %5783 = vmatpush2.msra.mxu0 %v5572
          %5784 = vmatprep.subr.mxu0 0.0
          %5785 = vmatpush2.msra.mxu0 %v5571
          %5786 = vmatprep.subr.mxu0 0.0
          %5787 = vmatpush2.msra.mxu0 %v5570
          %5788 = vmatprep.mubr.f32.mxu0 %v5691
          %5789 = vmatmul.mubr.f32.gmra.mxu0 %v5687
          %v5790 = vpop.f32.mrf.mxu0
          %v5791 = vadd.f32 %v5682, %v5790
          %v5792 = vpop.f32.mrf.mxu0
          %5793 = vdwg.mxu0
          %5794 = vmatprep.subr.mxu0 0.0
          %5795 = vmatpush1.msra.mxu0 %v5601
          %5796 = vmatprep.subr.mxu0 0.0
          %5797 = vmatpush1.msra.mxu0 %v5600
          %5798 = vmatprep.subr.mxu0 0.0
          %5799 = vmatpush1.msra.mxu0 %v5599
          %5800 = vmatprep.subr.mxu0 0.0
          %5801 = vmatpush1.msra.mxu0 %v5598
          %5802 = vmatprep.subr.mxu0 0.0
          %5803 = vmatpush1.msra.mxu0 %v5597
          %5804 = vmatprep.subr.mxu0 0.0
          %5805 = vmatpush1.msra.mxu0 %v5596
          %5806 = vmatprep.subr.mxu0 0.0
          %5807 = vmatpush1.msra.mxu0 %v5595
          %5808 = vmatprep.subr.mxu0 0.0
          %5809 = vmatpush1.msra.mxu0 %v5594
          %5810 = vmatprep.subr.mxu0 0.0
          %5811 = vmatpush1.msra.mxu0 %v5593
          %5812 = vmatprep.subr.mxu0 0.0
          %5813 = vmatpush1.msra.mxu0 %v5592
          %5814 = vmatprep.subr.mxu0 0.0
          %5815 = vmatpush1.msra.mxu0 %v5591
          %5816 = vmatprep.subr.mxu0 0.0
          %5817 = vmatpush1.msra.mxu0 %v5590
          %5818 = vmatprep.subr.mxu0 0.0
          %5819 = vmatpush1.msra.mxu0 %v5589
          %5820 = vmatprep.subr.mxu0 0.0
          %5821 = vmatpush1.msra.mxu0 %v5588
          %5822 = vmatprep.subr.mxu0 0.0
          %5823 = vmatpush1.msra.mxu0 %v5587
          %5824 = vmatprep.subr.mxu0 0.0
          %5825 = vmatpush1.msra.mxu0 %v5586
          %5826 = vmatprep.subr.mxu0 0.0
          %5827 = vmatpush2.msra.mxu0 %v5617
          %5828 = vmatprep.subr.mxu0 0.0
          %5829 = vmatpush2.msra.mxu0 %v5616
          %5830 = vmatprep.subr.mxu0 0.0
          %5831 = vmatpush2.msra.mxu0 %v5615
          %5832 = vmatprep.subr.mxu0 0.0
          %5833 = vmatpush2.msra.mxu0 %v5614
          %5834 = vmatprep.subr.mxu0 0.0
          %5835 = vmatpush2.msra.mxu0 %v5613
          %5836 = vmatprep.subr.mxu0 0.0
          %5837 = vmatpush2.msra.mxu0 %v5612
          %5838 = vmatprep.subr.mxu0 0.0
          %5839 = vmatpush2.msra.mxu0 %v5611
          %5840 = vmatprep.subr.mxu0 0.0
          %5841 = vmatpush2.msra.mxu0 %v5610
          %5842 = vmatprep.subr.mxu0 0.0
          %5843 = vmatpush2.msra.mxu0 %v5609
          %5844 = vmatprep.subr.mxu0 0.0
          %5845 = vmatpush2.msra.mxu0 %v5608
          %5846 = vmatprep.subr.mxu0 0.0
          %5847 = vmatpush2.msra.mxu0 %v5607
          %5848 = vmatprep.subr.mxu0 0.0
          %5849 = vmatpush2.msra.mxu0 %v5606
          %5850 = vmatprep.subr.mxu0 0.0
          %5851 = vmatpush2.msra.mxu0 %v5605
          %5852 = vmatprep.subr.mxu0 0.0
          %5853 = vmatpush2.msra.mxu0 %v5604
          %5854 = vmatprep.subr.mxu0 0.0
          %5855 = vmatpush2.msra.mxu0 %v5603
          %5856 = vmatprep.subr.mxu0 0.0
          %5857 = vmatpush2.msra.mxu0 %v5602
          %5858 = vmatprep.mubr.f32.mxu0 %v5699
          %5859 = vmatmul.mubr.f32.gmra.mxu0 %v5695
          %v5860 = vpop.f32.mrf.mxu0
          %v5861 = vadd.f32 %v5791, %v5860
          %v5862 = vpop.f32.mrf.mxu0
          %5863 = vdwg.mxu0
          %5864 = vmatprep.subr.mxu0 0.0
          %5865 = vmatpush1.msra.mxu0 %v5633
          %5866 = vmatprep.subr.mxu0 0.0
          %5867 = vmatpush1.msra.mxu0 %v5632
          %5868 = vmatprep.subr.mxu0 0.0
          %5869 = vmatpush1.msra.mxu0 %v5631
          %5870 = vmatprep.subr.mxu0 0.0
          %5871 = vmatpush1.msra.mxu0 %v5630
          %5872 = vmatprep.subr.mxu0 0.0
          %5873 = vmatpush1.msra.mxu0 %v5629
          %5874 = vmatprep.subr.mxu0 0.0
          %5875 = vmatpush1.msra.mxu0 %v5628
          %5876 = vmatprep.subr.mxu0 0.0
          %5877 = vmatpush1.msra.mxu0 %v5627
          %5878 = vmatprep.subr.mxu0 0.0
          %5879 = vmatpush1.msra.mxu0 %v5626
          %5880 = vmatprep.subr.mxu0 0.0
          %5881 = vmatpush1.msra.mxu0 %v5625
          %5882 = vmatprep.subr.mxu0 0.0
          %5883 = vmatpush1.msra.mxu0 %v5624
          %5884 = vmatprep.subr.mxu0 0.0
          %5885 = vmatpush1.msra.mxu0 %v5623
          %5886 = vmatprep.subr.mxu0 0.0
          %5887 = vmatpush1.msra.mxu0 %v5622
          %5888 = vmatprep.subr.mxu0 0.0
          %5889 = vmatpush1.msra.mxu0 %v5621
          %5890 = vmatprep.subr.mxu0 0.0
          %5891 = vmatpush1.msra.mxu0 %v5620
          %5892 = vmatprep.subr.mxu0 0.0
          %5893 = vmatpush1.msra.mxu0 %v5619
          %5894 = vmatprep.subr.mxu0 0.0
          %5895 = vmatpush1.msra.mxu0 %v5618
          %5896 = vmatprep.subr.mxu0 0.0
          %5897 = vmatpush2.msra.mxu0 %v5649
          %5898 = vmatprep.subr.mxu0 0.0
          %5899 = vmatpush2.msra.mxu0 %v5648
          %5900 = vmatprep.subr.mxu0 0.0
          %5901 = vmatpush2.msra.mxu0 %v5647
          %5902 = vmatprep.subr.mxu0 0.0
          %5903 = vmatpush2.msra.mxu0 %v5646
          %5904 = vmatprep.subr.mxu0 0.0
          %5905 = vmatpush2.msra.mxu0 %v5645
          %5906 = vmatprep.subr.mxu0 0.0
          %5907 = vmatpush2.msra.mxu0 %v5644
          %5908 = vmatprep.subr.mxu0 0.0
          %5909 = vmatpush2.msra.mxu0 %v5643
          %5910 = vmatprep.subr.mxu0 0.0
          %5911 = vmatpush2.msra.mxu0 %v5642
          %5912 = vmatprep.subr.mxu0 0.0
          %5913 = vmatpush2.msra.mxu0 %v5641
          %5914 = vmatprep.subr.mxu0 0.0
          %5915 = vmatpush2.msra.mxu0 %v5640
          %5916 = vmatprep.subr.mxu0 0.0
          %5917 = vmatpush2.msra.mxu0 %v5639
          %5918 = vmatprep.subr.mxu0 0.0
          %5919 = vmatpush2.msra.mxu0 %v5638
          %5920 = vmatprep.subr.mxu0 0.0
          %5921 = vmatpush2.msra.mxu0 %v5637
          %5922 = vmatprep.subr.mxu0 0.0
          %5923 = vmatpush2.msra.mxu0 %v5636
          %5924 = vmatprep.subr.mxu0 0.0
          %5925 = vmatpush2.msra.mxu0 %v5635
          %5926 = vmatprep.subr.mxu0 0.0
          %5927 = vmatpush2.msra.mxu0 %v5634
          %5928 = vmatprep.mubr.f32.mxu0 %v5707
          %5929 = vmatmul.mubr.f32.gmra.mxu0 %v5703
          %v5930 = vpop.f32.mrf.mxu0
          %v5931 = vadd.f32 %v5861, %v5930
          %v5932 = vpop.f32.mrf.mxu0
          %5933 = vdwg.mxu0
          %5934 = vmatprep.subr.mxu0 0.0
          %5935 = vmatpush1.msra.mxu0 %v5665
          %5936 = vmatprep.subr.mxu0 0.0
          %5937 = vmatpush1.msra.mxu0 %v5664
          %5938 = vmatprep.subr.mxu0 0.0
          %5939 = vmatpush1.msra.mxu0 %v5663
          %5940 = vmatprep.subr.mxu0 0.0
          %5941 = vmatpush1.msra.mxu0 %v5662
          %5942 = vmatprep.subr.mxu0 0.0
          %5943 = vmatpush1.msra.mxu0 %v5661
          %5944 = vmatprep.subr.mxu0 0.0
          %5945 = vmatpush1.msra.mxu0 %v5660
          %5946 = vmatprep.subr.mxu0 0.0
          %5947 = vmatpush1.msra.mxu0 %v5659
          %5948 = vmatprep.subr.mxu0 0.0
          %5949 = vmatpush1.msra.mxu0 %v5658
          %5950 = vmatprep.subr.mxu0 0.0
          %5951 = vmatpush1.msra.mxu0 %v5657
          %5952 = vmatprep.subr.mxu0 0.0
          %5953 = vmatpush1.msra.mxu0 %v5656
          %5954 = vmatprep.subr.mxu0 0.0
          %5955 = vmatpush1.msra.mxu0 %v5655
          %5956 = vmatprep.subr.mxu0 0.0
          %5957 = vmatpush1.msra.mxu0 %v5654
          %5958 = vmatprep.subr.mxu0 0.0
          %5959 = vmatpush1.msra.mxu0 %v5653
          %5960 = vmatprep.subr.mxu0 0.0
          %5961 = vmatpush1.msra.mxu0 %v5652
          %5962 = vmatprep.subr.mxu0 0.0
          %5963 = vmatpush1.msra.mxu0 %v5651
          %5964 = vmatprep.subr.mxu0 0.0
          %5965 = vmatpush1.msra.mxu0 %v5650
          %5966 = vmatprep.subr.mxu0 0.0
          %5967 = vmatpush2.msra.mxu0 %v5681
          %5968 = vmatprep.subr.mxu0 0.0
          %5969 = vmatpush2.msra.mxu0 %v5680
          %5970 = vmatprep.subr.mxu0 0.0
          %5971 = vmatpush2.msra.mxu0 %v5679
          %5972 = vmatprep.subr.mxu0 0.0
          %5973 = vmatpush2.msra.mxu0 %v5678
          %5974 = vmatprep.subr.mxu0 0.0
          %5975 = vmatpush2.msra.mxu0 %v5677
          %5976 = vmatprep.subr.mxu0 0.0
          %5977 = vmatpush2.msra.mxu0 %v5676
          %5978 = vmatprep.subr.mxu0 0.0
          %5979 = vmatpush2.msra.mxu0 %v5675
          %5980 = vmatprep.subr.mxu0 0.0
          %5981 = vmatpush2.msra.mxu0 %v5674
          %5982 = vmatprep.subr.mxu0 0.0
          %5983 = vmatpush2.msra.mxu0 %v5673
          %5984 = vmatprep.subr.mxu0 0.0
          %5985 = vmatpush2.msra.mxu0 %v5672
          %5986 = vmatprep.subr.mxu0 0.0
          %5987 = vmatpush2.msra.mxu0 %v5671
          %5988 = vmatprep.subr.mxu0 0.0
          %5989 = vmatpush2.msra.mxu0 %v5670
          %5990 = vmatprep.subr.mxu0 0.0
          %5991 = vmatpush2.msra.mxu0 %v5669
          %5992 = vmatprep.subr.mxu0 0.0
          %5993 = vmatpush2.msra.mxu0 %v5668
          %5994 = vmatprep.subr.mxu0 0.0
          %5995 = vmatpush2.msra.mxu0 %v5667
          %5996 = vmatprep.subr.mxu0 0.0
          %5997 = vmatpush2.msra.mxu0 %v5666
          %5998 = vmatprep.mubr.f32.mxu0 %v5715
          %5999 = vmatmul.mubr.f32.gmra.mxu0 %v5711
          %v6000 = vpop.f32.mrf.mxu0
          %v6001 = vadd.f32 %v5931, %v6000
          %v6002 = vpop.f32.mrf.mxu0
          %6003 = vdwg.mxu0
          %6004 = vst [vmem:[%s415] sm:$0x1] %v6001
        $region88: #{tpu_custom_call.1} parent=51 // pred_fallthru
          _
        %s6005 = sand.u32 %s223, 1
        %s6006 = scalar_lea.sflag [#allocation6], %s6005
        %s6007 = sand.u32 %s223, 1
        %s6008 = scalar_lea.vmem [#allocation16], %s6007
        // Predicated region
        $region89: #{tpu_custom_call.1} parent=51 // pred_check
          %p6009 = pneg %p233
        $region90: #{tpu_custom_call.1} parent=51 // pred_check_branch
          %6011 = sbr.rel (%p6009) target = $region92
        $region91: #{tpu_custom_call.1} parent=51 // pred_region
          %s6013 = ssub.s32 16, 16
          %6014 = vsyncadd %s6006, %s6013
          %s6015 = smul.addr %s32, 16
          %s6016 = scalar_lea.hbm %s8, %s6015
          %s6018 = sshll.u32 %s6008, 4
          %s6019 = int_to_ptr.vmem [resolvable:$true] %s6018
          %6021 = dma.vmem_to_hbm [thread:$0]  %s6019, 16, %s6016, %s6006
        $region92: #{tpu_custom_call.1} parent=51 // pred_fallthru
          _
      $region52: #{tpu_custom_call.1} parent=5 // pred_fallthru
        _
      %p6022 = scmp.le.s32.totalorder 2, %s23
      // Predicated region
      $region93: #{tpu_custom_call.1} parent=5 // pred_check
        %p6023 = pneg %p6022
      $region94: #{tpu_custom_call.1} parent=5 // pred_check_branch
        %6025 = sbr.rel (%p6023) target = $region96
      $region95: #{tpu_custom_call.1} parent=5 // pred_region
        %s6026 = ssub.s32 %s23, 2
        // Predicated region
        $region97: #{tpu_custom_call.1} parent=95 // pred_check
          %p6027 = pneg %p239
        $region98: #{tpu_custom_call.1} parent=95 // pred_check_branch
          %6029 = sbr.rel (%p6027) target = $region100
        $region99: #{tpu_custom_call.1} parent=95 // pred_region
          %s6030 = sand.u32 %s224, 1
          %s6031 = scalar_lea.sflag [#allocation6], %s6030
          %s6032 = sand.u32 %s224, 1
          %s6033 = scalar_lea.vmem [#allocation16], %s6032
          %6034 = dma.done %s6031, 16
        $region100: #{tpu_custom_call.1} parent=95 // pred_fallthru
          _
      $region96: #{tpu_custom_call.1} parent=5 // pred_fallthru
        _
    $region6: #{tpu_custom_call.1} parent=1 // loop_footer
      %s27 = sadd.s32 1, %s23
    $region7: #{tpu_custom_call.1} parent=1 // loop_footer_branch
      %22 = sbr.rel target = $region3
    $region8: #{tpu_custom_call.1} parent=1 // loop_exit
      _
    %6035 = vsyncpa [#allocation5], 1
    %s6036 = scalar_lea.sflag [#allocation5], 1
    %6037 = vsyncpa %s6036, 1
    %6038 = vsyncpa [#allocation8], 1
    %6039 = vsyncpa [#allocation11], 1
    %6040 = vsyncpa [#allocation14], 1
    %6041 = vsyncpa [#allocation6], 1
    %s6042 = scalar_lea.sflag [#allocation6], 1
    %6043 = vsyncpa %s6042, 1

</llo_original>
